<compile_context>
chip_gen: v5e
topology: v5e:2x2
jax: 0.10.0
libtpu: 0.0.40
codegen_flags: <defaults>
</compile_context>

<pallas_src>
import math
import functools
import numpy as np

import jax
import jax.numpy as jnp
from jax import lax
from jax.experimental import pallas as pl
from jax.experimental.pallas import tpu as pltpu

# ----------------------------- configuration --------------------------------
X_CHANNEL = 4          # in_channels of the denoised latent
Z_CHANNEL = 64         # context channel dim
HIDDEN = 32            # embed_dim / hidden_size
DEPTH = 2              # number of DiT blocks
NUM_HEADS = 16         # DiT & pooling heads
HEAD_DIM = HIDDEN // NUM_HEADS       # 2
MLP_RATIO = 4.0
MLP_HIDDEN = int(HIDDEN * MLP_RATIO) # 128
FREQ_DIM = 256         # timestep frequency embedding size
N_PATCHES_BEV = 64     # input_size_bev = 8
N_PATCHES_VIEW = 16    # input_size_view = 4
LEARN_SIGMA = False
OUT_CHANNELS = X_CHANNEL * 2 if LEARN_SIGMA else X_CHANNEL
NUM_TIMESTEPS = 1000   # train_diffusion (timestep_respacing='')
LN_EPS = 1e-6
SLAB_LANES = 128       # lane width of the packed weight slab

# ------------------------ sincos positional embedding -----------------------
def get_1d_sincos_pos_embed_from_grid(embed_dim, pos):
    assert embed_dim % 2 == 0
    omega = np.arange(embed_dim // 2, dtype=np.float64)
    omega /= embed_dim / 2.0
    omega = 1.0 / 10000 ** omega
    pos = pos.reshape(-1)
    out = np.einsum('m,d->md', pos, omega)
    return np.concatenate([np.sin(out), np.cos(out)], axis=1)

def get_2d_sincos_pos_embed_from_grid(embed_dim, grid):
    assert embed_dim % 2 == 0
    emb_h = get_1d_sincos_pos_embed_from_grid(embed_dim // 2, grid[0])
    emb_w = get_1d_sincos_pos_embed_from_grid(embed_dim // 2, grid[1])
    return np.concatenate([emb_h, emb_w], axis=1)

def get_2d_sincos_pos_embed(embed_dim, grid_size):
    grid_h = np.arange(grid_size, dtype=np.float32)
    grid_w = np.arange(grid_size, dtype=np.float32)
    grid = np.meshgrid(grid_w, grid_h)
    grid = np.stack(grid, axis=0).reshape([2, 1, grid_size, grid_size])
    return get_2d_sincos_pos_embed_from_grid(embed_dim, grid)

# --------------------------- diffusion schedule ------------------------------
def cosine_schedule(num_timesteps=NUM_TIMESTEPS, max_beta=0.999):
    def alpha_bar(t):
        return math.cos((t + 0.008) / 1.008 * math.pi / 2) ** 2
    betas = []
    for i in range(num_timesteps):
        t1 = i / num_timesteps
        t2 = (i + 1) / num_timesteps
        betas.append(min(1 - alpha_bar(t2) / alpha_bar(t1), max_beta))
    betas = np.array(betas, dtype=np.float64)
    alphas_cumprod = np.cumprod(1.0 - betas)
    return (np.sqrt(alphas_cumprod).astype(np.float32),
            np.sqrt(1.0 - alphas_cumprod).astype(np.float32))

SQRT_ACP, SQRT_1M_ACP = cosine_schedule()

# ------------------------------ kernel helpers -------------------------------
def _silu(x):
    return x * jax.nn.sigmoid(x)

def _gelu_tanh(x):
    c = math.sqrt(2.0 / math.pi)
    return 0.5 * x * (1.0 + jnp.tanh(c * (x + 0.044715 * x * x * x)))

def _layernorm(x, eps=LN_EPS):
    m = jnp.mean(x, axis=-1, keepdims=True)
    xc = x - m
    v = jnp.mean(xc * xc, axis=-1, keepdims=True)
    return xc * lax.rsqrt(v + eps)

_TRANS_B = (((1,), (1,)), ((), ()))   # dot_general dims for A @ B^T

def _mha_heads(q, kvT, scale):
    """Multi-head attention with head_dim = 2.

    q:   (Tq, D)   queries, original channel order (head h uses cols 2h, 2h+1)
    kvT: (2D, Tk)  rows [0, D)  = K channels (transposed),
                   rows [D, 2D) = V channels (transposed)
    returns (Tq, D) in original channel order.

    Scores stay on the VPU (outer products); only the softmax max stays on the
    XLU; the denominator and P@V go through one small MXU dot per head against
    [v_c0 ; v_c1 ; ones]^T; output assembly is one lane concatenate.
    """
    Tq, D = q.shape
    Tk = kvT.shape[1]
    ones_row = jnp.ones((1, Tk), jnp.float32)
    outs = []
    for h in range(NUM_HEADS):
        c0 = 2 * h
        s = (q[:, c0:c0 + 1] * kvT[c0:c0 + 1, :]
             + q[:, c0 + 1:c0 + 2] * kvT[c0 + 1:c0 + 2, :]) * scale      # (Tq, Tk)
        s = s - jnp.max(s, axis=-1, keepdims=True)                       # XLU (only kept reduction)
        p = jnp.exp(s)                                                   # EUP
        vt3 = jnp.concatenate([kvT[D + c0:D + c0 + 2, :], ones_row], axis=0)  # (3, Tk)
        r = lax.dot_general(p, vt3, _TRANS_B,
                            preferred_element_type=jnp.float32)          # (Tq, 3) on the MXU
        outs.append(r[:, 0:2] / r[:, 2:3])                               # exact softmax normalization
    return jnp.concatenate(outs, axis=1)                                 # (Tq, D)

# ----------------------- packed-weight slab layout ----------------------------
def _round8(n):
    return (n + 7) // 8 * 8

def make_layout(n_patches):
    """Static layout of the packed weight slab: name -> (row_offset, rows, cols)."""
    T = n_patches
    D = HIDDEN
    layout = {}
    off = 0
    def add(name, rows, cols):
        nonlocal off
        layout[name] = (off, rows, cols)
        off += _round8(rows)
    add('x_emb_w', X_CHANNEL, D)
    add('x_emb_b', 1, D)
    add('pos', T, D)
    add('z_proj_w', Z_CHANNEL, D)
    add('z_proj_b', 1, D)
    add('z_kvT_w', 2 * D, D)
    add('z_cls', T, D)
    add('z_lin_w', D, D)
    add('t_w1', FREQ_DIM, D)
    add('t_b1', 1, D)
    add('t_w2', D, D)
    add('t_b2', 1, D)
    for i in range(DEPTH):
        for j in range(6):
            add(f'b{i}_adaln_w{j}', D, D)
        add(f'b{i}_adaln_b', 6, D)          # row j = bias of adaLN chunk j
        add(f'b{i}_q_w', D, D)
        add(f'b{i}_q_b', 1, D)
        add(f'b{i}_kvT_w', 2 * D, D)
        add(f'b{i}_kvT_b', 2 * D, 1)
        add(f'b{i}_proj_w', D, D)
        add(f'b{i}_proj_b', 1, D)
        add(f'b{i}_fc1_w', D, MLP_HIDDEN)
        add(f'b{i}_fc1_b', 1, MLP_HIDDEN)
        add(f'b{i}_fc2_w', MLP_HIDDEN, D)
        add(f'b{i}_fc2_b', 1, D)
    add('f_adaln_w0', D, D)                 # shift weights
    add('f_adaln_w1', D, D)                 # scale weights
    add('f_adaln_b', 2, D)                  # row 0 = shift bias, row 1 = scale bias
    add('f_lin_wT', OUT_CHANNELS, D)        # final linear, transposed
    add('f_lin_b', OUT_CHANNELS, 1)
    return layout, off

# --------------------------- fused DiT forward kernel -------------------------
def _dit_fused_kernel(x_ref, tfreq_ref, zctx_ref, w_ref, out_ref, *, layout, n_blocks):
    D = HIDDEN
    scale = HEAD_DIM ** -0.5

    def W(name):
        off, rows, cols = layout[name]
        return w_ref[off:off + rows, 0:cols]            # static 8-row-aligned view

    # ---- timestep MLP: Linear(256->D) -> SiLU -> Linear(D->D) ----
    tfq = tfreq_ref[0]                                                    # (1, 256)
    t_emb = _silu(jnp.dot(tfq, W('t_w1'),
                          preferred_element_type=jnp.float32) + W('t_b1'))
    t_emb = jnp.dot(t_emb, W('t_w2'),
                    preferred_element_type=jnp.float32) + W('t_b2')       # (1, D)

    # ---- z attention pooler ----
    # NOTE: the PyTorch reference flattens batch and tokens
    # (proj(x).flatten(0,1).unsqueeze(0)), so every pooled query attends over
    # ALL samples' context tokens; this is intentionally preserved.
    zp = jnp.dot(_silu(zctx_ref[...]), W('z_proj_w'),
                 preferred_element_type=jnp.float32) + W('z_proj_b')      # (Nk, D)
    kvT_z = lax.dot_general(W('z_kvT_w'), zp, _TRANS_B,
                            preferred_element_type=jnp.float32)           # (2D, Nk)
    x_cls = _mha_heads(W('z_cls'), kvT_z, scale)                          # (T, D)
    zq = jnp.dot(x_cls, W('z_lin_w'), preferred_element_type=jnp.float32)

    c_act = _silu(t_emb + zq)           # (T, D); shared SiLU input of every adaLN layer

    # ---- patch embedding (1x1 conv == per-token linear) + positional embedding ----
    x_tok = x_ref[0]                                                      # (T, C)
    h = (jnp.dot(x_tok, W('x_emb_w'), preferred_element_type=jnp.float32)
         + W('x_emb_b') + W('pos'))                                       # (T, D)

    # ---- DiT blocks (Python-unrolled) ----
    for i in range(n_blocks):
        g = lambda nm, i=i: W(f'b{i}_{nm}')
        ab = g('adaln_b')                                                 # (6, D)

        def mod_chunk(j, i=i, ab=ab):
            return (jnp.dot(c_act, W(f'b{i}_adaln_w{j}'),
                            preferred_element_type=jnp.float32)
                    + ab[j:j + 1, :])                                     # (T, D), lane-aligned

        sh_msa, sc_msa, gt_msa = mod_chunk(0), mod_chunk(1), mod_chunk(2)
        sh_mlp, sc_mlp, gt_mlp = mod_chunk(3), mod_chunk(4), mod_chunk(5)

        # attention branch
        hn = _layernorm(h) * (1.0 + sc_msa) + sh_msa
        q = jnp.dot(hn, g('q_w'), preferred_element_type=jnp.float32) + g('q_b')
        kvT = lax.dot_general(g('kvT_w'), hn, _TRANS_B,
                              preferred_element_type=jnp.float32) + g('kvT_b')   # (2D, T)
        attn = _mha_heads(q, kvT, scale)
        attn = jnp.dot(attn, g('proj_w'),
                       preferred_element_type=jnp.float32) + g('proj_b')
        h = h + gt_msa * attn

        # MLP branch
        hn2 = _layernorm(h) * (1.0 + sc_mlp) + sh_mlp
        m = _gelu_tanh(jnp.dot(hn2, g('fc1_w'),
                               preferred_element_type=jnp.float32) + g('fc1_b'))
        m = jnp.dot(m, g('fc2_w'), preferred_element_type=jnp.float32) + g('fc2_b')
        h = h + gt_mlp * m

    # ---- final layer (lane-aligned shift/scale; output emitted transposed) ----
    fb = W('f_adaln_b')                                                   # (2, D)
    shift = (jnp.dot(c_act, W('f_adaln_w0'),
                     preferred_element_type=jnp.float32) + fb[0:1, :])
    scl = (jnp.dot(c_act, W('f_adaln_w1'),
                   preferred_element_type=jnp.float32) + fb[1:2, :])
    hf = _layernorm(h) * (1.0 + scl) + shift
    outT = lax.dot_general(W('f_lin_wT'), hf, _TRANS_B,
                           preferred_element_type=jnp.float32) + W('f_lin_b')   # (out_c, T)
    out_ref[...] = outT[None]

# ----------------------------- parameter init --------------------------------
class _KeyGen:
    def __init__(self, key):
        self.key = key
        self.i = 0
    def __call__(self):
        self.i += 1
        return jax.random.fold_in(self.key, self.i)

def init_params(key):
    kg = _KeyGen(key)
    def Wm(shape, std=0.02):
        return jax.random.normal(kg(), shape, dtype=jnp.float32) * std
    def Z(shape):
        return jnp.zeros(shape, jnp.float32)
    p = {}
    H = HIDDEN
    for pfx, npatch in (('bev', N_PATCHES_BEV), ('view', N_PATCHES_VIEW)):
        p[f'x_embedder_{pfx}_w'] = Wm((X_CHANNEL, H))
        p[f'x_embedder_{pfx}_b'] = Z((H,))
        gs = int(math.sqrt(npatch))
        p[f'pos_embed_{pfx}'] = jnp.asarray(
            get_2d_sincos_pos_embed(H, gs), jnp.float32)[None]           # (1, T, H)
        p[f'z_{pfx}_proj_w'] = Wm((Z_CHANNEL, H))
        p[f'z_{pfx}_proj_b'] = Z((H,))
        p[f'z_{pfx}_k_w'] = Wm((H, H))
        p[f'z_{pfx}_v_w'] = Wm((H, H))
        p[f'z_{pfx}_cls_token'] = Wm((1, npatch, H))
        p[f'z_{pfx}_linear_w'] = Wm((H, H))
    p['t_w1'] = Wm((FREQ_DIM, H)); p['t_b1'] = Z((H,))
    p['t_w2'] = Wm((H, H));        p['t_b2'] = Z((H,))
    blocks = []
    for _ in range(DEPTH):
        blocks.append(dict(
            qkv_w=Wm((H, 3 * H)), qkv_b=Z((3 * H,)),
            proj_w=Wm((H, H)),    proj_b=Z((H,)),
            fc1_w=Wm((H, MLP_HIDDEN)), fc1_b=Z((MLP_HIDDEN,)),
            fc2_w=Wm((MLP_HIDDEN, H)), fc2_b=Z((H,)),
            adaln_w=Wm((H, 6 * H)),    adaln_b=Z((6 * H,)),
        ))
    p['blocks'] = blocks
    p['final_linear_w'] = Wm((H, 1 * 1 * OUT_CHANNELS))
    p['final_linear_b'] = Z((1 * 1 * OUT_CHANNELS,))
    p['final_adaln_w'] = Wm((H, 2 * H))
    p['final_adaln_b'] = Z((2 * H,))
    return p

# ----------------------- pack branch weights into one slab --------------------
def pack_branch(params, bev):
    """Pack all per-branch weights into one (rows, 128) f32 slab (host-side, once)."""
    pfx = 'bev' if bev else 'view'
    T = N_PATCHES_BEV if bev else N_PATCHES_VIEW
    layout, total_rows = make_layout(T)
    D = HIDDEN
    slab = np.zeros((total_rows, SLAB_LANES), np.float32)

    def put(name, arr):
        arr = np.asarray(arr, np.float32)
        off, rows, cols = layout[name]
        assert arr.shape == (rows, cols), (name, arr.shape, (rows, cols))
        slab[off:off + rows, :cols] = arr

    p = params
    put('x_emb_w', p[f'x_embedder_{pfx}_w'])
    put('x_emb_b', np.asarray(p[f'x_embedder_{pfx}_b'])[None, :])
    put('pos', np.asarray(p[f'pos_embed_{pfx}'])[0])
    put('z_proj_w', p[f'z_{pfx}_proj_w'])
    put('z_proj_b', np.asarray(p[f'z_{pfx}_proj_b'])[None, :])
    put('z_kvT_w', np.concatenate([np.asarray(p[f'z_{pfx}_k_w']).T,
                                   np.asarray(p[f'z_{pfx}_v_w']).T], axis=0))
    put('z_cls', np.asarray(p[f'z_{pfx}_cls_token'])[0])
    put('z_lin_w', p[f'z_{pfx}_linear_w'])
    put('t_w1', p['t_w1']); put('t_b1', np.asarray(p['t_b1'])[None, :])
    put('t_w2', p['t_w2']); put('t_b2', np.asarray(p['t_b2'])[None, :])
    for i, bp in enumerate(p['blocks']):
        aw = np.asarray(bp['adaln_w'])
        for j in range(6):
            put(f'b{i}_adaln_w{j}', aw[:, j * D:(j + 1) * D])
        put(f'b{i}_adaln_b', np.asarray(bp['adaln_b']).reshape(6, D))
        qkv_w = np.asarray(bp['qkv_w']); qkv_b = np.asarray(bp['qkv_b'])
        put(f'b{i}_q_w', qkv_w[:, 0:D])
        put(f'b{i}_q_b', qkv_b[0:D][None, :])
        put(f'b{i}_kvT_w', qkv_w[:, D:3 * D].T)
        put(f'b{i}_kvT_b', qkv_b[D:3 * D][:, None])
        put(f'b{i}_proj_w', bp['proj_w'])
        put(f'b{i}_proj_b', np.asarray(bp['proj_b'])[None, :])
        put(f'b{i}_fc1_w', bp['fc1_w'])
        put(f'b{i}_fc1_b', np.asarray(bp['fc1_b'])[None, :])
        put(f'b{i}_fc2_w', bp['fc2_w'])
        put(f'b{i}_fc2_b', np.asarray(bp['fc2_b'])[None, :])
    faw = np.asarray(p['final_adaln_w'])
    put('f_adaln_w0', faw[:, 0:D])
    put('f_adaln_w1', faw[:, D:2 * D])
    put('f_adaln_b', np.asarray(p['final_adaln_b']).reshape(2, D))
    put('f_lin_wT', np.asarray(p['final_linear_w']).T)
    put('f_lin_b', np.asarray(p['final_linear_b'])[:, None])
    return jnp.asarray(slab)

# ------------------------------ model forward --------------------------------
def timestep_embedding(t, dim, max_period=10000):
    half = dim // 2
    freqs = jnp.exp(-math.log(max_period)
                    * jnp.arange(half, dtype=jnp.float32) / half)
    args = t[:, None].astype(jnp.float32) * freqs[None]
    return jnp.concatenate([jnp.cos(args), jnp.sin(args)], axis=-1)

def dit_forward(slab, x, t, context, *, bev):
    """x: (N, C, H, W), t: (N,), context: (N, Cz, Hz, Wz) -> (N, out_c, H, W)."""
    B, C = x.shape[0], x.shape[1]
    T = x.shape[2] * x.shape[3]
    layout, _ = make_layout(T)

    xt = x.reshape(B, C, T).transpose(0, 2, 1)                            # (B, T, C)
    zc = context.reshape(B, context.shape[1], -1).transpose(0, 2, 1)      # (B, HW, Cz)
    zc = zc.reshape(B * zc.shape[1], Z_CHANNEL)                           # (B*HW, Cz)
    t_freq = timestep_embedding(t, FREQ_DIM)[:, None, :]                  # (B, 1, 256)
    nk = zc.shape[0]

    # advisory cost estimate (keeps XLA from serializing the ops around the call)
    flops = int(2 * B * (
        T * X_CHANNEL * HIDDEN
        + FREQ_DIM * HIDDEN + HIDDEN * HIDDEN
        + nk * Z_CHANNEL * HIDDEN + 2 * nk * HIDDEN * HIDDEN
        + T * HIDDEN * (2 * nk + HIDDEN)
        + DEPTH * T * HIDDEN * (10 * HIDDEN + 2 * MLP_HIDDEN + 2 * T)
        + T * HIDDEN * (2 * HIDDEN + OUT_CHANNELS)))
    transcendentals = int(B * (NUM_HEADS * T * (nk + DEPTH * T)
                               + DEPTH * T * MLP_HIDDEN
                               + nk * Z_CHANNEL + 4 * T * HIDDEN))
    bytes_accessed = int(4 * (slab.size + xt.size + zc.size + t_freq.size
                              + B * OUT_CHANNELS * T))

    out = pl.pallas_call(
        functools.partial(_dit_fused_kernel, layout=layout, n_blocks=DEPTH),
        grid=(B,),
        out_shape=jax.ShapeDtypeStruct((B, OUT_CHANNELS, T), jnp.float32),
        in_specs=[
            pl.BlockSpec((1, T, C), lambda b: (b, 0, 0)),
            pl.BlockSpec((1, 1, FREQ_DIM), lambda b: (b, 0, 0)),
            pl.BlockSpec(zc.shape, lambda b: (0, 0)),
            pl.BlockSpec(slab.shape, lambda b: (0, 0)),
        ],
        out_specs=pl.BlockSpec((1, OUT_CHANNELS, T), lambda b: (b, 0, 0)),
        compiler_params=pltpu.CompilerParams(
            dimension_semantics=("parallel",)),
        cost_estimate=pl.CostEstimate(flops=flops,
                                      transcendentals=transcendentals,
                                      bytes_accessed=bytes_accessed),
    )(xt, t_freq, zc, slab)

    # unpatchify (patch_size = 1): kernel already emits (B, out_c, T) -> pure reshape
    hw = int(math.isqrt(T))
    return out.reshape(B, OUT_CHANNELS, hw, hw)

def ross3d_denoiser_forward(slab, z, target, key, *, bev):
    """Ross3DDenoiserMulti.forward: cosine-schedule q_sample + epsilon-MSE loss."""
    # TODO(synk): full GaussianDiffusion (create_diffusion) is reduced to the
    #             learn_sigma=False epsilon-prediction path (cosine q_sample +
    #             mean_flat MSE); vlb/learn_sigma and timestep respacing omitted.
    B = target.shape[0]
    kt, kn = jax.random.split(key)
    t = jax.random.randint(kt, (B,), 0, NUM_TIMESTEPS)
    noise = jax.random.normal(kn, target.shape, dtype=jnp.float32)
    c1 = jnp.asarray(SQRT_ACP)[t][:, None, None, None]
    c2 = jnp.asarray(SQRT_1M_ACP)[t][:, None, None, None]
    x_t = c1 * target + c2 * noise
    model_out = dit_forward(slab, x_t, t, z, bev=bev)
    diff = (noise - model_out).reshape(B, -1)
    return jnp.mean(diff * diff, axis=1)                                  # (B,)

# ---------------------------------- main -------------------------------------
if __name__ == "__main__":
    root = jax.random.PRNGKey(0)
    kp, kz, kx, kf, kzb, kxb, kfb = jax.random.split(root, 7)
    params = init_params(kp)

    # pack each branch's weights into one contiguous slab (once, host-side)
    slab_view = pack_branch(params, bev=False)
    slab_bev = pack_branch(params, bev=True)

    # view branch: target 4x4 -> 16 patches; context 4x4 -> 32 pooled kv tokens
    z = jax.random.normal(kz, (2, Z_CHANNEL, 4, 4), dtype=jnp.float32)
    target = jax.random.normal(kx, (2, X_CHANNEL, 4, 4), dtype=jnp.float32)
    fwd_view = jax.jit(functools.partial(ross3d_denoiser_forward, bev=False))
    loss_view = jax.block_until_ready(fwd_view(slab_view, z, target, kf))

    # bev branch: target 8x8 -> 64 patches
    z_b = jax.random.normal(kzb, (2, Z_CHANNEL, 4, 4), dtype=jnp.float32)
    target_b = jax.random.normal(kxb, (2, X_CHANNEL, 8, 8), dtype=jnp.float32)
    fwd_bev = jax.jit(functools.partial(ross3d_denoiser_forward, bev=True))
    loss_bev = jax.block_until_ready(fwd_bev(slab_bev, z_b, target_b, kfb))

    assert loss_view.shape == (2,) and loss_bev.shape == (2,)
    assert bool(jnp.all(jnp.isfinite(loss_view))) and bool(jnp.all(jnp.isfinite(loss_bev)))
    print("KERNEL_OK")
</pallas_src>

<mosaic_0001>
module attributes {stable_mosaic.version = 11 : i64} {
  func.func @_dit_fused_kernel(%arg0: i32, %arg1: memref<1x16x4xf32, #tpu.memory_space<vmem>>, %arg2: memref<1x1x256xf32, #tpu.memory_space<vmem>>, %arg3: memref<32x64xf32, #tpu.memory_space<vmem>>, %arg4: memref<1776x128xf32, #tpu.memory_space<vmem>>, %arg5: memref<1x4x16xf32, #tpu.memory_space<vmem>>) attributes {dimension_semantics = [#tpu.dimension_semantics<parallel>], iteration_bounds = array<i64: 2>, scalar_prefetch = 0 : i64, scratch_operands = 0 : i64, tpu.core_type = #tpu.core_type<tc>, window_params = [{transform_indices = @transform_0, window_bounds = array<i64: 1, 16, 4>}, {transform_indices = @transform_1, window_bounds = array<i64: 1, 1, 256>}, {pipeline_mode = #tpu.pipeline_mode<synchronous>, transform_indices = @transform_2, window_bounds = array<i64: 32, 64>}, {pipeline_mode = #tpu.pipeline_mode<synchronous>, transform_indices = @transform_3, window_bounds = array<i64: 1776, 128>}, {transform_indices = @transform_4, window_bounds = array<i64: 1, 4, 16>}]} {
    %c0 = arith.constant 0 : index
    %c0_0 = arith.constant 0 : index
    %c0_1 = arith.constant 0 : index
    %0 = vector.load %arg2[%c0, %c0_0, %c0_1] : memref<1x1x256xf32, #tpu.memory_space<vmem>>, vector<1x1x256xf32>
    %1 = vector.shape_cast %0 : vector<1x1x256xf32> to vector<1x256xf32>
    %c216 = arith.constant 216 : index
    %c0_2 = arith.constant 0 : index
    %2 = vector.load %arg4[%c216, %c0_2] : memref<1776x128xf32, #tpu.memory_space<vmem>>, vector<256x32xf32>
    %cst = arith.constant dense<0.000000e+00> : vector<1x32xf32>
    %3 = tpu.matmul %1, %2, %cst {dimension_numbers = #tpu.dot_dimension_numbers<[1], [0], [0], [1], [0, 0, 1, 1], [], []>} : vector<1x256xf32>, vector<256x32xf32>, vector<1x32xf32> -> vector<1x32xf32>
    %c472 = arith.constant 472 : index
    %c0_3 = arith.constant 0 : index
    %4 = vector.load %arg4[%c472, %c0_3] : memref<1776x128xf32, #tpu.memory_space<vmem>>, vector<1x32xf32>
    %5 = arith.addf %3, %4 : vector<1x32xf32>
    %6 = arith.negf %5 : vector<1x32xf32>
    %7 = math.exp %6 : vector<1x32xf32>
    %cst_4 = arith.constant 1.000000e+00 : f32
    %8 = vector.broadcast %cst_4 : f32 to vector<1x32xf32>
    %9 = arith.addf %8, %7 : vector<1x32xf32>
    %10 = arith.divf %8, %9 : vector<1x32xf32>
    %11 = arith.mulf %5, %10 : vector<1x32xf32>
    %c480 = arith.constant 480 : index
    %c0_5 = arith.constant 0 : index
    %12 = vector.load %arg4[%c480, %c0_5] : memref<1776x128xf32, #tpu.memory_space<vmem>>, vector<32x32xf32>
    %cst_6 = arith.constant dense<0.000000e+00> : vector<1x32xf32>
    %13 = tpu.matmul %11, %12, %cst_6 {dimension_numbers = #tpu.dot_dimension_numbers<[1], [0], [0], [1], [0, 0, 1, 1], [], []>} : vector<1x32xf32>, vector<32x32xf32>, vector<1x32xf32> -> vector<1x32xf32>
    %c512 = arith.constant 512 : index
    %c0_7 = arith.constant 0 : index
    %14 = vector.load %arg4[%c512, %c0_7] : memref<1776x128xf32, #tpu.memory_space<vmem>>, vector<1x32xf32>
    %15 = arith.addf %13, %14 : vector<1x32xf32>
    %c0_8 = arith.constant 0 : index
    %c0_9 = arith.constant 0 : index
    %16 = vector.load %arg3[%c0_8, %c0_9] : memref<32x64xf32, #tpu.memory_space<vmem>>, vector<32x64xf32>
    %17 = arith.negf %16 : vector<32x64xf32>
    %18 = math.exp %17 : vector<32x64xf32>
    %cst_10 = arith.constant 1.000000e+00 : f32
    %19 = vector.broadcast %cst_10 : f32 to vector<32x64xf32>
    %20 = arith.addf %19, %18 : vector<32x64xf32>
    %21 = arith.divf %19, %20 : vector<32x64xf32>
    %22 = arith.mulf %16, %21 : vector<32x64xf32>
    %c32 = arith.constant 32 : index
    %c0_11 = arith.constant 0 : index
    %23 = vector.load %arg4[%c32, %c0_11] : memref<1776x128xf32, #tpu.memory_space<vmem>>, vector<64x32xf32>
    %cst_12 = arith.constant dense<0.000000e+00> : vector<32x32xf32>
    %24 = tpu.matmul %22, %23, %cst_12 {dimension_numbers = #tpu.dot_dimension_numbers<[1], [0], [0], [1], [0, 0, 1, 1], [], []>} : vector<32x64xf32>, vector<64x32xf32>, vector<32x32xf32> -> vector<32x32xf32>
    %c96 = arith.constant 96 : index
    %c0_13 = arith.constant 0 : index
    %25 = vector.load %arg4[%c96, %c0_13] : memref<1776x128xf32, #tpu.memory_space<vmem>>, vector<1x32xf32>
    %26 = vector.broadcast %25 : vector<1x32xf32> to vector<32x32xf32>
    %27 = arith.addf %24, %26 : vector<32x32xf32>
    %c104 = arith.constant 104 : index
    %c0_14 = arith.constant 0 : index
    %28 = vector.load %arg4[%c104, %c0_14] : memref<1776x128xf32, #tpu.memory_space<vmem>>, vector<64x32xf32>
    %cst_15 = arith.constant dense<0.000000e+00> : vector<64x32xf32>
    %29 = tpu.matmul %28, %27, %cst_15 {dimension_numbers = #tpu.dot_dimension_numbers<[1], [1], [0], [0], [0, 0, 1, 0], [], []>} : vector<64x32xf32>, vector<32x32xf32>, vector<64x32xf32> -> vector<64x32xf32>
    %c168 = arith.constant 168 : index
    %c0_16 = arith.constant 0 : index
    %30 = vector.load %arg4[%c168, %c0_16] : memref<1776x128xf32, #tpu.memory_space<vmem>>, vector<16x32xf32>
    %cst_17 = arith.constant 1.000000e+00 : f32
    %31 = vector.broadcast %cst_17 : f32 to vector<1x32xf32>
    %32 = vector.extract_strided_slice %30 {offsets = [0, 0], sizes = [16, 1], strides = [1, 1]} : vector<16x32xf32> to vector<16x1xf32>
    %33 = vector.extract_strided_slice %29 {offsets = [0, 0], sizes = [1, 32], strides = [1, 1]} : vector<64x32xf32> to vector<1x32xf32>
    %34 = vector.broadcast %32 : vector<16x1xf32> to vector<16x32xf32>
    %35 = vector.broadcast %33 : vector<1x32xf32> to vector<16x32xf32>
    %36 = arith.mulf %34, %35 : vector<16x32xf32>
    %37 = vector.extract_strided_slice %30 {offsets = [0, 1], sizes = [16, 1], strides = [1, 1]} : vector<16x32xf32> to vector<16x1xf32>
    %38 = vector.extract_strided_slice %29 {offsets = [1, 0], sizes = [1, 32], strides = [1, 1]} : vector<64x32xf32> to vector<1x32xf32>
    %39 = vector.broadcast %37 : vector<16x1xf32> to vector<16x32xf32>
    %40 = vector.broadcast %38 : vector<1x32xf32> to vector<16x32xf32>
    %41 = arith.mulf %39, %40 : vector<16x32xf32>
    %42 = arith.addf %36, %41 : vector<16x32xf32>
    %cst_18 = arith.constant 0.707106769 : f32
    %43 = vector.broadcast %cst_18 : f32 to vector<16x32xf32>
    %44 = arith.mulf %42, %43 : vector<16x32xf32>
    %cst_19 = arith.constant dense<0xFF800000> : vector<16xf32>
    %45 = vector.multi_reduction <maximumf>, %44, %cst_19 [1] : vector<16x32xf32> to vector<16xf32>
    %46 = vector.shape_cast %45 : vector<16xf32> to vector<16x1xf32>
    %47 = vector.broadcast %46 : vector<16x1xf32> to vector<16x32xf32>
    %48 = arith.subf %44, %47 : vector<16x32xf32>
    %49 = math.exp %48 : vector<16x32xf32>
    %50 = vector.extract_strided_slice %29 {offsets = [32, 0], sizes = [2, 32], strides = [1, 1]} : vector<64x32xf32> to vector<2x32xf32>
    %51 = tpu.concatenate %50, %31 in 0 : vector<2x32xf32>, vector<1x32xf32> -> vector<3x32xf32>
    %cst_20 = arith.constant dense<0.000000e+00> : vector<16x3xf32>
    %52 = tpu.matmul %49, %51, %cst_20 {dimension_numbers = #tpu.dot_dimension_numbers<[1], [1], [0], [0], [0, 0, 1, 0], [], []>} : vector<16x32xf32>, vector<3x32xf32>, vector<16x3xf32> -> vector<16x3xf32>
    %53 = vector.extract_strided_slice %52 {offsets = [0, 0], sizes = [16, 2], strides = [1, 1]} : vector<16x3xf32> to vector<16x2xf32>
    %54 = vector.extract_strided_slice %52 {offsets = [0, 2], sizes = [16, 1], strides = [1, 1]} : vector<16x3xf32> to vector<16x1xf32>
    %55 = vector.broadcast %54 : vector<16x1xf32> to vector<16x2xf32>
    %56 = arith.divf %53, %55 : vector<16x2xf32>
    %57 = vector.extract_strided_slice %30 {offsets = [0, 2], sizes = [16, 1], strides = [1, 1]} : vector<16x32xf32> to vector<16x1xf32>
    %58 = vector.extract_strided_slice %29 {offsets = [2, 0], sizes = [1, 32], strides = [1, 1]} : vector<64x32xf32> to vector<1x32xf32>
    %59 = vector.broadcast %57 : vector<16x1xf32> to vector<16x32xf32>
    %60 = vector.broadcast %58 : vector<1x32xf32> to vector<16x32xf32>
    %61 = arith.mulf %59, %60 : vector<16x32xf32>
    %62 = vector.extract_strided_slice %30 {offsets = [0, 3], sizes = [16, 1], strides = [1, 1]} : vector<16x32xf32> to vector<16x1xf32>
    %63 = vector.extract_strided_slice %29 {offsets = [3, 0], sizes = [1, 32], strides = [1, 1]} : vector<64x32xf32> to vector<1x32xf32>
    %64 = vector.broadcast %62 : vector<16x1xf32> to vector<16x32xf32>
    %65 = vector.broadcast %63 : vector<1x32xf32> to vector<16x32xf32>
    %66 = arith.mulf %64, %65 : vector<16x32xf32>
    %67 = arith.addf %61, %66 : vector<16x32xf32>
    %cst_21 = arith.constant 0.707106769 : f32
    %68 = vector.broadcast %cst_21 : f32 to vector<16x32xf32>
    %69 = arith.mulf %67, %68 : vector<16x32xf32>
    %cst_22 = arith.constant dense<0xFF800000> : vector<16xf32>
    %70 = vector.multi_reduction <maximumf>, %69, %cst_22 [1] : vector<16x32xf32> to vector<16xf32>
    %71 = vector.shape_cast %70 : vector<16xf32> to vector<16x1xf32>
    %72 = vector.broadcast %71 : vector<16x1xf32> to vector<16x32xf32>
    %73 = arith.subf %69, %72 : vector<16x32xf32>
    %74 = math.exp %73 : vector<16x32xf32>
    %75 = vector.extract_strided_slice %29 {offsets = [34, 0], sizes = [2, 32], strides = [1, 1]} : vector<64x32xf32> to vector<2x32xf32>
    %76 = tpu.concatenate %75, %31 in 0 : vector<2x32xf32>, vector<1x32xf32> -> vector<3x32xf32>
    %cst_23 = arith.constant dense<0.000000e+00> : vector<16x3xf32>
    %77 = tpu.matmul %74, %76, %cst_23 {dimension_numbers = #tpu.dot_dimension_numbers<[1], [1], [0], [0], [0, 0, 1, 0], [], []>} : vector<16x32xf32>, vector<3x32xf32>, vector<16x3xf32> -> vector<16x3xf32>
    %78 = vector.extract_strided_slice %77 {offsets = [0, 0], sizes = [16, 2], strides = [1, 1]} : vector<16x3xf32> to vector<16x2xf32>
    %79 = vector.extract_strided_slice %77 {offsets = [0, 2], sizes = [16, 1], strides = [1, 1]} : vector<16x3xf32> to vector<16x1xf32>
    %80 = vector.broadcast %79 : vector<16x1xf32> to vector<16x2xf32>
    %81 = arith.divf %78, %80 : vector<16x2xf32>
    %82 = vector.extract_strided_slice %30 {offsets = [0, 4], sizes = [16, 1], strides = [1, 1]} : vector<16x32xf32> to vector<16x1xf32>
    %83 = vector.extract_strided_slice %29 {offsets = [4, 0], sizes = [1, 32], strides = [1, 1]} : vector<64x32xf32> to vector<1x32xf32>
    %84 = vector.broadcast %82 : vector<16x1xf32> to vector<16x32xf32>
    %85 = vector.broadcast %83 : vector<1x32xf32> to vector<16x32xf32>
    %86 = arith.mulf %84, %85 : vector<16x32xf32>
    %87 = vector.extract_strided_slice %30 {offsets = [0, 5], sizes = [16, 1], strides = [1, 1]} : vector<16x32xf32> to vector<16x1xf32>
    %88 = vector.extract_strided_slice %29 {offsets = [5, 0], sizes = [1, 32], strides = [1, 1]} : vector<64x32xf32> to vector<1x32xf32>
    %89 = vector.broadcast %87 : vector<16x1xf32> to vector<16x32xf32>
    %90 = vector.broadcast %88 : vector<1x32xf32> to vector<16x32xf32>
    %91 = arith.mulf %89, %90 : vector<16x32xf32>
    %92 = arith.addf %86, %91 : vector<16x32xf32>
    %cst_24 = arith.constant 0.707106769 : f32
    %93 = vector.broadcast %cst_24 : f32 to vector<16x32xf32>
    %94 = arith.mulf %92, %93 : vector<16x32xf32>
    %cst_25 = arith.constant dense<0xFF800000> : vector<16xf32>
    %95 = vector.multi_reduction <maximumf>, %94, %cst_25 [1] : vector<16x32xf32> to vector<16xf32>
    %96 = vector.shape_cast %95 : vector<16xf32> to vector<16x1xf32>
    %97 = vector.broadcast %96 : vector<16x1xf32> to vector<16x32xf32>
    %98 = arith.subf %94, %97 : vector<16x32xf32>
    %99 = math.exp %98 : vector<16x32xf32>
    %100 = vector.extract_strided_slice %29 {offsets = [36, 0], sizes = [2, 32], strides = [1, 1]} : vector<64x32xf32> to vector<2x32xf32>
    %101 = tpu.concatenate %100, %31 in 0 : vector<2x32xf32>, vector<1x32xf32> -> vector<3x32xf32>
    %cst_26 = arith.constant dense<0.000000e+00> : vector<16x3xf32>
    %102 = tpu.matmul %99, %101, %cst_26 {dimension_numbers = #tpu.dot_dimension_numbers<[1], [1], [0], [0], [0, 0, 1, 0], [], []>} : vector<16x32xf32>, vector<3x32xf32>, vector<16x3xf32> -> vector<16x3xf32>
    %103 = vector.extract_strided_slice %102 {offsets = [0, 0], sizes = [16, 2], strides = [1, 1]} : vector<16x3xf32> to vector<16x2xf32>
    %104 = vector.extract_strided_slice %102 {offsets = [0, 2], sizes = [16, 1], strides = [1, 1]} : vector<16x3xf32> to vector<16x1xf32>
    %105 = vector.broadcast %104 : vector<16x1xf32> to vector<16x2xf32>
    %106 = arith.divf %103, %105 : vector<16x2xf32>
    %107 = vector.extract_strided_slice %30 {offsets = [0, 6], sizes = [16, 1], strides = [1, 1]} : vector<16x32xf32> to vector<16x1xf32>
    %108 = vector.extract_strided_slice %29 {offsets = [6, 0], sizes = [1, 32], strides = [1, 1]} : vector<64x32xf32> to vector<1x32xf32>
    %109 = vector.broadcast %107 : vector<16x1xf32> to vector<16x32xf32>
    %110 = vector.broadcast %108 : vector<1x32xf32> to vector<16x32xf32>
    %111 = arith.mulf %109, %110 : vector<16x32xf32>
    %112 = vector.extract_strided_slice %30 {offsets = [0, 7], sizes = [16, 1], strides = [1, 1]} : vector<16x32xf32> to vector<16x1xf32>
    %113 = vector.extract_strided_slice %29 {offsets = [7, 0], sizes = [1, 32], strides = [1, 1]} : vector<64x32xf32> to vector<1x32xf32>
    %114 = vector.broadcast %112 : vector<16x1xf32> to vector<16x32xf32>
    %115 = vector.broadcast %113 : vector<1x32xf32> to vector<16x32xf32>
    %116 = arith.mulf %114, %115 : vector<16x32xf32>
    %117 = arith.addf %111, %116 : vector<16x32xf32>
    %cst_27 = arith.constant 0.707106769 : f32
    %118 = vector.broadcast %cst_27 : f32 to vector<16x32xf32>
    %119 = arith.mulf %117, %118 : vector<16x32xf32>
    %cst_28 = arith.constant dense<0xFF800000> : vector<16xf32>
    %120 = vector.multi_reduction <maximumf>, %119, %cst_28 [1] : vector<16x32xf32> to vector<16xf32>
    %121 = vector.shape_cast %120 : vector<16xf32> to vector<16x1xf32>
    %122 = vector.broadcast %121 : vector<16x1xf32> to vector<16x32xf32>
    %123 = arith.subf %119, %122 : vector<16x32xf32>
    %124 = math.exp %123 : vector<16x32xf32>
    %125 = vector.extract_strided_slice %29 {offsets = [38, 0], sizes = [2, 32], strides = [1, 1]} : vector<64x32xf32> to vector<2x32xf32>
    %126 = tpu.concatenate %125, %31 in 0 : vector<2x32xf32>, vector<1x32xf32> -> vector<3x32xf32>
    %cst_29 = arith.constant dense<0.000000e+00> : vector<16x3xf32>
    %127 = tpu.matmul %124, %126, %cst_29 {dimension_numbers = #tpu.dot_dimension_numbers<[1], [1], [0], [0], [0, 0, 1, 0], [], []>} : vector<16x32xf32>, vector<3x32xf32>, vector<16x3xf32> -> vector<16x3xf32>
    %128 = vector.extract_strided_slice %127 {offsets = [0, 0], sizes = [16, 2], strides = [1, 1]} : vector<16x3xf32> to vector<16x2xf32>
    %129 = vector.extract_strided_slice %127 {offsets = [0, 2], sizes = [16, 1], strides = [1, 1]} : vector<16x3xf32> to vector<16x1xf32>
    %130 = vector.broadcast %129 : vector<16x1xf32> to vector<16x2xf32>
    %131 = arith.divf %128, %130 : vector<16x2xf32>
    %132 = vector.extract_strided_slice %30 {offsets = [0, 8], sizes = [16, 1], strides = [1, 1]} : vector<16x32xf32> to vector<16x1xf32>
    %133 = vector.extract_strided_slice %29 {offsets = [8, 0], sizes = [1, 32], strides = [1, 1]} : vector<64x32xf32> to vector<1x32xf32>
    %134 = vector.broadcast %132 : vector<16x1xf32> to vector<16x32xf32>
    %135 = vector.broadcast %133 : vector<1x32xf32> to vector<16x32xf32>
    %136 = arith.mulf %134, %135 : vector<16x32xf32>
    %137 = vector.extract_strided_slice %30 {offsets = [0, 9], sizes = [16, 1], strides = [1, 1]} : vector<16x32xf32> to vector<16x1xf32>
    %138 = vector.extract_strided_slice %29 {offsets = [9, 0], sizes = [1, 32], strides = [1, 1]} : vector<64x32xf32> to vector<1x32xf32>
    %139 = vector.broadcast %137 : vector<16x1xf32> to vector<16x32xf32>
    %140 = vector.broadcast %138 : vector<1x32xf32> to vector<16x32xf32>
    %141 = arith.mulf %139, %140 : vector<16x32xf32>
    %142 = arith.addf %136, %141 : vector<16x32xf32>
    %cst_30 = arith.constant 0.707106769 : f32
    %143 = vector.broadcast %cst_30 : f32 to vector<16x32xf32>
    %144 = arith.mulf %142, %143 : vector<16x32xf32>
    %cst_31 = arith.constant dense<0xFF800000> : vector<16xf32>
    %145 = vector.multi_reduction <maximumf>, %144, %cst_31 [1] : vector<16x32xf32> to vector<16xf32>
    %146 = vector.shape_cast %145 : vector<16xf32> to vector<16x1xf32>
    %147 = vector.broadcast %146 : vector<16x1xf32> to vector<16x32xf32>
    %148 = arith.subf %144, %147 : vector<16x32xf32>
    %149 = math.exp %148 : vector<16x32xf32>
    %150 = vector.extract_strided_slice %29 {offsets = [40, 0], sizes = [2, 32], strides = [1, 1]} : vector<64x32xf32> to vector<2x32xf32>
    %151 = tpu.concatenate %150, %31 in 0 : vector<2x32xf32>, vector<1x32xf32> -> vector<3x32xf32>
    %cst_32 = arith.constant dense<0.000000e+00> : vector<16x3xf32>
    %152 = tpu.matmul %149, %151, %cst_32 {dimension_numbers = #tpu.dot_dimension_numbers<[1], [1], [0], [0], [0, 0, 1, 0], [], []>} : vector<16x32xf32>, vector<3x32xf32>, vector<16x3xf32> -> vector<16x3xf32>
    %153 = vector.extract_strided_slice %152 {offsets = [0, 0], sizes = [16, 2], strides = [1, 1]} : vector<16x3xf32> to vector<16x2xf32>
    %154 = vector.extract_strided_slice %152 {offsets = [0, 2], sizes = [16, 1], strides = [1, 1]} : vector<16x3xf32> to vector<16x1xf32>
    %155 = vector.broadcast %154 : vector<16x1xf32> to vector<16x2xf32>
    %156 = arith.divf %153, %155 : vector<16x2xf32>
    %157 = vector.extract_strided_slice %30 {offsets = [0, 10], sizes = [16, 1], strides = [1, 1]} : vector<16x32xf32> to vector<16x1xf32>
    %158 = vector.extract_strided_slice %29 {offsets = [10, 0], sizes = [1, 32], strides = [1, 1]} : vector<64x32xf32> to vector<1x32xf32>
    %159 = vector.broadcast %157 : vector<16x1xf32> to vector<16x32xf32>
    %160 = vector.broadcast %158 : vector<1x32xf32> to vector<16x32xf32>
    %161 = arith.mulf %159, %160 : vector<16x32xf32>
    %162 = vector.extract_strided_slice %30 {offsets = [0, 11], sizes = [16, 1], strides = [1, 1]} : vector<16x32xf32> to vector<16x1xf32>
    %163 = vector.extract_strided_slice %29 {offsets = [11, 0], sizes = [1, 32], strides = [1, 1]} : vector<64x32xf32> to vector<1x32xf32>
    %164 = vector.broadcast %162 : vector<16x1xf32> to vector<16x32xf32>
    %165 = vector.broadcast %163 : vector<1x32xf32> to vector<16x32xf32>
    %166 = arith.mulf %164, %165 : vector<16x32xf32>
    %167 = arith.addf %161, %166 : vector<16x32xf32>
    %cst_33 = arith.constant 0.707106769 : f32
    %168 = vector.broadcast %cst_33 : f32 to vector<16x32xf32>
    %169 = arith.mulf %167, %168 : vector<16x32xf32>
    %cst_34 = arith.constant dense<0xFF800000> : vector<16xf32>
    %170 = vector.multi_reduction <maximumf>, %169, %cst_34 [1] : vector<16x32xf32> to vector<16xf32>
    %171 = vector.shape_cast %170 : vector<16xf32> to vector<16x1xf32>
    %172 = vector.broadcast %171 : vector<16x1xf32> to vector<16x32xf32>
    %173 = arith.subf %169, %172 : vector<16x32xf32>
    %174 = math.exp %173 : vector<16x32xf32>
    %175 = vector.extract_strided_slice %29 {offsets = [42, 0], sizes = [2, 32], strides = [1, 1]} : vector<64x32xf32> to vector<2x32xf32>
    %176 = tpu.concatenate %175, %31 in 0 : vector<2x32xf32>, vector<1x32xf32> -> vector<3x32xf32>
    %cst_35 = arith.constant dense<0.000000e+00> : vector<16x3xf32>
    %177 = tpu.matmul %174, %176, %cst_35 {dimension_numbers = #tpu.dot_dimension_numbers<[1], [1], [0], [0], [0, 0, 1, 0], [], []>} : vector<16x32xf32>, vector<3x32xf32>, vector<16x3xf32> -> vector<16x3xf32>
    %178 = vector.extract_strided_slice %177 {offsets = [0, 0], sizes = [16, 2], strides = [1, 1]} : vector<16x3xf32> to vector<16x2xf32>
    %179 = vector.extract_strided_slice %177 {offsets = [0, 2], sizes = [16, 1], strides = [1, 1]} : vector<16x3xf32> to vector<16x1xf32>
    %180 = vector.broadcast %179 : vector<16x1xf32> to vector<16x2xf32>
    %181 = arith.divf %178, %180 : vector<16x2xf32>
    %182 = vector.extract_strided_slice %30 {offsets = [0, 12], sizes = [16, 1], strides = [1, 1]} : vector<16x32xf32> to vector<16x1xf32>
    %183 = vector.extract_strided_slice %29 {offsets = [12, 0], sizes = [1, 32], strides = [1, 1]} : vector<64x32xf32> to vector<1x32xf32>
    %184 = vector.broadcast %182 : vector<16x1xf32> to vector<16x32xf32>
    %185 = vector.broadcast %183 : vector<1x32xf32> to vector<16x32xf32>
    %186 = arith.mulf %184, %185 : vector<16x32xf32>
    %187 = vector.extract_strided_slice %30 {offsets = [0, 13], sizes = [16, 1], strides = [1, 1]} : vector<16x32xf32> to vector<16x1xf32>
    %188 = vector.extract_strided_slice %29 {offsets = [13, 0], sizes = [1, 32], strides = [1, 1]} : vector<64x32xf32> to vector<1x32xf32>
    %189 = vector.broadcast %187 : vector<16x1xf32> to vector<16x32xf32>
    %190 = vector.broadcast %188 : vector<1x32xf32> to vector<16x32xf32>
    %191 = arith.mulf %189, %190 : vector<16x32xf32>
    %192 = arith.addf %186, %191 : vector<16x32xf32>
    %cst_36 = arith.constant 0.707106769 : f32
    %193 = vector.broadcast %cst_36 : f32 to vector<16x32xf32>
    %194 = arith.mulf %192, %193 : vector<16x32xf32>
    %cst_37 = arith.constant dense<0xFF800000> : vector<16xf32>
    %195 = vector.multi_reduction <maximumf>, %194, %cst_37 [1] : vector<16x32xf32> to vector<16xf32>
    %196 = vector.shape_cast %195 : vector<16xf32> to vector<16x1xf32>
    %197 = vector.broadcast %196 : vector<16x1xf32> to vector<16x32xf32>
    %198 = arith.subf %194, %197 : vector<16x32xf32>
    %199 = math.exp %198 : vector<16x32xf32>
    %200 = vector.extract_strided_slice %29 {offsets = [44, 0], sizes = [2, 32], strides = [1, 1]} : vector<64x32xf32> to vector<2x32xf32>
    %201 = tpu.concatenate %200, %31 in 0 : vector<2x32xf32>, vector<1x32xf32> -> vector<3x32xf32>
    %cst_38 = arith.constant dense<0.000000e+00> : vector<16x3xf32>
    %202 = tpu.matmul %199, %201, %cst_38 {dimension_numbers = #tpu.dot_dimension_numbers<[1], [1], [0], [0], [0, 0, 1, 0], [], []>} : vector<16x32xf32>, vector<3x32xf32>, vector<16x3xf32> -> vector<16x3xf32>
    %203 = vector.extract_strided_slice %202 {offsets = [0, 0], sizes = [16, 2], strides = [1, 1]} : vector<16x3xf32> to vector<16x2xf32>
    %204 = vector.extract_strided_slice %202 {offsets = [0, 2], sizes = [16, 1], strides = [1, 1]} : vector<16x3xf32> to vector<16x1xf32>
    %205 = vector.broadcast %204 : vector<16x1xf32> to vector<16x2xf32>
    %206 = arith.divf %203, %205 : vector<16x2xf32>
    %207 = vector.extract_strided_slice %30 {offsets = [0, 14], sizes = [16, 1], strides = [1, 1]} : vector<16x32xf32> to vector<16x1xf32>
    %208 = vector.extract_strided_slice %29 {offsets = [14, 0], sizes = [1, 32], strides = [1, 1]} : vector<64x32xf32> to vector<1x32xf32>
    %209 = vector.broadcast %207 : vector<16x1xf32> to vector<16x32xf32>
    %210 = vector.broadcast %208 : vector<1x32xf32> to vector<16x32xf32>
    %211 = arith.mulf %209, %210 : vector<16x32xf32>
    %212 = vector.extract_strided_slice %30 {offsets = [0, 15], sizes = [16, 1], strides = [1, 1]} : vector<16x32xf32> to vector<16x1xf32>
    %213 = vector.extract_strided_slice %29 {offsets = [15, 0], sizes = [1, 32], strides = [1, 1]} : vector<64x32xf32> to vector<1x32xf32>
    %214 = vector.broadcast %212 : vector<16x1xf32> to vector<16x32xf32>
    %215 = vector.broadcast %213 : vector<1x32xf32> to vector<16x32xf32>
    %216 = arith.mulf %214, %215 : vector<16x32xf32>
    %217 = arith.addf %211, %216 : vector<16x32xf32>
    %cst_39 = arith.constant 0.707106769 : f32
    %218 = vector.broadcast %cst_39 : f32 to vector<16x32xf32>
    %219 = arith.mulf %217, %218 : vector<16x32xf32>
    %cst_40 = arith.constant dense<0xFF800000> : vector<16xf32>
    %220 = vector.multi_reduction <maximumf>, %219, %cst_40 [1] : vector<16x32xf32> to vector<16xf32>
    %221 = vector.shape_cast %220 : vector<16xf32> to vector<16x1xf32>
    %222 = vector.broadcast %221 : vector<16x1xf32> to vector<16x32xf32>
    %223 = arith.subf %219, %222 : vector<16x32xf32>
    %224 = math.exp %223 : vector<16x32xf32>
    %225 = vector.extract_strided_slice %29 {offsets = [46, 0], sizes = [2, 32], strides = [1, 1]} : vector<64x32xf32> to vector<2x32xf32>
    %226 = tpu.concatenate %225, %31 in 0 : vector<2x32xf32>, vector<1x32xf32> -> vector<3x32xf32>
    %cst_41 = arith.constant dense<0.000000e+00> : vector<16x3xf32>
    %227 = tpu.matmul %224, %226, %cst_41 {dimension_numbers = #tpu.dot_dimension_numbers<[1], [1], [0], [0], [0, 0, 1, 0], [], []>} : vector<16x32xf32>, vector<3x32xf32>, vector<16x3xf32> -> vector<16x3xf32>
    %228 = vector.extract_strided_slice %227 {offsets = [0, 0], sizes = [16, 2], strides = [1, 1]} : vector<16x3xf32> to vector<16x2xf32>
    %229 = vector.extract_strided_slice %227 {offsets = [0, 2], sizes = [16, 1], strides = [1, 1]} : vector<16x3xf32> to vector<16x1xf32>
    %230 = vector.broadcast %229 : vector<16x1xf32> to vector<16x2xf32>
    %231 = arith.divf %228, %230 : vector<16x2xf32>
    %232 = vector.extract_strided_slice %30 {offsets = [0, 16], sizes = [16, 1], strides = [1, 1]} : vector<16x32xf32> to vector<16x1xf32>
    %233 = vector.extract_strided_slice %29 {offsets = [16, 0], sizes = [1, 32], strides = [1, 1]} : vector<64x32xf32> to vector<1x32xf32>
    %234 = vector.broadcast %232 : vector<16x1xf32> to vector<16x32xf32>
    %235 = vector.broadcast %233 : vector<1x32xf32> to vector<16x32xf32>
    %236 = arith.mulf %234, %235 : vector<16x32xf32>
    %237 = vector.extract_strided_slice %30 {offsets = [0, 17], sizes = [16, 1], strides = [1, 1]} : vector<16x32xf32> to vector<16x1xf32>
    %238 = vector.extract_strided_slice %29 {offsets = [17, 0], sizes = [1, 32], strides = [1, 1]} : vector<64x32xf32> to vector<1x32xf32>
    %239 = vector.broadcast %237 : vector<16x1xf32> to vector<16x32xf32>
    %240 = vector.broadcast %238 : vector<1x32xf32> to vector<16x32xf32>
    %241 = arith.mulf %239, %240 : vector<16x32xf32>
    %242 = arith.addf %236, %241 : vector<16x32xf32>
    %cst_42 = arith.constant 0.707106769 : f32
    %243 = vector.broadcast %cst_42 : f32 to vector<16x32xf32>
    %244 = arith.mulf %242, %243 : vector<16x32xf32>
    %cst_43 = arith.constant dense<0xFF800000> : vector<16xf32>
    %245 = vector.multi_reduction <maximumf>, %244, %cst_43 [1] : vector<16x32xf32> to vector<16xf32>
    %246 = vector.shape_cast %245 : vector<16xf32> to vector<16x1xf32>
    %247 = vector.broadcast %246 : vector<16x1xf32> to vector<16x32xf32>
    %248 = arith.subf %244, %247 : vector<16x32xf32>
    %249 = math.exp %248 : vector<16x32xf32>
    %250 = vector.extract_strided_slice %29 {offsets = [48, 0], sizes = [2, 32], strides = [1, 1]} : vector<64x32xf32> to vector<2x32xf32>
    %251 = tpu.concatenate %250, %31 in 0 : vector<2x32xf32>, vector<1x32xf32> -> vector<3x32xf32>
    %cst_44 = arith.constant dense<0.000000e+00> : vector<16x3xf32>
    %252 = tpu.matmul %249, %251, %cst_44 {dimension_numbers = #tpu.dot_dimension_numbers<[1], [1], [0], [0], [0, 0, 1, 0], [], []>} : vector<16x32xf32>, vector<3x32xf32>, vector<16x3xf32> -> vector<16x3xf32>
    %253 = vector.extract_strided_slice %252 {offsets = [0, 0], sizes = [16, 2], strides = [1, 1]} : vector<16x3xf32> to vector<16x2xf32>
    %254 = vector.extract_strided_slice %252 {offsets = [0, 2], sizes = [16, 1], strides = [1, 1]} : vector<16x3xf32> to vector<16x1xf32>
    %255 = vector.broadcast %254 : vector<16x1xf32> to vector<16x2xf32>
    %256 = arith.divf %253, %255 : vector<16x2xf32>
    %257 = vector.extract_strided_slice %30 {offsets = [0, 18], sizes = [16, 1], strides = [1, 1]} : vector<16x32xf32> to vector<16x1xf32>
    %258 = vector.extract_strided_slice %29 {offsets = [18, 0], sizes = [1, 32], strides = [1, 1]} : vector<64x32xf32> to vector<1x32xf32>
    %259 = vector.broadcast %257 : vector<16x1xf32> to vector<16x32xf32>
    %260 = vector.broadcast %258 : vector<1x32xf32> to vector<16x32xf32>
    %261 = arith.mulf %259, %260 : vector<16x32xf32>
    %262 = vector.extract_strided_slice %30 {offsets = [0, 19], sizes = [16, 1], strides = [1, 1]} : vector<16x32xf32> to vector<16x1xf32>
    %263 = vector.extract_strided_slice %29 {offsets = [19, 0], sizes = [1, 32], strides = [1, 1]} : vector<64x32xf32> to vector<1x32xf32>
    %264 = vector.broadcast %262 : vector<16x1xf32> to vector<16x32xf32>
    %265 = vector.broadcast %263 : vector<1x32xf32> to vector<16x32xf32>
    %266 = arith.mulf %264, %265 : vector<16x32xf32>
    %267 = arith.addf %261, %266 : vector<16x32xf32>
    %cst_45 = arith.constant 0.707106769 : f32
    %268 = vector.broadcast %cst_45 : f32 to vector<16x32xf32>
    %269 = arith.mulf %267, %268 : vector<16x32xf32>
    %cst_46 = arith.constant dense<0xFF800000> : vector<16xf32>
    %270 = vector.multi_reduction <maximumf>, %269, %cst_46 [1] : vector<16x32xf32> to vector<16xf32>
    %271 = vector.shape_cast %270 : vector<16xf32> to vector<16x1xf32>
    %272 = vector.broadcast %271 : vector<16x1xf32> to vector<16x32xf32>
    %273 = arith.subf %269, %272 : vector<16x32xf32>
    %274 = math.exp %273 : vector<16x32xf32>
    %275 = vector.extract_strided_slice %29 {offsets = [50, 0], sizes = [2, 32], strides = [1, 1]} : vector<64x32xf32> to vector<2x32xf32>
    %276 = tpu.concatenate %275, %31 in 0 : vector<2x32xf32>, vector<1x32xf32> -> vector<3x32xf32>
    %cst_47 = arith.constant dense<0.000000e+00> : vector<16x3xf32>
    %277 = tpu.matmul %274, %276, %cst_47 {dimension_numbers = #tpu.dot_dimension_numbers<[1], [1], [0], [0], [0, 0, 1, 0], [], []>} : vector<16x32xf32>, vector<3x32xf32>, vector<16x3xf32> -> vector<16x3xf32>
    %278 = vector.extract_strided_slice %277 {offsets = [0, 0], sizes = [16, 2], strides = [1, 1]} : vector<16x3xf32> to vector<16x2xf32>
    %279 = vector.extract_strided_slice %277 {offsets = [0, 2], sizes = [16, 1], strides = [1, 1]} : vector<16x3xf32> to vector<16x1xf32>
    %280 = vector.broadcast %279 : vector<16x1xf32> to vector<16x2xf32>
    %281 = arith.divf %278, %280 : vector<16x2xf32>
    %282 = vector.extract_strided_slice %30 {offsets = [0, 20], sizes = [16, 1], strides = [1, 1]} : vector<16x32xf32> to vector<16x1xf32>
    %283 = vector.extract_strided_slice %29 {offsets = [20, 0], sizes = [1, 32], strides = [1, 1]} : vector<64x32xf32> to vector<1x32xf32>
    %284 = vector.broadcast %282 : vector<16x1xf32> to vector<16x32xf32>
    %285 = vector.broadcast %283 : vector<1x32xf32> to vector<16x32xf32>
    %286 = arith.mulf %284, %285 : vector<16x32xf32>
    %287 = vector.extract_strided_slice %30 {offsets = [0, 21], sizes = [16, 1], strides = [1, 1]} : vector<16x32xf32> to vector<16x1xf32>
    %288 = vector.extract_strided_slice %29 {offsets = [21, 0], sizes = [1, 32], strides = [1, 1]} : vector<64x32xf32> to vector<1x32xf32>
    %289 = vector.broadcast %287 : vector<16x1xf32> to vector<16x32xf32>
    %290 = vector.broadcast %288 : vector<1x32xf32> to vector<16x32xf32>
    %291 = arith.mulf %289, %290 : vector<16x32xf32>
    %292 = arith.addf %286, %291 : vector<16x32xf32>
    %cst_48 = arith.constant 0.707106769 : f32
    %293 = vector.broadcast %cst_48 : f32 to vector<16x32xf32>
    %294 = arith.mulf %292, %293 : vector<16x32xf32>
    %cst_49 = arith.constant dense<0xFF800000> : vector<16xf32>
    %295 = vector.multi_reduction <maximumf>, %294, %cst_49 [1] : vector<16x32xf32> to vector<16xf32>
    %296 = vector.shape_cast %295 : vector<16xf32> to vector<16x1xf32>
    %297 = vector.broadcast %296 : vector<16x1xf32> to vector<16x32xf32>
    %298 = arith.subf %294, %297 : vector<16x32xf32>
    %299 = math.exp %298 : vector<16x32xf32>
    %300 = vector.extract_strided_slice %29 {offsets = [52, 0], sizes = [2, 32], strides = [1, 1]} : vector<64x32xf32> to vector<2x32xf32>
    %301 = tpu.concatenate %300, %31 in 0 : vector<2x32xf32>, vector<1x32xf32> -> vector<3x32xf32>
    %cst_50 = arith.constant dense<0.000000e+00> : vector<16x3xf32>
    %302 = tpu.matmul %299, %301, %cst_50 {dimension_numbers = #tpu.dot_dimension_numbers<[1], [1], [0], [0], [0, 0, 1, 0], [], []>} : vector<16x32xf32>, vector<3x32xf32>, vector<16x3xf32> -> vector<16x3xf32>
    %303 = vector.extract_strided_slice %302 {offsets = [0, 0], sizes = [16, 2], strides = [1, 1]} : vector<16x3xf32> to vector<16x2xf32>
    %304 = vector.extract_strided_slice %302 {offsets = [0, 2], sizes = [16, 1], strides = [1, 1]} : vector<16x3xf32> to vector<16x1xf32>
    %305 = vector.broadcast %304 : vector<16x1xf32> to vector<16x2xf32>
    %306 = arith.divf %303, %305 : vector<16x2xf32>
    %307 = vector.extract_strided_slice %30 {offsets = [0, 22], sizes = [16, 1], strides = [1, 1]} : vector<16x32xf32> to vector<16x1xf32>
    %308 = vector.extract_strided_slice %29 {offsets = [22, 0], sizes = [1, 32], strides = [1, 1]} : vector<64x32xf32> to vector<1x32xf32>
    %309 = vector.broadcast %307 : vector<16x1xf32> to vector<16x32xf32>
    %310 = vector.broadcast %308 : vector<1x32xf32> to vector<16x32xf32>
    %311 = arith.mulf %309, %310 : vector<16x32xf32>
    %312 = vector.extract_strided_slice %30 {offsets = [0, 23], sizes = [16, 1], strides = [1, 1]} : vector<16x32xf32> to vector<16x1xf32>
    %313 = vector.extract_strided_slice %29 {offsets = [23, 0], sizes = [1, 32], strides = [1, 1]} : vector<64x32xf32> to vector<1x32xf32>
    %314 = vector.broadcast %312 : vector<16x1xf32> to vector<16x32xf32>
    %315 = vector.broadcast %313 : vector<1x32xf32> to vector<16x32xf32>
    %316 = arith.mulf %314, %315 : vector<16x32xf32>
    %317 = arith.addf %311, %316 : vector<16x32xf32>
    %cst_51 = arith.constant 0.707106769 : f32
    %318 = vector.broadcast %cst_51 : f32 to vector<16x32xf32>
    %319 = arith.mulf %317, %318 : vector<16x32xf32>
    %cst_52 = arith.constant dense<0xFF800000> : vector<16xf32>
    %320 = vector.multi_reduction <maximumf>, %319, %cst_52 [1] : vector<16x32xf32> to vector<16xf32>
    %321 = vector.shape_cast %320 : vector<16xf32> to vector<16x1xf32>
    %322 = vector.broadcast %321 : vector<16x1xf32> to vector<16x32xf32>
    %323 = arith.subf %319, %322 : vector<16x32xf32>
    %324 = math.exp %323 : vector<16x32xf32>
    %325 = vector.extract_strided_slice %29 {offsets = [54, 0], sizes = [2, 32], strides = [1, 1]} : vector<64x32xf32> to vector<2x32xf32>
    %326 = tpu.concatenate %325, %31 in 0 : vector<2x32xf32>, vector<1x32xf32> -> vector<3x32xf32>
    %cst_53 = arith.constant dense<0.000000e+00> : vector<16x3xf32>
    %327 = tpu.matmul %324, %326, %cst_53 {dimension_numbers = #tpu.dot_dimension_numbers<[1], [1], [0], [0], [0, 0, 1, 0], [], []>} : vector<16x32xf32>, vector<3x32xf32>, vector<16x3xf32> -> vector<16x3xf32>
    %328 = vector.extract_strided_slice %327 {offsets = [0, 0], sizes = [16, 2], strides = [1, 1]} : vector<16x3xf32> to vector<16x2xf32>
    %329 = vector.extract_strided_slice %327 {offsets = [0, 2], sizes = [16, 1], strides = [1, 1]} : vector<16x3xf32> to vector<16x1xf32>
    %330 = vector.broadcast %329 : vector<16x1xf32> to vector<16x2xf32>
    %331 = arith.divf %328, %330 : vector<16x2xf32>
    %332 = vector.extract_strided_slice %30 {offsets = [0, 24], sizes = [16, 1], strides = [1, 1]} : vector<16x32xf32> to vector<16x1xf32>
    %333 = vector.extract_strided_slice %29 {offsets = [24, 0], sizes = [1, 32], strides = [1, 1]} : vector<64x32xf32> to vector<1x32xf32>
    %334 = vector.broadcast %332 : vector<16x1xf32> to vector<16x32xf32>
    %335 = vector.broadcast %333 : vector<1x32xf32> to vector<16x32xf32>
    %336 = arith.mulf %334, %335 : vector<16x32xf32>
    %337 = vector.extract_strided_slice %30 {offsets = [0, 25], sizes = [16, 1], strides = [1, 1]} : vector<16x32xf32> to vector<16x1xf32>
    %338 = vector.extract_strided_slice %29 {offsets = [25, 0], sizes = [1, 32], strides = [1, 1]} : vector<64x32xf32> to vector<1x32xf32>
    %339 = vector.broadcast %337 : vector<16x1xf32> to vector<16x32xf32>
    %340 = vector.broadcast %338 : vector<1x32xf32> to vector<16x32xf32>
    %341 = arith.mulf %339, %340 : vector<16x32xf32>
    %342 = arith.addf %336, %341 : vector<16x32xf32>
    %cst_54 = arith.constant 0.707106769 : f32
    %343 = vector.broadcast %cst_54 : f32 to vector<16x32xf32>
    %344 = arith.mulf %342, %343 : vector<16x32xf32>
    %cst_55 = arith.constant dense<0xFF800000> : vector<16xf32>
    %345 = vector.multi_reduction <maximumf>, %344, %cst_55 [1] : vector<16x32xf32> to vector<16xf32>
    %346 = vector.shape_cast %345 : vector<16xf32> to vector<16x1xf32>
    %347 = vector.broadcast %346 : vector<16x1xf32> to vector<16x32xf32>
    %348 = arith.subf %344, %347 : vector<16x32xf32>
    %349 = math.exp %348 : vector<16x32xf32>
    %350 = vector.extract_strided_slice %29 {offsets = [56, 0], sizes = [2, 32], strides = [1, 1]} : vector<64x32xf32> to vector<2x32xf32>
    %351 = tpu.concatenate %350, %31 in 0 : vector<2x32xf32>, vector<1x32xf32> -> vector<3x32xf32>
    %cst_56 = arith.constant dense<0.000000e+00> : vector<16x3xf32>
    %352 = tpu.matmul %349, %351, %cst_56 {dimension_numbers = #tpu.dot_dimension_numbers<[1], [1], [0], [0], [0, 0, 1, 0], [], []>} : vector<16x32xf32>, vector<3x32xf32>, vector<16x3xf32> -> vector<16x3xf32>
    %353 = vector.extract_strided_slice %352 {offsets = [0, 0], sizes = [16, 2], strides = [1, 1]} : vector<16x3xf32> to vector<16x2xf32>
    %354 = vector.extract_strided_slice %352 {offsets = [0, 2], sizes = [16, 1], strides = [1, 1]} : vector<16x3xf32> to vector<16x1xf32>
    %355 = vector.broadcast %354 : vector<16x1xf32> to vector<16x2xf32>
    %356 = arith.divf %353, %355 : vector<16x2xf32>
    %357 = vector.extract_strided_slice %30 {offsets = [0, 26], sizes = [16, 1], strides = [1, 1]} : vector<16x32xf32> to vector<16x1xf32>
    %358 = vector.extract_strided_slice %29 {offsets = [26, 0], sizes = [1, 32], strides = [1, 1]} : vector<64x32xf32> to vector<1x32xf32>
    %359 = vector.broadcast %357 : vector<16x1xf32> to vector<16x32xf32>
    %360 = vector.broadcast %358 : vector<1x32xf32> to vector<16x32xf32>
    %361 = arith.mulf %359, %360 : vector<16x32xf32>
    %362 = vector.extract_strided_slice %30 {offsets = [0, 27], sizes = [16, 1], strides = [1, 1]} : vector<16x32xf32> to vector<16x1xf32>
    %363 = vector.extract_strided_slice %29 {offsets = [27, 0], sizes = [1, 32], strides = [1, 1]} : vector<64x32xf32> to vector<1x32xf32>
    %364 = vector.broadcast %362 : vector<16x1xf32> to vector<16x32xf32>
    %365 = vector.broadcast %363 : vector<1x32xf32> to vector<16x32xf32>
    %366 = arith.mulf %364, %365 : vector<16x32xf32>
    %367 = arith.addf %361, %366 : vector<16x32xf32>
    %cst_57 = arith.constant 0.707106769 : f32
    %368 = vector.broadcast %cst_57 : f32 to vector<16x32xf32>
    %369 = arith.mulf %367, %368 : vector<16x32xf32>
    %cst_58 = arith.constant dense<0xFF800000> : vector<16xf32>
    %370 = vector.multi_reduction <maximumf>, %369, %cst_58 [1] : vector<16x32xf32> to vector<16xf32>
    %371 = vector.shape_cast %370 : vector<16xf32> to vector<16x1xf32>
    %372 = vector.broadcast %371 : vector<16x1xf32> to vector<16x32xf32>
    %373 = arith.subf %369, %372 : vector<16x32xf32>
    %374 = math.exp %373 : vector<16x32xf32>
    %375 = vector.extract_strided_slice %29 {offsets = [58, 0], sizes = [2, 32], strides = [1, 1]} : vector<64x32xf32> to vector<2x32xf32>
    %376 = tpu.concatenate %375, %31 in 0 : vector<2x32xf32>, vector<1x32xf32> -> vector<3x32xf32>
    %cst_59 = arith.constant dense<0.000000e+00> : vector<16x3xf32>
    %377 = tpu.matmul %374, %376, %cst_59 {dimension_numbers = #tpu.dot_dimension_numbers<[1], [1], [0], [0], [0, 0, 1, 0], [], []>} : vector<16x32xf32>, vector<3x32xf32>, vector<16x3xf32> -> vector<16x3xf32>
    %378 = vector.extract_strided_slice %377 {offsets = [0, 0], sizes = [16, 2], strides = [1, 1]} : vector<16x3xf32> to vector<16x2xf32>
    %379 = vector.extract_strided_slice %377 {offsets = [0, 2], sizes = [16, 1], strides = [1, 1]} : vector<16x3xf32> to vector<16x1xf32>
    %380 = vector.broadcast %379 : vector<16x1xf32> to vector<16x2xf32>
    %381 = arith.divf %378, %380 : vector<16x2xf32>
    %382 = vector.extract_strided_slice %30 {offsets = [0, 28], sizes = [16, 1], strides = [1, 1]} : vector<16x32xf32> to vector<16x1xf32>
    %383 = vector.extract_strided_slice %29 {offsets = [28, 0], sizes = [1, 32], strides = [1, 1]} : vector<64x32xf32> to vector<1x32xf32>
    %384 = vector.broadcast %382 : vector<16x1xf32> to vector<16x32xf32>
    %385 = vector.broadcast %383 : vector<1x32xf32> to vector<16x32xf32>
    %386 = arith.mulf %384, %385 : vector<16x32xf32>
    %387 = vector.extract_strided_slice %30 {offsets = [0, 29], sizes = [16, 1], strides = [1, 1]} : vector<16x32xf32> to vector<16x1xf32>
    %388 = vector.extract_strided_slice %29 {offsets = [29, 0], sizes = [1, 32], strides = [1, 1]} : vector<64x32xf32> to vector<1x32xf32>
    %389 = vector.broadcast %387 : vector<16x1xf32> to vector<16x32xf32>
    %390 = vector.broadcast %388 : vector<1x32xf32> to vector<16x32xf32>
    %391 = arith.mulf %389, %390 : vector<16x32xf32>
    %392 = arith.addf %386, %391 : vector<16x32xf32>
    %cst_60 = arith.constant 0.707106769 : f32
    %393 = vector.broadcast %cst_60 : f32 to vector<16x32xf32>
    %394 = arith.mulf %392, %393 : vector<16x32xf32>
    %cst_61 = arith.constant dense<0xFF800000> : vector<16xf32>
    %395 = vector.multi_reduction <maximumf>, %394, %cst_61 [1] : vector<16x32xf32> to vector<16xf32>
    %396 = vector.shape_cast %395 : vector<16xf32> to vector<16x1xf32>
    %397 = vector.broadcast %396 : vector<16x1xf32> to vector<16x32xf32>
    %398 = arith.subf %394, %397 : vector<16x32xf32>
    %399 = math.exp %398 : vector<16x32xf32>
    %400 = vector.extract_strided_slice %29 {offsets = [60, 0], sizes = [2, 32], strides = [1, 1]} : vector<64x32xf32> to vector<2x32xf32>
    %401 = tpu.concatenate %400, %31 in 0 : vector<2x32xf32>, vector<1x32xf32> -> vector<3x32xf32>
    %cst_62 = arith.constant dense<0.000000e+00> : vector<16x3xf32>
    %402 = tpu.matmul %399, %401, %cst_62 {dimension_numbers = #tpu.dot_dimension_numbers<[1], [1], [0], [0], [0, 0, 1, 0], [], []>} : vector<16x32xf32>, vector<3x32xf32>, vector<16x3xf32> -> vector<16x3xf32>
    %403 = vector.extract_strided_slice %402 {offsets = [0, 0], sizes = [16, 2], strides = [1, 1]} : vector<16x3xf32> to vector<16x2xf32>
    %404 = vector.extract_strided_slice %402 {offsets = [0, 2], sizes = [16, 1], strides = [1, 1]} : vector<16x3xf32> to vector<16x1xf32>
    %405 = vector.broadcast %404 : vector<16x1xf32> to vector<16x2xf32>
    %406 = arith.divf %403, %405 : vector<16x2xf32>
    %407 = vector.extract_strided_slice %30 {offsets = [0, 30], sizes = [16, 1], strides = [1, 1]} : vector<16x32xf32> to vector<16x1xf32>
    %408 = vector.extract_strided_slice %29 {offsets = [30, 0], sizes = [1, 32], strides = [1, 1]} : vector<64x32xf32> to vector<1x32xf32>
    %409 = vector.broadcast %407 : vector<16x1xf32> to vector<16x32xf32>
    %410 = vector.broadcast %408 : vector<1x32xf32> to vector<16x32xf32>
    %411 = arith.mulf %409, %410 : vector<16x32xf32>
    %412 = vector.extract_strided_slice %30 {offsets = [0, 31], sizes = [16, 1], strides = [1, 1]} : vector<16x32xf32> to vector<16x1xf32>
    %413 = vector.extract_strided_slice %29 {offsets = [31, 0], sizes = [1, 32], strides = [1, 1]} : vector<64x32xf32> to vector<1x32xf32>
    %414 = vector.broadcast %412 : vector<16x1xf32> to vector<16x32xf32>
    %415 = vector.broadcast %413 : vector<1x32xf32> to vector<16x32xf32>
    %416 = arith.mulf %414, %415 : vector<16x32xf32>
    %417 = arith.addf %411, %416 : vector<16x32xf32>
    %cst_63 = arith.constant 0.707106769 : f32
    %418 = vector.broadcast %cst_63 : f32 to vector<16x32xf32>
    %419 = arith.mulf %417, %418 : vector<16x32xf32>
    %cst_64 = arith.constant dense<0xFF800000> : vector<16xf32>
    %420 = vector.multi_reduction <maximumf>, %419, %cst_64 [1] : vector<16x32xf32> to vector<16xf32>
    %421 = vector.shape_cast %420 : vector<16xf32> to vector<16x1xf32>
    %422 = vector.broadcast %421 : vector<16x1xf32> to vector<16x32xf32>
    %423 = arith.subf %419, %422 : vector<16x32xf32>
    %424 = math.exp %423 : vector<16x32xf32>
    %425 = vector.extract_strided_slice %29 {offsets = [62, 0], sizes = [2, 32], strides = [1, 1]} : vector<64x32xf32> to vector<2x32xf32>
    %426 = tpu.concatenate %425, %31 in 0 : vector<2x32xf32>, vector<1x32xf32> -> vector<3x32xf32>
    %cst_65 = arith.constant dense<0.000000e+00> : vector<16x3xf32>
    %427 = tpu.matmul %424, %426, %cst_65 {dimension_numbers = #tpu.dot_dimension_numbers<[1], [1], [0], [0], [0, 0, 1, 0], [], []>} : vector<16x32xf32>, vector<3x32xf32>, vector<16x3xf32> -> vector<16x3xf32>
    %428 = vector.extract_strided_slice %427 {offsets = [0, 0], sizes = [16, 2], strides = [1, 1]} : vector<16x3xf32> to vector<16x2xf32>
    %429 = vector.extract_strided_slice %427 {offsets = [0, 2], sizes = [16, 1], strides = [1, 1]} : vector<16x3xf32> to vector<16x1xf32>
    %430 = vector.broadcast %429 : vector<16x1xf32> to vector<16x2xf32>
    %431 = arith.divf %428, %430 : vector<16x2xf32>
    %432 = tpu.concatenate %56, %81, %106, %131, %156, %181, %206, %231, %256, %281, %306, %331, %356, %381, %406, %431 in 1 : vector<16x2xf32>, vector<16x2xf32>, vector<16x2xf32>, vector<16x2xf32>, vector<16x2xf32>, vector<16x2xf32>, vector<16x2xf32>, vector<16x2xf32>, vector<16x2xf32>, vector<16x2xf32>, vector<16x2xf32>, vector<16x2xf32>, vector<16x2xf32>, vector<16x2xf32>, vector<16x2xf32>, vector<16x2xf32> -> vector<16x32xf32>
    %c184 = arith.constant 184 : index
    %c0_66 = arith.constant 0 : index
    %433 = vector.load %arg4[%c184, %c0_66] : memref<1776x128xf32, #tpu.memory_space<vmem>>, vector<32x32xf32>
    %cst_67 = arith.constant dense<0.000000e+00> : vector<16x32xf32>
    %434 = tpu.matmul %432, %433, %cst_67 {dimension_numbers = #tpu.dot_dimension_numbers<[1], [0], [0], [1], [0, 0, 1, 1], [], []>} : vector<16x32xf32>, vector<32x32xf32>, vector<16x32xf32> -> vector<16x32xf32>
    %435 = vector.broadcast %15 : vector<1x32xf32> to vector<16x32xf32>
    %436 = arith.addf %435, %434 : vector<16x32xf32>
    %437 = arith.negf %436 : vector<16x32xf32>
    %438 = math.exp %437 : vector<16x32xf32>
    %cst_68 = arith.constant 1.000000e+00 : f32
    %439 = vector.broadcast %cst_68 : f32 to vector<16x32xf32>
    %440 = arith.addf %439, %438 : vector<16x32xf32>
    %441 = arith.divf %439, %440 : vector<16x32xf32>
    %442 = arith.mulf %436, %441 : vector<16x32xf32>
    %c0_69 = arith.constant 0 : index
    %c0_70 = arith.constant 0 : index
    %c0_71 = arith.constant 0 : index
    %443 = vector.load %arg1[%c0_69, %c0_70, %c0_71] : memref<1x16x4xf32, #tpu.memory_space<vmem>>, vector<1x16x4xf32>
    %444 = vector.shape_cast %443 : vector<1x16x4xf32> to vector<16x4xf32>
    %c0_72 = arith.constant 0 : index
    %c0_73 = arith.constant 0 : index
    %445 = vector.load %arg4[%c0_72, %c0_73] : memref<1776x128xf32, #tpu.memory_space<vmem>>, vector<4x32xf32>
    %cst_74 = arith.constant dense<0.000000e+00> : vector<16x32xf32>
    %446 = tpu.matmul %444, %445, %cst_74 {dimension_numbers = #tpu.dot_dimension_numbers<[1], [0], [0], [1], [0, 0, 1, 1], [], []>} : vector<16x4xf32>, vector<4x32xf32>, vector<16x32xf32> -> vector<16x32xf32>
    %c8 = arith.constant 8 : index
    %c0_75 = arith.constant 0 : index
    %447 = vector.load %arg4[%c8, %c0_75] : memref<1776x128xf32, #tpu.memory_space<vmem>>, vector<1x32xf32>
    %448 = vector.broadcast %447 : vector<1x32xf32> to vector<16x32xf32>
    %449 = arith.addf %446, %448 : vector<16x32xf32>
    %c16 = arith.constant 16 : index
    %c0_76 = arith.constant 0 : index
    %450 = vector.load %arg4[%c16, %c0_76] : memref<1776x128xf32, #tpu.memory_space<vmem>>, vector<16x32xf32>
    %451 = arith.addf %449, %450 : vector<16x32xf32>
    %c712 = arith.constant 712 : index
    %c0_77 = arith.constant 0 : index
    %452 = vector.load %arg4[%c712, %c0_77] : memref<1776x128xf32, #tpu.memory_space<vmem>>, vector<6x32xf32>
    %c520 = arith.constant 520 : index
    %c0_78 = arith.constant 0 : index
    %453 = vector.load %arg4[%c520, %c0_78] : memref<1776x128xf32, #tpu.memory_space<vmem>>, vector<32x32xf32>
    %cst_79 = arith.constant dense<0.000000e+00> : vector<16x32xf32>
    %454 = tpu.matmul %442, %453, %cst_79 {dimension_numbers = #tpu.dot_dimension_numbers<[1], [0], [0], [1], [0, 0, 1, 1], [], []>} : vector<16x32xf32>, vector<32x32xf32>, vector<16x32xf32> -> vector<16x32xf32>
    %455 = vector.extract_strided_slice %452 {offsets = [0, 0], sizes = [1, 32], strides = [1, 1]} : vector<6x32xf32> to vector<1x32xf32>
    %456 = vector.broadcast %455 : vector<1x32xf32> to vector<16x32xf32>
    %457 = arith.addf %454, %456 : vector<16x32xf32>
    %c552 = arith.constant 552 : index
    %c0_80 = arith.constant 0 : index
    %458 = vector.load %arg4[%c552, %c0_80] : memref<1776x128xf32, #tpu.memory_space<vmem>>, vector<32x32xf32>
    %cst_81 = arith.constant dense<0.000000e+00> : vector<16x32xf32>
    %459 = tpu.matmul %442, %458, %cst_81 {dimension_numbers = #tpu.dot_dimension_numbers<[1], [0], [0], [1], [0, 0, 1, 1], [], []>} : vector<16x32xf32>, vector<32x32xf32>, vector<16x32xf32> -> vector<16x32xf32>
    %460 = vector.extract_strided_slice %452 {offsets = [1, 0], sizes = [1, 32], strides = [1, 1]} : vector<6x32xf32> to vector<1x32xf32>
    %461 = vector.broadcast %460 : vector<1x32xf32> to vector<16x32xf32>
    %462 = arith.addf %459, %461 : vector<16x32xf32>
    %c584 = arith.constant 584 : index
    %c0_82 = arith.constant 0 : index
    %463 = vector.load %arg4[%c584, %c0_82] : memref<1776x128xf32, #tpu.memory_space<vmem>>, vector<32x32xf32>
    %cst_83 = arith.constant dense<0.000000e+00> : vector<16x32xf32>
    %464 = tpu.matmul %442, %463, %cst_83 {dimension_numbers = #tpu.dot_dimension_numbers<[1], [0], [0], [1], [0, 0, 1, 1], [], []>} : vector<16x32xf32>, vector<32x32xf32>, vector<16x32xf32> -> vector<16x32xf32>
    %465 = vector.extract_strided_slice %452 {offsets = [2, 0], sizes = [1, 32], strides = [1, 1]} : vector<6x32xf32> to vector<1x32xf32>
    %466 = vector.broadcast %465 : vector<1x32xf32> to vector<16x32xf32>
    %467 = arith.addf %464, %466 : vector<16x32xf32>
    %c616 = arith.constant 616 : index
    %c0_84 = arith.constant 0 : index
    %468 = vector.load %arg4[%c616, %c0_84] : memref<1776x128xf32, #tpu.memory_space<vmem>>, vector<32x32xf32>
    %cst_85 = arith.constant dense<0.000000e+00> : vector<16x32xf32>
    %469 = tpu.matmul %442, %468, %cst_85 {dimension_numbers = #tpu.dot_dimension_numbers<[1], [0], [0], [1], [0, 0, 1, 1], [], []>} : vector<16x32xf32>, vector<32x32xf32>, vector<16x32xf32> -> vector<16x32xf32>
    %470 = vector.extract_strided_slice %452 {offsets = [3, 0], sizes = [1, 32], strides = [1, 1]} : vector<6x32xf32> to vector<1x32xf32>
    %471 = vector.broadcast %470 : vector<1x32xf32> to vector<16x32xf32>
    %472 = arith.addf %469, %471 : vector<16x32xf32>
    %c648 = arith.constant 648 : index
    %c0_86 = arith.constant 0 : index
    %473 = vector.load %arg4[%c648, %c0_86] : memref<1776x128xf32, #tpu.memory_space<vmem>>, vector<32x32xf32>
    %cst_87 = arith.constant dense<0.000000e+00> : vector<16x32xf32>
    %474 = tpu.matmul %442, %473, %cst_87 {dimension_numbers = #tpu.dot_dimension_numbers<[1], [0], [0], [1], [0, 0, 1, 1], [], []>} : vector<16x32xf32>, vector<32x32xf32>, vector<16x32xf32> -> vector<16x32xf32>
    %475 = vector.extract_strided_slice %452 {offsets = [4, 0], sizes = [1, 32], strides = [1, 1]} : vector<6x32xf32> to vector<1x32xf32>
    %476 = vector.broadcast %475 : vector<1x32xf32> to vector<16x32xf32>
    %477 = arith.addf %474, %476 : vector<16x32xf32>
    %c680 = arith.constant 680 : index
    %c0_88 = arith.constant 0 : index
    %478 = vector.load %arg4[%c680, %c0_88] : memref<1776x128xf32, #tpu.memory_space<vmem>>, vector<32x32xf32>
    %cst_89 = arith.constant dense<0.000000e+00> : vector<16x32xf32>
    %479 = tpu.matmul %442, %478, %cst_89 {dimension_numbers = #tpu.dot_dimension_numbers<[1], [0], [0], [1], [0, 0, 1, 1], [], []>} : vector<16x32xf32>, vector<32x32xf32>, vector<16x32xf32> -> vector<16x32xf32>
    %480 = vector.extract_strided_slice %452 {offsets = [5, 0], sizes = [1, 32], strides = [1, 1]} : vector<6x32xf32> to vector<1x32xf32>
    %481 = vector.broadcast %480 : vector<1x32xf32> to vector<16x32xf32>
    %482 = arith.addf %479, %481 : vector<16x32xf32>
    %cst_90 = arith.constant dense<0.000000e+00> : vector<16xf32>
    %483 = vector.multi_reduction <add>, %451, %cst_90 [1] : vector<16x32xf32> to vector<16xf32>
    %484 = vector.shape_cast %483 : vector<16xf32> to vector<16x1xf32>
    %cst_91 = arith.constant 3.200000e+01 : f32
    %485 = vector.broadcast %cst_91 : f32 to vector<16x1xf32>
    %486 = arith.divf %484, %485 : vector<16x1xf32>
    %487 = vector.broadcast %486 : vector<16x1xf32> to vector<16x32xf32>
    %488 = arith.subf %451, %487 : vector<16x32xf32>
    %489 = arith.mulf %488, %488 : vector<16x32xf32>
    %cst_92 = arith.constant dense<0.000000e+00> : vector<16xf32>
    %490 = vector.multi_reduction <add>, %489, %cst_92 [1] : vector<16x32xf32> to vector<16xf32>
    %491 = vector.shape_cast %490 : vector<16xf32> to vector<16x1xf32>
    %cst_93 = arith.constant 3.200000e+01 : f32
    %492 = vector.broadcast %cst_93 : f32 to vector<16x1xf32>
    %493 = arith.divf %491, %492 : vector<16x1xf32>
    %cst_94 = arith.constant 9.99999997E-7 : f32
    %494 = vector.broadcast %cst_94 : f32 to vector<16x1xf32>
    %495 = arith.addf %493, %494 : vector<16x1xf32>
    %496 = math.rsqrt %495 : vector<16x1xf32>
    %497 = vector.broadcast %496 : vector<16x1xf32> to vector<16x32xf32>
    %498 = arith.mulf %488, %497 : vector<16x32xf32>
    %cst_95 = arith.constant 1.000000e+00 : f32
    %499 = vector.broadcast %cst_95 : f32 to vector<16x32xf32>
    %500 = arith.addf %499, %462 : vector<16x32xf32>
    %501 = arith.mulf %498, %500 : vector<16x32xf32>
    %502 = arith.addf %501, %457 : vector<16x32xf32>
    %c720 = arith.constant 720 : index
    %c0_96 = arith.constant 0 : index
    %503 = vector.load %arg4[%c720, %c0_96] : memref<1776x128xf32, #tpu.memory_space<vmem>>, vector<32x32xf32>
    %cst_97 = arith.constant dense<0.000000e+00> : vector<16x32xf32>
    %504 = tpu.matmul %502, %503, %cst_97 {dimension_numbers = #tpu.dot_dimension_numbers<[1], [0], [0], [1], [0, 0, 1, 1], [], []>} : vector<16x32xf32>, vector<32x32xf32>, vector<16x32xf32> -> vector<16x32xf32>
    %c752 = arith.constant 752 : index
    %c0_98 = arith.constant 0 : index
    %505 = vector.load %arg4[%c752, %c0_98] : memref<1776x128xf32, #tpu.memory_space<vmem>>, vector<1x32xf32>
    %506 = vector.broadcast %505 : vector<1x32xf32> to vector<16x32xf32>
    %507 = arith.addf %504, %506 : vector<16x32xf32>
    %c760 = arith.constant 760 : index
    %c0_99 = arith.constant 0 : index
    %508 = vector.load %arg4[%c760, %c0_99] : memref<1776x128xf32, #tpu.memory_space<vmem>>, vector<64x32xf32>
    %cst_100 = arith.constant dense<0.000000e+00> : vector<64x16xf32>
    %509 = tpu.matmul %508, %502, %cst_100 {dimension_numbers = #tpu.dot_dimension_numbers<[1], [1], [0], [0], [0, 0, 1, 0], [], []>} : vector<64x32xf32>, vector<16x32xf32>, vector<64x16xf32> -> vector<64x16xf32>
    %c824 = arith.constant 824 : index
    %c0_101 = arith.constant 0 : index
    %510 = vector.load %arg4[%c824, %c0_101] : memref<1776x128xf32, #tpu.memory_space<vmem>>, vector<64x1xf32>
    %511 = vector.broadcast %510 : vector<64x1xf32> to vector<64x16xf32>
    %512 = arith.addf %509, %511 : vector<64x16xf32>
    %cst_102 = arith.constant 1.000000e+00 : f32
    %513 = vector.broadcast %cst_102 : f32 to vector<1x16xf32>
    %514 = vector.extract_strided_slice %507 {offsets = [0, 0], sizes = [16, 1], strides = [1, 1]} : vector<16x32xf32> to vector<16x1xf32>
    %515 = vector.extract_strided_slice %512 {offsets = [0, 0], sizes = [1, 16], strides = [1, 1]} : vector<64x16xf32> to vector<1x16xf32>
    %516 = vector.broadcast %514 : vector<16x1xf32> to vector<16x16xf32>
    %517 = vector.broadcast %515 : vector<1x16xf32> to vector<16x16xf32>
    %518 = arith.mulf %516, %517 : vector<16x16xf32>
    %519 = vector.extract_strided_slice %507 {offsets = [0, 1], sizes = [16, 1], strides = [1, 1]} : vector<16x32xf32> to vector<16x1xf32>
    %520 = vector.extract_strided_slice %512 {offsets = [1, 0], sizes = [1, 16], strides = [1, 1]} : vector<64x16xf32> to vector<1x16xf32>
    %521 = vector.broadcast %519 : vector<16x1xf32> to vector<16x16xf32>
    %522 = vector.broadcast %520 : vector<1x16xf32> to vector<16x16xf32>
    %523 = arith.mulf %521, %522 : vector<16x16xf32>
    %524 = arith.addf %518, %523 : vector<16x16xf32>
    %cst_103 = arith.constant 0.707106769 : f32
    %525 = vector.broadcast %cst_103 : f32 to vector<16x16xf32>
    %526 = arith.mulf %524, %525 : vector<16x16xf32>
    %cst_104 = arith.constant dense<0xFF800000> : vector<16xf32>
    %527 = vector.multi_reduction <maximumf>, %526, %cst_104 [1] : vector<16x16xf32> to vector<16xf32>
    %528 = vector.shape_cast %527 : vector<16xf32> to vector<16x1xf32>
    %529 = vector.broadcast %528 : vector<16x1xf32> to vector<16x16xf32>
    %530 = arith.subf %526, %529 : vector<16x16xf32>
    %531 = math.exp %530 : vector<16x16xf32>
    %532 = vector.extract_strided_slice %512 {offsets = [32, 0], sizes = [2, 16], strides = [1, 1]} : vector<64x16xf32> to vector<2x16xf32>
    %533 = tpu.concatenate %532, %513 in 0 : vector<2x16xf32>, vector<1x16xf32> -> vector<3x16xf32>
    %cst_105 = arith.constant dense<0.000000e+00> : vector<16x3xf32>
    %534 = tpu.matmul %531, %533, %cst_105 {dimension_numbers = #tpu.dot_dimension_numbers<[1], [1], [0], [0], [0, 0, 1, 0], [], []>} : vector<16x16xf32>, vector<3x16xf32>, vector<16x3xf32> -> vector<16x3xf32>
    %535 = vector.extract_strided_slice %534 {offsets = [0, 0], sizes = [16, 2], strides = [1, 1]} : vector<16x3xf32> to vector<16x2xf32>
    %536 = vector.extract_strided_slice %534 {offsets = [0, 2], sizes = [16, 1], strides = [1, 1]} : vector<16x3xf32> to vector<16x1xf32>
    %537 = vector.broadcast %536 : vector<16x1xf32> to vector<16x2xf32>
    %538 = arith.divf %535, %537 : vector<16x2xf32>
    %539 = vector.extract_strided_slice %507 {offsets = [0, 2], sizes = [16, 1], strides = [1, 1]} : vector<16x32xf32> to vector<16x1xf32>
    %540 = vector.extract_strided_slice %512 {offsets = [2, 0], sizes = [1, 16], strides = [1, 1]} : vector<64x16xf32> to vector<1x16xf32>
    %541 = vector.broadcast %539 : vector<16x1xf32> to vector<16x16xf32>
    %542 = vector.broadcast %540 : vector<1x16xf32> to vector<16x16xf32>
    %543 = arith.mulf %541, %542 : vector<16x16xf32>
    %544 = vector.extract_strided_slice %507 {offsets = [0, 3], sizes = [16, 1], strides = [1, 1]} : vector<16x32xf32> to vector<16x1xf32>
    %545 = vector.extract_strided_slice %512 {offsets = [3, 0], sizes = [1, 16], strides = [1, 1]} : vector<64x16xf32> to vector<1x16xf32>
    %546 = vector.broadcast %544 : vector<16x1xf32> to vector<16x16xf32>
    %547 = vector.broadcast %545 : vector<1x16xf32> to vector<16x16xf32>
    %548 = arith.mulf %546, %547 : vector<16x16xf32>
    %549 = arith.addf %543, %548 : vector<16x16xf32>
    %cst_106 = arith.constant 0.707106769 : f32
    %550 = vector.broadcast %cst_106 : f32 to vector<16x16xf32>
    %551 = arith.mulf %549, %550 : vector<16x16xf32>
    %cst_107 = arith.constant dense<0xFF800000> : vector<16xf32>
    %552 = vector.multi_reduction <maximumf>, %551, %cst_107 [1] : vector<16x16xf32> to vector<16xf32>
    %553 = vector.shape_cast %552 : vector<16xf32> to vector<16x1xf32>
    %554 = vector.broadcast %553 : vector<16x1xf32> to vector<16x16xf32>
    %555 = arith.subf %551, %554 : vector<16x16xf32>
    %556 = math.exp %555 : vector<16x16xf32>
    %557 = vector.extract_strided_slice %512 {offsets = [34, 0], sizes = [2, 16], strides = [1, 1]} : vector<64x16xf32> to vector<2x16xf32>
    %558 = tpu.concatenate %557, %513 in 0 : vector<2x16xf32>, vector<1x16xf32> -> vector<3x16xf32>
    %cst_108 = arith.constant dense<0.000000e+00> : vector<16x3xf32>
    %559 = tpu.matmul %556, %558, %cst_108 {dimension_numbers = #tpu.dot_dimension_numbers<[1], [1], [0], [0], [0, 0, 1, 0], [], []>} : vector<16x16xf32>, vector<3x16xf32>, vector<16x3xf32> -> vector<16x3xf32>
    %560 = vector.extract_strided_slice %559 {offsets = [0, 0], sizes = [16, 2], strides = [1, 1]} : vector<16x3xf32> to vector<16x2xf32>
    %561 = vector.extract_strided_slice %559 {offsets = [0, 2], sizes = [16, 1], strides = [1, 1]} : vector<16x3xf32> to vector<16x1xf32>
    %562 = vector.broadcast %561 : vector<16x1xf32> to vector<16x2xf32>
    %563 = arith.divf %560, %562 : vector<16x2xf32>
    %564 = vector.extract_strided_slice %507 {offsets = [0, 4], sizes = [16, 1], strides = [1, 1]} : vector<16x32xf32> to vector<16x1xf32>
    %565 = vector.extract_strided_slice %512 {offsets = [4, 0], sizes = [1, 16], strides = [1, 1]} : vector<64x16xf32> to vector<1x16xf32>
    %566 = vector.broadcast %564 : vector<16x1xf32> to vector<16x16xf32>
    %567 = vector.broadcast %565 : vector<1x16xf32> to vector<16x16xf32>
    %568 = arith.mulf %566, %567 : vector<16x16xf32>
    %569 = vector.extract_strided_slice %507 {offsets = [0, 5], sizes = [16, 1], strides = [1, 1]} : vector<16x32xf32> to vector<16x1xf32>
    %570 = vector.extract_strided_slice %512 {offsets = [5, 0], sizes = [1, 16], strides = [1, 1]} : vector<64x16xf32> to vector<1x16xf32>
    %571 = vector.broadcast %569 : vector<16x1xf32> to vector<16x16xf32>
    %572 = vector.broadcast %570 : vector<1x16xf32> to vector<16x16xf32>
    %573 = arith.mulf %571, %572 : vector<16x16xf32>
    %574 = arith.addf %568, %573 : vector<16x16xf32>
    %cst_109 = arith.constant 0.707106769 : f32
    %575 = vector.broadcast %cst_109 : f32 to vector<16x16xf32>
    %576 = arith.mulf %574, %575 : vector<16x16xf32>
    %cst_110 = arith.constant dense<0xFF800000> : vector<16xf32>
    %577 = vector.multi_reduction <maximumf>, %576, %cst_110 [1] : vector<16x16xf32> to vector<16xf32>
    %578 = vector.shape_cast %577 : vector<16xf32> to vector<16x1xf32>
    %579 = vector.broadcast %578 : vector<16x1xf32> to vector<16x16xf32>
    %580 = arith.subf %576, %579 : vector<16x16xf32>
    %581 = math.exp %580 : vector<16x16xf32>
    %582 = vector.extract_strided_slice %512 {offsets = [36, 0], sizes = [2, 16], strides = [1, 1]} : vector<64x16xf32> to vector<2x16xf32>
    %583 = tpu.concatenate %582, %513 in 0 : vector<2x16xf32>, vector<1x16xf32> -> vector<3x16xf32>
    %cst_111 = arith.constant dense<0.000000e+00> : vector<16x3xf32>
    %584 = tpu.matmul %581, %583, %cst_111 {dimension_numbers = #tpu.dot_dimension_numbers<[1], [1], [0], [0], [0, 0, 1, 0], [], []>} : vector<16x16xf32>, vector<3x16xf32>, vector<16x3xf32> -> vector<16x3xf32>
    %585 = vector.extract_strided_slice %584 {offsets = [0, 0], sizes = [16, 2], strides = [1, 1]} : vector<16x3xf32> to vector<16x2xf32>
    %586 = vector.extract_strided_slice %584 {offsets = [0, 2], sizes = [16, 1], strides = [1, 1]} : vector<16x3xf32> to vector<16x1xf32>
    %587 = vector.broadcast %586 : vector<16x1xf32> to vector<16x2xf32>
    %588 = arith.divf %585, %587 : vector<16x2xf32>
    %589 = vector.extract_strided_slice %507 {offsets = [0, 6], sizes = [16, 1], strides = [1, 1]} : vector<16x32xf32> to vector<16x1xf32>
    %590 = vector.extract_strided_slice %512 {offsets = [6, 0], sizes = [1, 16], strides = [1, 1]} : vector<64x16xf32> to vector<1x16xf32>
    %591 = vector.broadcast %589 : vector<16x1xf32> to vector<16x16xf32>
    %592 = vector.broadcast %590 : vector<1x16xf32> to vector<16x16xf32>
    %593 = arith.mulf %591, %592 : vector<16x16xf32>
    %594 = vector.extract_strided_slice %507 {offsets = [0, 7], sizes = [16, 1], strides = [1, 1]} : vector<16x32xf32> to vector<16x1xf32>
    %595 = vector.extract_strided_slice %512 {offsets = [7, 0], sizes = [1, 16], strides = [1, 1]} : vector<64x16xf32> to vector<1x16xf32>
    %596 = vector.broadcast %594 : vector<16x1xf32> to vector<16x16xf32>
    %597 = vector.broadcast %595 : vector<1x16xf32> to vector<16x16xf32>
    %598 = arith.mulf %596, %597 : vector<16x16xf32>
    %599 = arith.addf %593, %598 : vector<16x16xf32>
    %cst_112 = arith.constant 0.707106769 : f32
    %600 = vector.broadcast %cst_112 : f32 to vector<16x16xf32>
    %601 = arith.mulf %599, %600 : vector<16x16xf32>
    %cst_113 = arith.constant dense<0xFF800000> : vector<16xf32>
    %602 = vector.multi_reduction <maximumf>, %601, %cst_113 [1] : vector<16x16xf32> to vector<16xf32>
    %603 = vector.shape_cast %602 : vector<16xf32> to vector<16x1xf32>
    %604 = vector.broadcast %603 : vector<16x1xf32> to vector<16x16xf32>
    %605 = arith.subf %601, %604 : vector<16x16xf32>
    %606 = math.exp %605 : vector<16x16xf32>
    %607 = vector.extract_strided_slice %512 {offsets = [38, 0], sizes = [2, 16], strides = [1, 1]} : vector<64x16xf32> to vector<2x16xf32>
    %608 = tpu.concatenate %607, %513 in 0 : vector<2x16xf32>, vector<1x16xf32> -> vector<3x16xf32>
    %cst_114 = arith.constant dense<0.000000e+00> : vector<16x3xf32>
    %609 = tpu.matmul %606, %608, %cst_114 {dimension_numbers = #tpu.dot_dimension_numbers<[1], [1], [0], [0], [0, 0, 1, 0], [], []>} : vector<16x16xf32>, vector<3x16xf32>, vector<16x3xf32> -> vector<16x3xf32>
    %610 = vector.extract_strided_slice %609 {offsets = [0, 0], sizes = [16, 2], strides = [1, 1]} : vector<16x3xf32> to vector<16x2xf32>
    %611 = vector.extract_strided_slice %609 {offsets = [0, 2], sizes = [16, 1], strides = [1, 1]} : vector<16x3xf32> to vector<16x1xf32>
    %612 = vector.broadcast %611 : vector<16x1xf32> to vector<16x2xf32>
    %613 = arith.divf %610, %612 : vector<16x2xf32>
    %614 = vector.extract_strided_slice %507 {offsets = [0, 8], sizes = [16, 1], strides = [1, 1]} : vector<16x32xf32> to vector<16x1xf32>
    %615 = vector.extract_strided_slice %512 {offsets = [8, 0], sizes = [1, 16], strides = [1, 1]} : vector<64x16xf32> to vector<1x16xf32>
    %616 = vector.broadcast %614 : vector<16x1xf32> to vector<16x16xf32>
    %617 = vector.broadcast %615 : vector<1x16xf32> to vector<16x16xf32>
    %618 = arith.mulf %616, %617 : vector<16x16xf32>
    %619 = vector.extract_strided_slice %507 {offsets = [0, 9], sizes = [16, 1], strides = [1, 1]} : vector<16x32xf32> to vector<16x1xf32>
    %620 = vector.extract_strided_slice %512 {offsets = [9, 0], sizes = [1, 16], strides = [1, 1]} : vector<64x16xf32> to vector<1x16xf32>
    %621 = vector.broadcast %619 : vector<16x1xf32> to vector<16x16xf32>
    %622 = vector.broadcast %620 : vector<1x16xf32> to vector<16x16xf32>
    %623 = arith.mulf %621, %622 : vector<16x16xf32>
    %624 = arith.addf %618, %623 : vector<16x16xf32>
    %cst_115 = arith.constant 0.707106769 : f32
    %625 = vector.broadcast %cst_115 : f32 to vector<16x16xf32>
    %626 = arith.mulf %624, %625 : vector<16x16xf32>
    %cst_116 = arith.constant dense<0xFF800000> : vector<16xf32>
    %627 = vector.multi_reduction <maximumf>, %626, %cst_116 [1] : vector<16x16xf32> to vector<16xf32>
    %628 = vector.shape_cast %627 : vector<16xf32> to vector<16x1xf32>
    %629 = vector.broadcast %628 : vector<16x1xf32> to vector<16x16xf32>
    %630 = arith.subf %626, %629 : vector<16x16xf32>
    %631 = math.exp %630 : vector<16x16xf32>
    %632 = vector.extract_strided_slice %512 {offsets = [40, 0], sizes = [2, 16], strides = [1, 1]} : vector<64x16xf32> to vector<2x16xf32>
    %633 = tpu.concatenate %632, %513 in 0 : vector<2x16xf32>, vector<1x16xf32> -> vector<3x16xf32>
    %cst_117 = arith.constant dense<0.000000e+00> : vector<16x3xf32>
    %634 = tpu.matmul %631, %633, %cst_117 {dimension_numbers = #tpu.dot_dimension_numbers<[1], [1], [0], [0], [0, 0, 1, 0], [], []>} : vector<16x16xf32>, vector<3x16xf32>, vector<16x3xf32> -> vector<16x3xf32>
    %635 = vector.extract_strided_slice %634 {offsets = [0, 0], sizes = [16, 2], strides = [1, 1]} : vector<16x3xf32> to vector<16x2xf32>
    %636 = vector.extract_strided_slice %634 {offsets = [0, 2], sizes = [16, 1], strides = [1, 1]} : vector<16x3xf32> to vector<16x1xf32>
    %637 = vector.broadcast %636 : vector<16x1xf32> to vector<16x2xf32>
    %638 = arith.divf %635, %637 : vector<16x2xf32>
    %639 = vector.extract_strided_slice %507 {offsets = [0, 10], sizes = [16, 1], strides = [1, 1]} : vector<16x32xf32> to vector<16x1xf32>
    %640 = vector.extract_strided_slice %512 {offsets = [10, 0], sizes = [1, 16], strides = [1, 1]} : vector<64x16xf32> to vector<1x16xf32>
    %641 = vector.broadcast %639 : vector<16x1xf32> to vector<16x16xf32>
    %642 = vector.broadcast %640 : vector<1x16xf32> to vector<16x16xf32>
    %643 = arith.mulf %641, %642 : vector<16x16xf32>
    %644 = vector.extract_strided_slice %507 {offsets = [0, 11], sizes = [16, 1], strides = [1, 1]} : vector<16x32xf32> to vector<16x1xf32>
    %645 = vector.extract_strided_slice %512 {offsets = [11, 0], sizes = [1, 16], strides = [1, 1]} : vector<64x16xf32> to vector<1x16xf32>
    %646 = vector.broadcast %644 : vector<16x1xf32> to vector<16x16xf32>
    %647 = vector.broadcast %645 : vector<1x16xf32> to vector<16x16xf32>
    %648 = arith.mulf %646, %647 : vector<16x16xf32>
    %649 = arith.addf %643, %648 : vector<16x16xf32>
    %cst_118 = arith.constant 0.707106769 : f32
    %650 = vector.broadcast %cst_118 : f32 to vector<16x16xf32>
    %651 = arith.mulf %649, %650 : vector<16x16xf32>
    %cst_119 = arith.constant dense<0xFF800000> : vector<16xf32>
    %652 = vector.multi_reduction <maximumf>, %651, %cst_119 [1] : vector<16x16xf32> to vector<16xf32>
    %653 = vector.shape_cast %652 : vector<16xf32> to vector<16x1xf32>
    %654 = vector.broadcast %653 : vector<16x1xf32> to vector<16x16xf32>
    %655 = arith.subf %651, %654 : vector<16x16xf32>
    %656 = math.exp %655 : vector<16x16xf32>
    %657 = vector.extract_strided_slice %512 {offsets = [42, 0], sizes = [2, 16], strides = [1, 1]} : vector<64x16xf32> to vector<2x16xf32>
    %658 = tpu.concatenate %657, %513 in 0 : vector<2x16xf32>, vector<1x16xf32> -> vector<3x16xf32>
    %cst_120 = arith.constant dense<0.000000e+00> : vector<16x3xf32>
    %659 = tpu.matmul %656, %658, %cst_120 {dimension_numbers = #tpu.dot_dimension_numbers<[1], [1], [0], [0], [0, 0, 1, 0], [], []>} : vector<16x16xf32>, vector<3x16xf32>, vector<16x3xf32> -> vector<16x3xf32>
    %660 = vector.extract_strided_slice %659 {offsets = [0, 0], sizes = [16, 2], strides = [1, 1]} : vector<16x3xf32> to vector<16x2xf32>
    %661 = vector.extract_strided_slice %659 {offsets = [0, 2], sizes = [16, 1], strides = [1, 1]} : vector<16x3xf32> to vector<16x1xf32>
    %662 = vector.broadcast %661 : vector<16x1xf32> to vector<16x2xf32>
    %663 = arith.divf %660, %662 : vector<16x2xf32>
    %664 = vector.extract_strided_slice %507 {offsets = [0, 12], sizes = [16, 1], strides = [1, 1]} : vector<16x32xf32> to vector<16x1xf32>
    %665 = vector.extract_strided_slice %512 {offsets = [12, 0], sizes = [1, 16], strides = [1, 1]} : vector<64x16xf32> to vector<1x16xf32>
    %666 = vector.broadcast %664 : vector<16x1xf32> to vector<16x16xf32>
    %667 = vector.broadcast %665 : vector<1x16xf32> to vector<16x16xf32>
    %668 = arith.mulf %666, %667 : vector<16x16xf32>
    %669 = vector.extract_strided_slice %507 {offsets = [0, 13], sizes = [16, 1], strides = [1, 1]} : vector<16x32xf32> to vector<16x1xf32>
    %670 = vector.extract_strided_slice %512 {offsets = [13, 0], sizes = [1, 16], strides = [1, 1]} : vector<64x16xf32> to vector<1x16xf32>
    %671 = vector.broadcast %669 : vector<16x1xf32> to vector<16x16xf32>
    %672 = vector.broadcast %670 : vector<1x16xf32> to vector<16x16xf32>
    %673 = arith.mulf %671, %672 : vector<16x16xf32>
    %674 = arith.addf %668, %673 : vector<16x16xf32>
    %cst_121 = arith.constant 0.707106769 : f32
    %675 = vector.broadcast %cst_121 : f32 to vector<16x16xf32>
    %676 = arith.mulf %674, %675 : vector<16x16xf32>
    %cst_122 = arith.constant dense<0xFF800000> : vector<16xf32>
    %677 = vector.multi_reduction <maximumf>, %676, %cst_122 [1] : vector<16x16xf32> to vector<16xf32>
    %678 = vector.shape_cast %677 : vector<16xf32> to vector<16x1xf32>
    %679 = vector.broadcast %678 : vector<16x1xf32> to vector<16x16xf32>
    %680 = arith.subf %676, %679 : vector<16x16xf32>
    %681 = math.exp %680 : vector<16x16xf32>
    %682 = vector.extract_strided_slice %512 {offsets = [44, 0], sizes = [2, 16], strides = [1, 1]} : vector<64x16xf32> to vector<2x16xf32>
    %683 = tpu.concatenate %682, %513 in 0 : vector<2x16xf32>, vector<1x16xf32> -> vector<3x16xf32>
    %cst_123 = arith.constant dense<0.000000e+00> : vector<16x3xf32>
    %684 = tpu.matmul %681, %683, %cst_123 {dimension_numbers = #tpu.dot_dimension_numbers<[1], [1], [0], [0], [0, 0, 1, 0], [], []>} : vector<16x16xf32>, vector<3x16xf32>, vector<16x3xf32> -> vector<16x3xf32>
    %685 = vector.extract_strided_slice %684 {offsets = [0, 0], sizes = [16, 2], strides = [1, 1]} : vector<16x3xf32> to vector<16x2xf32>
    %686 = vector.extract_strided_slice %684 {offsets = [0, 2], sizes = [16, 1], strides = [1, 1]} : vector<16x3xf32> to vector<16x1xf32>
    %687 = vector.broadcast %686 : vector<16x1xf32> to vector<16x2xf32>
    %688 = arith.divf %685, %687 : vector<16x2xf32>
    %689 = vector.extract_strided_slice %507 {offsets = [0, 14], sizes = [16, 1], strides = [1, 1]} : vector<16x32xf32> to vector<16x1xf32>
    %690 = vector.extract_strided_slice %512 {offsets = [14, 0], sizes = [1, 16], strides = [1, 1]} : vector<64x16xf32> to vector<1x16xf32>
    %691 = vector.broadcast %689 : vector<16x1xf32> to vector<16x16xf32>
    %692 = vector.broadcast %690 : vector<1x16xf32> to vector<16x16xf32>
    %693 = arith.mulf %691, %692 : vector<16x16xf32>
    %694 = vector.extract_strided_slice %507 {offsets = [0, 15], sizes = [16, 1], strides = [1, 1]} : vector<16x32xf32> to vector<16x1xf32>
    %695 = vector.extract_strided_slice %512 {offsets = [15, 0], sizes = [1, 16], strides = [1, 1]} : vector<64x16xf32> to vector<1x16xf32>
    %696 = vector.broadcast %694 : vector<16x1xf32> to vector<16x16xf32>
    %697 = vector.broadcast %695 : vector<1x16xf32> to vector<16x16xf32>
    %698 = arith.mulf %696, %697 : vector<16x16xf32>
    %699 = arith.addf %693, %698 : vector<16x16xf32>
    %cst_124 = arith.constant 0.707106769 : f32
    %700 = vector.broadcast %cst_124 : f32 to vector<16x16xf32>
    %701 = arith.mulf %699, %700 : vector<16x16xf32>
    %cst_125 = arith.constant dense<0xFF800000> : vector<16xf32>
    %702 = vector.multi_reduction <maximumf>, %701, %cst_125 [1] : vector<16x16xf32> to vector<16xf32>
    %703 = vector.shape_cast %702 : vector<16xf32> to vector<16x1xf32>
    %704 = vector.broadcast %703 : vector<16x1xf32> to vector<16x16xf32>
    %705 = arith.subf %701, %704 : vector<16x16xf32>
    %706 = math.exp %705 : vector<16x16xf32>
    %707 = vector.extract_strided_slice %512 {offsets = [46, 0], sizes = [2, 16], strides = [1, 1]} : vector<64x16xf32> to vector<2x16xf32>
    %708 = tpu.concatenate %707, %513 in 0 : vector<2x16xf32>, vector<1x16xf32> -> vector<3x16xf32>
    %cst_126 = arith.constant dense<0.000000e+00> : vector<16x3xf32>
    %709 = tpu.matmul %706, %708, %cst_126 {dimension_numbers = #tpu.dot_dimension_numbers<[1], [1], [0], [0], [0, 0, 1, 0], [], []>} : vector<16x16xf32>, vector<3x16xf32>, vector<16x3xf32> -> vector<16x3xf32>
    %710 = vector.extract_strided_slice %709 {offsets = [0, 0], sizes = [16, 2], strides = [1, 1]} : vector<16x3xf32> to vector<16x2xf32>
    %711 = vector.extract_strided_slice %709 {offsets = [0, 2], sizes = [16, 1], strides = [1, 1]} : vector<16x3xf32> to vector<16x1xf32>
    %712 = vector.broadcast %711 : vector<16x1xf32> to vector<16x2xf32>
    %713 = arith.divf %710, %712 : vector<16x2xf32>
    %714 = vector.extract_strided_slice %507 {offsets = [0, 16], sizes = [16, 1], strides = [1, 1]} : vector<16x32xf32> to vector<16x1xf32>
    %715 = vector.extract_strided_slice %512 {offsets = [16, 0], sizes = [1, 16], strides = [1, 1]} : vector<64x16xf32> to vector<1x16xf32>
    %716 = vector.broadcast %714 : vector<16x1xf32> to vector<16x16xf32>
    %717 = vector.broadcast %715 : vector<1x16xf32> to vector<16x16xf32>
    %718 = arith.mulf %716, %717 : vector<16x16xf32>
    %719 = vector.extract_strided_slice %507 {offsets = [0, 17], sizes = [16, 1], strides = [1, 1]} : vector<16x32xf32> to vector<16x1xf32>
    %720 = vector.extract_strided_slice %512 {offsets = [17, 0], sizes = [1, 16], strides = [1, 1]} : vector<64x16xf32> to vector<1x16xf32>
    %721 = vector.broadcast %719 : vector<16x1xf32> to vector<16x16xf32>
    %722 = vector.broadcast %720 : vector<1x16xf32> to vector<16x16xf32>
    %723 = arith.mulf %721, %722 : vector<16x16xf32>
    %724 = arith.addf %718, %723 : vector<16x16xf32>
    %cst_127 = arith.constant 0.707106769 : f32
    %725 = vector.broadcast %cst_127 : f32 to vector<16x16xf32>
    %726 = arith.mulf %724, %725 : vector<16x16xf32>
    %cst_128 = arith.constant dense<0xFF800000> : vector<16xf32>
    %727 = vector.multi_reduction <maximumf>, %726, %cst_128 [1] : vector<16x16xf32> to vector<16xf32>
    %728 = vector.shape_cast %727 : vector<16xf32> to vector<16x1xf32>
    %729 = vector.broadcast %728 : vector<16x1xf32> to vector<16x16xf32>
    %730 = arith.subf %726, %729 : vector<16x16xf32>
    %731 = math.exp %730 : vector<16x16xf32>
    %732 = vector.extract_strided_slice %512 {offsets = [48, 0], sizes = [2, 16], strides = [1, 1]} : vector<64x16xf32> to vector<2x16xf32>
    %733 = tpu.concatenate %732, %513 in 0 : vector<2x16xf32>, vector<1x16xf32> -> vector<3x16xf32>
    %cst_129 = arith.constant dense<0.000000e+00> : vector<16x3xf32>
    %734 = tpu.matmul %731, %733, %cst_129 {dimension_numbers = #tpu.dot_dimension_numbers<[1], [1], [0], [0], [0, 0, 1, 0], [], []>} : vector<16x16xf32>, vector<3x16xf32>, vector<16x3xf32> -> vector<16x3xf32>
    %735 = vector.extract_strided_slice %734 {offsets = [0, 0], sizes = [16, 2], strides = [1, 1]} : vector<16x3xf32> to vector<16x2xf32>
    %736 = vector.extract_strided_slice %734 {offsets = [0, 2], sizes = [16, 1], strides = [1, 1]} : vector<16x3xf32> to vector<16x1xf32>
    %737 = vector.broadcast %736 : vector<16x1xf32> to vector<16x2xf32>
    %738 = arith.divf %735, %737 : vector<16x2xf32>
    %739 = vector.extract_strided_slice %507 {offsets = [0, 18], sizes = [16, 1], strides = [1, 1]} : vector<16x32xf32> to vector<16x1xf32>
    %740 = vector.extract_strided_slice %512 {offsets = [18, 0], sizes = [1, 16], strides = [1, 1]} : vector<64x16xf32> to vector<1x16xf32>
    %741 = vector.broadcast %739 : vector<16x1xf32> to vector<16x16xf32>
    %742 = vector.broadcast %740 : vector<1x16xf32> to vector<16x16xf32>
    %743 = arith.mulf %741, %742 : vector<16x16xf32>
    %744 = vector.extract_strided_slice %507 {offsets = [0, 19], sizes = [16, 1], strides = [1, 1]} : vector<16x32xf32> to vector<16x1xf32>
    %745 = vector.extract_strided_slice %512 {offsets = [19, 0], sizes = [1, 16], strides = [1, 1]} : vector<64x16xf32> to vector<1x16xf32>
    %746 = vector.broadcast %744 : vector<16x1xf32> to vector<16x16xf32>
    %747 = vector.broadcast %745 : vector<1x16xf32> to vector<16x16xf32>
    %748 = arith.mulf %746, %747 : vector<16x16xf32>
    %749 = arith.addf %743, %748 : vector<16x16xf32>
    %cst_130 = arith.constant 0.707106769 : f32
    %750 = vector.broadcast %cst_130 : f32 to vector<16x16xf32>
    %751 = arith.mulf %749, %750 : vector<16x16xf32>
    %cst_131 = arith.constant dense<0xFF800000> : vector<16xf32>
    %752 = vector.multi_reduction <maximumf>, %751, %cst_131 [1] : vector<16x16xf32> to vector<16xf32>
    %753 = vector.shape_cast %752 : vector<16xf32> to vector<16x1xf32>
    %754 = vector.broadcast %753 : vector<16x1xf32> to vector<16x16xf32>
    %755 = arith.subf %751, %754 : vector<16x16xf32>
    %756 = math.exp %755 : vector<16x16xf32>
    %757 = vector.extract_strided_slice %512 {offsets = [50, 0], sizes = [2, 16], strides = [1, 1]} : vector<64x16xf32> to vector<2x16xf32>
    %758 = tpu.concatenate %757, %513 in 0 : vector<2x16xf32>, vector<1x16xf32> -> vector<3x16xf32>
    %cst_132 = arith.constant dense<0.000000e+00> : vector<16x3xf32>
    %759 = tpu.matmul %756, %758, %cst_132 {dimension_numbers = #tpu.dot_dimension_numbers<[1], [1], [0], [0], [0, 0, 1, 0], [], []>} : vector<16x16xf32>, vector<3x16xf32>, vector<16x3xf32> -> vector<16x3xf32>
    %760 = vector.extract_strided_slice %759 {offsets = [0, 0], sizes = [16, 2], strides = [1, 1]} : vector<16x3xf32> to vector<16x2xf32>
    %761 = vector.extract_strided_slice %759 {offsets = [0, 2], sizes = [16, 1], strides = [1, 1]} : vector<16x3xf32> to vector<16x1xf32>
    %762 = vector.broadcast %761 : vector<16x1xf32> to vector<16x2xf32>
    %763 = arith.divf %760, %762 : vector<16x2xf32>
    %764 = vector.extract_strided_slice %507 {offsets = [0, 20], sizes = [16, 1], strides = [1, 1]} : vector<16x32xf32> to vector<16x1xf32>
    %765 = vector.extract_strided_slice %512 {offsets = [20, 0], sizes = [1, 16], strides = [1, 1]} : vector<64x16xf32> to vector<1x16xf32>
    %766 = vector.broadcast %764 : vector<16x1xf32> to vector<16x16xf32>
    %767 = vector.broadcast %765 : vector<1x16xf32> to vector<16x16xf32>
    %768 = arith.mulf %766, %767 : vector<16x16xf32>
    %769 = vector.extract_strided_slice %507 {offsets = [0, 21], sizes = [16, 1], strides = [1, 1]} : vector<16x32xf32> to vector<16x1xf32>
    %770 = vector.extract_strided_slice %512 {offsets = [21, 0], sizes = [1, 16], strides = [1, 1]} : vector<64x16xf32> to vector<1x16xf32>
    %771 = vector.broadcast %769 : vector<16x1xf32> to vector<16x16xf32>
    %772 = vector.broadcast %770 : vector<1x16xf32> to vector<16x16xf32>
    %773 = arith.mulf %771, %772 : vector<16x16xf32>
    %774 = arith.addf %768, %773 : vector<16x16xf32>
    %cst_133 = arith.constant 0.707106769 : f32
    %775 = vector.broadcast %cst_133 : f32 to vector<16x16xf32>
    %776 = arith.mulf %774, %775 : vector<16x16xf32>
    %cst_134 = arith.constant dense<0xFF800000> : vector<16xf32>
    %777 = vector.multi_reduction <maximumf>, %776, %cst_134 [1] : vector<16x16xf32> to vector<16xf32>
    %778 = vector.shape_cast %777 : vector<16xf32> to vector<16x1xf32>
    %779 = vector.broadcast %778 : vector<16x1xf32> to vector<16x16xf32>
    %780 = arith.subf %776, %779 : vector<16x16xf32>
    %781 = math.exp %780 : vector<16x16xf32>
    %782 = vector.extract_strided_slice %512 {offsets = [52, 0], sizes = [2, 16], strides = [1, 1]} : vector<64x16xf32> to vector<2x16xf32>
    %783 = tpu.concatenate %782, %513 in 0 : vector<2x16xf32>, vector<1x16xf32> -> vector<3x16xf32>
    %cst_135 = arith.constant dense<0.000000e+00> : vector<16x3xf32>
    %784 = tpu.matmul %781, %783, %cst_135 {dimension_numbers = #tpu.dot_dimension_numbers<[1], [1], [0], [0], [0, 0, 1, 0], [], []>} : vector<16x16xf32>, vector<3x16xf32>, vector<16x3xf32> -> vector<16x3xf32>
    %785 = vector.extract_strided_slice %784 {offsets = [0, 0], sizes = [16, 2], strides = [1, 1]} : vector<16x3xf32> to vector<16x2xf32>
    %786 = vector.extract_strided_slice %784 {offsets = [0, 2], sizes = [16, 1], strides = [1, 1]} : vector<16x3xf32> to vector<16x1xf32>
    %787 = vector.broadcast %786 : vector<16x1xf32> to vector<16x2xf32>
    %788 = arith.divf %785, %787 : vector<16x2xf32>
    %789 = vector.extract_strided_slice %507 {offsets = [0, 22], sizes = [16, 1], strides = [1, 1]} : vector<16x32xf32> to vector<16x1xf32>
    %790 = vector.extract_strided_slice %512 {offsets = [22, 0], sizes = [1, 16], strides = [1, 1]} : vector<64x16xf32> to vector<1x16xf32>
    %791 = vector.broadcast %789 : vector<16x1xf32> to vector<16x16xf32>
    %792 = vector.broadcast %790 : vector<1x16xf32> to vector<16x16xf32>
    %793 = arith.mulf %791, %792 : vector<16x16xf32>
    %794 = vector.extract_strided_slice %507 {offsets = [0, 23], sizes = [16, 1], strides = [1, 1]} : vector<16x32xf32> to vector<16x1xf32>
    %795 = vector.extract_strided_slice %512 {offsets = [23, 0], sizes = [1, 16], strides = [1, 1]} : vector<64x16xf32> to vector<1x16xf32>
    %796 = vector.broadcast %794 : vector<16x1xf32> to vector<16x16xf32>
    %797 = vector.broadcast %795 : vector<1x16xf32> to vector<16x16xf32>
    %798 = arith.mulf %796, %797 : vector<16x16xf32>
    %799 = arith.addf %793, %798 : vector<16x16xf32>
    %cst_136 = arith.constant 0.707106769 : f32
    %800 = vector.broadcast %cst_136 : f32 to vector<16x16xf32>
    %801 = arith.mulf %799, %800 : vector<16x16xf32>
    %cst_137 = arith.constant dense<0xFF800000> : vector<16xf32>
    %802 = vector.multi_reduction <maximumf>, %801, %cst_137 [1] : vector<16x16xf32> to vector<16xf32>
    %803 = vector.shape_cast %802 : vector<16xf32> to vector<16x1xf32>
    %804 = vector.broadcast %803 : vector<16x1xf32> to vector<16x16xf32>
    %805 = arith.subf %801, %804 : vector<16x16xf32>
    %806 = math.exp %805 : vector<16x16xf32>
    %807 = vector.extract_strided_slice %512 {offsets = [54, 0], sizes = [2, 16], strides = [1, 1]} : vector<64x16xf32> to vector<2x16xf32>
    %808 = tpu.concatenate %807, %513 in 0 : vector<2x16xf32>, vector<1x16xf32> -> vector<3x16xf32>
    %cst_138 = arith.constant dense<0.000000e+00> : vector<16x3xf32>
    %809 = tpu.matmul %806, %808, %cst_138 {dimension_numbers = #tpu.dot_dimension_numbers<[1], [1], [0], [0], [0, 0, 1, 0], [], []>} : vector<16x16xf32>, vector<3x16xf32>, vector<16x3xf32> -> vector<16x3xf32>
    %810 = vector.extract_strided_slice %809 {offsets = [0, 0], sizes = [16, 2], strides = [1, 1]} : vector<16x3xf32> to vector<16x2xf32>
    %811 = vector.extract_strided_slice %809 {offsets = [0, 2], sizes = [16, 1], strides = [1, 1]} : vector<16x3xf32> to vector<16x1xf32>
    %812 = vector.broadcast %811 : vector<16x1xf32> to vector<16x2xf32>
    %813 = arith.divf %810, %812 : vector<16x2xf32>
    %814 = vector.extract_strided_slice %507 {offsets = [0, 24], sizes = [16, 1], strides = [1, 1]} : vector<16x32xf32> to vector<16x1xf32>
    %815 = vector.extract_strided_slice %512 {offsets = [24, 0], sizes = [1, 16], strides = [1, 1]} : vector<64x16xf32> to vector<1x16xf32>
    %816 = vector.broadcast %814 : vector<16x1xf32> to vector<16x16xf32>
    %817 = vector.broadcast %815 : vector<1x16xf32> to vector<16x16xf32>
    %818 = arith.mulf %816, %817 : vector<16x16xf32>
    %819 = vector.extract_strided_slice %507 {offsets = [0, 25], sizes = [16, 1], strides = [1, 1]} : vector<16x32xf32> to vector<16x1xf32>
    %820 = vector.extract_strided_slice %512 {offsets = [25, 0], sizes = [1, 16], strides = [1, 1]} : vector<64x16xf32> to vector<1x16xf32>
    %821 = vector.broadcast %819 : vector<16x1xf32> to vector<16x16xf32>
    %822 = vector.broadcast %820 : vector<1x16xf32> to vector<16x16xf32>
    %823 = arith.mulf %821, %822 : vector<16x16xf32>
    %824 = arith.addf %818, %823 : vector<16x16xf32>
    %cst_139 = arith.constant 0.707106769 : f32
    %825 = vector.broadcast %cst_139 : f32 to vector<16x16xf32>
    %826 = arith.mulf %824, %825 : vector<16x16xf32>
    %cst_140 = arith.constant dense<0xFF800000> : vector<16xf32>
    %827 = vector.multi_reduction <maximumf>, %826, %cst_140 [1] : vector<16x16xf32> to vector<16xf32>
    %828 = vector.shape_cast %827 : vector<16xf32> to vector<16x1xf32>
    %829 = vector.broadcast %828 : vector<16x1xf32> to vector<16x16xf32>
    %830 = arith.subf %826, %829 : vector<16x16xf32>
    %831 = math.exp %830 : vector<16x16xf32>
    %832 = vector.extract_strided_slice %512 {offsets = [56, 0], sizes = [2, 16], strides = [1, 1]} : vector<64x16xf32> to vector<2x16xf32>
    %833 = tpu.concatenate %832, %513 in 0 : vector<2x16xf32>, vector<1x16xf32> -> vector<3x16xf32>
    %cst_141 = arith.constant dense<0.000000e+00> : vector<16x3xf32>
    %834 = tpu.matmul %831, %833, %cst_141 {dimension_numbers = #tpu.dot_dimension_numbers<[1], [1], [0], [0], [0, 0, 1, 0], [], []>} : vector<16x16xf32>, vector<3x16xf32>, vector<16x3xf32> -> vector<16x3xf32>
    %835 = vector.extract_strided_slice %834 {offsets = [0, 0], sizes = [16, 2], strides = [1, 1]} : vector<16x3xf32> to vector<16x2xf32>
    %836 = vector.extract_strided_slice %834 {offsets = [0, 2], sizes = [16, 1], strides = [1, 1]} : vector<16x3xf32> to vector<16x1xf32>
    %837 = vector.broadcast %836 : vector<16x1xf32> to vector<16x2xf32>
    %838 = arith.divf %835, %837 : vector<16x2xf32>
    %839 = vector.extract_strided_slice %507 {offsets = [0, 26], sizes = [16, 1], strides = [1, 1]} : vector<16x32xf32> to vector<16x1xf32>
    %840 = vector.extract_strided_slice %512 {offsets = [26, 0], sizes = [1, 16], strides = [1, 1]} : vector<64x16xf32> to vector<1x16xf32>
    %841 = vector.broadcast %839 : vector<16x1xf32> to vector<16x16xf32>
    %842 = vector.broadcast %840 : vector<1x16xf32> to vector<16x16xf32>
    %843 = arith.mulf %841, %842 : vector<16x16xf32>
    %844 = vector.extract_strided_slice %507 {offsets = [0, 27], sizes = [16, 1], strides = [1, 1]} : vector<16x32xf32> to vector<16x1xf32>
    %845 = vector.extract_strided_slice %512 {offsets = [27, 0], sizes = [1, 16], strides = [1, 1]} : vector<64x16xf32> to vector<1x16xf32>
    %846 = vector.broadcast %844 : vector<16x1xf32> to vector<16x16xf32>
    %847 = vector.broadcast %845 : vector<1x16xf32> to vector<16x16xf32>
    %848 = arith.mulf %846, %847 : vector<16x16xf32>
    %849 = arith.addf %843, %848 : vector<16x16xf32>
    %cst_142 = arith.constant 0.707106769 : f32
    %850 = vector.broadcast %cst_142 : f32 to vector<16x16xf32>
    %851 = arith.mulf %849, %850 : vector<16x16xf32>
    %cst_143 = arith.constant dense<0xFF800000> : vector<16xf32>
    %852 = vector.multi_reduction <maximumf>, %851, %cst_143 [1] : vector<16x16xf32> to vector<16xf32>
    %853 = vector.shape_cast %852 : vector<16xf32> to vector<16x1xf32>
    %854 = vector.broadcast %853 : vector<16x1xf32> to vector<16x16xf32>
    %855 = arith.subf %851, %854 : vector<16x16xf32>
    %856 = math.exp %855 : vector<16x16xf32>
    %857 = vector.extract_strided_slice %512 {offsets = [58, 0], sizes = [2, 16], strides = [1, 1]} : vector<64x16xf32> to vector<2x16xf32>
    %858 = tpu.concatenate %857, %513 in 0 : vector<2x16xf32>, vector<1x16xf32> -> vector<3x16xf32>
    %cst_144 = arith.constant dense<0.000000e+00> : vector<16x3xf32>
    %859 = tpu.matmul %856, %858, %cst_144 {dimension_numbers = #tpu.dot_dimension_numbers<[1], [1], [0], [0], [0, 0, 1, 0], [], []>} : vector<16x16xf32>, vector<3x16xf32>, vector<16x3xf32> -> vector<16x3xf32>
    %860 = vector.extract_strided_slice %859 {offsets = [0, 0], sizes = [16, 2], strides = [1, 1]} : vector<16x3xf32> to vector<16x2xf32>
    %861 = vector.extract_strided_slice %859 {offsets = [0, 2], sizes = [16, 1], strides = [1, 1]} : vector<16x3xf32> to vector<16x1xf32>
    %862 = vector.broadcast %861 : vector<16x1xf32> to vector<16x2xf32>
    %863 = arith.divf %860, %862 : vector<16x2xf32>
    %864 = vector.extract_strided_slice %507 {offsets = [0, 28], sizes = [16, 1], strides = [1, 1]} : vector<16x32xf32> to vector<16x1xf32>
    %865 = vector.extract_strided_slice %512 {offsets = [28, 0], sizes = [1, 16], strides = [1, 1]} : vector<64x16xf32> to vector<1x16xf32>
    %866 = vector.broadcast %864 : vector<16x1xf32> to vector<16x16xf32>
    %867 = vector.broadcast %865 : vector<1x16xf32> to vector<16x16xf32>
    %868 = arith.mulf %866, %867 : vector<16x16xf32>
    %869 = vector.extract_strided_slice %507 {offsets = [0, 29], sizes = [16, 1], strides = [1, 1]} : vector<16x32xf32> to vector<16x1xf32>
    %870 = vector.extract_strided_slice %512 {offsets = [29, 0], sizes = [1, 16], strides = [1, 1]} : vector<64x16xf32> to vector<1x16xf32>
    %871 = vector.broadcast %869 : vector<16x1xf32> to vector<16x16xf32>
    %872 = vector.broadcast %870 : vector<1x16xf32> to vector<16x16xf32>
    %873 = arith.mulf %871, %872 : vector<16x16xf32>
    %874 = arith.addf %868, %873 : vector<16x16xf32>
    %cst_145 = arith.constant 0.707106769 : f32
    %875 = vector.broadcast %cst_145 : f32 to vector<16x16xf32>
    %876 = arith.mulf %874, %875 : vector<16x16xf32>
    %cst_146 = arith.constant dense<0xFF800000> : vector<16xf32>
    %877 = vector.multi_reduction <maximumf>, %876, %cst_146 [1] : vector<16x16xf32> to vector<16xf32>
    %878 = vector.shape_cast %877 : vector<16xf32> to vector<16x1xf32>
    %879 = vector.broadcast %878 : vector<16x1xf32> to vector<16x16xf32>
    %880 = arith.subf %876, %879 : vector<16x16xf32>
    %881 = math.exp %880 : vector<16x16xf32>
    %882 = vector.extract_strided_slice %512 {offsets = [60, 0], sizes = [2, 16], strides = [1, 1]} : vector<64x16xf32> to vector<2x16xf32>
    %883 = tpu.concatenate %882, %513 in 0 : vector<2x16xf32>, vector<1x16xf32> -> vector<3x16xf32>
    %cst_147 = arith.constant dense<0.000000e+00> : vector<16x3xf32>
    %884 = tpu.matmul %881, %883, %cst_147 {dimension_numbers = #tpu.dot_dimension_numbers<[1], [1], [0], [0], [0, 0, 1, 0], [], []>} : vector<16x16xf32>, vector<3x16xf32>, vector<16x3xf32> -> vector<16x3xf32>
    %885 = vector.extract_strided_slice %884 {offsets = [0, 0], sizes = [16, 2], strides = [1, 1]} : vector<16x3xf32> to vector<16x2xf32>
    %886 = vector.extract_strided_slice %884 {offsets = [0, 2], sizes = [16, 1], strides = [1, 1]} : vector<16x3xf32> to vector<16x1xf32>
    %887 = vector.broadcast %886 : vector<16x1xf32> to vector<16x2xf32>
    %888 = arith.divf %885, %887 : vector<16x2xf32>
    %889 = vector.extract_strided_slice %507 {offsets = [0, 30], sizes = [16, 1], strides = [1, 1]} : vector<16x32xf32> to vector<16x1xf32>
    %890 = vector.extract_strided_slice %512 {offsets = [30, 0], sizes = [1, 16], strides = [1, 1]} : vector<64x16xf32> to vector<1x16xf32>
    %891 = vector.broadcast %889 : vector<16x1xf32> to vector<16x16xf32>
    %892 = vector.broadcast %890 : vector<1x16xf32> to vector<16x16xf32>
    %893 = arith.mulf %891, %892 : vector<16x16xf32>
    %894 = vector.extract_strided_slice %507 {offsets = [0, 31], sizes = [16, 1], strides = [1, 1]} : vector<16x32xf32> to vector<16x1xf32>
    %895 = vector.extract_strided_slice %512 {offsets = [31, 0], sizes = [1, 16], strides = [1, 1]} : vector<64x16xf32> to vector<1x16xf32>
    %896 = vector.broadcast %894 : vector<16x1xf32> to vector<16x16xf32>
    %897 = vector.broadcast %895 : vector<1x16xf32> to vector<16x16xf32>
    %898 = arith.mulf %896, %897 : vector<16x16xf32>
    %899 = arith.addf %893, %898 : vector<16x16xf32>
    %cst_148 = arith.constant 0.707106769 : f32
    %900 = vector.broadcast %cst_148 : f32 to vector<16x16xf32>
    %901 = arith.mulf %899, %900 : vector<16x16xf32>
    %cst_149 = arith.constant dense<0xFF800000> : vector<16xf32>
    %902 = vector.multi_reduction <maximumf>, %901, %cst_149 [1] : vector<16x16xf32> to vector<16xf32>
    %903 = vector.shape_cast %902 : vector<16xf32> to vector<16x1xf32>
    %904 = vector.broadcast %903 : vector<16x1xf32> to vector<16x16xf32>
    %905 = arith.subf %901, %904 : vector<16x16xf32>
    %906 = math.exp %905 : vector<16x16xf32>
    %907 = vector.extract_strided_slice %512 {offsets = [62, 0], sizes = [2, 16], strides = [1, 1]} : vector<64x16xf32> to vector<2x16xf32>
    %908 = tpu.concatenate %907, %513 in 0 : vector<2x16xf32>, vector<1x16xf32> -> vector<3x16xf32>
    %cst_150 = arith.constant dense<0.000000e+00> : vector<16x3xf32>
    %909 = tpu.matmul %906, %908, %cst_150 {dimension_numbers = #tpu.dot_dimension_numbers<[1], [1], [0], [0], [0, 0, 1, 0], [], []>} : vector<16x16xf32>, vector<3x16xf32>, vector<16x3xf32> -> vector<16x3xf32>
    %910 = vector.extract_strided_slice %909 {offsets = [0, 0], sizes = [16, 2], strides = [1, 1]} : vector<16x3xf32> to vector<16x2xf32>
    %911 = vector.extract_strided_slice %909 {offsets = [0, 2], sizes = [16, 1], strides = [1, 1]} : vector<16x3xf32> to vector<16x1xf32>
    %912 = vector.broadcast %911 : vector<16x1xf32> to vector<16x2xf32>
    %913 = arith.divf %910, %912 : vector<16x2xf32>
    %914 = tpu.concatenate %538, %563, %588, %613, %638, %663, %688, %713, %738, %763, %788, %813, %838, %863, %888, %913 in 1 : vector<16x2xf32>, vector<16x2xf32>, vector<16x2xf32>, vector<16x2xf32>, vector<16x2xf32>, vector<16x2xf32>, vector<16x2xf32>, vector<16x2xf32>, vector<16x2xf32>, vector<16x2xf32>, vector<16x2xf32>, vector<16x2xf32>, vector<16x2xf32>, vector<16x2xf32>, vector<16x2xf32>, vector<16x2xf32> -> vector<16x32xf32>
    %c888 = arith.constant 888 : index
    %c0_151 = arith.constant 0 : index
    %915 = vector.load %arg4[%c888, %c0_151] : memref<1776x128xf32, #tpu.memory_space<vmem>>, vector<32x32xf32>
    %cst_152 = arith.constant dense<0.000000e+00> : vector<16x32xf32>
    %916 = tpu.matmul %914, %915, %cst_152 {dimension_numbers = #tpu.dot_dimension_numbers<[1], [0], [0], [1], [0, 0, 1, 1], [], []>} : vector<16x32xf32>, vector<32x32xf32>, vector<16x32xf32> -> vector<16x32xf32>
    %c920 = arith.constant 920 : index
    %c0_153 = arith.constant 0 : index
    %917 = vector.load %arg4[%c920, %c0_153] : memref<1776x128xf32, #tpu.memory_space<vmem>>, vector<1x32xf32>
    %918 = vector.broadcast %917 : vector<1x32xf32> to vector<16x32xf32>
    %919 = arith.addf %916, %918 : vector<16x32xf32>
    %920 = arith.mulf %467, %919 : vector<16x32xf32>
    %921 = arith.addf %451, %920 : vector<16x32xf32>
    %cst_154 = arith.constant dense<0.000000e+00> : vector<16xf32>
    %922 = vector.multi_reduction <add>, %921, %cst_154 [1] : vector<16x32xf32> to vector<16xf32>
    %923 = vector.shape_cast %922 : vector<16xf32> to vector<16x1xf32>
    %cst_155 = arith.constant 3.200000e+01 : f32
    %924 = vector.broadcast %cst_155 : f32 to vector<16x1xf32>
    %925 = arith.divf %923, %924 : vector<16x1xf32>
    %926 = vector.broadcast %925 : vector<16x1xf32> to vector<16x32xf32>
    %927 = arith.subf %921, %926 : vector<16x32xf32>
    %928 = arith.mulf %927, %927 : vector<16x32xf32>
    %cst_156 = arith.constant dense<0.000000e+00> : vector<16xf32>
    %929 = vector.multi_reduction <add>, %928, %cst_156 [1] : vector<16x32xf32> to vector<16xf32>
    %930 = vector.shape_cast %929 : vector<16xf32> to vector<16x1xf32>
    %cst_157 = arith.constant 3.200000e+01 : f32
    %931 = vector.broadcast %cst_157 : f32 to vector<16x1xf32>
    %932 = arith.divf %930, %931 : vector<16x1xf32>
    %cst_158 = arith.constant 9.99999997E-7 : f32
    %933 = vector.broadcast %cst_158 : f32 to vector<16x1xf32>
    %934 = arith.addf %932, %933 : vector<16x1xf32>
    %935 = math.rsqrt %934 : vector<16x1xf32>
    %936 = vector.broadcast %935 : vector<16x1xf32> to vector<16x32xf32>
    %937 = arith.mulf %927, %936 : vector<16x32xf32>
    %cst_159 = arith.constant 1.000000e+00 : f32
    %938 = vector.broadcast %cst_159 : f32 to vector<16x32xf32>
    %939 = arith.addf %938, %477 : vector<16x32xf32>
    %940 = arith.mulf %937, %939 : vector<16x32xf32>
    %941 = arith.addf %940, %472 : vector<16x32xf32>
    %c928 = arith.constant 928 : index
    %c0_160 = arith.constant 0 : index
    %942 = vector.load %arg4[%c928, %c0_160] : memref<1776x128xf32, #tpu.memory_space<vmem>>, vector<32x128xf32>
    %cst_161 = arith.constant dense<0.000000e+00> : vector<16x128xf32>
    %943 = tpu.matmul %941, %942, %cst_161 {dimension_numbers = #tpu.dot_dimension_numbers<[1], [0], [0], [1], [0, 0, 1, 1], [], []>} : vector<16x32xf32>, vector<32x128xf32>, vector<16x128xf32> -> vector<16x128xf32>
    %c960 = arith.constant 960 : index
    %c0_162 = arith.constant 0 : index
    %944 = vector.load %arg4[%c960, %c0_162] : memref<1776x128xf32, #tpu.memory_space<vmem>>, vector<1x128xf32>
    %945 = vector.broadcast %944 : vector<1x128xf32> to vector<16x128xf32>
    %946 = arith.addf %943, %945 : vector<16x128xf32>
    %cst_163 = arith.constant 5.000000e-01 : f32
    %947 = vector.broadcast %cst_163 : f32 to vector<16x128xf32>
    %948 = arith.mulf %947, %946 : vector<16x128xf32>
    %cst_164 = arith.constant 4.471500e-02 : f32
    %949 = vector.broadcast %cst_164 : f32 to vector<16x128xf32>
    %950 = arith.mulf %949, %946 : vector<16x128xf32>
    %951 = arith.mulf %950, %946 : vector<16x128xf32>
    %952 = arith.mulf %951, %946 : vector<16x128xf32>
    %953 = arith.addf %946, %952 : vector<16x128xf32>
    %cst_165 = arith.constant 0.797884583 : f32
    %954 = vector.broadcast %cst_165 : f32 to vector<16x128xf32>
    %955 = arith.mulf %954, %953 : vector<16x128xf32>
    %956 = math.tanh %955 : vector<16x128xf32>
    %cst_166 = arith.constant 1.000000e+00 : f32
    %957 = vector.broadcast %cst_166 : f32 to vector<16x128xf32>
    %958 = arith.addf %957, %956 : vector<16x128xf32>
    %959 = arith.mulf %948, %958 : vector<16x128xf32>
    %c968 = arith.constant 968 : index
    %c0_167 = arith.constant 0 : index
    %960 = vector.load %arg4[%c968, %c0_167] : memref<1776x128xf32, #tpu.memory_space<vmem>>, vector<128x32xf32>
    %cst_168 = arith.constant dense<0.000000e+00> : vector<16x32xf32>
    %961 = tpu.matmul %959, %960, %cst_168 {dimension_numbers = #tpu.dot_dimension_numbers<[1], [0], [0], [1], [0, 0, 1, 1], [], []>} : vector<16x128xf32>, vector<128x32xf32>, vector<16x32xf32> -> vector<16x32xf32>
    %c1096 = arith.constant 1096 : index
    %c0_169 = arith.constant 0 : index
    %962 = vector.load %arg4[%c1096, %c0_169] : memref<1776x128xf32, #tpu.memory_space<vmem>>, vector<1x32xf32>
    %963 = vector.broadcast %962 : vector<1x32xf32> to vector<16x32xf32>
    %964 = arith.addf %961, %963 : vector<16x32xf32>
    %965 = arith.mulf %482, %964 : vector<16x32xf32>
    %966 = arith.addf %921, %965 : vector<16x32xf32>
    %c1296 = arith.constant 1296 : index
    %c0_170 = arith.constant 0 : index
    %967 = vector.load %arg4[%c1296, %c0_170] : memref<1776x128xf32, #tpu.memory_space<vmem>>, vector<6x32xf32>
    %c1104 = arith.constant 1104 : index
    %c0_171 = arith.constant 0 : index
    %968 = vector.load %arg4[%c1104, %c0_171] : memref<1776x128xf32, #tpu.memory_space<vmem>>, vector<32x32xf32>
    %cst_172 = arith.constant dense<0.000000e+00> : vector<16x32xf32>
    %969 = tpu.matmul %442, %968, %cst_172 {dimension_numbers = #tpu.dot_dimension_numbers<[1], [0], [0], [1], [0, 0, 1, 1], [], []>} : vector<16x32xf32>, vector<32x32xf32>, vector<16x32xf32> -> vector<16x32xf32>
    %970 = vector.extract_strided_slice %967 {offsets = [0, 0], sizes = [1, 32], strides = [1, 1]} : vector<6x32xf32> to vector<1x32xf32>
    %971 = vector.broadcast %970 : vector<1x32xf32> to vector<16x32xf32>
    %972 = arith.addf %969, %971 : vector<16x32xf32>
    %c1136 = arith.constant 1136 : index
    %c0_173 = arith.constant 0 : index
    %973 = vector.load %arg4[%c1136, %c0_173] : memref<1776x128xf32, #tpu.memory_space<vmem>>, vector<32x32xf32>
    %cst_174 = arith.constant dense<0.000000e+00> : vector<16x32xf32>
    %974 = tpu.matmul %442, %973, %cst_174 {dimension_numbers = #tpu.dot_dimension_numbers<[1], [0], [0], [1], [0, 0, 1, 1], [], []>} : vector<16x32xf32>, vector<32x32xf32>, vector<16x32xf32> -> vector<16x32xf32>
    %975 = vector.extract_strided_slice %967 {offsets = [1, 0], sizes = [1, 32], strides = [1, 1]} : vector<6x32xf32> to vector<1x32xf32>
    %976 = vector.broadcast %975 : vector<1x32xf32> to vector<16x32xf32>
    %977 = arith.addf %974, %976 : vector<16x32xf32>
    %c1168 = arith.constant 1168 : index
    %c0_175 = arith.constant 0 : index
    %978 = vector.load %arg4[%c1168, %c0_175] : memref<1776x128xf32, #tpu.memory_space<vmem>>, vector<32x32xf32>
    %cst_176 = arith.constant dense<0.000000e+00> : vector<16x32xf32>
    %979 = tpu.matmul %442, %978, %cst_176 {dimension_numbers = #tpu.dot_dimension_numbers<[1], [0], [0], [1], [0, 0, 1, 1], [], []>} : vector<16x32xf32>, vector<32x32xf32>, vector<16x32xf32> -> vector<16x32xf32>
    %980 = vector.extract_strided_slice %967 {offsets = [2, 0], sizes = [1, 32], strides = [1, 1]} : vector<6x32xf32> to vector<1x32xf32>
    %981 = vector.broadcast %980 : vector<1x32xf32> to vector<16x32xf32>
    %982 = arith.addf %979, %981 : vector<16x32xf32>
    %c1200 = arith.constant 1200 : index
    %c0_177 = arith.constant 0 : index
    %983 = vector.load %arg4[%c1200, %c0_177] : memref<1776x128xf32, #tpu.memory_space<vmem>>, vector<32x32xf32>
    %cst_178 = arith.constant dense<0.000000e+00> : vector<16x32xf32>
    %984 = tpu.matmul %442, %983, %cst_178 {dimension_numbers = #tpu.dot_dimension_numbers<[1], [0], [0], [1], [0, 0, 1, 1], [], []>} : vector<16x32xf32>, vector<32x32xf32>, vector<16x32xf32> -> vector<16x32xf32>
    %985 = vector.extract_strided_slice %967 {offsets = [3, 0], sizes = [1, 32], strides = [1, 1]} : vector<6x32xf32> to vector<1x32xf32>
    %986 = vector.broadcast %985 : vector<1x32xf32> to vector<16x32xf32>
    %987 = arith.addf %984, %986 : vector<16x32xf32>
    %c1232 = arith.constant 1232 : index
    %c0_179 = arith.constant 0 : index
    %988 = vector.load %arg4[%c1232, %c0_179] : memref<1776x128xf32, #tpu.memory_space<vmem>>, vector<32x32xf32>
    %cst_180 = arith.constant dense<0.000000e+00> : vector<16x32xf32>
    %989 = tpu.matmul %442, %988, %cst_180 {dimension_numbers = #tpu.dot_dimension_numbers<[1], [0], [0], [1], [0, 0, 1, 1], [], []>} : vector<16x32xf32>, vector<32x32xf32>, vector<16x32xf32> -> vector<16x32xf32>
    %990 = vector.extract_strided_slice %967 {offsets = [4, 0], sizes = [1, 32], strides = [1, 1]} : vector<6x32xf32> to vector<1x32xf32>
    %991 = vector.broadcast %990 : vector<1x32xf32> to vector<16x32xf32>
    %992 = arith.addf %989, %991 : vector<16x32xf32>
    %c1264 = arith.constant 1264 : index
    %c0_181 = arith.constant 0 : index
    %993 = vector.load %arg4[%c1264, %c0_181] : memref<1776x128xf32, #tpu.memory_space<vmem>>, vector<32x32xf32>
    %cst_182 = arith.constant dense<0.000000e+00> : vector<16x32xf32>
    %994 = tpu.matmul %442, %993, %cst_182 {dimension_numbers = #tpu.dot_dimension_numbers<[1], [0], [0], [1], [0, 0, 1, 1], [], []>} : vector<16x32xf32>, vector<32x32xf32>, vector<16x32xf32> -> vector<16x32xf32>
    %995 = vector.extract_strided_slice %967 {offsets = [5, 0], sizes = [1, 32], strides = [1, 1]} : vector<6x32xf32> to vector<1x32xf32>
    %996 = vector.broadcast %995 : vector<1x32xf32> to vector<16x32xf32>
    %997 = arith.addf %994, %996 : vector<16x32xf32>
    %cst_183 = arith.constant dense<0.000000e+00> : vector<16xf32>
    %998 = vector.multi_reduction <add>, %966, %cst_183 [1] : vector<16x32xf32> to vector<16xf32>
    %999 = vector.shape_cast %998 : vector<16xf32> to vector<16x1xf32>
    %cst_184 = arith.constant 3.200000e+01 : f32
    %1000 = vector.broadcast %cst_184 : f32 to vector<16x1xf32>
    %1001 = arith.divf %999, %1000 : vector<16x1xf32>
    %1002 = vector.broadcast %1001 : vector<16x1xf32> to vector<16x32xf32>
    %1003 = arith.subf %966, %1002 : vector<16x32xf32>
    %1004 = arith.mulf %1003, %1003 : vector<16x32xf32>
    %cst_185 = arith.constant dense<0.000000e+00> : vector<16xf32>
    %1005 = vector.multi_reduction <add>, %1004, %cst_185 [1] : vector<16x32xf32> to vector<16xf32>
    %1006 = vector.shape_cast %1005 : vector<16xf32> to vector<16x1xf32>
    %cst_186 = arith.constant 3.200000e+01 : f32
    %1007 = vector.broadcast %cst_186 : f32 to vector<16x1xf32>
    %1008 = arith.divf %1006, %1007 : vector<16x1xf32>
    %cst_187 = arith.constant 9.99999997E-7 : f32
    %1009 = vector.broadcast %cst_187 : f32 to vector<16x1xf32>
    %1010 = arith.addf %1008, %1009 : vector<16x1xf32>
    %1011 = math.rsqrt %1010 : vector<16x1xf32>
    %1012 = vector.broadcast %1011 : vector<16x1xf32> to vector<16x32xf32>
    %1013 = arith.mulf %1003, %1012 : vector<16x32xf32>
    %cst_188 = arith.constant 1.000000e+00 : f32
    %1014 = vector.broadcast %cst_188 : f32 to vector<16x32xf32>
    %1015 = arith.addf %1014, %977 : vector<16x32xf32>
    %1016 = arith.mulf %1013, %1015 : vector<16x32xf32>
    %1017 = arith.addf %1016, %972 : vector<16x32xf32>
    %c1304 = arith.constant 1304 : index
    %c0_189 = arith.constant 0 : index
    %1018 = vector.load %arg4[%c1304, %c0_189] : memref<1776x128xf32, #tpu.memory_space<vmem>>, vector<32x32xf32>
    %cst_190 = arith.constant dense<0.000000e+00> : vector<16x32xf32>
    %1019 = tpu.matmul %1017, %1018, %cst_190 {dimension_numbers = #tpu.dot_dimension_numbers<[1], [0], [0], [1], [0, 0, 1, 1], [], []>} : vector<16x32xf32>, vector<32x32xf32>, vector<16x32xf32> -> vector<16x32xf32>
    %c1336 = arith.constant 1336 : index
    %c0_191 = arith.constant 0 : index
    %1020 = vector.load %arg4[%c1336, %c0_191] : memref<1776x128xf32, #tpu.memory_space<vmem>>, vector<1x32xf32>
    %1021 = vector.broadcast %1020 : vector<1x32xf32> to vector<16x32xf32>
    %1022 = arith.addf %1019, %1021 : vector<16x32xf32>
    %c1344 = arith.constant 1344 : index
    %c0_192 = arith.constant 0 : index
    %1023 = vector.load %arg4[%c1344, %c0_192] : memref<1776x128xf32, #tpu.memory_space<vmem>>, vector<64x32xf32>
    %cst_193 = arith.constant dense<0.000000e+00> : vector<64x16xf32>
    %1024 = tpu.matmul %1023, %1017, %cst_193 {dimension_numbers = #tpu.dot_dimension_numbers<[1], [1], [0], [0], [0, 0, 1, 0], [], []>} : vector<64x32xf32>, vector<16x32xf32>, vector<64x16xf32> -> vector<64x16xf32>
    %c1408 = arith.constant 1408 : index
    %c0_194 = arith.constant 0 : index
    %1025 = vector.load %arg4[%c1408, %c0_194] : memref<1776x128xf32, #tpu.memory_space<vmem>>, vector<64x1xf32>
    %1026 = vector.broadcast %1025 : vector<64x1xf32> to vector<64x16xf32>
    %1027 = arith.addf %1024, %1026 : vector<64x16xf32>
    %cst_195 = arith.constant 1.000000e+00 : f32
    %1028 = vector.broadcast %cst_195 : f32 to vector<1x16xf32>
    %1029 = vector.extract_strided_slice %1022 {offsets = [0, 0], sizes = [16, 1], strides = [1, 1]} : vector<16x32xf32> to vector<16x1xf32>
    %1030 = vector.extract_strided_slice %1027 {offsets = [0, 0], sizes = [1, 16], strides = [1, 1]} : vector<64x16xf32> to vector<1x16xf32>
    %1031 = vector.broadcast %1029 : vector<16x1xf32> to vector<16x16xf32>
    %1032 = vector.broadcast %1030 : vector<1x16xf32> to vector<16x16xf32>
    %1033 = arith.mulf %1031, %1032 : vector<16x16xf32>
    %1034 = vector.extract_strided_slice %1022 {offsets = [0, 1], sizes = [16, 1], strides = [1, 1]} : vector<16x32xf32> to vector<16x1xf32>
    %1035 = vector.extract_strided_slice %1027 {offsets = [1, 0], sizes = [1, 16], strides = [1, 1]} : vector<64x16xf32> to vector<1x16xf32>
    %1036 = vector.broadcast %1034 : vector<16x1xf32> to vector<16x16xf32>
    %1037 = vector.broadcast %1035 : vector<1x16xf32> to vector<16x16xf32>
    %1038 = arith.mulf %1036, %1037 : vector<16x16xf32>
    %1039 = arith.addf %1033, %1038 : vector<16x16xf32>
    %cst_196 = arith.constant 0.707106769 : f32
    %1040 = vector.broadcast %cst_196 : f32 to vector<16x16xf32>
    %1041 = arith.mulf %1039, %1040 : vector<16x16xf32>
    %cst_197 = arith.constant dense<0xFF800000> : vector<16xf32>
    %1042 = vector.multi_reduction <maximumf>, %1041, %cst_197 [1] : vector<16x16xf32> to vector<16xf32>
    %1043 = vector.shape_cast %1042 : vector<16xf32> to vector<16x1xf32>
    %1044 = vector.broadcast %1043 : vector<16x1xf32> to vector<16x16xf32>
    %1045 = arith.subf %1041, %1044 : vector<16x16xf32>
    %1046 = math.exp %1045 : vector<16x16xf32>
    %1047 = vector.extract_strided_slice %1027 {offsets = [32, 0], sizes = [2, 16], strides = [1, 1]} : vector<64x16xf32> to vector<2x16xf32>
    %1048 = tpu.concatenate %1047, %1028 in 0 : vector<2x16xf32>, vector<1x16xf32> -> vector<3x16xf32>
    %cst_198 = arith.constant dense<0.000000e+00> : vector<16x3xf32>
    %1049 = tpu.matmul %1046, %1048, %cst_198 {dimension_numbers = #tpu.dot_dimension_numbers<[1], [1], [0], [0], [0, 0, 1, 0], [], []>} : vector<16x16xf32>, vector<3x16xf32>, vector<16x3xf32> -> vector<16x3xf32>
    %1050 = vector.extract_strided_slice %1049 {offsets = [0, 0], sizes = [16, 2], strides = [1, 1]} : vector<16x3xf32> to vector<16x2xf32>
    %1051 = vector.extract_strided_slice %1049 {offsets = [0, 2], sizes = [16, 1], strides = [1, 1]} : vector<16x3xf32> to vector<16x1xf32>
    %1052 = vector.broadcast %1051 : vector<16x1xf32> to vector<16x2xf32>
    %1053 = arith.divf %1050, %1052 : vector<16x2xf32>
    %1054 = vector.extract_strided_slice %1022 {offsets = [0, 2], sizes = [16, 1], strides = [1, 1]} : vector<16x32xf32> to vector<16x1xf32>
    %1055 = vector.extract_strided_slice %1027 {offsets = [2, 0], sizes = [1, 16], strides = [1, 1]} : vector<64x16xf32> to vector<1x16xf32>
    %1056 = vector.broadcast %1054 : vector<16x1xf32> to vector<16x16xf32>
    %1057 = vector.broadcast %1055 : vector<1x16xf32> to vector<16x16xf32>
    %1058 = arith.mulf %1056, %1057 : vector<16x16xf32>
    %1059 = vector.extract_strided_slice %1022 {offsets = [0, 3], sizes = [16, 1], strides = [1, 1]} : vector<16x32xf32> to vector<16x1xf32>
    %1060 = vector.extract_strided_slice %1027 {offsets = [3, 0], sizes = [1, 16], strides = [1, 1]} : vector<64x16xf32> to vector<1x16xf32>
    %1061 = vector.broadcast %1059 : vector<16x1xf32> to vector<16x16xf32>
    %1062 = vector.broadcast %1060 : vector<1x16xf32> to vector<16x16xf32>
    %1063 = arith.mulf %1061, %1062 : vector<16x16xf32>
    %1064 = arith.addf %1058, %1063 : vector<16x16xf32>
    %cst_199 = arith.constant 0.707106769 : f32
    %1065 = vector.broadcast %cst_199 : f32 to vector<16x16xf32>
    %1066 = arith.mulf %1064, %1065 : vector<16x16xf32>
    %cst_200 = arith.constant dense<0xFF800000> : vector<16xf32>
    %1067 = vector.multi_reduction <maximumf>, %1066, %cst_200 [1] : vector<16x16xf32> to vector<16xf32>
    %1068 = vector.shape_cast %1067 : vector<16xf32> to vector<16x1xf32>
    %1069 = vector.broadcast %1068 : vector<16x1xf32> to vector<16x16xf32>
    %1070 = arith.subf %1066, %1069 : vector<16x16xf32>
    %1071 = math.exp %1070 : vector<16x16xf32>
    %1072 = vector.extract_strided_slice %1027 {offsets = [34, 0], sizes = [2, 16], strides = [1, 1]} : vector<64x16xf32> to vector<2x16xf32>
    %1073 = tpu.concatenate %1072, %1028 in 0 : vector<2x16xf32>, vector<1x16xf32> -> vector<3x16xf32>
    %cst_201 = arith.constant dense<0.000000e+00> : vector<16x3xf32>
    %1074 = tpu.matmul %1071, %1073, %cst_201 {dimension_numbers = #tpu.dot_dimension_numbers<[1], [1], [0], [0], [0, 0, 1, 0], [], []>} : vector<16x16xf32>, vector<3x16xf32>, vector<16x3xf32> -> vector<16x3xf32>
    %1075 = vector.extract_strided_slice %1074 {offsets = [0, 0], sizes = [16, 2], strides = [1, 1]} : vector<16x3xf32> to vector<16x2xf32>
    %1076 = vector.extract_strided_slice %1074 {offsets = [0, 2], sizes = [16, 1], strides = [1, 1]} : vector<16x3xf32> to vector<16x1xf32>
    %1077 = vector.broadcast %1076 : vector<16x1xf32> to vector<16x2xf32>
    %1078 = arith.divf %1075, %1077 : vector<16x2xf32>
    %1079 = vector.extract_strided_slice %1022 {offsets = [0, 4], sizes = [16, 1], strides = [1, 1]} : vector<16x32xf32> to vector<16x1xf32>
    %1080 = vector.extract_strided_slice %1027 {offsets = [4, 0], sizes = [1, 16], strides = [1, 1]} : vector<64x16xf32> to vector<1x16xf32>
    %1081 = vector.broadcast %1079 : vector<16x1xf32> to vector<16x16xf32>
    %1082 = vector.broadcast %1080 : vector<1x16xf32> to vector<16x16xf32>
    %1083 = arith.mulf %1081, %1082 : vector<16x16xf32>
    %1084 = vector.extract_strided_slice %1022 {offsets = [0, 5], sizes = [16, 1], strides = [1, 1]} : vector<16x32xf32> to vector<16x1xf32>
    %1085 = vector.extract_strided_slice %1027 {offsets = [5, 0], sizes = [1, 16], strides = [1, 1]} : vector<64x16xf32> to vector<1x16xf32>
    %1086 = vector.broadcast %1084 : vector<16x1xf32> to vector<16x16xf32>
    %1087 = vector.broadcast %1085 : vector<1x16xf32> to vector<16x16xf32>
    %1088 = arith.mulf %1086, %1087 : vector<16x16xf32>
    %1089 = arith.addf %1083, %1088 : vector<16x16xf32>
    %cst_202 = arith.constant 0.707106769 : f32
    %1090 = vector.broadcast %cst_202 : f32 to vector<16x16xf32>
    %1091 = arith.mulf %1089, %1090 : vector<16x16xf32>
    %cst_203 = arith.constant dense<0xFF800000> : vector<16xf32>
    %1092 = vector.multi_reduction <maximumf>, %1091, %cst_203 [1] : vector<16x16xf32> to vector<16xf32>
    %1093 = vector.shape_cast %1092 : vector<16xf32> to vector<16x1xf32>
    %1094 = vector.broadcast %1093 : vector<16x1xf32> to vector<16x16xf32>
    %1095 = arith.subf %1091, %1094 : vector<16x16xf32>
    %1096 = math.exp %1095 : vector<16x16xf32>
    %1097 = vector.extract_strided_slice %1027 {offsets = [36, 0], sizes = [2, 16], strides = [1, 1]} : vector<64x16xf32> to vector<2x16xf32>
    %1098 = tpu.concatenate %1097, %1028 in 0 : vector<2x16xf32>, vector<1x16xf32> -> vector<3x16xf32>
    %cst_204 = arith.constant dense<0.000000e+00> : vector<16x3xf32>
    %1099 = tpu.matmul %1096, %1098, %cst_204 {dimension_numbers = #tpu.dot_dimension_numbers<[1], [1], [0], [0], [0, 0, 1, 0], [], []>} : vector<16x16xf32>, vector<3x16xf32>, vector<16x3xf32> -> vector<16x3xf32>
    %1100 = vector.extract_strided_slice %1099 {offsets = [0, 0], sizes = [16, 2], strides = [1, 1]} : vector<16x3xf32> to vector<16x2xf32>
    %1101 = vector.extract_strided_slice %1099 {offsets = [0, 2], sizes = [16, 1], strides = [1, 1]} : vector<16x3xf32> to vector<16x1xf32>
    %1102 = vector.broadcast %1101 : vector<16x1xf32> to vector<16x2xf32>
    %1103 = arith.divf %1100, %1102 : vector<16x2xf32>
    %1104 = vector.extract_strided_slice %1022 {offsets = [0, 6], sizes = [16, 1], strides = [1, 1]} : vector<16x32xf32> to vector<16x1xf32>
    %1105 = vector.extract_strided_slice %1027 {offsets = [6, 0], sizes = [1, 16], strides = [1, 1]} : vector<64x16xf32> to vector<1x16xf32>
    %1106 = vector.broadcast %1104 : vector<16x1xf32> to vector<16x16xf32>
    %1107 = vector.broadcast %1105 : vector<1x16xf32> to vector<16x16xf32>
    %1108 = arith.mulf %1106, %1107 : vector<16x16xf32>
    %1109 = vector.extract_strided_slice %1022 {offsets = [0, 7], sizes = [16, 1], strides = [1, 1]} : vector<16x32xf32> to vector<16x1xf32>
    %1110 = vector.extract_strided_slice %1027 {offsets = [7, 0], sizes = [1, 16], strides = [1, 1]} : vector<64x16xf32> to vector<1x16xf32>
    %1111 = vector.broadcast %1109 : vector<16x1xf32> to vector<16x16xf32>
    %1112 = vector.broadcast %1110 : vector<1x16xf32> to vector<16x16xf32>
    %1113 = arith.mulf %1111, %1112 : vector<16x16xf32>
    %1114 = arith.addf %1108, %1113 : vector<16x16xf32>
    %cst_205 = arith.constant 0.707106769 : f32
    %1115 = vector.broadcast %cst_205 : f32 to vector<16x16xf32>
    %1116 = arith.mulf %1114, %1115 : vector<16x16xf32>
    %cst_206 = arith.constant dense<0xFF800000> : vector<16xf32>
    %1117 = vector.multi_reduction <maximumf>, %1116, %cst_206 [1] : vector<16x16xf32> to vector<16xf32>
    %1118 = vector.shape_cast %1117 : vector<16xf32> to vector<16x1xf32>
    %1119 = vector.broadcast %1118 : vector<16x1xf32> to vector<16x16xf32>
    %1120 = arith.subf %1116, %1119 : vector<16x16xf32>
    %1121 = math.exp %1120 : vector<16x16xf32>
    %1122 = vector.extract_strided_slice %1027 {offsets = [38, 0], sizes = [2, 16], strides = [1, 1]} : vector<64x16xf32> to vector<2x16xf32>
    %1123 = tpu.concatenate %1122, %1028 in 0 : vector<2x16xf32>, vector<1x16xf32> -> vector<3x16xf32>
    %cst_207 = arith.constant dense<0.000000e+00> : vector<16x3xf32>
    %1124 = tpu.matmul %1121, %1123, %cst_207 {dimension_numbers = #tpu.dot_dimension_numbers<[1], [1], [0], [0], [0, 0, 1, 0], [], []>} : vector<16x16xf32>, vector<3x16xf32>, vector<16x3xf32> -> vector<16x3xf32>
    %1125 = vector.extract_strided_slice %1124 {offsets = [0, 0], sizes = [16, 2], strides = [1, 1]} : vector<16x3xf32> to vector<16x2xf32>
    %1126 = vector.extract_strided_slice %1124 {offsets = [0, 2], sizes = [16, 1], strides = [1, 1]} : vector<16x3xf32> to vector<16x1xf32>
    %1127 = vector.broadcast %1126 : vector<16x1xf32> to vector<16x2xf32>
    %1128 = arith.divf %1125, %1127 : vector<16x2xf32>
    %1129 = vector.extract_strided_slice %1022 {offsets = [0, 8], sizes = [16, 1], strides = [1, 1]} : vector<16x32xf32> to vector<16x1xf32>
    %1130 = vector.extract_strided_slice %1027 {offsets = [8, 0], sizes = [1, 16], strides = [1, 1]} : vector<64x16xf32> to vector<1x16xf32>
    %1131 = vector.broadcast %1129 : vector<16x1xf32> to vector<16x16xf32>
    %1132 = vector.broadcast %1130 : vector<1x16xf32> to vector<16x16xf32>
    %1133 = arith.mulf %1131, %1132 : vector<16x16xf32>
    %1134 = vector.extract_strided_slice %1022 {offsets = [0, 9], sizes = [16, 1], strides = [1, 1]} : vector<16x32xf32> to vector<16x1xf32>
    %1135 = vector.extract_strided_slice %1027 {offsets = [9, 0], sizes = [1, 16], strides = [1, 1]} : vector<64x16xf32> to vector<1x16xf32>
    %1136 = vector.broadcast %1134 : vector<16x1xf32> to vector<16x16xf32>
    %1137 = vector.broadcast %1135 : vector<1x16xf32> to vector<16x16xf32>
    %1138 = arith.mulf %1136, %1137 : vector<16x16xf32>
    %1139 = arith.addf %1133, %1138 : vector<16x16xf32>
    %cst_208 = arith.constant 0.707106769 : f32
    %1140 = vector.broadcast %cst_208 : f32 to vector<16x16xf32>
    %1141 = arith.mulf %1139, %1140 : vector<16x16xf32>
    %cst_209 = arith.constant dense<0xFF800000> : vector<16xf32>
    %1142 = vector.multi_reduction <maximumf>, %1141, %cst_209 [1] : vector<16x16xf32> to vector<16xf32>
    %1143 = vector.shape_cast %1142 : vector<16xf32> to vector<16x1xf32>
    %1144 = vector.broadcast %1143 : vector<16x1xf32> to vector<16x16xf32>
    %1145 = arith.subf %1141, %1144 : vector<16x16xf32>
    %1146 = math.exp %1145 : vector<16x16xf32>
    %1147 = vector.extract_strided_slice %1027 {offsets = [40, 0], sizes = [2, 16], strides = [1, 1]} : vector<64x16xf32> to vector<2x16xf32>
    %1148 = tpu.concatenate %1147, %1028 in 0 : vector<2x16xf32>, vector<1x16xf32> -> vector<3x16xf32>
    %cst_210 = arith.constant dense<0.000000e+00> : vector<16x3xf32>
    %1149 = tpu.matmul %1146, %1148, %cst_210 {dimension_numbers = #tpu.dot_dimension_numbers<[1], [1], [0], [0], [0, 0, 1, 0], [], []>} : vector<16x16xf32>, vector<3x16xf32>, vector<16x3xf32> -> vector<16x3xf32>
    %1150 = vector.extract_strided_slice %1149 {offsets = [0, 0], sizes = [16, 2], strides = [1, 1]} : vector<16x3xf32> to vector<16x2xf32>
    %1151 = vector.extract_strided_slice %1149 {offsets = [0, 2], sizes = [16, 1], strides = [1, 1]} : vector<16x3xf32> to vector<16x1xf32>
    %1152 = vector.broadcast %1151 : vector<16x1xf32> to vector<16x2xf32>
    %1153 = arith.divf %1150, %1152 : vector<16x2xf32>
    %1154 = vector.extract_strided_slice %1022 {offsets = [0, 10], sizes = [16, 1], strides = [1, 1]} : vector<16x32xf32> to vector<16x1xf32>
    %1155 = vector.extract_strided_slice %1027 {offsets = [10, 0], sizes = [1, 16], strides = [1, 1]} : vector<64x16xf32> to vector<1x16xf32>
    %1156 = vector.broadcast %1154 : vector<16x1xf32> to vector<16x16xf32>
    %1157 = vector.broadcast %1155 : vector<1x16xf32> to vector<16x16xf32>
    %1158 = arith.mulf %1156, %1157 : vector<16x16xf32>
    %1159 = vector.extract_strided_slice %1022 {offsets = [0, 11], sizes = [16, 1], strides = [1, 1]} : vector<16x32xf32> to vector<16x1xf32>
    %1160 = vector.extract_strided_slice %1027 {offsets = [11, 0], sizes = [1, 16], strides = [1, 1]} : vector<64x16xf32> to vector<1x16xf32>
    %1161 = vector.broadcast %1159 : vector<16x1xf32> to vector<16x16xf32>
    %1162 = vector.broadcast %1160 : vector<1x16xf32> to vector<16x16xf32>
    %1163 = arith.mulf %1161, %1162 : vector<16x16xf32>
    %1164 = arith.addf %1158, %1163 : vector<16x16xf32>
    %cst_211 = arith.constant 0.707106769 : f32
    %1165 = vector.broadcast %cst_211 : f32 to vector<16x16xf32>
    %1166 = arith.mulf %1164, %1165 : vector<16x16xf32>
    %cst_212 = arith.constant dense<0xFF800000> : vector<16xf32>
    %1167 = vector.multi_reduction <maximumf>, %1166, %cst_212 [1] : vector<16x16xf32> to vector<16xf32>
    %1168 = vector.shape_cast %1167 : vector<16xf32> to vector<16x1xf32>
    %1169 = vector.broadcast %1168 : vector<16x1xf32> to vector<16x16xf32>
    %1170 = arith.subf %1166, %1169 : vector<16x16xf32>
    %1171 = math.exp %1170 : vector<16x16xf32>
    %1172 = vector.extract_strided_slice %1027 {offsets = [42, 0], sizes = [2, 16], strides = [1, 1]} : vector<64x16xf32> to vector<2x16xf32>
    %1173 = tpu.concatenate %1172, %1028 in 0 : vector<2x16xf32>, vector<1x16xf32> -> vector<3x16xf32>
    %cst_213 = arith.constant dense<0.000000e+00> : vector<16x3xf32>
    %1174 = tpu.matmul %1171, %1173, %cst_213 {dimension_numbers = #tpu.dot_dimension_numbers<[1], [1], [0], [0], [0, 0, 1, 0], [], []>} : vector<16x16xf32>, vector<3x16xf32>, vector<16x3xf32> -> vector<16x3xf32>
    %1175 = vector.extract_strided_slice %1174 {offsets = [0, 0], sizes = [16, 2], strides = [1, 1]} : vector<16x3xf32> to vector<16x2xf32>
    %1176 = vector.extract_strided_slice %1174 {offsets = [0, 2], sizes = [16, 1], strides = [1, 1]} : vector<16x3xf32> to vector<16x1xf32>
    %1177 = vector.broadcast %1176 : vector<16x1xf32> to vector<16x2xf32>
    %1178 = arith.divf %1175, %1177 : vector<16x2xf32>
    %1179 = vector.extract_strided_slice %1022 {offsets = [0, 12], sizes = [16, 1], strides = [1, 1]} : vector<16x32xf32> to vector<16x1xf32>
    %1180 = vector.extract_strided_slice %1027 {offsets = [12, 0], sizes = [1, 16], strides = [1, 1]} : vector<64x16xf32> to vector<1x16xf32>
    %1181 = vector.broadcast %1179 : vector<16x1xf32> to vector<16x16xf32>
    %1182 = vector.broadcast %1180 : vector<1x16xf32> to vector<16x16xf32>
    %1183 = arith.mulf %1181, %1182 : vector<16x16xf32>
    %1184 = vector.extract_strided_slice %1022 {offsets = [0, 13], sizes = [16, 1], strides = [1, 1]} : vector<16x32xf32> to vector<16x1xf32>
    %1185 = vector.extract_strided_slice %1027 {offsets = [13, 0], sizes = [1, 16], strides = [1, 1]} : vector<64x16xf32> to vector<1x16xf32>
    %1186 = vector.broadcast %1184 : vector<16x1xf32> to vector<16x16xf32>
    %1187 = vector.broadcast %1185 : vector<1x16xf32> to vector<16x16xf32>
    %1188 = arith.mulf %1186, %1187 : vector<16x16xf32>
    %1189 = arith.addf %1183, %1188 : vector<16x16xf32>
    %cst_214 = arith.constant 0.707106769 : f32
    %1190 = vector.broadcast %cst_214 : f32 to vector<16x16xf32>
    %1191 = arith.mulf %1189, %1190 : vector<16x16xf32>
    %cst_215 = arith.constant dense<0xFF800000> : vector<16xf32>
    %1192 = vector.multi_reduction <maximumf>, %1191, %cst_215 [1] : vector<16x16xf32> to vector<16xf32>
    %1193 = vector.shape_cast %1192 : vector<16xf32> to vector<16x1xf32>
    %1194 = vector.broadcast %1193 : vector<16x1xf32> to vector<16x16xf32>
    %1195 = arith.subf %1191, %1194 : vector<16x16xf32>
    %1196 = math.exp %1195 : vector<16x16xf32>
    %1197 = vector.extract_strided_slice %1027 {offsets = [44, 0], sizes = [2, 16], strides = [1, 1]} : vector<64x16xf32> to vector<2x16xf32>
    %1198 = tpu.concatenate %1197, %1028 in 0 : vector<2x16xf32>, vector<1x16xf32> -> vector<3x16xf32>
    %cst_216 = arith.constant dense<0.000000e+00> : vector<16x3xf32>
    %1199 = tpu.matmul %1196, %1198, %cst_216 {dimension_numbers = #tpu.dot_dimension_numbers<[1], [1], [0], [0], [0, 0, 1, 0], [], []>} : vector<16x16xf32>, vector<3x16xf32>, vector<16x3xf32> -> vector<16x3xf32>
    %1200 = vector.extract_strided_slice %1199 {offsets = [0, 0], sizes = [16, 2], strides = [1, 1]} : vector<16x3xf32> to vector<16x2xf32>
    %1201 = vector.extract_strided_slice %1199 {offsets = [0, 2], sizes = [16, 1], strides = [1, 1]} : vector<16x3xf32> to vector<16x1xf32>
    %1202 = vector.broadcast %1201 : vector<16x1xf32> to vector<16x2xf32>
    %1203 = arith.divf %1200, %1202 : vector<16x2xf32>
    %1204 = vector.extract_strided_slice %1022 {offsets = [0, 14], sizes = [16, 1], strides = [1, 1]} : vector<16x32xf32> to vector<16x1xf32>
    %1205 = vector.extract_strided_slice %1027 {offsets = [14, 0], sizes = [1, 16], strides = [1, 1]} : vector<64x16xf32> to vector<1x16xf32>
    %1206 = vector.broadcast %1204 : vector<16x1xf32> to vector<16x16xf32>
    %1207 = vector.broadcast %1205 : vector<1x16xf32> to vector<16x16xf32>
    %1208 = arith.mulf %1206, %1207 : vector<16x16xf32>
    %1209 = vector.extract_strided_slice %1022 {offsets = [0, 15], sizes = [16, 1], strides = [1, 1]} : vector<16x32xf32> to vector<16x1xf32>
    %1210 = vector.extract_strided_slice %1027 {offsets = [15, 0], sizes = [1, 16], strides = [1, 1]} : vector<64x16xf32> to vector<1x16xf32>
    %1211 = vector.broadcast %1209 : vector<16x1xf32> to vector<16x16xf32>
    %1212 = vector.broadcast %1210 : vector<1x16xf32> to vector<16x16xf32>
    %1213 = arith.mulf %1211, %1212 : vector<16x16xf32>
    %1214 = arith.addf %1208, %1213 : vector<16x16xf32>
    %cst_217 = arith.constant 0.707106769 : f32
    %1215 = vector.broadcast %cst_217 : f32 to vector<16x16xf32>
    %1216 = arith.mulf %1214, %1215 : vector<16x16xf32>
    %cst_218 = arith.constant dense<0xFF800000> : vector<16xf32>
    %1217 = vector.multi_reduction <maximumf>, %1216, %cst_218 [1] : vector<16x16xf32> to vector<16xf32>
    %1218 = vector.shape_cast %1217 : vector<16xf32> to vector<16x1xf32>
    %1219 = vector.broadcast %1218 : vector<16x1xf32> to vector<16x16xf32>
    %1220 = arith.subf %1216, %1219 : vector<16x16xf32>
    %1221 = math.exp %1220 : vector<16x16xf32>
    %1222 = vector.extract_strided_slice %1027 {offsets = [46, 0], sizes = [2, 16], strides = [1, 1]} : vector<64x16xf32> to vector<2x16xf32>
    %1223 = tpu.concatenate %1222, %1028 in 0 : vector<2x16xf32>, vector<1x16xf32> -> vector<3x16xf32>
    %cst_219 = arith.constant dense<0.000000e+00> : vector<16x3xf32>
    %1224 = tpu.matmul %1221, %1223, %cst_219 {dimension_numbers = #tpu.dot_dimension_numbers<[1], [1], [0], [0], [0, 0, 1, 0], [], []>} : vector<16x16xf32>, vector<3x16xf32>, vector<16x3xf32> -> vector<16x3xf32>
    %1225 = vector.extract_strided_slice %1224 {offsets = [0, 0], sizes = [16, 2], strides = [1, 1]} : vector<16x3xf32> to vector<16x2xf32>
    %1226 = vector.extract_strided_slice %1224 {offsets = [0, 2], sizes = [16, 1], strides = [1, 1]} : vector<16x3xf32> to vector<16x1xf32>
    %1227 = vector.broadcast %1226 : vector<16x1xf32> to vector<16x2xf32>
    %1228 = arith.divf %1225, %1227 : vector<16x2xf32>
    %1229 = vector.extract_strided_slice %1022 {offsets = [0, 16], sizes = [16, 1], strides = [1, 1]} : vector<16x32xf32> to vector<16x1xf32>
    %1230 = vector.extract_strided_slice %1027 {offsets = [16, 0], sizes = [1, 16], strides = [1, 1]} : vector<64x16xf32> to vector<1x16xf32>
    %1231 = vector.broadcast %1229 : vector<16x1xf32> to vector<16x16xf32>
    %1232 = vector.broadcast %1230 : vector<1x16xf32> to vector<16x16xf32>
    %1233 = arith.mulf %1231, %1232 : vector<16x16xf32>
    %1234 = vector.extract_strided_slice %1022 {offsets = [0, 17], sizes = [16, 1], strides = [1, 1]} : vector<16x32xf32> to vector<16x1xf32>
    %1235 = vector.extract_strided_slice %1027 {offsets = [17, 0], sizes = [1, 16], strides = [1, 1]} : vector<64x16xf32> to vector<1x16xf32>
    %1236 = vector.broadcast %1234 : vector<16x1xf32> to vector<16x16xf32>
    %1237 = vector.broadcast %1235 : vector<1x16xf32> to vector<16x16xf32>
    %1238 = arith.mulf %1236, %1237 : vector<16x16xf32>
    %1239 = arith.addf %1233, %1238 : vector<16x16xf32>
    %cst_220 = arith.constant 0.707106769 : f32
    %1240 = vector.broadcast %cst_220 : f32 to vector<16x16xf32>
    %1241 = arith.mulf %1239, %1240 : vector<16x16xf32>
    %cst_221 = arith.constant dense<0xFF800000> : vector<16xf32>
    %1242 = vector.multi_reduction <maximumf>, %1241, %cst_221 [1] : vector<16x16xf32> to vector<16xf32>
    %1243 = vector.shape_cast %1242 : vector<16xf32> to vector<16x1xf32>
    %1244 = vector.broadcast %1243 : vector<16x1xf32> to vector<16x16xf32>
    %1245 = arith.subf %1241, %1244 : vector<16x16xf32>
    %1246 = math.exp %1245 : vector<16x16xf32>
    %1247 = vector.extract_strided_slice %1027 {offsets = [48, 0], sizes = [2, 16], strides = [1, 1]} : vector<64x16xf32> to vector<2x16xf32>
    %1248 = tpu.concatenate %1247, %1028 in 0 : vector<2x16xf32>, vector<1x16xf32> -> vector<3x16xf32>
    %cst_222 = arith.constant dense<0.000000e+00> : vector<16x3xf32>
    %1249 = tpu.matmul %1246, %1248, %cst_222 {dimension_numbers = #tpu.dot_dimension_numbers<[1], [1], [0], [0], [0, 0, 1, 0], [], []>} : vector<16x16xf32>, vector<3x16xf32>, vector<16x3xf32> -> vector<16x3xf32>
    %1250 = vector.extract_strided_slice %1249 {offsets = [0, 0], sizes = [16, 2], strides = [1, 1]} : vector<16x3xf32> to vector<16x2xf32>
    %1251 = vector.extract_strided_slice %1249 {offsets = [0, 2], sizes = [16, 1], strides = [1, 1]} : vector<16x3xf32> to vector<16x1xf32>
    %1252 = vector.broadcast %1251 : vector<16x1xf32> to vector<16x2xf32>
    %1253 = arith.divf %1250, %1252 : vector<16x2xf32>
    %1254 = vector.extract_strided_slice %1022 {offsets = [0, 18], sizes = [16, 1], strides = [1, 1]} : vector<16x32xf32> to vector<16x1xf32>
    %1255 = vector.extract_strided_slice %1027 {offsets = [18, 0], sizes = [1, 16], strides = [1, 1]} : vector<64x16xf32> to vector<1x16xf32>
    %1256 = vector.broadcast %1254 : vector<16x1xf32> to vector<16x16xf32>
    %1257 = vector.broadcast %1255 : vector<1x16xf32> to vector<16x16xf32>
    %1258 = arith.mulf %1256, %1257 : vector<16x16xf32>
    %1259 = vector.extract_strided_slice %1022 {offsets = [0, 19], sizes = [16, 1], strides = [1, 1]} : vector<16x32xf32> to vector<16x1xf32>
    %1260 = vector.extract_strided_slice %1027 {offsets = [19, 0], sizes = [1, 16], strides = [1, 1]} : vector<64x16xf32> to vector<1x16xf32>
    %1261 = vector.broadcast %1259 : vector<16x1xf32> to vector<16x16xf32>
    %1262 = vector.broadcast %1260 : vector<1x16xf32> to vector<16x16xf32>
    %1263 = arith.mulf %1261, %1262 : vector<16x16xf32>
    %1264 = arith.addf %1258, %1263 : vector<16x16xf32>
    %cst_223 = arith.constant 0.707106769 : f32
    %1265 = vector.broadcast %cst_223 : f32 to vector<16x16xf32>
    %1266 = arith.mulf %1264, %1265 : vector<16x16xf32>
    %cst_224 = arith.constant dense<0xFF800000> : vector<16xf32>
    %1267 = vector.multi_reduction <maximumf>, %1266, %cst_224 [1] : vector<16x16xf32> to vector<16xf32>
    %1268 = vector.shape_cast %1267 : vector<16xf32> to vector<16x1xf32>
    %1269 = vector.broadcast %1268 : vector<16x1xf32> to vector<16x16xf32>
    %1270 = arith.subf %1266, %1269 : vector<16x16xf32>
    %1271 = math.exp %1270 : vector<16x16xf32>
    %1272 = vector.extract_strided_slice %1027 {offsets = [50, 0], sizes = [2, 16], strides = [1, 1]} : vector<64x16xf32> to vector<2x16xf32>
    %1273 = tpu.concatenate %1272, %1028 in 0 : vector<2x16xf32>, vector<1x16xf32> -> vector<3x16xf32>
    %cst_225 = arith.constant dense<0.000000e+00> : vector<16x3xf32>
    %1274 = tpu.matmul %1271, %1273, %cst_225 {dimension_numbers = #tpu.dot_dimension_numbers<[1], [1], [0], [0], [0, 0, 1, 0], [], []>} : vector<16x16xf32>, vector<3x16xf32>, vector<16x3xf32> -> vector<16x3xf32>
    %1275 = vector.extract_strided_slice %1274 {offsets = [0, 0], sizes = [16, 2], strides = [1, 1]} : vector<16x3xf32> to vector<16x2xf32>
    %1276 = vector.extract_strided_slice %1274 {offsets = [0, 2], sizes = [16, 1], strides = [1, 1]} : vector<16x3xf32> to vector<16x1xf32>
    %1277 = vector.broadcast %1276 : vector<16x1xf32> to vector<16x2xf32>
    %1278 = arith.divf %1275, %1277 : vector<16x2xf32>
    %1279 = vector.extract_strided_slice %1022 {offsets = [0, 20], sizes = [16, 1], strides = [1, 1]} : vector<16x32xf32> to vector<16x1xf32>
    %1280 = vector.extract_strided_slice %1027 {offsets = [20, 0], sizes = [1, 16], strides = [1, 1]} : vector<64x16xf32> to vector<1x16xf32>
    %1281 = vector.broadcast %1279 : vector<16x1xf32> to vector<16x16xf32>
    %1282 = vector.broadcast %1280 : vector<1x16xf32> to vector<16x16xf32>
    %1283 = arith.mulf %1281, %1282 : vector<16x16xf32>
    %1284 = vector.extract_strided_slice %1022 {offsets = [0, 21], sizes = [16, 1], strides = [1, 1]} : vector<16x32xf32> to vector<16x1xf32>
    %1285 = vector.extract_strided_slice %1027 {offsets = [21, 0], sizes = [1, 16], strides = [1, 1]} : vector<64x16xf32> to vector<1x16xf32>
    %1286 = vector.broadcast %1284 : vector<16x1xf32> to vector<16x16xf32>
    %1287 = vector.broadcast %1285 : vector<1x16xf32> to vector<16x16xf32>
    %1288 = arith.mulf %1286, %1287 : vector<16x16xf32>
    %1289 = arith.addf %1283, %1288 : vector<16x16xf32>
    %cst_226 = arith.constant 0.707106769 : f32
    %1290 = vector.broadcast %cst_226 : f32 to vector<16x16xf32>
    %1291 = arith.mulf %1289, %1290 : vector<16x16xf32>
    %cst_227 = arith.constant dense<0xFF800000> : vector<16xf32>
    %1292 = vector.multi_reduction <maximumf>, %1291, %cst_227 [1] : vector<16x16xf32> to vector<16xf32>
    %1293 = vector.shape_cast %1292 : vector<16xf32> to vector<16x1xf32>
    %1294 = vector.broadcast %1293 : vector<16x1xf32> to vector<16x16xf32>
    %1295 = arith.subf %1291, %1294 : vector<16x16xf32>
    %1296 = math.exp %1295 : vector<16x16xf32>
    %1297 = vector.extract_strided_slice %1027 {offsets = [52, 0], sizes = [2, 16], strides = [1, 1]} : vector<64x16xf32> to vector<2x16xf32>
    %1298 = tpu.concatenate %1297, %1028 in 0 : vector<2x16xf32>, vector<1x16xf32> -> vector<3x16xf32>
    %cst_228 = arith.constant dense<0.000000e+00> : vector<16x3xf32>
    %1299 = tpu.matmul %1296, %1298, %cst_228 {dimension_numbers = #tpu.dot_dimension_numbers<[1], [1], [0], [0], [0, 0, 1, 0], [], []>} : vector<16x16xf32>, vector<3x16xf32>, vector<16x3xf32> -> vector<16x3xf32>
    %1300 = vector.extract_strided_slice %1299 {offsets = [0, 0], sizes = [16, 2], strides = [1, 1]} : vector<16x3xf32> to vector<16x2xf32>
    %1301 = vector.extract_strided_slice %1299 {offsets = [0, 2], sizes = [16, 1], strides = [1, 1]} : vector<16x3xf32> to vector<16x1xf32>
    %1302 = vector.broadcast %1301 : vector<16x1xf32> to vector<16x2xf32>
    %1303 = arith.divf %1300, %1302 : vector<16x2xf32>
    %1304 = vector.extract_strided_slice %1022 {offsets = [0, 22], sizes = [16, 1], strides = [1, 1]} : vector<16x32xf32> to vector<16x1xf32>
    %1305 = vector.extract_strided_slice %1027 {offsets = [22, 0], sizes = [1, 16], strides = [1, 1]} : vector<64x16xf32> to vector<1x16xf32>
    %1306 = vector.broadcast %1304 : vector<16x1xf32> to vector<16x16xf32>
    %1307 = vector.broadcast %1305 : vector<1x16xf32> to vector<16x16xf32>
    %1308 = arith.mulf %1306, %1307 : vector<16x16xf32>
    %1309 = vector.extract_strided_slice %1022 {offsets = [0, 23], sizes = [16, 1], strides = [1, 1]} : vector<16x32xf32> to vector<16x1xf32>
    %1310 = vector.extract_strided_slice %1027 {offsets = [23, 0], sizes = [1, 16], strides = [1, 1]} : vector<64x16xf32> to vector<1x16xf32>
    %1311 = vector.broadcast %1309 : vector<16x1xf32> to vector<16x16xf32>
    %1312 = vector.broadcast %1310 : vector<1x16xf32> to vector<16x16xf32>
    %1313 = arith.mulf %1311, %1312 : vector<16x16xf32>
    %1314 = arith.addf %1308, %1313 : vector<16x16xf32>
    %cst_229 = arith.constant 0.707106769 : f32
    %1315 = vector.broadcast %cst_229 : f32 to vector<16x16xf32>
    %1316 = arith.mulf %1314, %1315 : vector<16x16xf32>
    %cst_230 = arith.constant dense<0xFF800000> : vector<16xf32>
    %1317 = vector.multi_reduction <maximumf>, %1316, %cst_230 [1] : vector<16x16xf32> to vector<16xf32>
    %1318 = vector.shape_cast %1317 : vector<16xf32> to vector<16x1xf32>
    %1319 = vector.broadcast %1318 : vector<16x1xf32> to vector<16x16xf32>
    %1320 = arith.subf %1316, %1319 : vector<16x16xf32>
    %1321 = math.exp %1320 : vector<16x16xf32>
    %1322 = vector.extract_strided_slice %1027 {offsets = [54, 0], sizes = [2, 16], strides = [1, 1]} : vector<64x16xf32> to vector<2x16xf32>
    %1323 = tpu.concatenate %1322, %1028 in 0 : vector<2x16xf32>, vector<1x16xf32> -> vector<3x16xf32>
    %cst_231 = arith.constant dense<0.000000e+00> : vector<16x3xf32>
    %1324 = tpu.matmul %1321, %1323, %cst_231 {dimension_numbers = #tpu.dot_dimension_numbers<[1], [1], [0], [0], [0, 0, 1, 0], [], []>} : vector<16x16xf32>, vector<3x16xf32>, vector<16x3xf32> -> vector<16x3xf32>
    %1325 = vector.extract_strided_slice %1324 {offsets = [0, 0], sizes = [16, 2], strides = [1, 1]} : vector<16x3xf32> to vector<16x2xf32>
    %1326 = vector.extract_strided_slice %1324 {offsets = [0, 2], sizes = [16, 1], strides = [1, 1]} : vector<16x3xf32> to vector<16x1xf32>
    %1327 = vector.broadcast %1326 : vector<16x1xf32> to vector<16x2xf32>
    %1328 = arith.divf %1325, %1327 : vector<16x2xf32>
    %1329 = vector.extract_strided_slice %1022 {offsets = [0, 24], sizes = [16, 1], strides = [1, 1]} : vector<16x32xf32> to vector<16x1xf32>
    %1330 = vector.extract_strided_slice %1027 {offsets = [24, 0], sizes = [1, 16], strides = [1, 1]} : vector<64x16xf32> to vector<1x16xf32>
    %1331 = vector.broadcast %1329 : vector<16x1xf32> to vector<16x16xf32>
    %1332 = vector.broadcast %1330 : vector<1x16xf32> to vector<16x16xf32>
    %1333 = arith.mulf %1331, %1332 : vector<16x16xf32>
    %1334 = vector.extract_strided_slice %1022 {offsets = [0, 25], sizes = [16, 1], strides = [1, 1]} : vector<16x32xf32> to vector<16x1xf32>
    %1335 = vector.extract_strided_slice %1027 {offsets = [25, 0], sizes = [1, 16], strides = [1, 1]} : vector<64x16xf32> to vector<1x16xf32>
    %1336 = vector.broadcast %1334 : vector<16x1xf32> to vector<16x16xf32>
    %1337 = vector.broadcast %1335 : vector<1x16xf32> to vector<16x16xf32>
    %1338 = arith.mulf %1336, %1337 : vector<16x16xf32>
    %1339 = arith.addf %1333, %1338 : vector<16x16xf32>
    %cst_232 = arith.constant 0.707106769 : f32
    %1340 = vector.broadcast %cst_232 : f32 to vector<16x16xf32>
    %1341 = arith.mulf %1339, %1340 : vector<16x16xf32>
    %cst_233 = arith.constant dense<0xFF800000> : vector<16xf32>
    %1342 = vector.multi_reduction <maximumf>, %1341, %cst_233 [1] : vector<16x16xf32> to vector<16xf32>
    %1343 = vector.shape_cast %1342 : vector<16xf32> to vector<16x1xf32>
    %1344 = vector.broadcast %1343 : vector<16x1xf32> to vector<16x16xf32>
    %1345 = arith.subf %1341, %1344 : vector<16x16xf32>
    %1346 = math.exp %1345 : vector<16x16xf32>
    %1347 = vector.extract_strided_slice %1027 {offsets = [56, 0], sizes = [2, 16], strides = [1, 1]} : vector<64x16xf32> to vector<2x16xf32>
    %1348 = tpu.concatenate %1347, %1028 in 0 : vector<2x16xf32>, vector<1x16xf32> -> vector<3x16xf32>
    %cst_234 = arith.constant dense<0.000000e+00> : vector<16x3xf32>
    %1349 = tpu.matmul %1346, %1348, %cst_234 {dimension_numbers = #tpu.dot_dimension_numbers<[1], [1], [0], [0], [0, 0, 1, 0], [], []>} : vector<16x16xf32>, vector<3x16xf32>, vector<16x3xf32> -> vector<16x3xf32>
    %1350 = vector.extract_strided_slice %1349 {offsets = [0, 0], sizes = [16, 2], strides = [1, 1]} : vector<16x3xf32> to vector<16x2xf32>
    %1351 = vector.extract_strided_slice %1349 {offsets = [0, 2], sizes = [16, 1], strides = [1, 1]} : vector<16x3xf32> to vector<16x1xf32>
    %1352 = vector.broadcast %1351 : vector<16x1xf32> to vector<16x2xf32>
    %1353 = arith.divf %1350, %1352 : vector<16x2xf32>
    %1354 = vector.extract_strided_slice %1022 {offsets = [0, 26], sizes = [16, 1], strides = [1, 1]} : vector<16x32xf32> to vector<16x1xf32>
    %1355 = vector.extract_strided_slice %1027 {offsets = [26, 0], sizes = [1, 16], strides = [1, 1]} : vector<64x16xf32> to vector<1x16xf32>
    %1356 = vector.broadcast %1354 : vector<16x1xf32> to vector<16x16xf32>
    %1357 = vector.broadcast %1355 : vector<1x16xf32> to vector<16x16xf32>
    %1358 = arith.mulf %1356, %1357 : vector<16x16xf32>
    %1359 = vector.extract_strided_slice %1022 {offsets = [0, 27], sizes = [16, 1], strides = [1, 1]} : vector<16x32xf32> to vector<16x1xf32>
    %1360 = vector.extract_strided_slice %1027 {offsets = [27, 0], sizes = [1, 16], strides = [1, 1]} : vector<64x16xf32> to vector<1x16xf32>
    %1361 = vector.broadcast %1359 : vector<16x1xf32> to vector<16x16xf32>
    %1362 = vector.broadcast %1360 : vector<1x16xf32> to vector<16x16xf32>
    %1363 = arith.mulf %1361, %1362 : vector<16x16xf32>
    %1364 = arith.addf %1358, %1363 : vector<16x16xf32>
    %cst_235 = arith.constant 0.707106769 : f32
    %1365 = vector.broadcast %cst_235 : f32 to vector<16x16xf32>
    %1366 = arith.mulf %1364, %1365 : vector<16x16xf32>
    %cst_236 = arith.constant dense<0xFF800000> : vector<16xf32>
    %1367 = vector.multi_reduction <maximumf>, %1366, %cst_236 [1] : vector<16x16xf32> to vector<16xf32>
    %1368 = vector.shape_cast %1367 : vector<16xf32> to vector<16x1xf32>
    %1369 = vector.broadcast %1368 : vector<16x1xf32> to vector<16x16xf32>
    %1370 = arith.subf %1366, %1369 : vector<16x16xf32>
    %1371 = math.exp %1370 : vector<16x16xf32>
    %1372 = vector.extract_strided_slice %1027 {offsets = [58, 0], sizes = [2, 16], strides = [1, 1]} : vector<64x16xf32> to vector<2x16xf32>
    %1373 = tpu.concatenate %1372, %1028 in 0 : vector<2x16xf32>, vector<1x16xf32> -> vector<3x16xf32>
    %cst_237 = arith.constant dense<0.000000e+00> : vector<16x3xf32>
    %1374 = tpu.matmul %1371, %1373, %cst_237 {dimension_numbers = #tpu.dot_dimension_numbers<[1], [1], [0], [0], [0, 0, 1, 0], [], []>} : vector<16x16xf32>, vector<3x16xf32>, vector<16x3xf32> -> vector<16x3xf32>
    %1375 = vector.extract_strided_slice %1374 {offsets = [0, 0], sizes = [16, 2], strides = [1, 1]} : vector<16x3xf32> to vector<16x2xf32>
    %1376 = vector.extract_strided_slice %1374 {offsets = [0, 2], sizes = [16, 1], strides = [1, 1]} : vector<16x3xf32> to vector<16x1xf32>
    %1377 = vector.broadcast %1376 : vector<16x1xf32> to vector<16x2xf32>
    %1378 = arith.divf %1375, %1377 : vector<16x2xf32>
    %1379 = vector.extract_strided_slice %1022 {offsets = [0, 28], sizes = [16, 1], strides = [1, 1]} : vector<16x32xf32> to vector<16x1xf32>
    %1380 = vector.extract_strided_slice %1027 {offsets = [28, 0], sizes = [1, 16], strides = [1, 1]} : vector<64x16xf32> to vector<1x16xf32>
    %1381 = vector.broadcast %1379 : vector<16x1xf32> to vector<16x16xf32>
    %1382 = vector.broadcast %1380 : vector<1x16xf32> to vector<16x16xf32>
    %1383 = arith.mulf %1381, %1382 : vector<16x16xf32>
    %1384 = vector.extract_strided_slice %1022 {offsets = [0, 29], sizes = [16, 1], strides = [1, 1]} : vector<16x32xf32> to vector<16x1xf32>
    %1385 = vector.extract_strided_slice %1027 {offsets = [29, 0], sizes = [1, 16], strides = [1, 1]} : vector<64x16xf32> to vector<1x16xf32>
    %1386 = vector.broadcast %1384 : vector<16x1xf32> to vector<16x16xf32>
    %1387 = vector.broadcast %1385 : vector<1x16xf32> to vector<16x16xf32>
    %1388 = arith.mulf %1386, %1387 : vector<16x16xf32>
    %1389 = arith.addf %1383, %1388 : vector<16x16xf32>
    %cst_238 = arith.constant 0.707106769 : f32
    %1390 = vector.broadcast %cst_238 : f32 to vector<16x16xf32>
    %1391 = arith.mulf %1389, %1390 : vector<16x16xf32>
    %cst_239 = arith.constant dense<0xFF800000> : vector<16xf32>
    %1392 = vector.multi_reduction <maximumf>, %1391, %cst_239 [1] : vector<16x16xf32> to vector<16xf32>
    %1393 = vector.shape_cast %1392 : vector<16xf32> to vector<16x1xf32>
    %1394 = vector.broadcast %1393 : vector<16x1xf32> to vector<16x16xf32>
    %1395 = arith.subf %1391, %1394 : vector<16x16xf32>
    %1396 = math.exp %1395 : vector<16x16xf32>
    %1397 = vector.extract_strided_slice %1027 {offsets = [60, 0], sizes = [2, 16], strides = [1, 1]} : vector<64x16xf32> to vector<2x16xf32>
    %1398 = tpu.concatenate %1397, %1028 in 0 : vector<2x16xf32>, vector<1x16xf32> -> vector<3x16xf32>
    %cst_240 = arith.constant dense<0.000000e+00> : vector<16x3xf32>
    %1399 = tpu.matmul %1396, %1398, %cst_240 {dimension_numbers = #tpu.dot_dimension_numbers<[1], [1], [0], [0], [0, 0, 1, 0], [], []>} : vector<16x16xf32>, vector<3x16xf32>, vector<16x3xf32> -> vector<16x3xf32>
    %1400 = vector.extract_strided_slice %1399 {offsets = [0, 0], sizes = [16, 2], strides = [1, 1]} : vector<16x3xf32> to vector<16x2xf32>
    %1401 = vector.extract_strided_slice %1399 {offsets = [0, 2], sizes = [16, 1], strides = [1, 1]} : vector<16x3xf32> to vector<16x1xf32>
    %1402 = vector.broadcast %1401 : vector<16x1xf32> to vector<16x2xf32>
    %1403 = arith.divf %1400, %1402 : vector<16x2xf32>
    %1404 = vector.extract_strided_slice %1022 {offsets = [0, 30], sizes = [16, 1], strides = [1, 1]} : vector<16x32xf32> to vector<16x1xf32>
    %1405 = vector.extract_strided_slice %1027 {offsets = [30, 0], sizes = [1, 16], strides = [1, 1]} : vector<64x16xf32> to vector<1x16xf32>
    %1406 = vector.broadcast %1404 : vector<16x1xf32> to vector<16x16xf32>
    %1407 = vector.broadcast %1405 : vector<1x16xf32> to vector<16x16xf32>
    %1408 = arith.mulf %1406, %1407 : vector<16x16xf32>
    %1409 = vector.extract_strided_slice %1022 {offsets = [0, 31], sizes = [16, 1], strides = [1, 1]} : vector<16x32xf32> to vector<16x1xf32>
    %1410 = vector.extract_strided_slice %1027 {offsets = [31, 0], sizes = [1, 16], strides = [1, 1]} : vector<64x16xf32> to vector<1x16xf32>
    %1411 = vector.broadcast %1409 : vector<16x1xf32> to vector<16x16xf32>
    %1412 = vector.broadcast %1410 : vector<1x16xf32> to vector<16x16xf32>
    %1413 = arith.mulf %1411, %1412 : vector<16x16xf32>
    %1414 = arith.addf %1408, %1413 : vector<16x16xf32>
    %cst_241 = arith.constant 0.707106769 : f32
    %1415 = vector.broadcast %cst_241 : f32 to vector<16x16xf32>
    %1416 = arith.mulf %1414, %1415 : vector<16x16xf32>
    %cst_242 = arith.constant dense<0xFF800000> : vector<16xf32>
    %1417 = vector.multi_reduction <maximumf>, %1416, %cst_242 [1] : vector<16x16xf32> to vector<16xf32>
    %1418 = vector.shape_cast %1417 : vector<16xf32> to vector<16x1xf32>
    %1419 = vector.broadcast %1418 : vector<16x1xf32> to vector<16x16xf32>
    %1420 = arith.subf %1416, %1419 : vector<16x16xf32>
    %1421 = math.exp %1420 : vector<16x16xf32>
    %1422 = vector.extract_strided_slice %1027 {offsets = [62, 0], sizes = [2, 16], strides = [1, 1]} : vector<64x16xf32> to vector<2x16xf32>
    %1423 = tpu.concatenate %1422, %1028 in 0 : vector<2x16xf32>, vector<1x16xf32> -> vector<3x16xf32>
    %cst_243 = arith.constant dense<0.000000e+00> : vector<16x3xf32>
    %1424 = tpu.matmul %1421, %1423, %cst_243 {dimension_numbers = #tpu.dot_dimension_numbers<[1], [1], [0], [0], [0, 0, 1, 0], [], []>} : vector<16x16xf32>, vector<3x16xf32>, vector<16x3xf32> -> vector<16x3xf32>
    %1425 = vector.extract_strided_slice %1424 {offsets = [0, 0], sizes = [16, 2], strides = [1, 1]} : vector<16x3xf32> to vector<16x2xf32>
    %1426 = vector.extract_strided_slice %1424 {offsets = [0, 2], sizes = [16, 1], strides = [1, 1]} : vector<16x3xf32> to vector<16x1xf32>
    %1427 = vector.broadcast %1426 : vector<16x1xf32> to vector<16x2xf32>
    %1428 = arith.divf %1425, %1427 : vector<16x2xf32>
    %1429 = tpu.concatenate %1053, %1078, %1103, %1128, %1153, %1178, %1203, %1228, %1253, %1278, %1303, %1328, %1353, %1378, %1403, %1428 in 1 : vector<16x2xf32>, vector<16x2xf32>, vector<16x2xf32>, vector<16x2xf32>, vector<16x2xf32>, vector<16x2xf32>, vector<16x2xf32>, vector<16x2xf32>, vector<16x2xf32>, vector<16x2xf32>, vector<16x2xf32>, vector<16x2xf32>, vector<16x2xf32>, vector<16x2xf32>, vector<16x2xf32>, vector<16x2xf32> -> vector<16x32xf32>
    %c1472 = arith.constant 1472 : index
    %c0_244 = arith.constant 0 : index
    %1430 = vector.load %arg4[%c1472, %c0_244] : memref<1776x128xf32, #tpu.memory_space<vmem>>, vector<32x32xf32>
    %cst_245 = arith.constant dense<0.000000e+00> : vector<16x32xf32>
    %1431 = tpu.matmul %1429, %1430, %cst_245 {dimension_numbers = #tpu.dot_dimension_numbers<[1], [0], [0], [1], [0, 0, 1, 1], [], []>} : vector<16x32xf32>, vector<32x32xf32>, vector<16x32xf32> -> vector<16x32xf32>
    %c1504 = arith.constant 1504 : index
    %c0_246 = arith.constant 0 : index
    %1432 = vector.load %arg4[%c1504, %c0_246] : memref<1776x128xf32, #tpu.memory_space<vmem>>, vector<1x32xf32>
    %1433 = vector.broadcast %1432 : vector<1x32xf32> to vector<16x32xf32>
    %1434 = arith.addf %1431, %1433 : vector<16x32xf32>
    %1435 = arith.mulf %982, %1434 : vector<16x32xf32>
    %1436 = arith.addf %966, %1435 : vector<16x32xf32>
    %cst_247 = arith.constant dense<0.000000e+00> : vector<16xf32>
    %1437 = vector.multi_reduction <add>, %1436, %cst_247 [1] : vector<16x32xf32> to vector<16xf32>
    %1438 = vector.shape_cast %1437 : vector<16xf32> to vector<16x1xf32>
    %cst_248 = arith.constant 3.200000e+01 : f32
    %1439 = vector.broadcast %cst_248 : f32 to vector<16x1xf32>
    %1440 = arith.divf %1438, %1439 : vector<16x1xf32>
    %1441 = vector.broadcast %1440 : vector<16x1xf32> to vector<16x32xf32>
    %1442 = arith.subf %1436, %1441 : vector<16x32xf32>
    %1443 = arith.mulf %1442, %1442 : vector<16x32xf32>
    %cst_249 = arith.constant dense<0.000000e+00> : vector<16xf32>
    %1444 = vector.multi_reduction <add>, %1443, %cst_249 [1] : vector<16x32xf32> to vector<16xf32>
    %1445 = vector.shape_cast %1444 : vector<16xf32> to vector<16x1xf32>
    %cst_250 = arith.constant 3.200000e+01 : f32
    %1446 = vector.broadcast %cst_250 : f32 to vector<16x1xf32>
    %1447 = arith.divf %1445, %1446 : vector<16x1xf32>
    %cst_251 = arith.constant 9.99999997E-7 : f32
    %1448 = vector.broadcast %cst_251 : f32 to vector<16x1xf32>
    %1449 = arith.addf %1447, %1448 : vector<16x1xf32>
    %1450 = math.rsqrt %1449 : vector<16x1xf32>
    %1451 = vector.broadcast %1450 : vector<16x1xf32> to vector<16x32xf32>
    %1452 = arith.mulf %1442, %1451 : vector<16x32xf32>
    %cst_252 = arith.constant 1.000000e+00 : f32
    %1453 = vector.broadcast %cst_252 : f32 to vector<16x32xf32>
    %1454 = arith.addf %1453, %992 : vector<16x32xf32>
    %1455 = arith.mulf %1452, %1454 : vector<16x32xf32>
    %1456 = arith.addf %1455, %987 : vector<16x32xf32>
    %c1512 = arith.constant 1512 : index
    %c0_253 = arith.constant 0 : index
    %1457 = vector.load %arg4[%c1512, %c0_253] : memref<1776x128xf32, #tpu.memory_space<vmem>>, vector<32x128xf32>
    %cst_254 = arith.constant dense<0.000000e+00> : vector<16x128xf32>
    %1458 = tpu.matmul %1456, %1457, %cst_254 {dimension_numbers = #tpu.dot_dimension_numbers<[1], [0], [0], [1], [0, 0, 1, 1], [], []>} : vector<16x32xf32>, vector<32x128xf32>, vector<16x128xf32> -> vector<16x128xf32>
    %c1544 = arith.constant 1544 : index
    %c0_255 = arith.constant 0 : index
    %1459 = vector.load %arg4[%c1544, %c0_255] : memref<1776x128xf32, #tpu.memory_space<vmem>>, vector<1x128xf32>
    %1460 = vector.broadcast %1459 : vector<1x128xf32> to vector<16x128xf32>
    %1461 = arith.addf %1458, %1460 : vector<16x128xf32>
    %cst_256 = arith.constant 5.000000e-01 : f32
    %1462 = vector.broadcast %cst_256 : f32 to vector<16x128xf32>
    %1463 = arith.mulf %1462, %1461 : vector<16x128xf32>
    %cst_257 = arith.constant 4.471500e-02 : f32
    %1464 = vector.broadcast %cst_257 : f32 to vector<16x128xf32>
    %1465 = arith.mulf %1464, %1461 : vector<16x128xf32>
    %1466 = arith.mulf %1465, %1461 : vector<16x128xf32>
    %1467 = arith.mulf %1466, %1461 : vector<16x128xf32>
    %1468 = arith.addf %1461, %1467 : vector<16x128xf32>
    %cst_258 = arith.constant 0.797884583 : f32
    %1469 = vector.broadcast %cst_258 : f32 to vector<16x128xf32>
    %1470 = arith.mulf %1469, %1468 : vector<16x128xf32>
    %1471 = math.tanh %1470 : vector<16x128xf32>
    %cst_259 = arith.constant 1.000000e+00 : f32
    %1472 = vector.broadcast %cst_259 : f32 to vector<16x128xf32>
    %1473 = arith.addf %1472, %1471 : vector<16x128xf32>
    %1474 = arith.mulf %1463, %1473 : vector<16x128xf32>
    %c1552 = arith.constant 1552 : index
    %c0_260 = arith.constant 0 : index
    %1475 = vector.load %arg4[%c1552, %c0_260] : memref<1776x128xf32, #tpu.memory_space<vmem>>, vector<128x32xf32>
    %cst_261 = arith.constant dense<0.000000e+00> : vector<16x32xf32>
    %1476 = tpu.matmul %1474, %1475, %cst_261 {dimension_numbers = #tpu.dot_dimension_numbers<[1], [0], [0], [1], [0, 0, 1, 1], [], []>} : vector<16x128xf32>, vector<128x32xf32>, vector<16x32xf32> -> vector<16x32xf32>
    %c1680 = arith.constant 1680 : index
    %c0_262 = arith.constant 0 : index
    %1477 = vector.load %arg4[%c1680, %c0_262] : memref<1776x128xf32, #tpu.memory_space<vmem>>, vector<1x32xf32>
    %1478 = vector.broadcast %1477 : vector<1x32xf32> to vector<16x32xf32>
    %1479 = arith.addf %1476, %1478 : vector<16x32xf32>
    %1480 = arith.mulf %997, %1479 : vector<16x32xf32>
    %1481 = arith.addf %1436, %1480 : vector<16x32xf32>
    %c1752 = arith.constant 1752 : index
    %c0_263 = arith.constant 0 : index
    %1482 = vector.load %arg4[%c1752, %c0_263] : memref<1776x128xf32, #tpu.memory_space<vmem>>, vector<2x32xf32>
    %c1688 = arith.constant 1688 : index
    %c0_264 = arith.constant 0 : index
    %1483 = vector.load %arg4[%c1688, %c0_264] : memref<1776x128xf32, #tpu.memory_space<vmem>>, vector<32x32xf32>
    %cst_265 = arith.constant dense<0.000000e+00> : vector<16x32xf32>
    %1484 = tpu.matmul %442, %1483, %cst_265 {dimension_numbers = #tpu.dot_dimension_numbers<[1], [0], [0], [1], [0, 0, 1, 1], [], []>} : vector<16x32xf32>, vector<32x32xf32>, vector<16x32xf32> -> vector<16x32xf32>
    %1485 = vector.extract_strided_slice %1482 {offsets = [0, 0], sizes = [1, 32], strides = [1, 1]} : vector<2x32xf32> to vector<1x32xf32>
    %1486 = vector.broadcast %1485 : vector<1x32xf32> to vector<16x32xf32>
    %1487 = arith.addf %1484, %1486 : vector<16x32xf32>
    %c1720 = arith.constant 1720 : index
    %c0_266 = arith.constant 0 : index
    %1488 = vector.load %arg4[%c1720, %c0_266] : memref<1776x128xf32, #tpu.memory_space<vmem>>, vector<32x32xf32>
    %cst_267 = arith.constant dense<0.000000e+00> : vector<16x32xf32>
    %1489 = tpu.matmul %442, %1488, %cst_267 {dimension_numbers = #tpu.dot_dimension_numbers<[1], [0], [0], [1], [0, 0, 1, 1], [], []>} : vector<16x32xf32>, vector<32x32xf32>, vector<16x32xf32> -> vector<16x32xf32>
    %1490 = vector.extract_strided_slice %1482 {offsets = [1, 0], sizes = [1, 32], strides = [1, 1]} : vector<2x32xf32> to vector<1x32xf32>
    %1491 = vector.broadcast %1490 : vector<1x32xf32> to vector<16x32xf32>
    %1492 = arith.addf %1489, %1491 : vector<16x32xf32>
    %cst_268 = arith.constant dense<0.000000e+00> : vector<16xf32>
    %1493 = vector.multi_reduction <add>, %1481, %cst_268 [1] : vector<16x32xf32> to vector<16xf32>
    %1494 = vector.shape_cast %1493 : vector<16xf32> to vector<16x1xf32>
    %cst_269 = arith.constant 3.200000e+01 : f32
    %1495 = vector.broadcast %cst_269 : f32 to vector<16x1xf32>
    %1496 = arith.divf %1494, %1495 : vector<16x1xf32>
    %1497 = vector.broadcast %1496 : vector<16x1xf32> to vector<16x32xf32>
    %1498 = arith.subf %1481, %1497 : vector<16x32xf32>
    %1499 = arith.mulf %1498, %1498 : vector<16x32xf32>
    %cst_270 = arith.constant dense<0.000000e+00> : vector<16xf32>
    %1500 = vector.multi_reduction <add>, %1499, %cst_270 [1] : vector<16x32xf32> to vector<16xf32>
    %1501 = vector.shape_cast %1500 : vector<16xf32> to vector<16x1xf32>
    %cst_271 = arith.constant 3.200000e+01 : f32
    %1502 = vector.broadcast %cst_271 : f32 to vector<16x1xf32>
    %1503 = arith.divf %1501, %1502 : vector<16x1xf32>
    %cst_272 = arith.constant 9.99999997E-7 : f32
    %1504 = vector.broadcast %cst_272 : f32 to vector<16x1xf32>
    %1505 = arith.addf %1503, %1504 : vector<16x1xf32>
    %1506 = math.rsqrt %1505 : vector<16x1xf32>
    %1507 = vector.broadcast %1506 : vector<16x1xf32> to vector<16x32xf32>
    %1508 = arith.mulf %1498, %1507 : vector<16x32xf32>
    %cst_273 = arith.constant 1.000000e+00 : f32
    %1509 = vector.broadcast %cst_273 : f32 to vector<16x32xf32>
    %1510 = arith.addf %1509, %1492 : vector<16x32xf32>
    %1511 = arith.mulf %1508, %1510 : vector<16x32xf32>
    %1512 = arith.addf %1511, %1487 : vector<16x32xf32>
    %c1760 = arith.constant 1760 : index
    %c0_274 = arith.constant 0 : index
    %1513 = vector.load %arg4[%c1760, %c0_274] : memref<1776x128xf32, #tpu.memory_space<vmem>>, vector<4x32xf32>
    %cst_275 = arith.constant dense<0.000000e+00> : vector<4x16xf32>
    %1514 = tpu.matmul %1513, %1512, %cst_275 {dimension_numbers = #tpu.dot_dimension_numbers<[1], [1], [0], [0], [0, 0, 1, 0], [], []>} : vector<4x32xf32>, vector<16x32xf32>, vector<4x16xf32> -> vector<4x16xf32>
    %c1768 = arith.constant 1768 : index
    %c0_276 = arith.constant 0 : index
    %1515 = vector.load %arg4[%c1768, %c0_276] : memref<1776x128xf32, #tpu.memory_space<vmem>>, vector<4x1xf32>
    %1516 = vector.broadcast %1515 : vector<4x1xf32> to vector<4x16xf32>
    %1517 = arith.addf %1514, %1516 : vector<4x16xf32>
    %1518 = vector.shape_cast %1517 : vector<4x16xf32> to vector<1x4x16xf32>
    %c0_277 = arith.constant 0 : index
    %c0_278 = arith.constant 0 : index
    %c0_279 = arith.constant 0 : index
    %1519 = vector.load %arg5[%c0_277, %c0_278, %c0_279] : memref<1x4x16xf32, #tpu.memory_space<vmem>>, vector<1x4x16xf32>
    tpu.vector_store %arg5[%c0_277, %c0_278, %c0_279], %1518 {strides = array<i32>} : memref<1x4x16xf32, #tpu.memory_space<vmem>>, vector<1x4x16xf32>,
    return
  }
  func.func @transform_0(%arg0: i32) -> (i32, i32, i32) {
    %c0_i32 = arith.constant 0 : i32
    %c0_i32_0 = arith.constant 0 : i32
    %c0_i32_1 = arith.constant 0 : i32
    return %arg0, %c0_i32, %c0_i32_0 : i32, i32, i32
  }
  func.func @transform_1(%arg0: i32) -> (i32, i32, i32) {
    %c0_i32 = arith.constant 0 : i32
    %c0_i32_0 = arith.constant 0 : i32
    %c0_i32_1 = arith.constant 0 : i32
    return %arg0, %c0_i32, %c0_i32_0 : i32, i32, i32
  }
  func.func @transform_2(%arg0: i32) -> (i32, i32) {
    %c0_i32 = arith.constant 0 : i32
    %c0_i32_0 = arith.constant 0 : i32
    %c0_i32_1 = arith.constant 0 : i32
    return %c0_i32, %c0_i32_0 : i32, i32
  }
  func.func @transform_3(%arg0: i32) -> (i32, i32) {
    %c0_i32 = arith.constant 0 : i32
    %c0_i32_0 = arith.constant 0 : i32
    %c0_i32_1 = arith.constant 0 : i32
    return %c0_i32, %c0_i32_0 : i32, i32
  }
  func.func @transform_4(%arg0: i32) -> (i32, i32, i32) {
    %c0_i32 = arith.constant 0 : i32
    %c0_i32_0 = arith.constant 0 : i32
    %c0_i32_1 = arith.constant 0 : i32
    return %arg0, %c0_i32, %c0_i32_0 : i32, i32, i32
  }
}

</mosaic_0001>

<llo_original>
// kernel: ross3d_denoiser_forward.21
$region0: #{ross3d_denoiser_forward.21}
  #allocation0 [shape = 'u32[]', space=smem, size = 0x4, offset = 0x4, fixed_abs, tag = 'smem constant byte address 0x4 - core index']
  #allocation1 [shape = 'u32[72,128]{1,0:T(1,128)}', space=vmem, size = 0x9000, scoped, tag = 'internal scratch']
  %s0 = inlined_call_operand.vmem [shape: f32[2,16,4], index: 0, kind: input, shape index: {}]
  %s1 = inlined_call_operand.vmem [shape: f32[2,1,256], index: 1, kind: input, shape index: {}]
  %s2 = inlined_call_operand.vmem [shape: f32[32,64], index: 2, kind: input, shape index: {}]
  %s3 = inlined_call_operand.vmem [shape: f32[1776,128], index: 3, kind: input, shape index: {}]
  %s4 = inlined_call_operand.vmem [shape: f32[2,4,16], index: 4, kind: output, shape index: {}]
  %s5 = sld [smem:[#allocation0]]
  $region49: #{ross3d_denoiser_forward.21} parent=0
    _
  %s7 = ssub.s32 1, %s5
  %s8 = scalar_select 0, %s7, %s5
  loop: start=0, step=1, limit=4
  $region2: #{ross3d_denoiser_forward.21} parent=0 // loop_pre_header
    _
  $region3: #{ross3d_denoiser_forward.21} parent=0 // loop_header
    %s10 = sphi 0, %s14
    %p11 = scmp.ge.s32.totalorder %s10, 4
    %s20 = sphi 0, %s22
    %s23 = sphi 0, %s20
    %s24 = sphi 0, %s23
    %s40 = sphi 0, %s24
    %s46 = sphi 0, %s48
    %s49 = sphi 0, %s46
    %s50 = sphi 0, %s49
    %s66 = sphi 0, %s50
    %s70 = sphi 0, %s70
    %s72 = sphi 0, %s70
    %s73 = sphi 0, %s72
    %s87 = sphi 0, %s73
    %s91 = sphi 0, %s91
    %s93 = sphi 0, %s91
    %s94 = sphi 0, %s93
    %s108 = sphi 0, %s94
    %s114 = sphi 0, %s116
    %s117 = sphi 0, %s114
    %s118 = sphi 0, %s117
    %s134 = sphi 0, %s118
  $region4: #{ross3d_denoiser_forward.21} parent=0 // loop_header_branch
    %13 = sbr.rel (%p11) target = $region8
  $region5: #{ross3d_denoiser_forward.21} parent=0 // loop_body
    %s15 = ssub.s32 %s10, 1
    %s16 = ssub.s32 %s10, 2
    %s17 = sadd.s32 %s10, 1
    %s18 = ssub.s32 %s10, %s17
    %p19 = scmp.eq.s32.totalorder %s18, 0
    %s21 = sadd.s32 %s20, 1
    %s22 = scalar_select %p19, %s20, %s21
    %p25 = pneg %p19
    %p26 = scmp.eq.s32.totalorder %s10, 1
    %p27 = por %p25, %p26
    %p28 = scmp.ne.s32.totalorder %s20, %s23
    %p29 = scmp.eq.s32.totalorder %s10, 0
    %p30 = por %p28, %p29
    %p31 = scmp.ne.s32.totalorder %s20, %s23
    %p32 = scmp.eq.s32.totalorder %s15, 1
    %p33 = por %p31, %p32
    %p34 = scmp.ne.s32.totalorder %s23, %s24
    %p35 = scmp.eq.s32.totalorder %s15, 0
    %p36 = por %p34, %p35
    %p37 = scmp.ne.s32.totalorder %s23, %s24
    %p38 = scmp.eq.s32.totalorder %s16, 1
    %p39 = por %p37, %p38
    %p41 = scmp.ne.s32.totalorder %s24, %s40
    %p42 = scmp.eq.s32.totalorder %s16, 0
    %p43 = por %p41, %p42
    %s44 = ssub.s32 %s10, %s17
    %p45 = scmp.eq.s32.totalorder %s44, 0
    %s47 = sadd.s32 %s46, 1
    %s48 = scalar_select %p45, %s46, %s47
    %p51 = pneg %p45
    %p52 = scmp.eq.s32.totalorder %s10, 1
    %p53 = por %p51, %p52
    %p54 = scmp.ne.s32.totalorder %s46, %s49
    %p55 = scmp.eq.s32.totalorder %s10, 0
    %p56 = por %p54, %p55
    %p57 = scmp.ne.s32.totalorder %s46, %s49
    %p58 = scmp.eq.s32.totalorder %s15, 1
    %p59 = por %p57, %p58
    %p60 = scmp.ne.s32.totalorder %s49, %s50
    %p61 = scmp.eq.s32.totalorder %s15, 0
    %p62 = por %p60, %p61
    %p63 = scmp.ne.s32.totalorder %s49, %s50
    %p64 = scmp.eq.s32.totalorder %s16, 1
    %p65 = por %p63, %p64
    %p67 = scmp.ne.s32.totalorder %s50, %s66
    %p68 = scmp.eq.s32.totalorder %s16, 0
    %p69 = por %p67, %p68
    %s71 = sadd.s32 %s70, 1
    %p74 = scmp.eq.s32.totalorder %s10, 1
    %p75 = scmp.ne.s32.totalorder %s70, %s72
    %p76 = scmp.eq.s32.totalorder %s10, 0
    %p77 = por %p75, %p76
    %p78 = scmp.ne.s32.totalorder %s70, %s72
    %p79 = scmp.eq.s32.totalorder %s15, 1
    %p80 = por %p78, %p79
    %p81 = scmp.ne.s32.totalorder %s72, %s73
    %p82 = scmp.eq.s32.totalorder %s15, 0
    %p83 = por %p81, %p82
    %p84 = scmp.ne.s32.totalorder %s72, %s73
    %p85 = scmp.eq.s32.totalorder %s16, 1
    %p86 = por %p84, %p85
    %p88 = scmp.ne.s32.totalorder %s73, %s87
    %p89 = scmp.eq.s32.totalorder %s16, 0
    %p90 = por %p88, %p89
    %s92 = sadd.s32 %s91, 1
    %p95 = scmp.eq.s32.totalorder %s10, 1
    %p96 = scmp.ne.s32.totalorder %s91, %s93
    %p97 = scmp.eq.s32.totalorder %s10, 0
    %p98 = por %p96, %p97
    %p99 = scmp.ne.s32.totalorder %s91, %s93
    %p100 = scmp.eq.s32.totalorder %s15, 1
    %p101 = por %p99, %p100
    %p102 = scmp.ne.s32.totalorder %s93, %s94
    %p103 = scmp.eq.s32.totalorder %s15, 0
    %p104 = por %p102, %p103
    %p105 = scmp.ne.s32.totalorder %s93, %s94
    %p106 = scmp.eq.s32.totalorder %s16, 1
    %p107 = por %p105, %p106
    %p109 = scmp.ne.s32.totalorder %s94, %s108
    %p110 = scmp.eq.s32.totalorder %s16, 0
    %p111 = por %p109, %p110
    %s112 = ssub.s32 %s10, %s17
    %p113 = scmp.eq.s32.totalorder %s112, 0
    %s115 = sadd.s32 %s114, 1
    %s116 = scalar_select %p113, %s114, %s115
    %p119 = pneg %p113
    %p120 = scmp.eq.s32.totalorder %s10, 1
    %p121 = por %p119, %p120
    %p122 = scmp.ne.s32.totalorder %s114, %s117
    %p123 = scmp.eq.s32.totalorder %s10, 0
    %p124 = por %p122, %p123
    %p125 = scmp.ne.s32.totalorder %s114, %s117
    %p126 = scmp.eq.s32.totalorder %s15, 1
    %p127 = por %p125, %p126
    %p128 = scmp.ne.s32.totalorder %s117, %s118
    %p129 = scmp.eq.s32.totalorder %s15, 0
    %p130 = por %p128, %p129
    %p131 = scmp.ne.s32.totalorder %s117, %s118
    %p132 = scmp.eq.s32.totalorder %s16, 1
    %p133 = por %p131, %p132
    %p135 = scmp.ne.s32.totalorder %s118, %s134
    %p136 = scmp.eq.s32.totalorder %s16, 0
    %p137 = por %p135, %p136
    %p138 = scmp.le.s32.totalorder 1, %s10
    %p139 = scmp.lt.s32.totalorder %s10, 3
    %p140 = pnand %p138, %p139
    %p141 = pneg %p140
    // Predicated region
    $region9: #{ross3d_denoiser_forward.21} parent=5 // pred_check
      _
    $region10: #{ross3d_denoiser_forward.21} parent=5 // pred_check_branch
      %143 = sbr.rel (%p140) target = $region12
    $region11: #{ross3d_denoiser_forward.21} parent=5 // pred_region
      %s144 = ssub.s32 %s10, 1
      // Predicated region
      $region13: #{ross3d_denoiser_forward.21} parent=11 // pred_check
        %p145 = pneg %p83
      $region14: #{ross3d_denoiser_forward.21} parent=11 // pred_check_branch
        %147 = sbr.rel (%p145) target = $region16
      $region15: #{ross3d_denoiser_forward.21} parent=11 // pred_region
        _
      $region16: #{ross3d_denoiser_forward.21} parent=11 // pred_fallthru
        _
      // Predicated region
      $region17: #{ross3d_denoiser_forward.21} parent=11 // pred_check
        %p148 = pneg %p104
      $region18: #{ross3d_denoiser_forward.21} parent=11 // pred_check_branch
        %150 = sbr.rel (%p148) target = $region20
      $region19: #{ross3d_denoiser_forward.21} parent=11 // pred_region
        _
      $region20: #{ross3d_denoiser_forward.21} parent=11 // pred_fallthru
        _
    $region12: #{ross3d_denoiser_forward.21} parent=5 // pred_fallthru
      _
    %p151 = scmp.lt.s32.totalorder %s10, 2
    // Predicated region
    $region21: #{ross3d_denoiser_forward.21} parent=5 // pred_check
      %p152 = pneg %p151
    $region22: #{ross3d_denoiser_forward.21} parent=5 // pred_check_branch
      %154 = sbr.rel (%p152) target = $region24
    $region23: #{ross3d_denoiser_forward.21} parent=5 // pred_region
      // Predicated region
      $region25: #{ross3d_denoiser_forward.21} parent=23 // pred_check
        %p155 = pneg %p30
      $region26: #{ross3d_denoiser_forward.21} parent=23 // pred_check_branch
        %157 = sbr.rel (%p155) target = $region28
      $region27: #{ross3d_denoiser_forward.21} parent=23 // pred_region
        %p158 = scmp.lt.s32.totalorder %s10, 1
        %s159 = scalar_select %p158, %s10, 1
        %s160 = smul.addr %s159, 2
        %s161 = smul.addr %s160, 8
        %s162 = scalar_lea.vmem %s0, %s161
      $region28: #{ross3d_denoiser_forward.21} parent=23 // pred_fallthru
        _
      // Predicated region
      $region29: #{ross3d_denoiser_forward.21} parent=23 // pred_check
        %p163 = pneg %p56
      $region30: #{ross3d_denoiser_forward.21} parent=23 // pred_check_branch
        %165 = sbr.rel (%p163) target = $region32
      $region31: #{ross3d_denoiser_forward.21} parent=23 // pred_region
        %p166 = scmp.lt.s32.totalorder %s10, 1
        %s167 = scalar_select %p166, %s10, 1
        %s168 = smul.addr %s167, 2
        %s169 = scalar_lea.vmem %s1, %s168
      $region32: #{ross3d_denoiser_forward.21} parent=23 // pred_fallthru
        _
    $region24: #{ross3d_denoiser_forward.21} parent=5 // pred_fallthru
      _
    %p170 = scmp.le.s32.totalorder 1, %s10
    %p171 = scmp.lt.s32.totalorder %s10, 3
    %p172 = pnand %p170, %p171
    %p173 = pneg %p172
    // Predicated region
    $region33: #{ross3d_denoiser_forward.21} parent=5 // pred_check
      _
    $region34: #{ross3d_denoiser_forward.21} parent=5 // pred_check_branch
      %175 = sbr.rel (%p172) target = $region36
    $region35: #{ross3d_denoiser_forward.21} parent=5 // pred_region
      %s176 = ssub.s32 %s10, 1
      %p177 = scmp.lt.s32.totalorder %s15, 1
      %s178 = scalar_select %p177, %s15, 1
      %s179 = smul.addr %s178, 2
      %s180 = smul.addr %s179, 8
      %s181 = scalar_lea.vmem %s0, %s180
      %p182 = pneg %p36
      %p183 = pneg %p33
      %p184 = scmp.lt.s32.totalorder %s15, 1
      %s185 = scalar_select %p184, %s15, 1
      %s186 = smul.addr %s185, 2
      %s187 = scalar_lea.vmem %s1, %s186
      %p188 = pneg %p62
      %p189 = pneg %p59
      %p190 = pneg %p83
      %p191 = pneg %p80
      %p192 = pneg %p104
      %p193 = pneg %p101
      %p194 = pneg %p130
      %p195 = pneg %p127
      %p196 = scmp.lt.s32.totalorder %s15, 1
      %s197 = scalar_select %p196, %s15, 1
      %s198 = smul.addr %s197, 4
      %s199 = scalar_lea.vmem %s4, %s198
      %p200 = scmp.lt.s32.totalorder %s15, 1
      %s201 = scalar_select %p200, %s15, 1
      %s202 = smul.addr %s201, 2
      %s203 = smul.addr %s202, 8
      %s204 = scalar_lea.vmem %s0, %s203
      %p205 = scmp.lt.s32.totalorder %s15, 1
      %s206 = scalar_select %p205, %s15, 1
      %s207 = smul.addr %s206, 2
      %s208 = scalar_lea.vmem %s1, %s207
      %p209 = scmp.lt.s32.totalorder %s15, 1
      %s210 = scalar_select %p209, %s15, 1
      %s211 = smul.addr %s210, 4
      %s212 = scalar_lea.vmem %s4, %s211
      %v213 = vld [vmem:[%s208] sm:$0x3]
      %v214 = vld [vmem:[%s3 + $0xd8] sm:$0xff]
      %v215 = vld [vmem:[%s3 + $0xe0] sm:$0xff]
      %v216 = vld [vmem:[%s3 + $0xe8] sm:$0xff]
      %v217 = vld [vmem:[%s3 + $0xf0] sm:$0xff]
      %v218 = vld [vmem:[%s3 + $0xf8] sm:$0xff]
      %v219 = vld [vmem:[%s3 + $0x100] sm:$0xff]
      %v220 = vld [vmem:[%s3 + $0x108] sm:$0xff]
      %v221 = vld [vmem:[%s3 + $0x110] sm:$0xff]
      %v222 = vld [vmem:[%s3 + $0x118] sm:$0xff]
      %v223 = vld [vmem:[%s3 + $0x120] sm:$0xff]
      %v224 = vld [vmem:[%s3 + $0x128] sm:$0xff]
      %v225 = vld [vmem:[%s3 + $0x130] sm:$0xff]
      %v226 = vld [vmem:[%s3 + $0x138] sm:$0xff]
      %v227 = vld [vmem:[%s3 + $0x140] sm:$0xff]
      %v228 = vld [vmem:[%s3 + $0x148] sm:$0xff]
      %v229 = vld [vmem:[%s3 + $0x150] sm:$0xff]
      %v230 = vld [vmem:[%s3 + $0x158] sm:$0xff]
      %v231 = vld [vmem:[%s3 + $0x160] sm:$0xff]
      %v232 = vld [vmem:[%s3 + $0x168] sm:$0xff]
      %v233 = vld [vmem:[%s3 + $0x170] sm:$0xff]
      %v234 = vld [vmem:[%s3 + $0x178] sm:$0xff]
      %v235 = vld [vmem:[%s3 + $0x180] sm:$0xff]
      %v236 = vld [vmem:[%s3 + $0x188] sm:$0xff]
      %v237 = vld [vmem:[%s3 + $0x190] sm:$0xff]
      %v238 = vld [vmem:[%s3 + $0x198] sm:$0xff]
      %v239 = vld [vmem:[%s3 + $0x1a0] sm:$0xff]
      %v240 = vld [vmem:[%s3 + $0x1a8] sm:$0xff]
      %v241 = vld [vmem:[%s3 + $0x1b0] sm:$0xff]
      %v242 = vld [vmem:[%s3 + $0x1b8] sm:$0xff]
      %v243 = vld [vmem:[%s3 + $0x1c0] sm:$0xff]
      %v244 = vld [vmem:[%s3 + $0x1c8] sm:$0xff]
      %v245 = vld [vmem:[%s3 + $0x1d0] sm:$0xff]
      %v246 = vld [vmem:[%s3 + $0x1d8] sm:$0x1]
      %v248 = vperm.slane %v213, 0
      %v249 = vperm.slane %v213, 1
      %252 = vmatpush.msra.mxu0 %v229
      %253 = vmatpush.msra.mxu0 %v228
      %254 = vmatpush.msra.mxu0 %v227
      %255 = vmatpush.msra.mxu0 %v226
      %256 = vmatpush.msra.mxu0 %v225
      %257 = vmatpush.msra.mxu0 %v224
      %258 = vmatpush.msra.mxu0 %v223
      %259 = vmatpush.msra.mxu0 %v222
      %260 = vmatpush.msra.mxu0 %v221
      %261 = vmatpush.msra.mxu0 %v220
      %262 = vmatpush.msra.mxu0 %v219
      %263 = vmatpush.msra.mxu0 %v218
      %264 = vmatpush.msra.mxu0 %v217
      %265 = vmatpush.msra.mxu0 %v216
      %266 = vmatpush.msra.mxu0 %v215
      %267 = vmatpush.msra.mxu0 %v214
      %268 = vmatmul.f32.gmra.mxu0 %v248
      %v269 = vpop.f32.mrf.mxu0
      %v270 = vadd.f32 %v246, %v269
      %271 = vdwg.mxu0
      %272 = vmatpush.msra.mxu0 %v245
      %273 = vmatpush.msra.mxu0 %v244
      %274 = vmatpush.msra.mxu0 %v243
      %275 = vmatpush.msra.mxu0 %v242
      %276 = vmatpush.msra.mxu0 %v241
      %277 = vmatpush.msra.mxu0 %v240
      %278 = vmatpush.msra.mxu0 %v239
      %279 = vmatpush.msra.mxu0 %v238
      %280 = vmatpush.msra.mxu0 %v237
      %281 = vmatpush.msra.mxu0 %v236
      %282 = vmatpush.msra.mxu0 %v235
      %283 = vmatpush.msra.mxu0 %v234
      %284 = vmatpush.msra.mxu0 %v233
      %285 = vmatpush.msra.mxu0 %v232
      %286 = vmatpush.msra.mxu0 %v231
      %287 = vmatpush.msra.mxu0 %v230
      %288 = vmatmul.f32.gmra.mxu0 %v249
      %v289 = vpop.f32.mrf.mxu0
      %v290 = vadd.f32 %v270, %v289
      %291 = vdwg.mxu0
      %v292 = vxor.u32 %v290, 2147483648
      %v293 = vmul.f32 %v292, 1.442695
      %v294 = vpow.pop %v293
      %v295 = vadd.f32 %v294, 1.0
      %v296 = vrcp.pop %v295
      %v297 = vmul.f32 %v295, %v296
      %v298 = vsub.f32 1.0, %v297
      %v299 = vmul.f32 %v296, %v298
      %v300 = vadd.f32 %v296, %v299
      %vm301 = vweird.f32 %v295
      %vm302 = vweird.f32 %v296
      %vm303 = vmor %vm301, %vm302
      %v304 = vsel %vm303, %v296, %v300
      %v305 = vand.u32 2147483647, %v295
      %vm306 = vcmp.eq.f32.partialorder %v305, 8.507059e+37
      %v307 = vand.u32 %v295, 2147483648
      %v308 = vor.u32 1.1754944e-38, %v307
      %v309 = vsel %vm306, %v308, %v304
      %v310 = vmul.f32 1.0, %v309
      %v311 = vmul.f32 %v290, %v310
      %v312 = vld [vmem:[%s3 + $0x1e0] sm:$0xff]
      %v313 = vld [vmem:[%s3 + $0x1e8] sm:$0xff]
      %v314 = vld [vmem:[%s3 + $0x1f0] sm:$0xff]
      %v315 = vld [vmem:[%s3 + $0x1f8] sm:$0xff]
      %v316 = vld [vmem:[%s3 + $0x200] sm:$0x1]
      %vm317 = vcmask 261120
      %v319 = vsel %vm317, %v311, 0
      %321 = vmatpush.msra.mxu0 0.0
      %322 = vmatpush.msra.mxu0 0.0
      %323 = vmatpush.msra.mxu0 0.0
      %324 = vmatpush.msra.mxu0 0.0
      %325 = vmatpush.msra.mxu0 0.0
      %326 = vmatpush.msra.mxu0 0.0
      %327 = vmatpush.msra.mxu0 0.0
      %328 = vmatpush.msra.mxu0 0.0
      %329 = vmatpush.msra.mxu0 0.0
      %330 = vmatpush.msra.mxu0 0.0
      %331 = vmatpush.msra.mxu0 0.0
      %332 = vmatpush.msra.mxu0 0.0
      %333 = vmatpush.msra.mxu0 %v315
      %334 = vmatpush.msra.mxu0 %v314
      %335 = vmatpush.msra.mxu0 %v313
      %336 = vmatpush.msra.mxu0 %v312
      %337 = vmatmul.f32.gmra.mxu0 %v319
      %v338 = vpop.f32.mrf.mxu0
      %v339 = vadd.f32 %v316, %v338
      %340 = vdwg.mxu0
      %v341 = vld [vmem:[%s2] sm:$0xff]
      %v342 = vld [vmem:[%s2 + $0x8] sm:$0xff]
      %v343 = vld [vmem:[%s2 + $0x10] sm:$0xff]
      %v344 = vld [vmem:[%s2 + $0x18] sm:$0xff]
      %v345 = vxor.u32 %v341, 2147483648
      %v346 = vxor.u32 %v342, 2147483648
      %v347 = vxor.u32 %v343, 2147483648
      %v348 = vxor.u32 %v344, 2147483648
      %v349 = vmul.f32 %v345, 1.442695
      %v350 = vpow.pop %v349
      %v351 = vmul.f32 %v346, 1.442695
      %v352 = vpow.pop %v351
      %v353 = vmul.f32 %v347, 1.442695
      %v354 = vpow.pop %v353
      %v355 = vmul.f32 %v348, 1.442695
      %v356 = vpow.pop %v355
      %v357 = vadd.f32 %v350, 1.0
      %v358 = vadd.f32 %v352, 1.0
      %v359 = vadd.f32 %v354, 1.0
      %v360 = vadd.f32 %v356, 1.0
      %v361 = vrcp.pop %v357
      %v362 = vmul.f32 %v357, %v361
      %v363 = vsub.f32 1.0, %v362
      %v364 = vmul.f32 %v361, %v363
      %v365 = vadd.f32 %v361, %v364
      %vm366 = vweird.f32 %v357
      %vm367 = vweird.f32 %v361
      %vm368 = vmor %vm366, %vm367
      %v369 = vsel %vm368, %v361, %v365
      %v370 = vand.u32 2147483647, %v357
      %vm371 = vcmp.eq.f32.partialorder %v370, 8.507059e+37
      %v372 = vand.u32 %v357, 2147483648
      %v373 = vor.u32 1.1754944e-38, %v372
      %v374 = vsel %vm371, %v373, %v369
      %v375 = vmul.f32 1.0, %v374
      %v376 = vrcp.pop %v358
      %v377 = vmul.f32 %v358, %v376
      %v378 = vsub.f32 1.0, %v377
      %v379 = vmul.f32 %v376, %v378
      %v380 = vadd.f32 %v376, %v379
      %vm381 = vweird.f32 %v358
      %vm382 = vweird.f32 %v376
      %vm383 = vmor %vm381, %vm382
      %v384 = vsel %vm383, %v376, %v380
      %v385 = vand.u32 2147483647, %v358
      %vm386 = vcmp.eq.f32.partialorder %v385, 8.507059e+37
      %v387 = vand.u32 %v358, 2147483648
      %v388 = vor.u32 1.1754944e-38, %v387
      %v389 = vsel %vm386, %v388, %v384
      %v390 = vmul.f32 1.0, %v389
      %v391 = vrcp.pop %v359
      %v392 = vmul.f32 %v359, %v391
      %v393 = vsub.f32 1.0, %v392
      %v394 = vmul.f32 %v391, %v393
      %v395 = vadd.f32 %v391, %v394
      %vm396 = vweird.f32 %v359
      %vm397 = vweird.f32 %v391
      %vm398 = vmor %vm396, %vm397
      %v399 = vsel %vm398, %v391, %v395
      %v400 = vand.u32 2147483647, %v359
      %vm401 = vcmp.eq.f32.partialorder %v400, 8.507059e+37
      %v402 = vand.u32 %v359, 2147483648
      %v403 = vor.u32 1.1754944e-38, %v402
      %v404 = vsel %vm401, %v403, %v399
      %v405 = vmul.f32 1.0, %v404
      %v406 = vrcp.pop %v360
      %v407 = vmul.f32 %v360, %v406
      %v408 = vsub.f32 1.0, %v407
      %v409 = vmul.f32 %v406, %v408
      %v410 = vadd.f32 %v406, %v409
      %vm411 = vweird.f32 %v360
      %vm412 = vweird.f32 %v406
      %vm413 = vmor %vm411, %vm412
      %v414 = vsel %vm413, %v406, %v410
      %v415 = vand.u32 2147483647, %v360
      %vm416 = vcmp.eq.f32.partialorder %v415, 8.507059e+37
      %v417 = vand.u32 %v360, 2147483648
      %v418 = vor.u32 1.1754944e-38, %v417
      %v419 = vsel %vm416, %v418, %v414
      %v420 = vmul.f32 1.0, %v419
      %v421 = vmul.f32 %v341, %v375
      %v422 = vmul.f32 %v342, %v390
      %v423 = vmul.f32 %v343, %v405
      %v424 = vmul.f32 %v344, %v420
      %v425 = vld [vmem:[%s3 + $0x20] sm:$0xff]
      %v426 = vld [vmem:[%s3 + $0x28] sm:$0xff]
      %v427 = vld [vmem:[%s3 + $0x30] sm:$0xff]
      %v428 = vld [vmem:[%s3 + $0x38] sm:$0xff]
      %v429 = vld [vmem:[%s3 + $0x40] sm:$0xff]
      %v430 = vld [vmem:[%s3 + $0x48] sm:$0xff]
      %v431 = vld [vmem:[%s3 + $0x50] sm:$0xff]
      %v432 = vld [vmem:[%s3 + $0x58] sm:$0xff]
      %v433 = vld [vmem:[%s3 + $0x60] sm:$0x1]
      %v434 = vperm.slane %v433, 0
      %vm435 = vcmask 523264
      %v437 = vsel %vm435, %v421, 0
      %v440 = vsel %vm435, %v422, 0
      %v443 = vsel %vm435, %v423, 0
      %v446 = vsel %vm435, %v424, 0
      %448 = vmatpush.msra.mxu0 0.0
      %449 = vmatpush.msra.mxu0 0.0
      %450 = vmatpush.msra.mxu0 0.0
      %451 = vmatpush.msra.mxu0 0.0
      %452 = vmatpush.msra.mxu0 0.0
      %453 = vmatpush.msra.mxu0 0.0
      %454 = vmatpush.msra.mxu0 0.0
      %455 = vmatpush.msra.mxu0 0.0
      %456 = vmatpush.msra.mxu0 %v432
      %457 = vmatpush.msra.mxu0 %v431
      %458 = vmatpush.msra.mxu0 %v430
      %459 = vmatpush.msra.mxu0 %v429
      %460 = vmatpush.msra.mxu0 %v428
      %461 = vmatpush.msra.mxu0 %v427
      %462 = vmatpush.msra.mxu0 %v426
      %463 = vmatpush.msra.mxu0 %v425
      %464 = vmatmul.f32.gmra.mxu0 %v437
      %v465 = vpop.f32.mrf.mxu0
      %v466 = vadd.f32 %v434, %v465
      %467 = vmatmul.f32.gmra.mxu0 %v440
      %v468 = vpop.f32.mrf.mxu0
      %v469 = vadd.f32 %v434, %v468
      %470 = vmatmul.f32.gmra.mxu0 %v443
      %v471 = vpop.f32.mrf.mxu0
      %v472 = vadd.f32 %v434, %v471
      %473 = vmatmul.f32.gmra.mxu0 %v446
      %v474 = vpop.f32.mrf.mxu0
      %v475 = vadd.f32 %v434, %v474
      %476 = vdwg.mxu0
      %v477 = vld [vmem:[%s3 + $0x68] sm:$0xff]
      %v478 = vld [vmem:[%s3 + $0x70] sm:$0xff]
      %v479 = vld [vmem:[%s3 + $0x78] sm:$0xff]
      %v480 = vld [vmem:[%s3 + $0x80] sm:$0xff]
      %v481 = vld [vmem:[%s3 + $0x88] sm:$0xff]
      %v482 = vld [vmem:[%s3 + $0x90] sm:$0xff]
      %v483 = vld [vmem:[%s3 + $0x98] sm:$0xff]
      %v484 = vld [vmem:[%s3 + $0xa0] sm:$0xff]
      %v486 = vsel %vm317, %v477, 0
      %v489 = vsel %vm317, %v478, 0
      %v492 = vsel %vm317, %v479, 0
      %v495 = vsel %vm317, %v480, 0
      %v498 = vsel %vm317, %v481, 0
      %v501 = vsel %vm317, %v482, 0
      %v504 = vsel %vm317, %v483, 0
      %v507 = vsel %vm317, %v484, 0
      %v510 = vsel %vm317, %v466, 0
      %v513 = vsel %vm317, %v469, 0
      %v516 = vsel %vm317, %v472, 0
      %v519 = vsel %vm317, %v475, 0
      %521 = vmatpush.xpose.msra.mxu0 0.0
      %522 = vmatpush.xpose.msra.mxu0 0.0
      %523 = vmatpush.xpose.msra.mxu0 0.0
      %524 = vmatpush.xpose.msra.mxu0 0.0
      %525 = vmatpush.xpose.msra.mxu0 0.0
      %526 = vmatpush.xpose.msra.mxu0 0.0
      %527 = vmatpush.xpose.msra.mxu0 0.0
      %528 = vmatpush.xpose.msra.mxu0 0.0
      %529 = vmatpush.xpose.msra.mxu0 0.0
      %530 = vmatpush.xpose.msra.mxu0 0.0
      %531 = vmatpush.xpose.msra.mxu0 0.0
      %532 = vmatpush.xpose.msra.mxu0 0.0
      %533 = vmatpush.xpose.msra.mxu0 %v519
      %534 = vmatpush.xpose.msra.mxu0 %v516
      %535 = vmatpush.xpose.msra.mxu0 %v513
      %536 = vmatpush.xpose.msra.mxu0 %v510
      %537 = vmatmul.f32.gmra.mxu0 %v486
      %v538 = vpop.f32.mrf.mxu0
      %v539 = vadd.f32 0.0, %v538
      %540 = vmatmul.f32.gmra.mxu0 %v489
      %v541 = vpop.f32.mrf.mxu0
      %v542 = vadd.f32 0.0, %v541
      %543 = vmatmul.f32.gmra.mxu0 %v492
      %v544 = vpop.f32.mrf.mxu0
      %v545 = vadd.f32 0.0, %v544
      %546 = vmatmul.f32.gmra.mxu0 %v495
      %v547 = vpop.f32.mrf.mxu0
      %v548 = vadd.f32 0.0, %v547
      %549 = vmatmul.f32.gmra.mxu0 %v498
      %v550 = vpop.f32.mrf.mxu0
      %v551 = vadd.f32 0.0, %v550
      %552 = vmatmul.f32.gmra.mxu0 %v501
      %v553 = vpop.f32.mrf.mxu0
      %v554 = vadd.f32 0.0, %v553
      %555 = vmatmul.f32.gmra.mxu0 %v504
      %v556 = vpop.f32.mrf.mxu0
      %v557 = vadd.f32 0.0, %v556
      %558 = vmatmul.f32.gmra.mxu0 %v507
      %v559 = vpop.f32.mrf.mxu0
      %v560 = vadd.f32 0.0, %v559
      %561 = vdwg.mxu0
      %v562 = vld [vmem:[%s3 + $0xa8] sm:$0xff]
      %v563 = vld [vmem:[%s3 + $0xb0] sm:$0xff]
      %565 = vset.pattern.permute.xlu0 0
      %566 = vperm.xlu0 %565, %v562
      %v567 = vpop.permute.xlu0 %566
      %570 = vset.pattern.permute.xlu0 0
      %571 = vperm.xlu0 %570, %v563
      %v572 = vpop.permute.xlu0 %571
      %v574 = vperm.slane %v539, 0
      %v575 = vmul.f32 %v567, %v574
      %v576 = vmul.f32 %v572, %v574
      %577 = vset.pattern.permute.xlu0 1
      %578 = vperm.xlu0 %577, %v562
      %v579 = vpop.permute.xlu0 %578
      %581 = vset.pattern.permute.xlu0 1
      %582 = vperm.xlu0 %581, %v563
      %v583 = vpop.permute.xlu0 %582
      %v585 = vperm.slane %v539, 1
      %v586 = vmul.f32 %v579, %v585
      %v587 = vmul.f32 %v583, %v585
      %v588 = vadd.f32 %v575, %v586
      %v589 = vadd.f32 %v576, %v587
      %v590 = vmul.f32 %v588, 0.70710677
      %v591 = vmul.f32 %v589, 0.70710677
      %v592 = vsel %vm317, %v590, -inf
      %593 = vmax.xlane.f32.xlu0 %v592
      %v594 = vpop.xlane.xlu0 %593
      %v595 = vsel %vm317, %v591, -inf
      %596 = vmax.xlane.f32.xlu0 %v595
      %v597 = vpop.xlane.xlu0 %596
      %v598 = vsub.f32 %v590, %v594
      %v599 = vsub.f32 %v591, %v597
      %v600 = vmul.f32 %v598, 1.442695
      %v601 = vpow.pop %v600
      %v602 = vmul.f32 %v599, 1.442695
      %v603 = vpow.pop %v602
      %vm604 = vcmask 1041408
      %v605 = vsel %vm604, %v551, 1.0
      %v607 = vsel %vm317, %v601, 0
      %v610 = vsel %vm317, %v603, 0
      %v613 = vsel %vm317, %v605, 0
      %615 = vmatpush.xpose.msra.mxu0 0.0
      %616 = vmatpush.xpose.msra.mxu0 0.0
      %617 = vmatpush.xpose.msra.mxu0 0.0
      %618 = vmatpush.xpose.msra.mxu0 0.0
      %619 = vmatpush.xpose.msra.mxu0 0.0
      %620 = vmatpush.xpose.msra.mxu0 0.0
      %621 = vmatpush.xpose.msra.mxu0 0.0
      %622 = vmatpush.xpose.msra.mxu0 0.0
      %623 = vmatpush.xpose.msra.mxu0 0.0
      %624 = vmatpush.xpose.msra.mxu0 0.0
      %625 = vmatpush.xpose.msra.mxu0 0.0
      %626 = vmatpush.xpose.msra.mxu0 0.0
      %627 = vmatpush.xpose.msra.mxu0 0.0
      %628 = vmatpush.xpose.msra.mxu0 0.0
      %629 = vmatpush.xpose.msra.mxu0 0.0
      %630 = vmatpush.xpose.msra.mxu0 %v613
      %631 = vmatmul.f32.gmra.mxu0 %v607
      %v632 = vpop.f32.mrf.mxu0
      %v633 = vadd.f32 0.0, %v632
      %634 = vmatmul.f32.gmra.mxu0 %v610
      %v635 = vpop.f32.mrf.mxu0
      %v636 = vadd.f32 0.0, %v635
      %637 = vdwg.mxu0
      %639 = vset.pattern.permute.xlu0 2
      %640 = vperm.xlu0 %639, %v633
      %v641 = vpop.permute.xlu0 %640
      %644 = vset.pattern.permute.xlu0 2
      %645 = vperm.xlu0 %644, %v636
      %v646 = vpop.permute.xlu0 %645
      %v648 = vrcp.pop %v641
      %v649 = vmul.f32 %v641, %v648
      %v650 = vsub.f32 1.0, %v649
      %v651 = vmul.f32 %v648, %v650
      %v652 = vadd.f32 %v648, %v651
      %vm653 = vweird.f32 %v641
      %vm654 = vweird.f32 %v648
      %vm655 = vmor %vm653, %vm654
      %v656 = vsel %vm655, %v648, %v652
      %v657 = vand.u32 2147483647, %v641
      %vm658 = vcmp.eq.f32.partialorder %v657, 8.507059e+37
      %v659 = vand.u32 %v641, 2147483648
      %v660 = vor.u32 1.1754944e-38, %v659
      %v661 = vsel %vm658, %v660, %v656
      %v662 = vmul.f32 %v633, %v661
      %v663 = vrcp.pop %v646
      %v664 = vmul.f32 %v646, %v663
      %v665 = vsub.f32 1.0, %v664
      %v666 = vmul.f32 %v663, %v665
      %v667 = vadd.f32 %v663, %v666
      %vm668 = vweird.f32 %v646
      %vm669 = vweird.f32 %v663
      %vm670 = vmor %vm668, %vm669
      %v671 = vsel %vm670, %v663, %v667
      %v672 = vand.u32 2147483647, %v646
      %vm673 = vcmp.eq.f32.partialorder %v672, 8.507059e+37
      %v674 = vand.u32 %v646, 2147483648
      %v675 = vor.u32 1.1754944e-38, %v674
      %v676 = vsel %vm673, %v675, %v671
      %v677 = vmul.f32 %v636, %v676
      %678 = vset.pattern.permute.xlu0 2
      %679 = vperm.xlu0 %678, %v562
      %v680 = vpop.permute.xlu0 %679
      %682 = vset.pattern.permute.xlu0 2
      %683 = vperm.xlu0 %682, %v563
      %v684 = vpop.permute.xlu0 %683
      %v686 = vperm.slane %v539, 2
      %v687 = vmul.f32 %v680, %v686
      %v688 = vmul.f32 %v684, %v686
      %689 = vset.pattern.permute.xlu0 3
      %690 = vperm.xlu0 %689, %v562
      %v691 = vpop.permute.xlu0 %690
      %693 = vset.pattern.permute.xlu0 3
      %694 = vperm.xlu0 %693, %v563
      %v695 = vpop.permute.xlu0 %694
      %v697 = vperm.slane %v539, 3
      %v698 = vmul.f32 %v691, %v697
      %v699 = vmul.f32 %v695, %v697
      %v700 = vadd.f32 %v687, %v698
      %v701 = vadd.f32 %v688, %v699
      %v702 = vmul.f32 %v700, 0.70710677
      %v703 = vmul.f32 %v701, 0.70710677
      %v704 = vsel %vm317, %v702, -inf
      %705 = vmax.xlane.f32.xlu0 %v704
      %v706 = vpop.xlane.xlu0 %705
      %v707 = vsel %vm317, %v703, -inf
      %708 = vmax.xlane.f32.xlu0 %v707
      %v709 = vpop.xlane.xlu0 %708
      %v710 = vsub.f32 %v702, %v706
      %v711 = vsub.f32 %v703, %v709
      %v712 = vmul.f32 %v710, 1.442695
      %v713 = vpow.pop %v712
      %v714 = vmul.f32 %v711, 1.442695
      %v715 = vpow.pop %v714
      %v717 = vrot.slane %v551, 2
      %v719 = vsel %vm604, %v717, 1.0
      %v721 = vsel %vm317, %v713, 0
      %v724 = vsel %vm317, %v715, 0
      %v727 = vsel %vm317, %v719, 0
      %729 = vmatpush.xpose.msra.mxu0 0.0
      %730 = vmatpush.xpose.msra.mxu0 0.0
      %731 = vmatpush.xpose.msra.mxu0 0.0
      %732 = vmatpush.xpose.msra.mxu0 0.0
      %733 = vmatpush.xpose.msra.mxu0 0.0
      %734 = vmatpush.xpose.msra.mxu0 0.0
      %735 = vmatpush.xpose.msra.mxu0 0.0
      %736 = vmatpush.xpose.msra.mxu0 0.0
      %737 = vmatpush.xpose.msra.mxu0 0.0
      %738 = vmatpush.xpose.msra.mxu0 0.0
      %739 = vmatpush.xpose.msra.mxu0 0.0
      %740 = vmatpush.xpose.msra.mxu0 0.0
      %741 = vmatpush.xpose.msra.mxu0 0.0
      %742 = vmatpush.xpose.msra.mxu0 0.0
      %743 = vmatpush.xpose.msra.mxu0 0.0
      %744 = vmatpush.xpose.msra.mxu0 %v727
      %745 = vmatmul.f32.gmra.mxu0 %v721
      %v746 = vpop.f32.mrf.mxu0
      %v747 = vadd.f32 0.0, %v746
      %748 = vmatmul.f32.gmra.mxu0 %v724
      %v749 = vpop.f32.mrf.mxu0
      %v750 = vadd.f32 0.0, %v749
      %751 = vdwg.mxu0
      %753 = vset.pattern.permute.xlu0 2
      %754 = vperm.xlu0 %753, %v747
      %v755 = vpop.permute.xlu0 %754
      %758 = vset.pattern.permute.xlu0 2
      %759 = vperm.xlu0 %758, %v750
      %v760 = vpop.permute.xlu0 %759
      %v762 = vrcp.pop %v755
      %v763 = vmul.f32 %v755, %v762
      %v764 = vsub.f32 1.0, %v763
      %v765 = vmul.f32 %v762, %v764
      %v766 = vadd.f32 %v762, %v765
      %vm767 = vweird.f32 %v755
      %vm768 = vweird.f32 %v762
      %vm769 = vmor %vm767, %vm768
      %v770 = vsel %vm769, %v762, %v766
      %v771 = vand.u32 2147483647, %v755
      %vm772 = vcmp.eq.f32.partialorder %v771, 8.507059e+37
      %v773 = vand.u32 %v755, 2147483648
      %v774 = vor.u32 1.1754944e-38, %v773
      %v775 = vsel %vm772, %v774, %v770
      %v776 = vmul.f32 %v747, %v775
      %v777 = vrcp.pop %v760
      %v778 = vmul.f32 %v760, %v777
      %v779 = vsub.f32 1.0, %v778
      %v780 = vmul.f32 %v777, %v779
      %v781 = vadd.f32 %v777, %v780
      %vm782 = vweird.f32 %v760
      %vm783 = vweird.f32 %v777
      %vm784 = vmor %vm782, %vm783
      %v785 = vsel %vm784, %v777, %v781
      %v786 = vand.u32 2147483647, %v760
      %vm787 = vcmp.eq.f32.partialorder %v786, 8.507059e+37
      %v788 = vand.u32 %v760, 2147483648
      %v789 = vor.u32 1.1754944e-38, %v788
      %v790 = vsel %vm787, %v789, %v785
      %v791 = vmul.f32 %v750, %v790
      %792 = vset.pattern.permute.xlu0 4
      %793 = vperm.xlu0 %792, %v562
      %v794 = vpop.permute.xlu0 %793
      %796 = vset.pattern.permute.xlu0 4
      %797 = vperm.xlu0 %796, %v563
      %v798 = vpop.permute.xlu0 %797
      %v800 = vperm.slane %v539, 4
      %v801 = vmul.f32 %v794, %v800
      %v802 = vmul.f32 %v798, %v800
      %803 = vset.pattern.permute.xlu0 5
      %804 = vperm.xlu0 %803, %v562
      %v805 = vpop.permute.xlu0 %804
      %807 = vset.pattern.permute.xlu0 5
      %808 = vperm.xlu0 %807, %v563
      %v809 = vpop.permute.xlu0 %808
      %v811 = vperm.slane %v539, 5
      %v812 = vmul.f32 %v805, %v811
      %v813 = vmul.f32 %v809, %v811
      %v814 = vadd.f32 %v801, %v812
      %v815 = vadd.f32 %v802, %v813
      %v816 = vmul.f32 %v814, 0.70710677
      %v817 = vmul.f32 %v815, 0.70710677
      %v818 = vsel %vm317, %v816, -inf
      %819 = vmax.xlane.f32.xlu0 %v818
      %v820 = vpop.xlane.xlu0 %819
      %v821 = vsel %vm317, %v817, -inf
      %822 = vmax.xlane.f32.xlu0 %v821
      %v823 = vpop.xlane.xlu0 %822
      %v824 = vsub.f32 %v816, %v820
      %v825 = vsub.f32 %v817, %v823
      %v826 = vmul.f32 %v824, 1.442695
      %v827 = vpow.pop %v826
      %v828 = vmul.f32 %v825, 1.442695
      %v829 = vpow.pop %v828
      %v830 = vrot.slane %v551, 4
      %v832 = vsel %vm604, %v830, 1.0
      %v834 = vsel %vm317, %v827, 0
      %v837 = vsel %vm317, %v829, 0
      %v840 = vsel %vm317, %v832, 0
      %842 = vmatpush.xpose.msra.mxu0 0.0
      %843 = vmatpush.xpose.msra.mxu0 0.0
      %844 = vmatpush.xpose.msra.mxu0 0.0
      %845 = vmatpush.xpose.msra.mxu0 0.0
      %846 = vmatpush.xpose.msra.mxu0 0.0
      %847 = vmatpush.xpose.msra.mxu0 0.0
      %848 = vmatpush.xpose.msra.mxu0 0.0
      %849 = vmatpush.xpose.msra.mxu0 0.0
      %850 = vmatpush.xpose.msra.mxu0 0.0
      %851 = vmatpush.xpose.msra.mxu0 0.0
      %852 = vmatpush.xpose.msra.mxu0 0.0
      %853 = vmatpush.xpose.msra.mxu0 0.0
      %854 = vmatpush.xpose.msra.mxu0 0.0
      %855 = vmatpush.xpose.msra.mxu0 0.0
      %856 = vmatpush.xpose.msra.mxu0 0.0
      %857 = vmatpush.xpose.msra.mxu0 %v840
      %858 = vmatmul.f32.gmra.mxu0 %v834
      %v859 = vpop.f32.mrf.mxu0
      %v860 = vadd.f32 0.0, %v859
      %861 = vmatmul.f32.gmra.mxu0 %v837
      %v862 = vpop.f32.mrf.mxu0
      %v863 = vadd.f32 0.0, %v862
      %864 = vdwg.mxu0
      %866 = vset.pattern.permute.xlu0 2
      %867 = vperm.xlu0 %866, %v860
      %v868 = vpop.permute.xlu0 %867
      %871 = vset.pattern.permute.xlu0 2
      %872 = vperm.xlu0 %871, %v863
      %v873 = vpop.permute.xlu0 %872
      %v875 = vrcp.pop %v868
      %v876 = vmul.f32 %v868, %v875
      %v877 = vsub.f32 1.0, %v876
      %v878 = vmul.f32 %v875, %v877
      %v879 = vadd.f32 %v875, %v878
      %vm880 = vweird.f32 %v868
      %vm881 = vweird.f32 %v875
      %vm882 = vmor %vm880, %vm881
      %v883 = vsel %vm882, %v875, %v879
      %v884 = vand.u32 2147483647, %v868
      %vm885 = vcmp.eq.f32.partialorder %v884, 8.507059e+37
      %v886 = vand.u32 %v868, 2147483648
      %v887 = vor.u32 1.1754944e-38, %v886
      %v888 = vsel %vm885, %v887, %v883
      %v889 = vmul.f32 %v860, %v888
      %v890 = vrcp.pop %v873
      %v891 = vmul.f32 %v873, %v890
      %v892 = vsub.f32 1.0, %v891
      %v893 = vmul.f32 %v890, %v892
      %v894 = vadd.f32 %v890, %v893
      %vm895 = vweird.f32 %v873
      %vm896 = vweird.f32 %v890
      %vm897 = vmor %vm895, %vm896
      %v898 = vsel %vm897, %v890, %v894
      %v899 = vand.u32 2147483647, %v873
      %vm900 = vcmp.eq.f32.partialorder %v899, 8.507059e+37
      %v901 = vand.u32 %v873, 2147483648
      %v902 = vor.u32 1.1754944e-38, %v901
      %v903 = vsel %vm900, %v902, %v898
      %v904 = vmul.f32 %v863, %v903
      %905 = vset.pattern.permute.xlu0 6
      %906 = vperm.xlu0 %905, %v562
      %v907 = vpop.permute.xlu0 %906
      %909 = vset.pattern.permute.xlu0 6
      %910 = vperm.xlu0 %909, %v563
      %v911 = vpop.permute.xlu0 %910
      %v913 = vperm.slane %v539, 6
      %v914 = vmul.f32 %v907, %v913
      %v915 = vmul.f32 %v911, %v913
      %916 = vset.pattern.permute.xlu0 7
      %917 = vperm.xlu0 %916, %v562
      %v918 = vpop.permute.xlu0 %917
      %920 = vset.pattern.permute.xlu0 7
      %921 = vperm.xlu0 %920, %v563
      %v922 = vpop.permute.xlu0 %921
      %v924 = vperm.slane %v539, 7
      %v925 = vmul.f32 %v918, %v924
      %v926 = vmul.f32 %v922, %v924
      %v927 = vadd.f32 %v914, %v925
      %v928 = vadd.f32 %v915, %v926
      %v929 = vmul.f32 %v927, 0.70710677
      %v930 = vmul.f32 %v928, 0.70710677
      %v931 = vsel %vm317, %v929, -inf
      %932 = vmax.xlane.f32.xlu0 %v931
      %v933 = vpop.xlane.xlu0 %932
      %v934 = vsel %vm317, %v930, -inf
      %935 = vmax.xlane.f32.xlu0 %v934
      %v936 = vpop.xlane.xlu0 %935
      %v937 = vsub.f32 %v929, %v933
      %v938 = vsub.f32 %v930, %v936
      %v939 = vmul.f32 %v937, 1.442695
      %v940 = vpow.pop %v939
      %v941 = vmul.f32 %v938, 1.442695
      %v942 = vpow.pop %v941
      %v943 = vrot.slane %v551, 6
      %v945 = vsel %vm604, %v943, 1.0
      %v947 = vsel %vm317, %v940, 0
      %v950 = vsel %vm317, %v942, 0
      %v953 = vsel %vm317, %v945, 0
      %955 = vmatpush.xpose.msra.mxu0 0.0
      %956 = vmatpush.xpose.msra.mxu0 0.0
      %957 = vmatpush.xpose.msra.mxu0 0.0
      %958 = vmatpush.xpose.msra.mxu0 0.0
      %959 = vmatpush.xpose.msra.mxu0 0.0
      %960 = vmatpush.xpose.msra.mxu0 0.0
      %961 = vmatpush.xpose.msra.mxu0 0.0
      %962 = vmatpush.xpose.msra.mxu0 0.0
      %963 = vmatpush.xpose.msra.mxu0 0.0
      %964 = vmatpush.xpose.msra.mxu0 0.0
      %965 = vmatpush.xpose.msra.mxu0 0.0
      %966 = vmatpush.xpose.msra.mxu0 0.0
      %967 = vmatpush.xpose.msra.mxu0 0.0
      %968 = vmatpush.xpose.msra.mxu0 0.0
      %969 = vmatpush.xpose.msra.mxu0 0.0
      %970 = vmatpush.xpose.msra.mxu0 %v953
      %971 = vmatmul.f32.gmra.mxu0 %v947
      %v972 = vpop.f32.mrf.mxu0
      %v973 = vadd.f32 0.0, %v972
      %974 = vmatmul.f32.gmra.mxu0 %v950
      %v975 = vpop.f32.mrf.mxu0
      %v976 = vadd.f32 0.0, %v975
      %977 = vdwg.mxu0
      %979 = vset.pattern.permute.xlu0 2
      %980 = vperm.xlu0 %979, %v973
      %v981 = vpop.permute.xlu0 %980
      %984 = vset.pattern.permute.xlu0 2
      %985 = vperm.xlu0 %984, %v976
      %v986 = vpop.permute.xlu0 %985
      %v988 = vrcp.pop %v981
      %v989 = vmul.f32 %v981, %v988
      %v990 = vsub.f32 1.0, %v989
      %v991 = vmul.f32 %v988, %v990
      %v992 = vadd.f32 %v988, %v991
      %vm993 = vweird.f32 %v981
      %vm994 = vweird.f32 %v988
      %vm995 = vmor %vm993, %vm994
      %v996 = vsel %vm995, %v988, %v992
      %v997 = vand.u32 2147483647, %v981
      %vm998 = vcmp.eq.f32.partialorder %v997, 8.507059e+37
      %v999 = vand.u32 %v981, 2147483648
      %v1000 = vor.u32 1.1754944e-38, %v999
      %v1001 = vsel %vm998, %v1000, %v996
      %v1002 = vmul.f32 %v973, %v1001
      %v1003 = vrcp.pop %v986
      %v1004 = vmul.f32 %v986, %v1003
      %v1005 = vsub.f32 1.0, %v1004
      %v1006 = vmul.f32 %v1003, %v1005
      %v1007 = vadd.f32 %v1003, %v1006
      %vm1008 = vweird.f32 %v986
      %vm1009 = vweird.f32 %v1003
      %vm1010 = vmor %vm1008, %vm1009
      %v1011 = vsel %vm1010, %v1003, %v1007
      %v1012 = vand.u32 2147483647, %v986
      %vm1013 = vcmp.eq.f32.partialorder %v1012, 8.507059e+37
      %v1014 = vand.u32 %v986, 2147483648
      %v1015 = vor.u32 1.1754944e-38, %v1014
      %v1016 = vsel %vm1013, %v1015, %v1011
      %v1017 = vmul.f32 %v976, %v1016
      %1018 = vset.pattern.permute.xlu0 8
      %1019 = vperm.xlu0 %1018, %v562
      %v1020 = vpop.permute.xlu0 %1019
      %1022 = vset.pattern.permute.xlu0 8
      %1023 = vperm.xlu0 %1022, %v563
      %v1024 = vpop.permute.xlu0 %1023
      %v1026 = vperm.slane %v542, 0
      %v1027 = vmul.f32 %v1020, %v1026
      %v1028 = vmul.f32 %v1024, %v1026
      %1029 = vset.pattern.permute.xlu0 9
      %1030 = vperm.xlu0 %1029, %v562
      %v1031 = vpop.permute.xlu0 %1030
      %1033 = vset.pattern.permute.xlu0 9
      %1034 = vperm.xlu0 %1033, %v563
      %v1035 = vpop.permute.xlu0 %1034
      %v1037 = vperm.slane %v542, 1
      %v1038 = vmul.f32 %v1031, %v1037
      %v1039 = vmul.f32 %v1035, %v1037
      %v1040 = vadd.f32 %v1027, %v1038
      %v1041 = vadd.f32 %v1028, %v1039
      %v1042 = vmul.f32 %v1040, 0.70710677
      %v1043 = vmul.f32 %v1041, 0.70710677
      %v1044 = vsel %vm317, %v1042, -inf
      %1045 = vmax.xlane.f32.xlu0 %v1044
      %v1046 = vpop.xlane.xlu0 %1045
      %v1047 = vsel %vm317, %v1043, -inf
      %1048 = vmax.xlane.f32.xlu0 %v1047
      %v1049 = vpop.xlane.xlu0 %1048
      %v1050 = vsub.f32 %v1042, %v1046
      %v1051 = vsub.f32 %v1043, %v1049
      %v1052 = vmul.f32 %v1050, 1.442695
      %v1053 = vpow.pop %v1052
      %v1054 = vmul.f32 %v1051, 1.442695
      %v1055 = vpow.pop %v1054
      %v1056 = vsel %vm604, %v554, 1.0
      %v1058 = vsel %vm317, %v1053, 0
      %v1061 = vsel %vm317, %v1055, 0
      %v1064 = vsel %vm317, %v1056, 0
      %1066 = vmatpush.xpose.msra.mxu0 0.0
      %1067 = vmatpush.xpose.msra.mxu0 0.0
      %1068 = vmatpush.xpose.msra.mxu0 0.0
      %1069 = vmatpush.xpose.msra.mxu0 0.0
      %1070 = vmatpush.xpose.msra.mxu0 0.0
      %1071 = vmatpush.xpose.msra.mxu0 0.0
      %1072 = vmatpush.xpose.msra.mxu0 0.0
      %1073 = vmatpush.xpose.msra.mxu0 0.0
      %1074 = vmatpush.xpose.msra.mxu0 0.0
      %1075 = vmatpush.xpose.msra.mxu0 0.0
      %1076 = vmatpush.xpose.msra.mxu0 0.0
      %1077 = vmatpush.xpose.msra.mxu0 0.0
      %1078 = vmatpush.xpose.msra.mxu0 0.0
      %1079 = vmatpush.xpose.msra.mxu0 0.0
      %1080 = vmatpush.xpose.msra.mxu0 0.0
      %1081 = vmatpush.xpose.msra.mxu0 %v1064
      %1082 = vmatmul.f32.gmra.mxu0 %v1058
      %v1083 = vpop.f32.mrf.mxu0
      %v1084 = vadd.f32 0.0, %v1083
      %1085 = vmatmul.f32.gmra.mxu0 %v1061
      %v1086 = vpop.f32.mrf.mxu0
      %v1087 = vadd.f32 0.0, %v1086
      %1088 = vdwg.mxu0
      %1090 = vset.pattern.permute.xlu0 2
      %1091 = vperm.xlu0 %1090, %v1084
      %v1092 = vpop.permute.xlu0 %1091
      %1095 = vset.pattern.permute.xlu0 2
      %1096 = vperm.xlu0 %1095, %v1087
      %v1097 = vpop.permute.xlu0 %1096
      %v1099 = vrcp.pop %v1092
      %v1100 = vmul.f32 %v1092, %v1099
      %v1101 = vsub.f32 1.0, %v1100
      %v1102 = vmul.f32 %v1099, %v1101
      %v1103 = vadd.f32 %v1099, %v1102
      %vm1104 = vweird.f32 %v1092
      %vm1105 = vweird.f32 %v1099
      %vm1106 = vmor %vm1104, %vm1105
      %v1107 = vsel %vm1106, %v1099, %v1103
      %v1108 = vand.u32 2147483647, %v1092
      %vm1109 = vcmp.eq.f32.partialorder %v1108, 8.507059e+37
      %v1110 = vand.u32 %v1092, 2147483648
      %v1111 = vor.u32 1.1754944e-38, %v1110
      %v1112 = vsel %vm1109, %v1111, %v1107
      %v1113 = vmul.f32 %v1084, %v1112
      %v1114 = vrcp.pop %v1097
      %v1115 = vmul.f32 %v1097, %v1114
      %v1116 = vsub.f32 1.0, %v1115
      %v1117 = vmul.f32 %v1114, %v1116
      %v1118 = vadd.f32 %v1114, %v1117
      %vm1119 = vweird.f32 %v1097
      %vm1120 = vweird.f32 %v1114
      %vm1121 = vmor %vm1119, %vm1120
      %v1122 = vsel %vm1121, %v1114, %v1118
      %v1123 = vand.u32 2147483647, %v1097
      %vm1124 = vcmp.eq.f32.partialorder %v1123, 8.507059e+37
      %v1125 = vand.u32 %v1097, 2147483648
      %v1126 = vor.u32 1.1754944e-38, %v1125
      %v1127 = vsel %vm1124, %v1126, %v1122
      %v1128 = vmul.f32 %v1087, %v1127
      %1129 = vset.pattern.permute.xlu0 10
      %1130 = vperm.xlu0 %1129, %v562
      %v1131 = vpop.permute.xlu0 %1130
      %1133 = vset.pattern.permute.xlu0 10
      %1134 = vperm.xlu0 %1133, %v563
      %v1135 = vpop.permute.xlu0 %1134
      %v1137 = vperm.slane %v542, 2
      %v1138 = vmul.f32 %v1131, %v1137
      %v1139 = vmul.f32 %v1135, %v1137
      %1140 = vset.pattern.permute.xlu0 11
      %1141 = vperm.xlu0 %1140, %v562
      %v1142 = vpop.permute.xlu0 %1141
      %1144 = vset.pattern.permute.xlu0 11
      %1145 = vperm.xlu0 %1144, %v563
      %v1146 = vpop.permute.xlu0 %1145
      %v1148 = vperm.slane %v542, 3
      %v1149 = vmul.f32 %v1142, %v1148
      %v1150 = vmul.f32 %v1146, %v1148
      %v1151 = vadd.f32 %v1138, %v1149
      %v1152 = vadd.f32 %v1139, %v1150
      %v1153 = vmul.f32 %v1151, 0.70710677
      %v1154 = vmul.f32 %v1152, 0.70710677
      %v1155 = vsel %vm317, %v1153, -inf
      %1156 = vmax.xlane.f32.xlu0 %v1155
      %v1157 = vpop.xlane.xlu0 %1156
      %v1158 = vsel %vm317, %v1154, -inf
      %1159 = vmax.xlane.f32.xlu0 %v1158
      %v1160 = vpop.xlane.xlu0 %1159
      %v1161 = vsub.f32 %v1153, %v1157
      %v1162 = vsub.f32 %v1154, %v1160
      %v1163 = vmul.f32 %v1161, 1.442695
      %v1164 = vpow.pop %v1163
      %v1165 = vmul.f32 %v1162, 1.442695
      %v1166 = vpow.pop %v1165
      %v1168 = vrot.slane %v554, 2
      %v1170 = vsel %vm604, %v1168, 1.0
      %v1172 = vsel %vm317, %v1164, 0
      %v1175 = vsel %vm317, %v1166, 0
      %v1178 = vsel %vm317, %v1170, 0
      %1180 = vmatpush.xpose.msra.mxu0 0.0
      %1181 = vmatpush.xpose.msra.mxu0 0.0
      %1182 = vmatpush.xpose.msra.mxu0 0.0
      %1183 = vmatpush.xpose.msra.mxu0 0.0
      %1184 = vmatpush.xpose.msra.mxu0 0.0
      %1185 = vmatpush.xpose.msra.mxu0 0.0
      %1186 = vmatpush.xpose.msra.mxu0 0.0
      %1187 = vmatpush.xpose.msra.mxu0 0.0
      %1188 = vmatpush.xpose.msra.mxu0 0.0
      %1189 = vmatpush.xpose.msra.mxu0 0.0
      %1190 = vmatpush.xpose.msra.mxu0 0.0
      %1191 = vmatpush.xpose.msra.mxu0 0.0
      %1192 = vmatpush.xpose.msra.mxu0 0.0
      %1193 = vmatpush.xpose.msra.mxu0 0.0
      %1194 = vmatpush.xpose.msra.mxu0 0.0
      %1195 = vmatpush.xpose.msra.mxu0 %v1178
      %1196 = vmatmul.f32.gmra.mxu0 %v1172
      %v1197 = vpop.f32.mrf.mxu0
      %v1198 = vadd.f32 0.0, %v1197
      %1199 = vmatmul.f32.gmra.mxu0 %v1175
      %v1200 = vpop.f32.mrf.mxu0
      %v1201 = vadd.f32 0.0, %v1200
      %1202 = vdwg.mxu0
      %1204 = vset.pattern.permute.xlu0 2
      %1205 = vperm.xlu0 %1204, %v1198
      %v1206 = vpop.permute.xlu0 %1205
      %1209 = vset.pattern.permute.xlu0 2
      %1210 = vperm.xlu0 %1209, %v1201
      %v1211 = vpop.permute.xlu0 %1210
      %v1213 = vrcp.pop %v1206
      %v1214 = vmul.f32 %v1206, %v1213
      %v1215 = vsub.f32 1.0, %v1214
      %v1216 = vmul.f32 %v1213, %v1215
      %v1217 = vadd.f32 %v1213, %v1216
      %vm1218 = vweird.f32 %v1206
      %vm1219 = vweird.f32 %v1213
      %vm1220 = vmor %vm1218, %vm1219
      %v1221 = vsel %vm1220, %v1213, %v1217
      %v1222 = vand.u32 2147483647, %v1206
      %vm1223 = vcmp.eq.f32.partialorder %v1222, 8.507059e+37
      %v1224 = vand.u32 %v1206, 2147483648
      %v1225 = vor.u32 1.1754944e-38, %v1224
      %v1226 = vsel %vm1223, %v1225, %v1221
      %v1227 = vmul.f32 %v1198, %v1226
      %v1228 = vrcp.pop %v1211
      %v1229 = vmul.f32 %v1211, %v1228
      %v1230 = vsub.f32 1.0, %v1229
      %v1231 = vmul.f32 %v1228, %v1230
      %v1232 = vadd.f32 %v1228, %v1231
      %vm1233 = vweird.f32 %v1211
      %vm1234 = vweird.f32 %v1228
      %vm1235 = vmor %vm1233, %vm1234
      %v1236 = vsel %vm1235, %v1228, %v1232
      %v1237 = vand.u32 2147483647, %v1211
      %vm1238 = vcmp.eq.f32.partialorder %v1237, 8.507059e+37
      %v1239 = vand.u32 %v1211, 2147483648
      %v1240 = vor.u32 1.1754944e-38, %v1239
      %v1241 = vsel %vm1238, %v1240, %v1236
      %v1242 = vmul.f32 %v1201, %v1241
      %1243 = vset.pattern.permute.xlu0 12
      %1244 = vperm.xlu0 %1243, %v562
      %v1245 = vpop.permute.xlu0 %1244
      %1247 = vset.pattern.permute.xlu0 12
      %1248 = vperm.xlu0 %1247, %v563
      %v1249 = vpop.permute.xlu0 %1248
      %v1251 = vperm.slane %v542, 4
      %v1252 = vmul.f32 %v1245, %v1251
      %v1253 = vmul.f32 %v1249, %v1251
      %1254 = vset.pattern.permute.xlu0 13
      %1255 = vperm.xlu0 %1254, %v562
      %v1256 = vpop.permute.xlu0 %1255
      %1258 = vset.pattern.permute.xlu0 13
      %1259 = vperm.xlu0 %1258, %v563
      %v1260 = vpop.permute.xlu0 %1259
      %v1262 = vperm.slane %v542, 5
      %v1263 = vmul.f32 %v1256, %v1262
      %v1264 = vmul.f32 %v1260, %v1262
      %v1265 = vadd.f32 %v1252, %v1263
      %v1266 = vadd.f32 %v1253, %v1264
      %v1267 = vmul.f32 %v1265, 0.70710677
      %v1268 = vmul.f32 %v1266, 0.70710677
      %v1269 = vsel %vm317, %v1267, -inf
      %1270 = vmax.xlane.f32.xlu0 %v1269
      %v1271 = vpop.xlane.xlu0 %1270
      %v1272 = vsel %vm317, %v1268, -inf
      %1273 = vmax.xlane.f32.xlu0 %v1272
      %v1274 = vpop.xlane.xlu0 %1273
      %v1275 = vsub.f32 %v1267, %v1271
      %v1276 = vsub.f32 %v1268, %v1274
      %v1277 = vmul.f32 %v1275, 1.442695
      %v1278 = vpow.pop %v1277
      %v1279 = vmul.f32 %v1276, 1.442695
      %v1280 = vpow.pop %v1279
      %v1281 = vrot.slane %v554, 4
      %v1283 = vsel %vm604, %v1281, 1.0
      %v1285 = vsel %vm317, %v1278, 0
      %v1288 = vsel %vm317, %v1280, 0
      %v1291 = vsel %vm317, %v1283, 0
      %1293 = vmatpush.xpose.msra.mxu0 0.0
      %1294 = vmatpush.xpose.msra.mxu0 0.0
      %1295 = vmatpush.xpose.msra.mxu0 0.0
      %1296 = vmatpush.xpose.msra.mxu0 0.0
      %1297 = vmatpush.xpose.msra.mxu0 0.0
      %1298 = vmatpush.xpose.msra.mxu0 0.0
      %1299 = vmatpush.xpose.msra.mxu0 0.0
      %1300 = vmatpush.xpose.msra.mxu0 0.0
      %1301 = vmatpush.xpose.msra.mxu0 0.0
      %1302 = vmatpush.xpose.msra.mxu0 0.0
      %1303 = vmatpush.xpose.msra.mxu0 0.0
      %1304 = vmatpush.xpose.msra.mxu0 0.0
      %1305 = vmatpush.xpose.msra.mxu0 0.0
      %1306 = vmatpush.xpose.msra.mxu0 0.0
      %1307 = vmatpush.xpose.msra.mxu0 0.0
      %1308 = vmatpush.xpose.msra.mxu0 %v1291
      %1309 = vmatmul.f32.gmra.mxu0 %v1285
      %v1310 = vpop.f32.mrf.mxu0
      %v1311 = vadd.f32 0.0, %v1310
      %1312 = vmatmul.f32.gmra.mxu0 %v1288
      %v1313 = vpop.f32.mrf.mxu0
      %v1314 = vadd.f32 0.0, %v1313
      %1315 = vdwg.mxu0
      %1317 = vset.pattern.permute.xlu0 2
      %1318 = vperm.xlu0 %1317, %v1311
      %v1319 = vpop.permute.xlu0 %1318
      %1322 = vset.pattern.permute.xlu0 2
      %1323 = vperm.xlu0 %1322, %v1314
      %v1324 = vpop.permute.xlu0 %1323
      %v1326 = vrcp.pop %v1319
      %v1327 = vmul.f32 %v1319, %v1326
      %v1328 = vsub.f32 1.0, %v1327
      %v1329 = vmul.f32 %v1326, %v1328
      %v1330 = vadd.f32 %v1326, %v1329
      %vm1331 = vweird.f32 %v1319
      %vm1332 = vweird.f32 %v1326
      %vm1333 = vmor %vm1331, %vm1332
      %v1334 = vsel %vm1333, %v1326, %v1330
      %v1335 = vand.u32 2147483647, %v1319
      %vm1336 = vcmp.eq.f32.partialorder %v1335, 8.507059e+37
      %v1337 = vand.u32 %v1319, 2147483648
      %v1338 = vor.u32 1.1754944e-38, %v1337
      %v1339 = vsel %vm1336, %v1338, %v1334
      %v1340 = vmul.f32 %v1311, %v1339
      %v1341 = vrcp.pop %v1324
      %v1342 = vmul.f32 %v1324, %v1341
      %v1343 = vsub.f32 1.0, %v1342
      %v1344 = vmul.f32 %v1341, %v1343
      %v1345 = vadd.f32 %v1341, %v1344
      %vm1346 = vweird.f32 %v1324
      %vm1347 = vweird.f32 %v1341
      %vm1348 = vmor %vm1346, %vm1347
      %v1349 = vsel %vm1348, %v1341, %v1345
      %v1350 = vand.u32 2147483647, %v1324
      %vm1351 = vcmp.eq.f32.partialorder %v1350, 8.507059e+37
      %v1352 = vand.u32 %v1324, 2147483648
      %v1353 = vor.u32 1.1754944e-38, %v1352
      %v1354 = vsel %vm1351, %v1353, %v1349
      %v1355 = vmul.f32 %v1314, %v1354
      %1356 = vset.pattern.permute.xlu0 14
      %1357 = vperm.xlu0 %1356, %v562
      %v1358 = vpop.permute.xlu0 %1357
      %1360 = vset.pattern.permute.xlu0 14
      %1361 = vperm.xlu0 %1360, %v563
      %v1362 = vpop.permute.xlu0 %1361
      %v1364 = vperm.slane %v542, 6
      %v1365 = vmul.f32 %v1358, %v1364
      %v1366 = vmul.f32 %v1362, %v1364
      %1367 = vset.pattern.permute.xlu0 15
      %1368 = vperm.xlu0 %1367, %v562
      %v1369 = vpop.permute.xlu0 %1368
      %1371 = vset.pattern.permute.xlu0 15
      %1372 = vperm.xlu0 %1371, %v563
      %v1373 = vpop.permute.xlu0 %1372
      %v1375 = vperm.slane %v542, 7
      %v1376 = vmul.f32 %v1369, %v1375
      %v1377 = vmul.f32 %v1373, %v1375
      %v1378 = vadd.f32 %v1365, %v1376
      %v1379 = vadd.f32 %v1366, %v1377
      %v1380 = vmul.f32 %v1378, 0.70710677
      %v1381 = vmul.f32 %v1379, 0.70710677
      %v1382 = vsel %vm317, %v1380, -inf
      %1383 = vmax.xlane.f32.xlu0 %v1382
      %v1384 = vpop.xlane.xlu0 %1383
      %v1385 = vsel %vm317, %v1381, -inf
      %1386 = vmax.xlane.f32.xlu0 %v1385
      %v1387 = vpop.xlane.xlu0 %1386
      %v1388 = vsub.f32 %v1380, %v1384
      %v1389 = vsub.f32 %v1381, %v1387
      %v1390 = vmul.f32 %v1388, 1.442695
      %v1391 = vpow.pop %v1390
      %v1392 = vmul.f32 %v1389, 1.442695
      %v1393 = vpow.pop %v1392
      %v1394 = vrot.slane %v554, 6
      %v1396 = vsel %vm604, %v1394, 1.0
      %v1398 = vsel %vm317, %v1391, 0
      %v1401 = vsel %vm317, %v1393, 0
      %v1404 = vsel %vm317, %v1396, 0
      %1406 = vmatpush.xpose.msra.mxu0 0.0
      %1407 = vmatpush.xpose.msra.mxu0 0.0
      %1408 = vmatpush.xpose.msra.mxu0 0.0
      %1409 = vmatpush.xpose.msra.mxu0 0.0
      %1410 = vmatpush.xpose.msra.mxu0 0.0
      %1411 = vmatpush.xpose.msra.mxu0 0.0
      %1412 = vmatpush.xpose.msra.mxu0 0.0
      %1413 = vmatpush.xpose.msra.mxu0 0.0
      %1414 = vmatpush.xpose.msra.mxu0 0.0
      %1415 = vmatpush.xpose.msra.mxu0 0.0
      %1416 = vmatpush.xpose.msra.mxu0 0.0
      %1417 = vmatpush.xpose.msra.mxu0 0.0
      %1418 = vmatpush.xpose.msra.mxu0 0.0
      %1419 = vmatpush.xpose.msra.mxu0 0.0
      %1420 = vmatpush.xpose.msra.mxu0 0.0
      %1421 = vmatpush.xpose.msra.mxu0 %v1404
      %1422 = vmatmul.f32.gmra.mxu0 %v1398
      %v1423 = vpop.f32.mrf.mxu0
      %v1424 = vadd.f32 0.0, %v1423
      %1425 = vmatmul.f32.gmra.mxu0 %v1401
      %v1426 = vpop.f32.mrf.mxu0
      %v1427 = vadd.f32 0.0, %v1426
      %1428 = vdwg.mxu0
      %1430 = vset.pattern.permute.xlu0 2
      %1431 = vperm.xlu0 %1430, %v1424
      %v1432 = vpop.permute.xlu0 %1431
      %1435 = vset.pattern.permute.xlu0 2
      %1436 = vperm.xlu0 %1435, %v1427
      %v1437 = vpop.permute.xlu0 %1436
      %v1439 = vrcp.pop %v1432
      %v1440 = vmul.f32 %v1432, %v1439
      %v1441 = vsub.f32 1.0, %v1440
      %v1442 = vmul.f32 %v1439, %v1441
      %v1443 = vadd.f32 %v1439, %v1442
      %vm1444 = vweird.f32 %v1432
      %vm1445 = vweird.f32 %v1439
      %vm1446 = vmor %vm1444, %vm1445
      %v1447 = vsel %vm1446, %v1439, %v1443
      %v1448 = vand.u32 2147483647, %v1432
      %vm1449 = vcmp.eq.f32.partialorder %v1448, 8.507059e+37
      %v1450 = vand.u32 %v1432, 2147483648
      %v1451 = vor.u32 1.1754944e-38, %v1450
      %v1452 = vsel %vm1449, %v1451, %v1447
      %v1453 = vmul.f32 %v1424, %v1452
      %v1454 = vrcp.pop %v1437
      %v1455 = vmul.f32 %v1437, %v1454
      %v1456 = vsub.f32 1.0, %v1455
      %v1457 = vmul.f32 %v1454, %v1456
      %v1458 = vadd.f32 %v1454, %v1457
      %vm1459 = vweird.f32 %v1437
      %vm1460 = vweird.f32 %v1454
      %vm1461 = vmor %vm1459, %vm1460
      %v1462 = vsel %vm1461, %v1454, %v1458
      %v1463 = vand.u32 2147483647, %v1437
      %vm1464 = vcmp.eq.f32.partialorder %v1463, 8.507059e+37
      %v1465 = vand.u32 %v1437, 2147483648
      %v1466 = vor.u32 1.1754944e-38, %v1465
      %v1467 = vsel %vm1464, %v1466, %v1462
      %v1468 = vmul.f32 %v1427, %v1467
      %1469 = vset.pattern.permute.xlu0 16
      %1470 = vperm.xlu0 %1469, %v562
      %v1471 = vpop.permute.xlu0 %1470
      %1473 = vset.pattern.permute.xlu0 16
      %1474 = vperm.xlu0 %1473, %v563
      %v1475 = vpop.permute.xlu0 %1474
      %v1477 = vperm.slane %v545, 0
      %v1478 = vmul.f32 %v1471, %v1477
      %v1479 = vmul.f32 %v1475, %v1477
      %1480 = vset.pattern.permute.xlu0 17
      %1481 = vperm.xlu0 %1480, %v562
      %v1482 = vpop.permute.xlu0 %1481
      %1484 = vset.pattern.permute.xlu0 17
      %1485 = vperm.xlu0 %1484, %v563
      %v1486 = vpop.permute.xlu0 %1485
      %v1488 = vperm.slane %v545, 1
      %v1489 = vmul.f32 %v1482, %v1488
      %v1490 = vmul.f32 %v1486, %v1488
      %v1491 = vadd.f32 %v1478, %v1489
      %v1492 = vadd.f32 %v1479, %v1490
      %v1493 = vmul.f32 %v1491, 0.70710677
      %v1494 = vmul.f32 %v1492, 0.70710677
      %v1495 = vsel %vm317, %v1493, -inf
      %1496 = vmax.xlane.f32.xlu0 %v1495
      %v1497 = vpop.xlane.xlu0 %1496
      %v1498 = vsel %vm317, %v1494, -inf
      %1499 = vmax.xlane.f32.xlu0 %v1498
      %v1500 = vpop.xlane.xlu0 %1499
      %v1501 = vsub.f32 %v1493, %v1497
      %v1502 = vsub.f32 %v1494, %v1500
      %v1503 = vmul.f32 %v1501, 1.442695
      %v1504 = vpow.pop %v1503
      %v1505 = vmul.f32 %v1502, 1.442695
      %v1506 = vpow.pop %v1505
      %v1507 = vsel %vm604, %v557, 1.0
      %v1509 = vsel %vm317, %v1504, 0
      %v1512 = vsel %vm317, %v1506, 0
      %v1515 = vsel %vm317, %v1507, 0
      %1517 = vmatpush.xpose.msra.mxu0 0.0
      %1518 = vmatpush.xpose.msra.mxu0 0.0
      %1519 = vmatpush.xpose.msra.mxu0 0.0
      %1520 = vmatpush.xpose.msra.mxu0 0.0
      %1521 = vmatpush.xpose.msra.mxu0 0.0
      %1522 = vmatpush.xpose.msra.mxu0 0.0
      %1523 = vmatpush.xpose.msra.mxu0 0.0
      %1524 = vmatpush.xpose.msra.mxu0 0.0
      %1525 = vmatpush.xpose.msra.mxu0 0.0
      %1526 = vmatpush.xpose.msra.mxu0 0.0
      %1527 = vmatpush.xpose.msra.mxu0 0.0
      %1528 = vmatpush.xpose.msra.mxu0 0.0
      %1529 = vmatpush.xpose.msra.mxu0 0.0
      %1530 = vmatpush.xpose.msra.mxu0 0.0
      %1531 = vmatpush.xpose.msra.mxu0 0.0
      %1532 = vmatpush.xpose.msra.mxu0 %v1515
      %1533 = vmatmul.f32.gmra.mxu0 %v1509
      %v1534 = vpop.f32.mrf.mxu0
      %v1535 = vadd.f32 0.0, %v1534
      %1536 = vmatmul.f32.gmra.mxu0 %v1512
      %v1537 = vpop.f32.mrf.mxu0
      %v1538 = vadd.f32 0.0, %v1537
      %1539 = vdwg.mxu0
      %1541 = vset.pattern.permute.xlu0 2
      %1542 = vperm.xlu0 %1541, %v1535
      %v1543 = vpop.permute.xlu0 %1542
      %1546 = vset.pattern.permute.xlu0 2
      %1547 = vperm.xlu0 %1546, %v1538
      %v1548 = vpop.permute.xlu0 %1547
      %v1550 = vrcp.pop %v1543
      %v1551 = vmul.f32 %v1543, %v1550
      %v1552 = vsub.f32 1.0, %v1551
      %v1553 = vmul.f32 %v1550, %v1552
      %v1554 = vadd.f32 %v1550, %v1553
      %vm1555 = vweird.f32 %v1543
      %vm1556 = vweird.f32 %v1550
      %vm1557 = vmor %vm1555, %vm1556
      %v1558 = vsel %vm1557, %v1550, %v1554
      %v1559 = vand.u32 2147483647, %v1543
      %vm1560 = vcmp.eq.f32.partialorder %v1559, 8.507059e+37
      %v1561 = vand.u32 %v1543, 2147483648
      %v1562 = vor.u32 1.1754944e-38, %v1561
      %v1563 = vsel %vm1560, %v1562, %v1558
      %v1564 = vmul.f32 %v1535, %v1563
      %v1565 = vrcp.pop %v1548
      %v1566 = vmul.f32 %v1548, %v1565
      %v1567 = vsub.f32 1.0, %v1566
      %v1568 = vmul.f32 %v1565, %v1567
      %v1569 = vadd.f32 %v1565, %v1568
      %vm1570 = vweird.f32 %v1548
      %vm1571 = vweird.f32 %v1565
      %vm1572 = vmor %vm1570, %vm1571
      %v1573 = vsel %vm1572, %v1565, %v1569
      %v1574 = vand.u32 2147483647, %v1548
      %vm1575 = vcmp.eq.f32.partialorder %v1574, 8.507059e+37
      %v1576 = vand.u32 %v1548, 2147483648
      %v1577 = vor.u32 1.1754944e-38, %v1576
      %v1578 = vsel %vm1575, %v1577, %v1573
      %v1579 = vmul.f32 %v1538, %v1578
      %1580 = vset.pattern.permute.xlu0 18
      %1581 = vperm.xlu0 %1580, %v562
      %v1582 = vpop.permute.xlu0 %1581
      %1584 = vset.pattern.permute.xlu0 18
      %1585 = vperm.xlu0 %1584, %v563
      %v1586 = vpop.permute.xlu0 %1585
      %v1588 = vperm.slane %v545, 2
      %v1589 = vmul.f32 %v1582, %v1588
      %v1590 = vmul.f32 %v1586, %v1588
      %1591 = vset.pattern.permute.xlu0 19
      %1592 = vperm.xlu0 %1591, %v562
      %v1593 = vpop.permute.xlu0 %1592
      %1595 = vset.pattern.permute.xlu0 19
      %1596 = vperm.xlu0 %1595, %v563
      %v1597 = vpop.permute.xlu0 %1596
      %v1599 = vperm.slane %v545, 3
      %v1600 = vmul.f32 %v1593, %v1599
      %v1601 = vmul.f32 %v1597, %v1599
      %v1602 = vadd.f32 %v1589, %v1600
      %v1603 = vadd.f32 %v1590, %v1601
      %v1604 = vmul.f32 %v1602, 0.70710677
      %v1605 = vmul.f32 %v1603, 0.70710677
      %v1606 = vsel %vm317, %v1604, -inf
      %1607 = vmax.xlane.f32.xlu0 %v1606
      %v1608 = vpop.xlane.xlu0 %1607
      %v1609 = vsel %vm317, %v1605, -inf
      %1610 = vmax.xlane.f32.xlu0 %v1609
      %v1611 = vpop.xlane.xlu0 %1610
      %v1612 = vsub.f32 %v1604, %v1608
      %v1613 = vsub.f32 %v1605, %v1611
      %v1614 = vmul.f32 %v1612, 1.442695
      %v1615 = vpow.pop %v1614
      %v1616 = vmul.f32 %v1613, 1.442695
      %v1617 = vpow.pop %v1616
      %v1619 = vrot.slane %v557, 2
      %v1621 = vsel %vm604, %v1619, 1.0
      %v1623 = vsel %vm317, %v1615, 0
      %v1626 = vsel %vm317, %v1617, 0
      %v1629 = vsel %vm317, %v1621, 0
      %1631 = vmatpush.xpose.msra.mxu0 0.0
      %1632 = vmatpush.xpose.msra.mxu0 0.0
      %1633 = vmatpush.xpose.msra.mxu0 0.0
      %1634 = vmatpush.xpose.msra.mxu0 0.0
      %1635 = vmatpush.xpose.msra.mxu0 0.0
      %1636 = vmatpush.xpose.msra.mxu0 0.0
      %1637 = vmatpush.xpose.msra.mxu0 0.0
      %1638 = vmatpush.xpose.msra.mxu0 0.0
      %1639 = vmatpush.xpose.msra.mxu0 0.0
      %1640 = vmatpush.xpose.msra.mxu0 0.0
      %1641 = vmatpush.xpose.msra.mxu0 0.0
      %1642 = vmatpush.xpose.msra.mxu0 0.0
      %1643 = vmatpush.xpose.msra.mxu0 0.0
      %1644 = vmatpush.xpose.msra.mxu0 0.0
      %1645 = vmatpush.xpose.msra.mxu0 0.0
      %1646 = vmatpush.xpose.msra.mxu0 %v1629
      %1647 = vmatmul.f32.gmra.mxu0 %v1623
      %v1648 = vpop.f32.mrf.mxu0
      %v1649 = vadd.f32 0.0, %v1648
      %1650 = vmatmul.f32.gmra.mxu0 %v1626
      %v1651 = vpop.f32.mrf.mxu0
      %v1652 = vadd.f32 0.0, %v1651
      %1653 = vdwg.mxu0
      %1655 = vset.pattern.permute.xlu0 2
      %1656 = vperm.xlu0 %1655, %v1649
      %v1657 = vpop.permute.xlu0 %1656
      %1660 = vset.pattern.permute.xlu0 2
      %1661 = vperm.xlu0 %1660, %v1652
      %v1662 = vpop.permute.xlu0 %1661
      %v1664 = vrcp.pop %v1657
      %v1665 = vmul.f32 %v1657, %v1664
      %v1666 = vsub.f32 1.0, %v1665
      %v1667 = vmul.f32 %v1664, %v1666
      %v1668 = vadd.f32 %v1664, %v1667
      %vm1669 = vweird.f32 %v1657
      %vm1670 = vweird.f32 %v1664
      %vm1671 = vmor %vm1669, %vm1670
      %v1672 = vsel %vm1671, %v1664, %v1668
      %v1673 = vand.u32 2147483647, %v1657
      %vm1674 = vcmp.eq.f32.partialorder %v1673, 8.507059e+37
      %v1675 = vand.u32 %v1657, 2147483648
      %v1676 = vor.u32 1.1754944e-38, %v1675
      %v1677 = vsel %vm1674, %v1676, %v1672
      %v1678 = vmul.f32 %v1649, %v1677
      %v1679 = vrcp.pop %v1662
      %v1680 = vmul.f32 %v1662, %v1679
      %v1681 = vsub.f32 1.0, %v1680
      %v1682 = vmul.f32 %v1679, %v1681
      %v1683 = vadd.f32 %v1679, %v1682
      %vm1684 = vweird.f32 %v1662
      %vm1685 = vweird.f32 %v1679
      %vm1686 = vmor %vm1684, %vm1685
      %v1687 = vsel %vm1686, %v1679, %v1683
      %v1688 = vand.u32 2147483647, %v1662
      %vm1689 = vcmp.eq.f32.partialorder %v1688, 8.507059e+37
      %v1690 = vand.u32 %v1662, 2147483648
      %v1691 = vor.u32 1.1754944e-38, %v1690
      %v1692 = vsel %vm1689, %v1691, %v1687
      %v1693 = vmul.f32 %v1652, %v1692
      %1694 = vset.pattern.permute.xlu0 20
      %1695 = vperm.xlu0 %1694, %v562
      %v1696 = vpop.permute.xlu0 %1695
      %1698 = vset.pattern.permute.xlu0 20
      %1699 = vperm.xlu0 %1698, %v563
      %v1700 = vpop.permute.xlu0 %1699
      %v1702 = vperm.slane %v545, 4
      %v1703 = vmul.f32 %v1696, %v1702
      %v1704 = vmul.f32 %v1700, %v1702
      %1705 = vset.pattern.permute.xlu0 21
      %1706 = vperm.xlu0 %1705, %v562
      %v1707 = vpop.permute.xlu0 %1706
      %1709 = vset.pattern.permute.xlu0 21
      %1710 = vperm.xlu0 %1709, %v563
      %v1711 = vpop.permute.xlu0 %1710
      %v1713 = vperm.slane %v545, 5
      %v1714 = vmul.f32 %v1707, %v1713
      %v1715 = vmul.f32 %v1711, %v1713
      %v1716 = vadd.f32 %v1703, %v1714
      %v1717 = vadd.f32 %v1704, %v1715
      %v1718 = vmul.f32 %v1716, 0.70710677
      %v1719 = vmul.f32 %v1717, 0.70710677
      %v1720 = vsel %vm317, %v1718, -inf
      %1721 = vmax.xlane.f32.xlu0 %v1720
      %v1722 = vpop.xlane.xlu0 %1721
      %v1723 = vsel %vm317, %v1719, -inf
      %1724 = vmax.xlane.f32.xlu0 %v1723
      %v1725 = vpop.xlane.xlu0 %1724
      %v1726 = vsub.f32 %v1718, %v1722
      %v1727 = vsub.f32 %v1719, %v1725
      %v1728 = vmul.f32 %v1726, 1.442695
      %v1729 = vpow.pop %v1728
      %v1730 = vmul.f32 %v1727, 1.442695
      %v1731 = vpow.pop %v1730
      %v1732 = vrot.slane %v557, 4
      %v1734 = vsel %vm604, %v1732, 1.0
      %v1736 = vsel %vm317, %v1729, 0
      %v1739 = vsel %vm317, %v1731, 0
      %v1742 = vsel %vm317, %v1734, 0
      %1744 = vmatpush.xpose.msra.mxu0 0.0
      %1745 = vmatpush.xpose.msra.mxu0 0.0
      %1746 = vmatpush.xpose.msra.mxu0 0.0
      %1747 = vmatpush.xpose.msra.mxu0 0.0
      %1748 = vmatpush.xpose.msra.mxu0 0.0
      %1749 = vmatpush.xpose.msra.mxu0 0.0
      %1750 = vmatpush.xpose.msra.mxu0 0.0
      %1751 = vmatpush.xpose.msra.mxu0 0.0
      %1752 = vmatpush.xpose.msra.mxu0 0.0
      %1753 = vmatpush.xpose.msra.mxu0 0.0
      %1754 = vmatpush.xpose.msra.mxu0 0.0
      %1755 = vmatpush.xpose.msra.mxu0 0.0
      %1756 = vmatpush.xpose.msra.mxu0 0.0
      %1757 = vmatpush.xpose.msra.mxu0 0.0
      %1758 = vmatpush.xpose.msra.mxu0 0.0
      %1759 = vmatpush.xpose.msra.mxu0 %v1742
      %1760 = vmatmul.f32.gmra.mxu0 %v1736
      %v1761 = vpop.f32.mrf.mxu0
      %v1762 = vadd.f32 0.0, %v1761
      %1763 = vmatmul.f32.gmra.mxu0 %v1739
      %v1764 = vpop.f32.mrf.mxu0
      %v1765 = vadd.f32 0.0, %v1764
      %1766 = vdwg.mxu0
      %1768 = vset.pattern.permute.xlu0 2
      %1769 = vperm.xlu0 %1768, %v1762
      %v1770 = vpop.permute.xlu0 %1769
      %1773 = vset.pattern.permute.xlu0 2
      %1774 = vperm.xlu0 %1773, %v1765
      %v1775 = vpop.permute.xlu0 %1774
      %v1777 = vrcp.pop %v1770
      %v1778 = vmul.f32 %v1770, %v1777
      %v1779 = vsub.f32 1.0, %v1778
      %v1780 = vmul.f32 %v1777, %v1779
      %v1781 = vadd.f32 %v1777, %v1780
      %vm1782 = vweird.f32 %v1770
      %vm1783 = vweird.f32 %v1777
      %vm1784 = vmor %vm1782, %vm1783
      %v1785 = vsel %vm1784, %v1777, %v1781
      %v1786 = vand.u32 2147483647, %v1770
      %vm1787 = vcmp.eq.f32.partialorder %v1786, 8.507059e+37
      %v1788 = vand.u32 %v1770, 2147483648
      %v1789 = vor.u32 1.1754944e-38, %v1788
      %v1790 = vsel %vm1787, %v1789, %v1785
      %v1791 = vmul.f32 %v1762, %v1790
      %v1792 = vrcp.pop %v1775
      %v1793 = vmul.f32 %v1775, %v1792
      %v1794 = vsub.f32 1.0, %v1793
      %v1795 = vmul.f32 %v1792, %v1794
      %v1796 = vadd.f32 %v1792, %v1795
      %vm1797 = vweird.f32 %v1775
      %vm1798 = vweird.f32 %v1792
      %vm1799 = vmor %vm1797, %vm1798
      %v1800 = vsel %vm1799, %v1792, %v1796
      %v1801 = vand.u32 2147483647, %v1775
      %vm1802 = vcmp.eq.f32.partialorder %v1801, 8.507059e+37
      %v1803 = vand.u32 %v1775, 2147483648
      %v1804 = vor.u32 1.1754944e-38, %v1803
      %v1805 = vsel %vm1802, %v1804, %v1800
      %v1806 = vmul.f32 %v1765, %v1805
      %1807 = vset.pattern.permute.xlu0 22
      %1808 = vperm.xlu0 %1807, %v562
      %v1809 = vpop.permute.xlu0 %1808
      %1811 = vset.pattern.permute.xlu0 22
      %1812 = vperm.xlu0 %1811, %v563
      %v1813 = vpop.permute.xlu0 %1812
      %v1815 = vperm.slane %v545, 6
      %v1816 = vmul.f32 %v1809, %v1815
      %v1817 = vmul.f32 %v1813, %v1815
      %1818 = vset.pattern.permute.xlu0 23
      %1819 = vperm.xlu0 %1818, %v562
      %v1820 = vpop.permute.xlu0 %1819
      %1822 = vset.pattern.permute.xlu0 23
      %1823 = vperm.xlu0 %1822, %v563
      %v1824 = vpop.permute.xlu0 %1823
      %v1826 = vperm.slane %v545, 7
      %v1827 = vmul.f32 %v1820, %v1826
      %v1828 = vmul.f32 %v1824, %v1826
      %v1829 = vadd.f32 %v1816, %v1827
      %v1830 = vadd.f32 %v1817, %v1828
      %v1831 = vmul.f32 %v1829, 0.70710677
      %v1832 = vmul.f32 %v1830, 0.70710677
      %v1833 = vsel %vm317, %v1831, -inf
      %1834 = vmax.xlane.f32.xlu0 %v1833
      %v1835 = vpop.xlane.xlu0 %1834
      %v1836 = vsel %vm317, %v1832, -inf
      %1837 = vmax.xlane.f32.xlu0 %v1836
      %v1838 = vpop.xlane.xlu0 %1837
      %v1839 = vsub.f32 %v1831, %v1835
      %v1840 = vsub.f32 %v1832, %v1838
      %v1841 = vmul.f32 %v1839, 1.442695
      %v1842 = vpow.pop %v1841
      %v1843 = vmul.f32 %v1840, 1.442695
      %v1844 = vpow.pop %v1843
      %v1845 = vrot.slane %v557, 6
      %v1847 = vsel %vm604, %v1845, 1.0
      %v1849 = vsel %vm317, %v1842, 0
      %v1852 = vsel %vm317, %v1844, 0
      %v1855 = vsel %vm317, %v1847, 0
      %1857 = vmatpush.xpose.msra.mxu0 0.0
      %1858 = vmatpush.xpose.msra.mxu0 0.0
      %1859 = vmatpush.xpose.msra.mxu0 0.0
      %1860 = vmatpush.xpose.msra.mxu0 0.0
      %1861 = vmatpush.xpose.msra.mxu0 0.0
      %1862 = vmatpush.xpose.msra.mxu0 0.0
      %1863 = vmatpush.xpose.msra.mxu0 0.0
      %1864 = vmatpush.xpose.msra.mxu0 0.0
      %1865 = vmatpush.xpose.msra.mxu0 0.0
      %1866 = vmatpush.xpose.msra.mxu0 0.0
      %1867 = vmatpush.xpose.msra.mxu0 0.0
      %1868 = vmatpush.xpose.msra.mxu0 0.0
      %1869 = vmatpush.xpose.msra.mxu0 0.0
      %1870 = vmatpush.xpose.msra.mxu0 0.0
      %1871 = vmatpush.xpose.msra.mxu0 0.0
      %1872 = vmatpush.xpose.msra.mxu0 %v1855
      %1873 = vmatmul.f32.gmra.mxu0 %v1849
      %v1874 = vpop.f32.mrf.mxu0
      %v1875 = vadd.f32 0.0, %v1874
      %1876 = vmatmul.f32.gmra.mxu0 %v1852
      %v1877 = vpop.f32.mrf.mxu0
      %v1878 = vadd.f32 0.0, %v1877
      %1879 = vdwg.mxu0
      %1881 = vset.pattern.permute.xlu0 2
      %1882 = vperm.xlu0 %1881, %v1875
      %v1883 = vpop.permute.xlu0 %1882
      %1886 = vset.pattern.permute.xlu0 2
      %1887 = vperm.xlu0 %1886, %v1878
      %v1888 = vpop.permute.xlu0 %1887
      %v1890 = vrcp.pop %v1883
      %v1891 = vmul.f32 %v1883, %v1890
      %v1892 = vsub.f32 1.0, %v1891
      %v1893 = vmul.f32 %v1890, %v1892
      %v1894 = vadd.f32 %v1890, %v1893
      %vm1895 = vweird.f32 %v1883
      %vm1896 = vweird.f32 %v1890
      %vm1897 = vmor %vm1895, %vm1896
      %v1898 = vsel %vm1897, %v1890, %v1894
      %v1899 = vand.u32 2147483647, %v1883
      %vm1900 = vcmp.eq.f32.partialorder %v1899, 8.507059e+37
      %v1901 = vand.u32 %v1883, 2147483648
      %v1902 = vor.u32 1.1754944e-38, %v1901
      %v1903 = vsel %vm1900, %v1902, %v1898
      %v1904 = vmul.f32 %v1875, %v1903
      %v1905 = vrcp.pop %v1888
      %v1906 = vmul.f32 %v1888, %v1905
      %v1907 = vsub.f32 1.0, %v1906
      %v1908 = vmul.f32 %v1905, %v1907
      %v1909 = vadd.f32 %v1905, %v1908
      %vm1910 = vweird.f32 %v1888
      %vm1911 = vweird.f32 %v1905
      %vm1912 = vmor %vm1910, %vm1911
      %v1913 = vsel %vm1912, %v1905, %v1909
      %v1914 = vand.u32 2147483647, %v1888
      %vm1915 = vcmp.eq.f32.partialorder %v1914, 8.507059e+37
      %v1916 = vand.u32 %v1888, 2147483648
      %v1917 = vor.u32 1.1754944e-38, %v1916
      %v1918 = vsel %vm1915, %v1917, %v1913
      %v1919 = vmul.f32 %v1878, %v1918
      %1920 = vset.pattern.permute.xlu0 24
      %1921 = vperm.xlu0 %1920, %v562
      %v1922 = vpop.permute.xlu0 %1921
      %1924 = vset.pattern.permute.xlu0 24
      %1925 = vperm.xlu0 %1924, %v563
      %v1926 = vpop.permute.xlu0 %1925
      %v1928 = vperm.slane %v548, 0
      %v1929 = vmul.f32 %v1922, %v1928
      %v1930 = vmul.f32 %v1926, %v1928
      %1931 = vset.pattern.permute.xlu0 25
      %1932 = vperm.xlu0 %1931, %v562
      %v1933 = vpop.permute.xlu0 %1932
      %1935 = vset.pattern.permute.xlu0 25
      %1936 = vperm.xlu0 %1935, %v563
      %v1937 = vpop.permute.xlu0 %1936
      %v1939 = vperm.slane %v548, 1
      %v1940 = vmul.f32 %v1933, %v1939
      %v1941 = vmul.f32 %v1937, %v1939
      %v1942 = vadd.f32 %v1929, %v1940
      %v1943 = vadd.f32 %v1930, %v1941
      %v1944 = vmul.f32 %v1942, 0.70710677
      %v1945 = vmul.f32 %v1943, 0.70710677
      %v1946 = vsel %vm317, %v1944, -inf
      %1947 = vmax.xlane.f32.xlu0 %v1946
      %v1948 = vpop.xlane.xlu0 %1947
      %v1949 = vsel %vm317, %v1945, -inf
      %1950 = vmax.xlane.f32.xlu0 %v1949
      %v1951 = vpop.xlane.xlu0 %1950
      %v1952 = vsub.f32 %v1944, %v1948
      %v1953 = vsub.f32 %v1945, %v1951
      %v1954 = vmul.f32 %v1952, 1.442695
      %v1955 = vpow.pop %v1954
      %v1956 = vmul.f32 %v1953, 1.442695
      %v1957 = vpow.pop %v1956
      %v1958 = vsel %vm604, %v560, 1.0
      %v1960 = vsel %vm317, %v1955, 0
      %v1963 = vsel %vm317, %v1957, 0
      %v1966 = vsel %vm317, %v1958, 0
      %1968 = vmatpush.xpose.msra.mxu0 0.0
      %1969 = vmatpush.xpose.msra.mxu0 0.0
      %1970 = vmatpush.xpose.msra.mxu0 0.0
      %1971 = vmatpush.xpose.msra.mxu0 0.0
      %1972 = vmatpush.xpose.msra.mxu0 0.0
      %1973 = vmatpush.xpose.msra.mxu0 0.0
      %1974 = vmatpush.xpose.msra.mxu0 0.0
      %1975 = vmatpush.xpose.msra.mxu0 0.0
      %1976 = vmatpush.xpose.msra.mxu0 0.0
      %1977 = vmatpush.xpose.msra.mxu0 0.0
      %1978 = vmatpush.xpose.msra.mxu0 0.0
      %1979 = vmatpush.xpose.msra.mxu0 0.0
      %1980 = vmatpush.xpose.msra.mxu0 0.0
      %1981 = vmatpush.xpose.msra.mxu0 0.0
      %1982 = vmatpush.xpose.msra.mxu0 0.0
      %1983 = vmatpush.xpose.msra.mxu0 %v1966
      %1984 = vmatmul.f32.gmra.mxu0 %v1960
      %v1985 = vpop.f32.mrf.mxu0
      %v1986 = vadd.f32 0.0, %v1985
      %1987 = vmatmul.f32.gmra.mxu0 %v1963
      %v1988 = vpop.f32.mrf.mxu0
      %v1989 = vadd.f32 0.0, %v1988
      %1990 = vdwg.mxu0
      %1992 = vset.pattern.permute.xlu0 2
      %1993 = vperm.xlu0 %1992, %v1986
      %v1994 = vpop.permute.xlu0 %1993
      %1997 = vset.pattern.permute.xlu0 2
      %1998 = vperm.xlu0 %1997, %v1989
      %v1999 = vpop.permute.xlu0 %1998
      %v2001 = vrcp.pop %v1994
      %v2002 = vmul.f32 %v1994, %v2001
      %v2003 = vsub.f32 1.0, %v2002
      %v2004 = vmul.f32 %v2001, %v2003
      %v2005 = vadd.f32 %v2001, %v2004
      %vm2006 = vweird.f32 %v1994
      %vm2007 = vweird.f32 %v2001
      %vm2008 = vmor %vm2006, %vm2007
      %v2009 = vsel %vm2008, %v2001, %v2005
      %v2010 = vand.u32 2147483647, %v1994
      %vm2011 = vcmp.eq.f32.partialorder %v2010, 8.507059e+37
      %v2012 = vand.u32 %v1994, 2147483648
      %v2013 = vor.u32 1.1754944e-38, %v2012
      %v2014 = vsel %vm2011, %v2013, %v2009
      %v2015 = vmul.f32 %v1986, %v2014
      %v2016 = vrcp.pop %v1999
      %v2017 = vmul.f32 %v1999, %v2016
      %v2018 = vsub.f32 1.0, %v2017
      %v2019 = vmul.f32 %v2016, %v2018
      %v2020 = vadd.f32 %v2016, %v2019
      %vm2021 = vweird.f32 %v1999
      %vm2022 = vweird.f32 %v2016
      %vm2023 = vmor %vm2021, %vm2022
      %v2024 = vsel %vm2023, %v2016, %v2020
      %v2025 = vand.u32 2147483647, %v1999
      %vm2026 = vcmp.eq.f32.partialorder %v2025, 8.507059e+37
      %v2027 = vand.u32 %v1999, 2147483648
      %v2028 = vor.u32 1.1754944e-38, %v2027
      %v2029 = vsel %vm2026, %v2028, %v2024
      %v2030 = vmul.f32 %v1989, %v2029
      %2031 = vset.pattern.permute.xlu0 26
      %2032 = vperm.xlu0 %2031, %v562
      %v2033 = vpop.permute.xlu0 %2032
      %2035 = vset.pattern.permute.xlu0 26
      %2036 = vperm.xlu0 %2035, %v563
      %v2037 = vpop.permute.xlu0 %2036
      %v2039 = vperm.slane %v548, 2
      %v2040 = vmul.f32 %v2033, %v2039
      %v2041 = vmul.f32 %v2037, %v2039
      %2042 = vset.pattern.permute.xlu0 27
      %2043 = vperm.xlu0 %2042, %v562
      %v2044 = vpop.permute.xlu0 %2043
      %2046 = vset.pattern.permute.xlu0 27
      %2047 = vperm.xlu0 %2046, %v563
      %v2048 = vpop.permute.xlu0 %2047
      %v2050 = vperm.slane %v548, 3
      %v2051 = vmul.f32 %v2044, %v2050
      %v2052 = vmul.f32 %v2048, %v2050
      %v2053 = vadd.f32 %v2040, %v2051
      %v2054 = vadd.f32 %v2041, %v2052
      %v2055 = vmul.f32 %v2053, 0.70710677
      %v2056 = vmul.f32 %v2054, 0.70710677
      %v2057 = vsel %vm317, %v2055, -inf
      %2058 = vmax.xlane.f32.xlu0 %v2057
      %v2059 = vpop.xlane.xlu0 %2058
      %v2060 = vsel %vm317, %v2056, -inf
      %2061 = vmax.xlane.f32.xlu0 %v2060
      %v2062 = vpop.xlane.xlu0 %2061
      %v2063 = vsub.f32 %v2055, %v2059
      %v2064 = vsub.f32 %v2056, %v2062
      %v2065 = vmul.f32 %v2063, 1.442695
      %v2066 = vpow.pop %v2065
      %v2067 = vmul.f32 %v2064, 1.442695
      %v2068 = vpow.pop %v2067
      %v2070 = vrot.slane %v560, 2
      %v2072 = vsel %vm604, %v2070, 1.0
      %v2074 = vsel %vm317, %v2066, 0
      %v2077 = vsel %vm317, %v2068, 0
      %v2080 = vsel %vm317, %v2072, 0
      %2082 = vmatpush.xpose.msra.mxu0 0.0
      %2083 = vmatpush.xpose.msra.mxu0 0.0
      %2084 = vmatpush.xpose.msra.mxu0 0.0
      %2085 = vmatpush.xpose.msra.mxu0 0.0
      %2086 = vmatpush.xpose.msra.mxu0 0.0
      %2087 = vmatpush.xpose.msra.mxu0 0.0
      %2088 = vmatpush.xpose.msra.mxu0 0.0
      %2089 = vmatpush.xpose.msra.mxu0 0.0
      %2090 = vmatpush.xpose.msra.mxu0 0.0
      %2091 = vmatpush.xpose.msra.mxu0 0.0
      %2092 = vmatpush.xpose.msra.mxu0 0.0
      %2093 = vmatpush.xpose.msra.mxu0 0.0
      %2094 = vmatpush.xpose.msra.mxu0 0.0
      %2095 = vmatpush.xpose.msra.mxu0 0.0
      %2096 = vmatpush.xpose.msra.mxu0 0.0
      %2097 = vmatpush.xpose.msra.mxu0 %v2080
      %2098 = vmatmul.f32.gmra.mxu0 %v2074
      %v2099 = vpop.f32.mrf.mxu0
      %v2100 = vadd.f32 0.0, %v2099
      %2101 = vmatmul.f32.gmra.mxu0 %v2077
      %v2102 = vpop.f32.mrf.mxu0
      %v2103 = vadd.f32 0.0, %v2102
      %2104 = vdwg.mxu0
      %2106 = vset.pattern.permute.xlu0 2
      %2107 = vperm.xlu0 %2106, %v2100
      %v2108 = vpop.permute.xlu0 %2107
      %2111 = vset.pattern.permute.xlu0 2
      %2112 = vperm.xlu0 %2111, %v2103
      %v2113 = vpop.permute.xlu0 %2112
      %v2115 = vrcp.pop %v2108
      %v2116 = vmul.f32 %v2108, %v2115
      %v2117 = vsub.f32 1.0, %v2116
      %v2118 = vmul.f32 %v2115, %v2117
      %v2119 = vadd.f32 %v2115, %v2118
      %vm2120 = vweird.f32 %v2108
      %vm2121 = vweird.f32 %v2115
      %vm2122 = vmor %vm2120, %vm2121
      %v2123 = vsel %vm2122, %v2115, %v2119
      %v2124 = vand.u32 2147483647, %v2108
      %vm2125 = vcmp.eq.f32.partialorder %v2124, 8.507059e+37
      %v2126 = vand.u32 %v2108, 2147483648
      %v2127 = vor.u32 1.1754944e-38, %v2126
      %v2128 = vsel %vm2125, %v2127, %v2123
      %v2129 = vmul.f32 %v2100, %v2128
      %v2130 = vrcp.pop %v2113
      %v2131 = vmul.f32 %v2113, %v2130
      %v2132 = vsub.f32 1.0, %v2131
      %v2133 = vmul.f32 %v2130, %v2132
      %v2134 = vadd.f32 %v2130, %v2133
      %vm2135 = vweird.f32 %v2113
      %vm2136 = vweird.f32 %v2130
      %vm2137 = vmor %vm2135, %vm2136
      %v2138 = vsel %vm2137, %v2130, %v2134
      %v2139 = vand.u32 2147483647, %v2113
      %vm2140 = vcmp.eq.f32.partialorder %v2139, 8.507059e+37
      %v2141 = vand.u32 %v2113, 2147483648
      %v2142 = vor.u32 1.1754944e-38, %v2141
      %v2143 = vsel %vm2140, %v2142, %v2138
      %v2144 = vmul.f32 %v2103, %v2143
      %2145 = vset.pattern.permute.xlu0 28
      %2146 = vperm.xlu0 %2145, %v562
      %v2147 = vpop.permute.xlu0 %2146
      %2149 = vset.pattern.permute.xlu0 28
      %2150 = vperm.xlu0 %2149, %v563
      %v2151 = vpop.permute.xlu0 %2150
      %v2153 = vperm.slane %v548, 4
      %v2154 = vmul.f32 %v2147, %v2153
      %v2155 = vmul.f32 %v2151, %v2153
      %2156 = vset.pattern.permute.xlu0 29
      %2157 = vperm.xlu0 %2156, %v562
      %v2158 = vpop.permute.xlu0 %2157
      %2160 = vset.pattern.permute.xlu0 29
      %2161 = vperm.xlu0 %2160, %v563
      %v2162 = vpop.permute.xlu0 %2161
      %v2164 = vperm.slane %v548, 5
      %v2165 = vmul.f32 %v2158, %v2164
      %v2166 = vmul.f32 %v2162, %v2164
      %v2167 = vadd.f32 %v2154, %v2165
      %v2168 = vadd.f32 %v2155, %v2166
      %v2169 = vmul.f32 %v2167, 0.70710677
      %v2170 = vmul.f32 %v2168, 0.70710677
      %v2171 = vsel %vm317, %v2169, -inf
      %2172 = vmax.xlane.f32.xlu0 %v2171
      %v2173 = vpop.xlane.xlu0 %2172
      %v2174 = vsel %vm317, %v2170, -inf
      %2175 = vmax.xlane.f32.xlu0 %v2174
      %v2176 = vpop.xlane.xlu0 %2175
      %v2177 = vsub.f32 %v2169, %v2173
      %v2178 = vsub.f32 %v2170, %v2176
      %v2179 = vmul.f32 %v2177, 1.442695
      %v2180 = vpow.pop %v2179
      %v2181 = vmul.f32 %v2178, 1.442695
      %v2182 = vpow.pop %v2181
      %v2183 = vrot.slane %v560, 4
      %v2185 = vsel %vm604, %v2183, 1.0
      %v2187 = vsel %vm317, %v2180, 0
      %v2190 = vsel %vm317, %v2182, 0
      %v2193 = vsel %vm317, %v2185, 0
      %2195 = vmatpush.xpose.msra.mxu0 0.0
      %2196 = vmatpush.xpose.msra.mxu0 0.0
      %2197 = vmatpush.xpose.msra.mxu0 0.0
      %2198 = vmatpush.xpose.msra.mxu0 0.0
      %2199 = vmatpush.xpose.msra.mxu0 0.0
      %2200 = vmatpush.xpose.msra.mxu0 0.0
      %2201 = vmatpush.xpose.msra.mxu0 0.0
      %2202 = vmatpush.xpose.msra.mxu0 0.0
      %2203 = vmatpush.xpose.msra.mxu0 0.0
      %2204 = vmatpush.xpose.msra.mxu0 0.0
      %2205 = vmatpush.xpose.msra.mxu0 0.0
      %2206 = vmatpush.xpose.msra.mxu0 0.0
      %2207 = vmatpush.xpose.msra.mxu0 0.0
      %2208 = vmatpush.xpose.msra.mxu0 0.0
      %2209 = vmatpush.xpose.msra.mxu0 0.0
      %2210 = vmatpush.xpose.msra.mxu0 %v2193
      %2211 = vmatmul.f32.gmra.mxu0 %v2187
      %v2212 = vpop.f32.mrf.mxu0
      %v2213 = vadd.f32 0.0, %v2212
      %2214 = vmatmul.f32.gmra.mxu0 %v2190
      %v2215 = vpop.f32.mrf.mxu0
      %v2216 = vadd.f32 0.0, %v2215
      %2217 = vdwg.mxu0
      %2219 = vset.pattern.permute.xlu0 2
      %2220 = vperm.xlu0 %2219, %v2213
      %v2221 = vpop.permute.xlu0 %2220
      %2224 = vset.pattern.permute.xlu0 2
      %2225 = vperm.xlu0 %2224, %v2216
      %v2226 = vpop.permute.xlu0 %2225
      %v2228 = vrcp.pop %v2221
      %v2229 = vmul.f32 %v2221, %v2228
      %v2230 = vsub.f32 1.0, %v2229
      %v2231 = vmul.f32 %v2228, %v2230
      %v2232 = vadd.f32 %v2228, %v2231
      %vm2233 = vweird.f32 %v2221
      %vm2234 = vweird.f32 %v2228
      %vm2235 = vmor %vm2233, %vm2234
      %v2236 = vsel %vm2235, %v2228, %v2232
      %v2237 = vand.u32 2147483647, %v2221
      %vm2238 = vcmp.eq.f32.partialorder %v2237, 8.507059e+37
      %v2239 = vand.u32 %v2221, 2147483648
      %v2240 = vor.u32 1.1754944e-38, %v2239
      %v2241 = vsel %vm2238, %v2240, %v2236
      %v2242 = vmul.f32 %v2213, %v2241
      %v2243 = vrcp.pop %v2226
      %v2244 = vmul.f32 %v2226, %v2243
      %v2245 = vsub.f32 1.0, %v2244
      %v2246 = vmul.f32 %v2243, %v2245
      %v2247 = vadd.f32 %v2243, %v2246
      %vm2248 = vweird.f32 %v2226
      %vm2249 = vweird.f32 %v2243
      %vm2250 = vmor %vm2248, %vm2249
      %v2251 = vsel %vm2250, %v2243, %v2247
      %v2252 = vand.u32 2147483647, %v2226
      %vm2253 = vcmp.eq.f32.partialorder %v2252, 8.507059e+37
      %v2254 = vand.u32 %v2226, 2147483648
      %v2255 = vor.u32 1.1754944e-38, %v2254
      %v2256 = vsel %vm2253, %v2255, %v2251
      %v2257 = vmul.f32 %v2216, %v2256
      %2258 = vset.pattern.permute.xlu0 30
      %2259 = vperm.xlu0 %2258, %v562
      %v2260 = vpop.permute.xlu0 %2259
      %2262 = vset.pattern.permute.xlu0 30
      %2263 = vperm.xlu0 %2262, %v563
      %v2264 = vpop.permute.xlu0 %2263
      %v2266 = vperm.slane %v548, 6
      %v2267 = vmul.f32 %v2260, %v2266
      %v2268 = vmul.f32 %v2264, %v2266
      %2269 = vset.pattern.permute.xlu0 31
      %2270 = vperm.xlu0 %2269, %v562
      %v2271 = vpop.permute.xlu0 %2270
      %2273 = vset.pattern.permute.xlu0 31
      %2274 = vperm.xlu0 %2273, %v563
      %v2275 = vpop.permute.xlu0 %2274
      %v2277 = vperm.slane %v548, 7
      %v2278 = vmul.f32 %v2271, %v2277
      %v2279 = vmul.f32 %v2275, %v2277
      %v2280 = vadd.f32 %v2267, %v2278
      %v2281 = vadd.f32 %v2268, %v2279
      %v2282 = vmul.f32 %v2280, 0.70710677
      %v2283 = vmul.f32 %v2281, 0.70710677
      %v2284 = vsel %vm317, %v2282, -inf
      %2285 = vmax.xlane.f32.xlu0 %v2284
      %v2286 = vpop.xlane.xlu0 %2285
      %v2287 = vsel %vm317, %v2283, -inf
      %2288 = vmax.xlane.f32.xlu0 %v2287
      %v2289 = vpop.xlane.xlu0 %2288
      %v2290 = vsub.f32 %v2282, %v2286
      %v2291 = vsub.f32 %v2283, %v2289
      %v2292 = vmul.f32 %v2290, 1.442695
      %v2293 = vpow.pop %v2292
      %v2294 = vmul.f32 %v2291, 1.442695
      %v2295 = vpow.pop %v2294
      %v2296 = vrot.slane %v560, 6
      %v2298 = vsel %vm604, %v2296, 1.0
      %v2300 = vsel %vm317, %v2293, 0
      %v2303 = vsel %vm317, %v2295, 0
      %v2306 = vsel %vm317, %v2298, 0
      %2308 = vmatpush.xpose.msra.mxu0 0.0
      %2309 = vmatpush.xpose.msra.mxu0 0.0
      %2310 = vmatpush.xpose.msra.mxu0 0.0
      %2311 = vmatpush.xpose.msra.mxu0 0.0
      %2312 = vmatpush.xpose.msra.mxu0 0.0
      %2313 = vmatpush.xpose.msra.mxu0 0.0
      %2314 = vmatpush.xpose.msra.mxu0 0.0
      %2315 = vmatpush.xpose.msra.mxu0 0.0
      %2316 = vmatpush.xpose.msra.mxu0 0.0
      %2317 = vmatpush.xpose.msra.mxu0 0.0
      %2318 = vmatpush.xpose.msra.mxu0 0.0
      %2319 = vmatpush.xpose.msra.mxu0 0.0
      %2320 = vmatpush.xpose.msra.mxu0 0.0
      %2321 = vmatpush.xpose.msra.mxu0 0.0
      %2322 = vmatpush.xpose.msra.mxu0 0.0
      %2323 = vmatpush.xpose.msra.mxu0 %v2306
      %2324 = vmatmul.f32.gmra.mxu0 %v2300
      %v2325 = vpop.f32.mrf.mxu0
      %v2326 = vadd.f32 0.0, %v2325
      %2327 = vmatmul.f32.gmra.mxu0 %v2303
      %v2328 = vpop.f32.mrf.mxu0
      %v2329 = vadd.f32 0.0, %v2328
      %2330 = vdwg.mxu0
      %2332 = vset.pattern.permute.xlu0 2
      %2333 = vperm.xlu0 %2332, %v2326
      %v2334 = vpop.permute.xlu0 %2333
      %2337 = vset.pattern.permute.xlu0 2
      %2338 = vperm.xlu0 %2337, %v2329
      %v2339 = vpop.permute.xlu0 %2338
      %v2341 = vrcp.pop %v2334
      %v2342 = vmul.f32 %v2334, %v2341
      %v2343 = vsub.f32 1.0, %v2342
      %v2344 = vmul.f32 %v2341, %v2343
      %v2345 = vadd.f32 %v2341, %v2344
      %vm2346 = vweird.f32 %v2334
      %vm2347 = vweird.f32 %v2341
      %vm2348 = vmor %vm2346, %vm2347
      %v2349 = vsel %vm2348, %v2341, %v2345
      %v2350 = vand.u32 2147483647, %v2334
      %vm2351 = vcmp.eq.f32.partialorder %v2350, 8.507059e+37
      %v2352 = vand.u32 %v2334, 2147483648
      %v2353 = vor.u32 1.1754944e-38, %v2352
      %v2354 = vsel %vm2351, %v2353, %v2349
      %v2355 = vmul.f32 %v2326, %v2354
      %v2356 = vrcp.pop %v2339
      %v2357 = vmul.f32 %v2339, %v2356
      %v2358 = vsub.f32 1.0, %v2357
      %v2359 = vmul.f32 %v2356, %v2358
      %v2360 = vadd.f32 %v2356, %v2359
      %vm2361 = vweird.f32 %v2339
      %vm2362 = vweird.f32 %v2356
      %vm2363 = vmor %vm2361, %vm2362
      %v2364 = vsel %vm2363, %v2356, %v2360
      %v2365 = vand.u32 2147483647, %v2339
      %vm2366 = vcmp.eq.f32.partialorder %v2365, 8.507059e+37
      %v2367 = vand.u32 %v2339, 2147483648
      %v2368 = vor.u32 1.1754944e-38, %v2367
      %v2369 = vsel %vm2366, %v2368, %v2364
      %v2370 = vmul.f32 %v2329, %v2369
      %2373 = vrot.lane.b32.xlu0 %v776, 2
      %v2374 = vpop.permute.xlu0 %2373
      %2375 = vrot.lane.b32.xlu0 %v791, 2
      %v2376 = vpop.permute.xlu0 %2375
      %2381 = vrot.lane.b32.xlu0 %v889, 4
      %v2382 = vpop.permute.xlu0 %2381
      %2383 = vrot.lane.b32.xlu0 %v904, 4
      %v2384 = vpop.permute.xlu0 %2383
      %2389 = vrot.lane.b32.xlu0 %v1002, 6
      %v2390 = vpop.permute.xlu0 %2389
      %2391 = vrot.lane.b32.xlu0 %v1017, 6
      %v2392 = vpop.permute.xlu0 %2391
      %2397 = vrot.lane.b32.xlu0 %v1113, 8
      %v2398 = vpop.permute.xlu0 %2397
      %2399 = vrot.lane.b32.xlu0 %v1128, 8
      %v2400 = vpop.permute.xlu0 %2399
      %2405 = vrot.lane.b32.xlu0 %v1227, 10
      %v2406 = vpop.permute.xlu0 %2405
      %2407 = vrot.lane.b32.xlu0 %v1242, 10
      %v2408 = vpop.permute.xlu0 %2407
      %2413 = vrot.lane.b32.xlu0 %v1340, 12
      %v2414 = vpop.permute.xlu0 %2413
      %2415 = vrot.lane.b32.xlu0 %v1355, 12
      %v2416 = vpop.permute.xlu0 %2415
      %2421 = vrot.lane.b32.xlu0 %v1453, 14
      %v2422 = vpop.permute.xlu0 %2421
      %2423 = vrot.lane.b32.xlu0 %v1468, 14
      %v2424 = vpop.permute.xlu0 %2423
      %2429 = vrot.lane.b32.xlu0 %v1564, 16
      %v2430 = vpop.permute.xlu0 %2429
      %2431 = vrot.lane.b32.xlu0 %v1579, 16
      %v2432 = vpop.permute.xlu0 %2431
      %2437 = vrot.lane.b32.xlu0 %v1678, 18
      %v2438 = vpop.permute.xlu0 %2437
      %2439 = vrot.lane.b32.xlu0 %v1693, 18
      %v2440 = vpop.permute.xlu0 %2439
      %2445 = vrot.lane.b32.xlu0 %v1791, 20
      %v2446 = vpop.permute.xlu0 %2445
      %2447 = vrot.lane.b32.xlu0 %v1806, 20
      %v2448 = vpop.permute.xlu0 %2447
      %2453 = vrot.lane.b32.xlu0 %v1904, 22
      %v2454 = vpop.permute.xlu0 %2453
      %2455 = vrot.lane.b32.xlu0 %v1919, 22
      %v2456 = vpop.permute.xlu0 %2455
      %2461 = vrot.lane.b32.xlu0 %v2015, 24
      %v2462 = vpop.permute.xlu0 %2461
      %2463 = vrot.lane.b32.xlu0 %v2030, 24
      %v2464 = vpop.permute.xlu0 %2463
      %2469 = vrot.lane.b32.xlu0 %v2129, 26
      %v2470 = vpop.permute.xlu0 %2469
      %2471 = vrot.lane.b32.xlu0 %v2144, 26
      %v2472 = vpop.permute.xlu0 %2471
      %2477 = vrot.lane.b32.xlu0 %v2242, 28
      %v2478 = vpop.permute.xlu0 %2477
      %2479 = vrot.lane.b32.xlu0 %v2257, 28
      %v2480 = vpop.permute.xlu0 %2479
      %2485 = vrot.lane.b32.xlu0 %v2355, 30
      %v2486 = vpop.permute.xlu0 %2485
      %2487 = vrot.lane.b32.xlu0 %v2370, 30
      %v2488 = vpop.permute.xlu0 %2487
      %vm2491 = vcmask 15360
      %v2492 = vsel %vm2491, %v662, %v2374
      %v2493 = vsel %vm2491, %v677, %v2376
      %vm2494 = vcmask 31744
      %v2495 = vsel %vm2494, %v2492, %v2382
      %v2496 = vsel %vm2494, %v2493, %v2384
      %vm2497 = vcmask 48128
      %v2498 = vsel %vm2497, %v2495, %v2390
      %v2499 = vsel %vm2497, %v2496, %v2392
      %vm2500 = vcmask 64512
      %v2501 = vsel %vm2500, %v2498, %v2398
      %v2502 = vsel %vm2500, %v2499, %v2400
      %vm2503 = vcmask 80896
      %v2504 = vsel %vm2503, %v2501, %v2406
      %v2505 = vsel %vm2503, %v2502, %v2408
      %vm2506 = vcmask 97280
      %v2507 = vsel %vm2506, %v2504, %v2414
      %v2508 = vsel %vm2506, %v2505, %v2416
      %vm2509 = vcmask 113664
      %v2510 = vsel %vm2509, %v2507, %v2422
      %v2511 = vsel %vm2509, %v2508, %v2424
      %vm2512 = vcmask 130048
      %v2513 = vsel %vm2512, %v2510, %v2430
      %v2514 = vsel %vm2512, %v2511, %v2432
      %vm2515 = vcmask 146432
      %v2516 = vsel %vm2515, %v2513, %v2438
      %v2517 = vsel %vm2515, %v2514, %v2440
      %vm2518 = vcmask 162816
      %v2519 = vsel %vm2518, %v2516, %v2446
      %v2520 = vsel %vm2518, %v2517, %v2448
      %vm2521 = vcmask 179200
      %v2522 = vsel %vm2521, %v2519, %v2454
      %v2523 = vsel %vm2521, %v2520, %v2456
      %vm2524 = vcmask 195584
      %v2525 = vsel %vm2524, %v2522, %v2462
      %v2526 = vsel %vm2524, %v2523, %v2464
      %vm2527 = vcmask 211968
      %v2528 = vsel %vm2527, %v2525, %v2470
      %v2529 = vsel %vm2527, %v2526, %v2472
      %vm2530 = vcmask 228352
      %v2531 = vsel %vm2530, %v2528, %v2478
      %v2532 = vsel %vm2530, %v2529, %v2480
      %vm2533 = vcmask 244736
      %v2534 = vsel %vm2533, %v2531, %v2486
      %v2535 = vsel %vm2533, %v2532, %v2488
      %v2536 = vld [vmem:[%s3 + $0xb8] sm:$0xff]
      %v2537 = vld [vmem:[%s3 + $0xc0] sm:$0xff]
      %v2538 = vld [vmem:[%s3 + $0xc8] sm:$0xff]
      %v2539 = vld [vmem:[%s3 + $0xd0] sm:$0xff]
      %v2541 = vsel %vm317, %v2534, 0
      %v2544 = vsel %vm317, %v2535, 0
      %2546 = vmatpush.msra.mxu0 0.0
      %2547 = vmatpush.msra.mxu0 0.0
      %2548 = vmatpush.msra.mxu0 0.0
      %2549 = vmatpush.msra.mxu0 0.0
      %2550 = vmatpush.msra.mxu0 0.0
      %2551 = vmatpush.msra.mxu0 0.0
      %2552 = vmatpush.msra.mxu0 0.0
      %2553 = vmatpush.msra.mxu0 0.0
      %2554 = vmatpush.msra.mxu0 0.0
      %2555 = vmatpush.msra.mxu0 0.0
      %2556 = vmatpush.msra.mxu0 0.0
      %2557 = vmatpush.msra.mxu0 0.0
      %2558 = vmatpush.msra.mxu0 %v2539
      %2559 = vmatpush.msra.mxu0 %v2538
      %2560 = vmatpush.msra.mxu0 %v2537
      %2561 = vmatpush.msra.mxu0 %v2536
      %2562 = vmatmul.f32.gmra.mxu0 %v2541
      %v2563 = vpop.f32.mrf.mxu0
      %v2564 = vadd.f32 0.0, %v2563
      %2565 = vmatmul.f32.gmra.mxu0 %v2544
      %v2566 = vpop.f32.mrf.mxu0
      %v2567 = vadd.f32 0.0, %v2566
      %2568 = vdwg.mxu0
      %v2569 = vperm.slane %v339, 0
      %v2570 = vadd.f32 %v2569, %v2564
      %v2571 = vadd.f32 %v2569, %v2567
      %v2572 = vxor.u32 %v2570, 2147483648
      %v2573 = vxor.u32 %v2571, 2147483648
      %v2574 = vmul.f32 %v2572, 1.442695
      %v2575 = vpow.pop %v2574
      %v2576 = vmul.f32 %v2573, 1.442695
      %v2577 = vpow.pop %v2576
      %v2578 = vadd.f32 %v2575, 1.0
      %v2579 = vadd.f32 %v2577, 1.0
      %v2580 = vrcp.pop %v2578
      %v2581 = vmul.f32 %v2578, %v2580
      %v2582 = vsub.f32 1.0, %v2581
      %v2583 = vmul.f32 %v2580, %v2582
      %v2584 = vadd.f32 %v2580, %v2583
      %vm2585 = vweird.f32 %v2578
      %vm2586 = vweird.f32 %v2580
      %vm2587 = vmor %vm2585, %vm2586
      %v2588 = vsel %vm2587, %v2580, %v2584
      %v2589 = vand.u32 2147483647, %v2578
      %vm2590 = vcmp.eq.f32.partialorder %v2589, 8.507059e+37
      %v2591 = vand.u32 %v2578, 2147483648
      %v2592 = vor.u32 1.1754944e-38, %v2591
      %v2593 = vsel %vm2590, %v2592, %v2588
      %v2594 = vmul.f32 1.0, %v2593
      %v2595 = vrcp.pop %v2579
      %v2596 = vmul.f32 %v2579, %v2595
      %v2597 = vsub.f32 1.0, %v2596
      %v2598 = vmul.f32 %v2595, %v2597
      %v2599 = vadd.f32 %v2595, %v2598
      %vm2600 = vweird.f32 %v2579
      %vm2601 = vweird.f32 %v2595
      %vm2602 = vmor %vm2600, %vm2601
      %v2603 = vsel %vm2602, %v2595, %v2599
      %v2604 = vand.u32 2147483647, %v2579
      %vm2605 = vcmp.eq.f32.partialorder %v2604, 8.507059e+37
      %v2606 = vand.u32 %v2579, 2147483648
      %v2607 = vor.u32 1.1754944e-38, %v2606
      %v2608 = vsel %vm2605, %v2607, %v2603
      %v2609 = vmul.f32 1.0, %v2608
      %v2610 = vmul.f32 %v2570, %v2594
      %v2611 = vmul.f32 %v2571, %v2609
      %v2612 = vld [vmem:[%s204] sm:$0xff]
      %v2613 = vld [vmem:[%s204 + $0x8] sm:$0xff]
      %v2614 = vld [vmem:[%s3] sm:$0xf]
      %v2615 = vld [vmem:[%s3 + $0x8] sm:$0x1]
      %v2616 = vperm.slane %v2615, 0
      %v2618 = vsel %vm2494, %v2612, 0
      %v2621 = vsel %vm2494, %v2613, 0
      %vm2623 = vcmask 1043456
      %v2625 = vsel %vm2623, %v2614, 0
      %2627 = vmatpush.msra.mxu0 0.0
      %2628 = vmatpush.msra.mxu0 0.0
      %2629 = vmatpush.msra.mxu0 0.0
      %2630 = vmatpush.msra.mxu0 0.0
      %2631 = vmatpush.msra.mxu0 0.0
      %2632 = vmatpush.msra.mxu0 0.0
      %2633 = vmatpush.msra.mxu0 0.0
      %2634 = vmatpush.msra.mxu0 0.0
      %2635 = vmatpush.msra.mxu0 0.0
      %2636 = vmatpush.msra.mxu0 0.0
      %2637 = vmatpush.msra.mxu0 0.0
      %2638 = vmatpush.msra.mxu0 0.0
      %2639 = vmatpush.msra.mxu0 0.0
      %2640 = vmatpush.msra.mxu0 0.0
      %2641 = vmatpush.msra.mxu0 0.0
      %2642 = vmatpush.msra.mxu0 %v2625
      %2643 = vmatmul.f32.gmra.mxu0 %v2618
      %v2644 = vpop.f32.mrf.mxu0
      %v2645 = vadd.f32 %v2616, %v2644
      %2646 = vmatmul.f32.gmra.mxu0 %v2621
      %v2647 = vpop.f32.mrf.mxu0
      %v2648 = vadd.f32 %v2616, %v2647
      %2649 = vdwg.mxu0
      %v2650 = vld [vmem:[%s3 + $0x10] sm:$0xff]
      %v2651 = vld [vmem:[%s3 + $0x18] sm:$0xff]
      %v2652 = vadd.f32 %v2645, %v2650
      %v2653 = vadd.f32 %v2648, %v2651
      %v2654 = vld [vmem:[%s3 + $0x2c8] sm:$0x3f]
      %v2655 = vld [vmem:[%s3 + $0x208] sm:$0xff]
      %v2656 = vld [vmem:[%s3 + $0x210] sm:$0xff]
      %v2657 = vld [vmem:[%s3 + $0x218] sm:$0xff]
      %v2658 = vld [vmem:[%s3 + $0x220] sm:$0xff]
      %v2659 = vperm.slane %v2654, 0
      %v2661 = vsel %vm317, %v2610, 0
      %v2664 = vsel %vm317, %v2611, 0
      %2666 = vmatpush.msra.mxu0 0.0
      %2667 = vmatpush.msra.mxu0 0.0
      %2668 = vmatpush.msra.mxu0 0.0
      %2669 = vmatpush.msra.mxu0 0.0
      %2670 = vmatpush.msra.mxu0 0.0
      %2671 = vmatpush.msra.mxu0 0.0
      %2672 = vmatpush.msra.mxu0 0.0
      %2673 = vmatpush.msra.mxu0 0.0
      %2674 = vmatpush.msra.mxu0 0.0
      %2675 = vmatpush.msra.mxu0 0.0
      %2676 = vmatpush.msra.mxu0 0.0
      %2677 = vmatpush.msra.mxu0 0.0
      %2678 = vmatpush.msra.mxu0 %v2658
      %2679 = vmatpush.msra.mxu0 %v2657
      %2680 = vmatpush.msra.mxu0 %v2656
      %2681 = vmatpush.msra.mxu0 %v2655
      %2682 = vmatmul.f32.gmra.mxu0 %v2661
      %v2683 = vpop.f32.mrf.mxu0
      %v2684 = vadd.f32 %v2659, %v2683
      %2685 = vmatmul.f32.gmra.mxu0 %v2664
      %v2686 = vpop.f32.mrf.mxu0
      %v2687 = vadd.f32 %v2659, %v2686
      %2688 = vdwg.mxu0
      %v2689 = vld [vmem:[%s3 + $0x228] sm:$0xff]
      %v2690 = vld [vmem:[%s3 + $0x230] sm:$0xff]
      %v2691 = vld [vmem:[%s3 + $0x238] sm:$0xff]
      %v2692 = vld [vmem:[%s3 + $0x240] sm:$0xff]
      %v2693 = vperm.slane %v2654, 1
      %2694 = vmatpush.msra.mxu0 0.0
      %2695 = vmatpush.msra.mxu0 0.0
      %2696 = vmatpush.msra.mxu0 0.0
      %2697 = vmatpush.msra.mxu0 0.0
      %2698 = vmatpush.msra.mxu0 0.0
      %2699 = vmatpush.msra.mxu0 0.0
      %2700 = vmatpush.msra.mxu0 0.0
      %2701 = vmatpush.msra.mxu0 0.0
      %2702 = vmatpush.msra.mxu0 0.0
      %2703 = vmatpush.msra.mxu0 0.0
      %2704 = vmatpush.msra.mxu0 0.0
      %2705 = vmatpush.msra.mxu0 0.0
      %2706 = vmatpush.msra.mxu0 %v2692
      %2707 = vmatpush.msra.mxu0 %v2691
      %2708 = vmatpush.msra.mxu0 %v2690
      %2709 = vmatpush.msra.mxu0 %v2689
      %2710 = vmatmul.f32.gmra.mxu0 %v2661
      %v2711 = vpop.f32.mrf.mxu0
      %v2712 = vadd.f32 %v2693, %v2711
      %2713 = vmatmul.f32.gmra.mxu0 %v2664
      %v2714 = vpop.f32.mrf.mxu0
      %v2715 = vadd.f32 %v2693, %v2714
      %2716 = vdwg.mxu0
      %v2717 = vld [vmem:[%s3 + $0x248] sm:$0xff]
      %v2718 = vld [vmem:[%s3 + $0x250] sm:$0xff]
      %v2719 = vld [vmem:[%s3 + $0x258] sm:$0xff]
      %v2720 = vld [vmem:[%s3 + $0x260] sm:$0xff]
      %v2721 = vperm.slane %v2654, 2
      %2722 = vmatpush.msra.mxu0 0.0
      %2723 = vmatpush.msra.mxu0 0.0
      %2724 = vmatpush.msra.mxu0 0.0
      %2725 = vmatpush.msra.mxu0 0.0
      %2726 = vmatpush.msra.mxu0 0.0
      %2727 = vmatpush.msra.mxu0 0.0
      %2728 = vmatpush.msra.mxu0 0.0
      %2729 = vmatpush.msra.mxu0 0.0
      %2730 = vmatpush.msra.mxu0 0.0
      %2731 = vmatpush.msra.mxu0 0.0
      %2732 = vmatpush.msra.mxu0 0.0
      %2733 = vmatpush.msra.mxu0 0.0
      %2734 = vmatpush.msra.mxu0 %v2720
      %2735 = vmatpush.msra.mxu0 %v2719
      %2736 = vmatpush.msra.mxu0 %v2718
      %2737 = vmatpush.msra.mxu0 %v2717
      %2738 = vmatmul.f32.gmra.mxu0 %v2661
      %v2739 = vpop.f32.mrf.mxu0
      %v2740 = vadd.f32 %v2721, %v2739
      %2741 = vmatmul.f32.gmra.mxu0 %v2664
      %v2742 = vpop.f32.mrf.mxu0
      %v2743 = vadd.f32 %v2721, %v2742
      %2744 = vdwg.mxu0
      %v2745 = vld [vmem:[%s3 + $0x268] sm:$0xff]
      %v2746 = vld [vmem:[%s3 + $0x270] sm:$0xff]
      %v2747 = vld [vmem:[%s3 + $0x278] sm:$0xff]
      %v2748 = vld [vmem:[%s3 + $0x280] sm:$0xff]
      %v2749 = vperm.slane %v2654, 3
      %2750 = vmatpush.msra.mxu0 0.0
      %2751 = vmatpush.msra.mxu0 0.0
      %2752 = vmatpush.msra.mxu0 0.0
      %2753 = vmatpush.msra.mxu0 0.0
      %2754 = vmatpush.msra.mxu0 0.0
      %2755 = vmatpush.msra.mxu0 0.0
      %2756 = vmatpush.msra.mxu0 0.0
      %2757 = vmatpush.msra.mxu0 0.0
      %2758 = vmatpush.msra.mxu0 0.0
      %2759 = vmatpush.msra.mxu0 0.0
      %2760 = vmatpush.msra.mxu0 0.0
      %2761 = vmatpush.msra.mxu0 0.0
      %2762 = vmatpush.msra.mxu0 %v2748
      %2763 = vmatpush.msra.mxu0 %v2747
      %2764 = vmatpush.msra.mxu0 %v2746
      %2765 = vmatpush.msra.mxu0 %v2745
      %2766 = vmatmul.f32.gmra.mxu0 %v2661
      %v2767 = vpop.f32.mrf.mxu0
      %v2768 = vadd.f32 %v2749, %v2767
      %2769 = vmatmul.f32.gmra.mxu0 %v2664
      %v2770 = vpop.f32.mrf.mxu0
      %v2771 = vadd.f32 %v2749, %v2770
      %2772 = vdwg.mxu0
      %v2773 = vld [vmem:[%s3 + $0x288] sm:$0xff]
      %v2774 = vld [vmem:[%s3 + $0x290] sm:$0xff]
      %v2775 = vld [vmem:[%s3 + $0x298] sm:$0xff]
      %v2776 = vld [vmem:[%s3 + $0x2a0] sm:$0xff]
      %v2777 = vperm.slane %v2654, 4
      %2778 = vmatpush.msra.mxu0 0.0
      %2779 = vmatpush.msra.mxu0 0.0
      %2780 = vmatpush.msra.mxu0 0.0
      %2781 = vmatpush.msra.mxu0 0.0
      %2782 = vmatpush.msra.mxu0 0.0
      %2783 = vmatpush.msra.mxu0 0.0
      %2784 = vmatpush.msra.mxu0 0.0
      %2785 = vmatpush.msra.mxu0 0.0
      %2786 = vmatpush.msra.mxu0 0.0
      %2787 = vmatpush.msra.mxu0 0.0
      %2788 = vmatpush.msra.mxu0 0.0
      %2789 = vmatpush.msra.mxu0 0.0
      %2790 = vmatpush.msra.mxu0 %v2776
      %2791 = vmatpush.msra.mxu0 %v2775
      %2792 = vmatpush.msra.mxu0 %v2774
      %2793 = vmatpush.msra.mxu0 %v2773
      %2794 = vmatmul.f32.gmra.mxu0 %v2661
      %v2795 = vpop.f32.mrf.mxu0
      %v2796 = vadd.f32 %v2777, %v2795
      %2797 = vmatmul.f32.gmra.mxu0 %v2664
      %v2798 = vpop.f32.mrf.mxu0
      %v2799 = vadd.f32 %v2777, %v2798
      %2800 = vdwg.mxu0
      %v2801 = vld [vmem:[%s3 + $0x2a8] sm:$0xff]
      %v2802 = vld [vmem:[%s3 + $0x2b0] sm:$0xff]
      %v2803 = vld [vmem:[%s3 + $0x2b8] sm:$0xff]
      %v2804 = vld [vmem:[%s3 + $0x2c0] sm:$0xff]
      %v2805 = vperm.slane %v2654, 5
      %2806 = vmatpush.msra.mxu0 0.0
      %2807 = vmatpush.msra.mxu0 0.0
      %2808 = vmatpush.msra.mxu0 0.0
      %2809 = vmatpush.msra.mxu0 0.0
      %2810 = vmatpush.msra.mxu0 0.0
      %2811 = vmatpush.msra.mxu0 0.0
      %2812 = vmatpush.msra.mxu0 0.0
      %2813 = vmatpush.msra.mxu0 0.0
      %2814 = vmatpush.msra.mxu0 0.0
      %2815 = vmatpush.msra.mxu0 0.0
      %2816 = vmatpush.msra.mxu0 0.0
      %2817 = vmatpush.msra.mxu0 0.0
      %2818 = vmatpush.msra.mxu0 %v2804
      %2819 = vmatpush.msra.mxu0 %v2803
      %2820 = vmatpush.msra.mxu0 %v2802
      %2821 = vmatpush.msra.mxu0 %v2801
      %2822 = vmatmul.f32.gmra.mxu0 %v2661
      %v2823 = vpop.f32.mrf.mxu0
      %v2824 = vadd.f32 %v2805, %v2823
      %2825 = vmatmul.f32.gmra.mxu0 %v2664
      %v2826 = vpop.f32.mrf.mxu0
      %v2827 = vadd.f32 %v2805, %v2826
      %2828 = vdwg.mxu0
      %v2829 = vsel %vm317, %v2652, 0.0
      %2830 = vadd.xlane.f32.xlu0 %v2829
      %v2831 = vpop.xlane.xlu0 %2830
      %v2832 = vsel %vm317, %v2653, 0.0
      %2833 = vadd.xlane.f32.xlu0 %v2832
      %v2834 = vpop.xlane.xlu0 %2833
      %v2835 = vrcp.pop 32.0
      %v2836 = vmul.f32 32.0, %v2835
      %v2837 = vsub.f32 1.0, %v2836
      %v2838 = vmul.f32 %v2835, %v2837
      %v2839 = vadd.f32 %v2835, %v2838
      %vm2840 = vweird.f32 %v2835
      %v2841 = vsel %vm2840, %v2835, %v2839
      %v2842 = vmul.f32 %v2831, %v2841
      %v2843 = vmul.f32 %v2834, %v2841
      %v2844 = vsub.f32 %v2652, %v2842
      %v2845 = vsub.f32 %v2653, %v2843
      %v2846 = vmul.f32 %v2844, %v2844
      %v2847 = vmul.f32 %v2845, %v2845
      %v2848 = vsel %vm317, %v2846, 0.0
      %2849 = vadd.xlane.f32.xlu0 %v2848
      %v2850 = vpop.xlane.xlu0 %2849
      %v2851 = vsel %vm317, %v2847, 0.0
      %2852 = vadd.xlane.f32.xlu0 %v2851
      %v2853 = vpop.xlane.xlu0 %2852
      %v2854 = vmul.f32 %v2850, %v2841
      %v2855 = vmul.f32 %v2853, %v2841
      %v2856 = vadd.f32 %v2854, 1e-06
      %v2857 = vadd.f32 %v2855, 1e-06
      %v2858 = vrsqrt.pop %v2856
      %v2859 = vmul.f32 %v2858, %v2856
      %v2860 = vmul.f32 %v2859, %v2858
      %v2861 = vmul.f32 0.5, %v2860
      %v2862 = vsub.f32 1.5, %v2861
      %v2863 = vmul.f32 %v2858, %v2862
      %vm2864 = vweird.f32 %v2856
      %vm2865 = vweird.f32 %v2858
      %vm2866 = vmor %vm2864, %vm2865
      %v2867 = vsel %vm2866, %v2858, %v2863
      %v2868 = vrsqrt.pop %v2857
      %v2869 = vmul.f32 %v2868, %v2857
      %v2870 = vmul.f32 %v2869, %v2868
      %v2871 = vmul.f32 0.5, %v2870
      %v2872 = vsub.f32 1.5, %v2871
      %v2873 = vmul.f32 %v2868, %v2872
      %vm2874 = vweird.f32 %v2857
      %vm2875 = vweird.f32 %v2868
      %vm2876 = vmor %vm2874, %vm2875
      %v2877 = vsel %vm2876, %v2868, %v2873
      %v2878 = vmul.f32 %v2844, %v2867
      %v2879 = vmul.f32 %v2845, %v2877
      %v2880 = vadd.f32 %v2712, 1.0
      %v2881 = vadd.f32 %v2715, 1.0
      %v2882 = vmul.f32 %v2878, %v2880
      %v2883 = vmul.f32 %v2879, %v2881
      %v2884 = vadd.f32 %v2882, %v2684
      %v2885 = vadd.f32 %v2883, %v2687
      %v2886 = vld [vmem:[%s3 + $0x2d0] sm:$0xff]
      %v2887 = vld [vmem:[%s3 + $0x2d8] sm:$0xff]
      %v2888 = vld [vmem:[%s3 + $0x2e0] sm:$0xff]
      %v2889 = vld [vmem:[%s3 + $0x2e8] sm:$0xff]
      %v2890 = vld [vmem:[%s3 + $0x2f0] sm:$0x1]
      %v2891 = vperm.slane %v2890, 0
      %v2893 = vsel %vm317, %v2884, 0
      %v2896 = vsel %vm317, %v2885, 0
      %2898 = vmatpush.msra.mxu0 0.0
      %2899 = vmatpush.msra.mxu0 0.0
      %2900 = vmatpush.msra.mxu0 0.0
      %2901 = vmatpush.msra.mxu0 0.0
      %2902 = vmatpush.msra.mxu0 0.0
      %2903 = vmatpush.msra.mxu0 0.0
      %2904 = vmatpush.msra.mxu0 0.0
      %2905 = vmatpush.msra.mxu0 0.0
      %2906 = vmatpush.msra.mxu0 0.0
      %2907 = vmatpush.msra.mxu0 0.0
      %2908 = vmatpush.msra.mxu0 0.0
      %2909 = vmatpush.msra.mxu0 0.0
      %2910 = vmatpush.msra.mxu0 %v2889
      %2911 = vmatpush.msra.mxu0 %v2888
      %2912 = vmatpush.msra.mxu0 %v2887
      %2913 = vmatpush.msra.mxu0 %v2886
      %2914 = vmatmul.f32.gmra.mxu0 %v2893
      %v2915 = vpop.f32.mrf.mxu0
      %v2916 = vadd.f32 %v2891, %v2915
      %2917 = vmatmul.f32.gmra.mxu0 %v2896
      %v2918 = vpop.f32.mrf.mxu0
      %v2919 = vadd.f32 %v2891, %v2918
      %2920 = vdwg.mxu0
      %v2921 = vld [vmem:[%s3 + $0x2f8] sm:$0xff]
      %v2922 = vld [vmem:[%s3 + $0x300] sm:$0xff]
      %v2923 = vld [vmem:[%s3 + $0x308] sm:$0xff]
      %v2924 = vld [vmem:[%s3 + $0x310] sm:$0xff]
      %v2925 = vld [vmem:[%s3 + $0x318] sm:$0xff]
      %v2926 = vld [vmem:[%s3 + $0x320] sm:$0xff]
      %v2927 = vld [vmem:[%s3 + $0x328] sm:$0xff]
      %v2928 = vld [vmem:[%s3 + $0x330] sm:$0xff]
      %v2929 = vld [vmem:[%s3 + $0x338] sm:$0xff]
      %v2930 = vld [vmem:[%s3 + $0x340] sm:$0xff]
      %v2931 = vld [vmem:[%s3 + $0x348] sm:$0xff]
      %v2932 = vld [vmem:[%s3 + $0x350] sm:$0xff]
      %v2933 = vld [vmem:[%s3 + $0x358] sm:$0xff]
      %v2934 = vld [vmem:[%s3 + $0x360] sm:$0xff]
      %v2935 = vld [vmem:[%s3 + $0x368] sm:$0xff]
      %v2936 = vld [vmem:[%s3 + $0x370] sm:$0xff]
      %2938 = vset.pattern.permute.xlu0 0
      %2939 = vperm.xlu0 %2938, %v2929
      %v2940 = vpop.permute.xlu0 %2939
      %2943 = vset.pattern.permute.xlu0 0
      %2944 = vperm.xlu0 %2943, %v2930
      %v2945 = vpop.permute.xlu0 %2944
      %2948 = vset.pattern.permute.xlu0 0
      %2949 = vperm.xlu0 %2948, %v2931
      %v2950 = vpop.permute.xlu0 %2949
      %2953 = vset.pattern.permute.xlu0 0
      %2954 = vperm.xlu0 %2953, %v2932
      %v2955 = vpop.permute.xlu0 %2954
      %2958 = vset.pattern.permute.xlu0 0
      %2959 = vperm.xlu0 %2958, %v2933
      %v2960 = vpop.permute.xlu0 %2959
      %2963 = vset.pattern.permute.xlu0 0
      %2964 = vperm.xlu0 %2963, %v2934
      %v2965 = vpop.permute.xlu0 %2964
      %2968 = vset.pattern.permute.xlu0 0
      %2969 = vperm.xlu0 %2968, %v2935
      %v2970 = vpop.permute.xlu0 %2969
      %2973 = vset.pattern.permute.xlu0 0
      %2974 = vperm.xlu0 %2973, %v2936
      %v2975 = vpop.permute.xlu0 %2974
      %v2978 = vsel %vm317, %v2921, 0
      %v2981 = vsel %vm317, %v2922, 0
      %v2984 = vsel %vm317, %v2923, 0
      %v2987 = vsel %vm317, %v2924, 0
      %v2990 = vsel %vm317, %v2925, 0
      %v2993 = vsel %vm317, %v2926, 0
      %v2996 = vsel %vm317, %v2927, 0
      %v2999 = vsel %vm317, %v2928, 0
      %3001 = vmatpush.xpose.msra.mxu0 0.0
      %3002 = vmatpush.xpose.msra.mxu0 0.0
      %3003 = vmatpush.xpose.msra.mxu0 0.0
      %3004 = vmatpush.xpose.msra.mxu0 0.0
      %3005 = vmatpush.xpose.msra.mxu0 0.0
      %3006 = vmatpush.xpose.msra.mxu0 0.0
      %3007 = vmatpush.xpose.msra.mxu0 0.0
      %3008 = vmatpush.xpose.msra.mxu0 0.0
      %3009 = vmatpush.xpose.msra.mxu0 0.0
      %3010 = vmatpush.xpose.msra.mxu0 0.0
      %3011 = vmatpush.xpose.msra.mxu0 0.0
      %3012 = vmatpush.xpose.msra.mxu0 0.0
      %3013 = vmatpush.xpose.msra.mxu0 0.0
      %3014 = vmatpush.xpose.msra.mxu0 0.0
      %3015 = vmatpush.xpose.msra.mxu0 %v2896
      %3016 = vmatpush.xpose.msra.mxu0 %v2893
      %3017 = vmatmul.f32.gmra.mxu0 %v2978
      %v3018 = vpop.f32.mrf.mxu0
      %v3019 = vadd.f32 %v2940, %v3018
      %3020 = vmatmul.f32.gmra.mxu0 %v2981
      %v3021 = vpop.f32.mrf.mxu0
      %v3022 = vadd.f32 %v2945, %v3021
      %3023 = vmatmul.f32.gmra.mxu0 %v2984
      %v3024 = vpop.f32.mrf.mxu0
      %v3025 = vadd.f32 %v2950, %v3024
      %3026 = vmatmul.f32.gmra.mxu0 %v2987
      %v3027 = vpop.f32.mrf.mxu0
      %v3028 = vadd.f32 %v2955, %v3027
      %3029 = vmatmul.f32.gmra.mxu0 %v2990
      %v3030 = vpop.f32.mrf.mxu0
      %v3031 = vadd.f32 %v2960, %v3030
      %3032 = vmatmul.f32.gmra.mxu0 %v2993
      %v3033 = vpop.f32.mrf.mxu0
      %v3034 = vadd.f32 %v2965, %v3033
      %3035 = vmatmul.f32.gmra.mxu0 %v2996
      %v3036 = vpop.f32.mrf.mxu0
      %v3037 = vadd.f32 %v2970, %v3036
      %3038 = vmatmul.f32.gmra.mxu0 %v2999
      %v3039 = vpop.f32.mrf.mxu0
      %v3040 = vadd.f32 %v2975, %v3039
      %3041 = vdwg.mxu0
      %3043 = vset.pattern.permute.xlu0 0
      %3044 = vperm.xlu0 %3043, %v2916
      %v3045 = vpop.permute.xlu0 %3044
      %3048 = vset.pattern.permute.xlu0 0
      %3049 = vperm.xlu0 %3048, %v2919
      %v3050 = vpop.permute.xlu0 %3049
      %v3052 = vperm.slane %v3019, 0
      %v3053 = vmul.f32 %v3045, %v3052
      %v3054 = vmul.f32 %v3050, %v3052
      %3055 = vset.pattern.permute.xlu0 1
      %3056 = vperm.xlu0 %3055, %v2916
      %v3057 = vpop.permute.xlu0 %3056
      %3059 = vset.pattern.permute.xlu0 1
      %3060 = vperm.xlu0 %3059, %v2919
      %v3061 = vpop.permute.xlu0 %3060
      %v3063 = vperm.slane %v3019, 1
      %v3064 = vmul.f32 %v3057, %v3063
      %v3065 = vmul.f32 %v3061, %v3063
      %v3066 = vadd.f32 %v3053, %v3064
      %v3067 = vadd.f32 %v3054, %v3065
      %v3068 = vmul.f32 %v3066, 0.70710677
      %v3069 = vmul.f32 %v3067, 0.70710677
      %v3070 = vsel %vm2512, %v3068, -inf
      %3071 = vmax.xlane.f32.xlu0 %v3070
      %v3072 = vpop.xlane.xlu0 %3071
      %v3073 = vsel %vm2512, %v3069, -inf
      %3074 = vmax.xlane.f32.xlu0 %v3073
      %v3075 = vpop.xlane.xlu0 %3074
      %v3076 = vsub.f32 %v3068, %v3072
      %v3077 = vsub.f32 %v3069, %v3075
      %v3078 = vmul.f32 %v3076, 1.442695
      %v3079 = vpow.pop %v3078
      %v3080 = vmul.f32 %v3077, 1.442695
      %v3081 = vpow.pop %v3080
      %v3082 = vsel %vm604, %v3031, 1.0
      %v3084 = vsel %vm2512, %v3079, 0
      %v3087 = vsel %vm2512, %v3081, 0
      %v3090 = vsel %vm2512, %v3082, 0
      %3092 = vmatpush.xpose.msra.mxu0 0.0
      %3093 = vmatpush.xpose.msra.mxu0 0.0
      %3094 = vmatpush.xpose.msra.mxu0 0.0
      %3095 = vmatpush.xpose.msra.mxu0 0.0
      %3096 = vmatpush.xpose.msra.mxu0 0.0
      %3097 = vmatpush.xpose.msra.mxu0 0.0
      %3098 = vmatpush.xpose.msra.mxu0 0.0
      %3099 = vmatpush.xpose.msra.mxu0 0.0
      %3100 = vmatpush.xpose.msra.mxu0 0.0
      %3101 = vmatpush.xpose.msra.mxu0 0.0
      %3102 = vmatpush.xpose.msra.mxu0 0.0
      %3103 = vmatpush.xpose.msra.mxu0 0.0
      %3104 = vmatpush.xpose.msra.mxu0 0.0
      %3105 = vmatpush.xpose.msra.mxu0 0.0
      %3106 = vmatpush.xpose.msra.mxu0 0.0
      %3107 = vmatpush.xpose.msra.mxu0 %v3090
      %3108 = vmatmul.f32.gmra.mxu0 %v3084
      %v3109 = vpop.f32.mrf.mxu0
      %v3110 = vadd.f32 0.0, %v3109
      %3111 = vmatmul.f32.gmra.mxu0 %v3087
      %v3112 = vpop.f32.mrf.mxu0
      %v3113 = vadd.f32 0.0, %v3112
      %3114 = vdwg.mxu0
      %3116 = vset.pattern.permute.xlu0 2
      %3117 = vperm.xlu0 %3116, %v3110
      %v3118 = vpop.permute.xlu0 %3117
      %3121 = vset.pattern.permute.xlu0 2
      %3122 = vperm.xlu0 %3121, %v3113
      %v3123 = vpop.permute.xlu0 %3122
      %v3125 = vrcp.pop %v3118
      %v3126 = vmul.f32 %v3118, %v3125
      %v3127 = vsub.f32 1.0, %v3126
      %v3128 = vmul.f32 %v3125, %v3127
      %v3129 = vadd.f32 %v3125, %v3128
      %vm3130 = vweird.f32 %v3118
      %vm3131 = vweird.f32 %v3125
      %vm3132 = vmor %vm3130, %vm3131
      %v3133 = vsel %vm3132, %v3125, %v3129
      %v3134 = vand.u32 2147483647, %v3118
      %vm3135 = vcmp.eq.f32.partialorder %v3134, 8.507059e+37
      %v3136 = vand.u32 %v3118, 2147483648
      %v3137 = vor.u32 1.1754944e-38, %v3136
      %v3138 = vsel %vm3135, %v3137, %v3133
      %v3139 = vmul.f32 %v3110, %v3138
      %v3140 = vrcp.pop %v3123
      %v3141 = vmul.f32 %v3123, %v3140
      %v3142 = vsub.f32 1.0, %v3141
      %v3143 = vmul.f32 %v3140, %v3142
      %v3144 = vadd.f32 %v3140, %v3143
      %vm3145 = vweird.f32 %v3123
      %vm3146 = vweird.f32 %v3140
      %vm3147 = vmor %vm3145, %vm3146
      %v3148 = vsel %vm3147, %v3140, %v3144
      %v3149 = vand.u32 2147483647, %v3123
      %vm3150 = vcmp.eq.f32.partialorder %v3149, 8.507059e+37
      %v3151 = vand.u32 %v3123, 2147483648
      %v3152 = vor.u32 1.1754944e-38, %v3151
      %v3153 = vsel %vm3150, %v3152, %v3148
      %v3154 = vmul.f32 %v3113, %v3153
      %3155 = vset.pattern.permute.xlu0 2
      %3156 = vperm.xlu0 %3155, %v2916
      %v3157 = vpop.permute.xlu0 %3156
      %3159 = vset.pattern.permute.xlu0 2
      %3160 = vperm.xlu0 %3159, %v2919
      %v3161 = vpop.permute.xlu0 %3160
      %v3163 = vperm.slane %v3019, 2
      %v3164 = vmul.f32 %v3157, %v3163
      %v3165 = vmul.f32 %v3161, %v3163
      %3166 = vset.pattern.permute.xlu0 3
      %3167 = vperm.xlu0 %3166, %v2916
      %v3168 = vpop.permute.xlu0 %3167
      %3170 = vset.pattern.permute.xlu0 3
      %3171 = vperm.xlu0 %3170, %v2919
      %v3172 = vpop.permute.xlu0 %3171
      %v3174 = vperm.slane %v3019, 3
      %v3175 = vmul.f32 %v3168, %v3174
      %v3176 = vmul.f32 %v3172, %v3174
      %v3177 = vadd.f32 %v3164, %v3175
      %v3178 = vadd.f32 %v3165, %v3176
      %v3179 = vmul.f32 %v3177, 0.70710677
      %v3180 = vmul.f32 %v3178, 0.70710677
      %v3181 = vsel %vm2512, %v3179, -inf
      %3182 = vmax.xlane.f32.xlu0 %v3181
      %v3183 = vpop.xlane.xlu0 %3182
      %v3184 = vsel %vm2512, %v3180, -inf
      %3185 = vmax.xlane.f32.xlu0 %v3184
      %v3186 = vpop.xlane.xlu0 %3185
      %v3187 = vsub.f32 %v3179, %v3183
      %v3188 = vsub.f32 %v3180, %v3186
      %v3189 = vmul.f32 %v3187, 1.442695
      %v3190 = vpow.pop %v3189
      %v3191 = vmul.f32 %v3188, 1.442695
      %v3192 = vpow.pop %v3191
      %v3194 = vrot.slane %v3031, 2
      %v3196 = vsel %vm604, %v3194, 1.0
      %v3198 = vsel %vm2512, %v3190, 0
      %v3201 = vsel %vm2512, %v3192, 0
      %v3204 = vsel %vm2512, %v3196, 0
      %3206 = vmatpush.xpose.msra.mxu0 0.0
      %3207 = vmatpush.xpose.msra.mxu0 0.0
      %3208 = vmatpush.xpose.msra.mxu0 0.0
      %3209 = vmatpush.xpose.msra.mxu0 0.0
      %3210 = vmatpush.xpose.msra.mxu0 0.0
      %3211 = vmatpush.xpose.msra.mxu0 0.0
      %3212 = vmatpush.xpose.msra.mxu0 0.0
      %3213 = vmatpush.xpose.msra.mxu0 0.0
      %3214 = vmatpush.xpose.msra.mxu0 0.0
      %3215 = vmatpush.xpose.msra.mxu0 0.0
      %3216 = vmatpush.xpose.msra.mxu0 0.0
      %3217 = vmatpush.xpose.msra.mxu0 0.0
      %3218 = vmatpush.xpose.msra.mxu0 0.0
      %3219 = vmatpush.xpose.msra.mxu0 0.0
      %3220 = vmatpush.xpose.msra.mxu0 0.0
      %3221 = vmatpush.xpose.msra.mxu0 %v3204
      %3222 = vmatmul.f32.gmra.mxu0 %v3198
      %v3223 = vpop.f32.mrf.mxu0
      %v3224 = vadd.f32 0.0, %v3223
      %3225 = vmatmul.f32.gmra.mxu0 %v3201
      %v3226 = vpop.f32.mrf.mxu0
      %v3227 = vadd.f32 0.0, %v3226
      %3228 = vdwg.mxu0
      %3230 = vset.pattern.permute.xlu0 2
      %3231 = vperm.xlu0 %3230, %v3224
      %v3232 = vpop.permute.xlu0 %3231
      %3235 = vset.pattern.permute.xlu0 2
      %3236 = vperm.xlu0 %3235, %v3227
      %v3237 = vpop.permute.xlu0 %3236
      %v3239 = vrcp.pop %v3232
      %v3240 = vmul.f32 %v3232, %v3239
      %v3241 = vsub.f32 1.0, %v3240
      %v3242 = vmul.f32 %v3239, %v3241
      %v3243 = vadd.f32 %v3239, %v3242
      %vm3244 = vweird.f32 %v3232
      %vm3245 = vweird.f32 %v3239
      %vm3246 = vmor %vm3244, %vm3245
      %v3247 = vsel %vm3246, %v3239, %v3243
      %v3248 = vand.u32 2147483647, %v3232
      %vm3249 = vcmp.eq.f32.partialorder %v3248, 8.507059e+37
      %v3250 = vand.u32 %v3232, 2147483648
      %v3251 = vor.u32 1.1754944e-38, %v3250
      %v3252 = vsel %vm3249, %v3251, %v3247
      %v3253 = vmul.f32 %v3224, %v3252
      %v3254 = vrcp.pop %v3237
      %v3255 = vmul.f32 %v3237, %v3254
      %v3256 = vsub.f32 1.0, %v3255
      %v3257 = vmul.f32 %v3254, %v3256
      %v3258 = vadd.f32 %v3254, %v3257
      %vm3259 = vweird.f32 %v3237
      %vm3260 = vweird.f32 %v3254
      %vm3261 = vmor %vm3259, %vm3260
      %v3262 = vsel %vm3261, %v3254, %v3258
      %v3263 = vand.u32 2147483647, %v3237
      %vm3264 = vcmp.eq.f32.partialorder %v3263, 8.507059e+37
      %v3265 = vand.u32 %v3237, 2147483648
      %v3266 = vor.u32 1.1754944e-38, %v3265
      %v3267 = vsel %vm3264, %v3266, %v3262
      %v3268 = vmul.f32 %v3227, %v3267
      %3269 = vset.pattern.permute.xlu0 4
      %3270 = vperm.xlu0 %3269, %v2916
      %v3271 = vpop.permute.xlu0 %3270
      %3273 = vset.pattern.permute.xlu0 4
      %3274 = vperm.xlu0 %3273, %v2919
      %v3275 = vpop.permute.xlu0 %3274
      %v3277 = vperm.slane %v3019, 4
      %v3278 = vmul.f32 %v3271, %v3277
      %v3279 = vmul.f32 %v3275, %v3277
      %3280 = vset.pattern.permute.xlu0 5
      %3281 = vperm.xlu0 %3280, %v2916
      %v3282 = vpop.permute.xlu0 %3281
      %3284 = vset.pattern.permute.xlu0 5
      %3285 = vperm.xlu0 %3284, %v2919
      %v3286 = vpop.permute.xlu0 %3285
      %v3288 = vperm.slane %v3019, 5
      %v3289 = vmul.f32 %v3282, %v3288
      %v3290 = vmul.f32 %v3286, %v3288
      %v3291 = vadd.f32 %v3278, %v3289
      %v3292 = vadd.f32 %v3279, %v3290
      %v3293 = vmul.f32 %v3291, 0.70710677
      %v3294 = vmul.f32 %v3292, 0.70710677
      %v3295 = vsel %vm2512, %v3293, -inf
      %3296 = vmax.xlane.f32.xlu0 %v3295
      %v3297 = vpop.xlane.xlu0 %3296
      %v3298 = vsel %vm2512, %v3294, -inf
      %3299 = vmax.xlane.f32.xlu0 %v3298
      %v3300 = vpop.xlane.xlu0 %3299
      %v3301 = vsub.f32 %v3293, %v3297
      %v3302 = vsub.f32 %v3294, %v3300
      %v3303 = vmul.f32 %v3301, 1.442695
      %v3304 = vpow.pop %v3303
      %v3305 = vmul.f32 %v3302, 1.442695
      %v3306 = vpow.pop %v3305
      %v3307 = vrot.slane %v3031, 4
      %v3309 = vsel %vm604, %v3307, 1.0
      %v3311 = vsel %vm2512, %v3304, 0
      %v3314 = vsel %vm2512, %v3306, 0
      %v3317 = vsel %vm2512, %v3309, 0
      %3319 = vmatpush.xpose.msra.mxu0 0.0
      %3320 = vmatpush.xpose.msra.mxu0 0.0
      %3321 = vmatpush.xpose.msra.mxu0 0.0
      %3322 = vmatpush.xpose.msra.mxu0 0.0
      %3323 = vmatpush.xpose.msra.mxu0 0.0
      %3324 = vmatpush.xpose.msra.mxu0 0.0
      %3325 = vmatpush.xpose.msra.mxu0 0.0
      %3326 = vmatpush.xpose.msra.mxu0 0.0
      %3327 = vmatpush.xpose.msra.mxu0 0.0
      %3328 = vmatpush.xpose.msra.mxu0 0.0
      %3329 = vmatpush.xpose.msra.mxu0 0.0
      %3330 = vmatpush.xpose.msra.mxu0 0.0
      %3331 = vmatpush.xpose.msra.mxu0 0.0
      %3332 = vmatpush.xpose.msra.mxu0 0.0
      %3333 = vmatpush.xpose.msra.mxu0 0.0
      %3334 = vmatpush.xpose.msra.mxu0 %v3317
      %3335 = vmatmul.f32.gmra.mxu0 %v3311
      %v3336 = vpop.f32.mrf.mxu0
      %v3337 = vadd.f32 0.0, %v3336
      %3338 = vmatmul.f32.gmra.mxu0 %v3314
      %v3339 = vpop.f32.mrf.mxu0
      %v3340 = vadd.f32 0.0, %v3339
      %3341 = vdwg.mxu0
      %3343 = vset.pattern.permute.xlu0 2
      %3344 = vperm.xlu0 %3343, %v3337
      %v3345 = vpop.permute.xlu0 %3344
      %3348 = vset.pattern.permute.xlu0 2
      %3349 = vperm.xlu0 %3348, %v3340
      %v3350 = vpop.permute.xlu0 %3349
      %v3352 = vrcp.pop %v3345
      %v3353 = vmul.f32 %v3345, %v3352
      %v3354 = vsub.f32 1.0, %v3353
      %v3355 = vmul.f32 %v3352, %v3354
      %v3356 = vadd.f32 %v3352, %v3355
      %vm3357 = vweird.f32 %v3345
      %vm3358 = vweird.f32 %v3352
      %vm3359 = vmor %vm3357, %vm3358
      %v3360 = vsel %vm3359, %v3352, %v3356
      %v3361 = vand.u32 2147483647, %v3345
      %vm3362 = vcmp.eq.f32.partialorder %v3361, 8.507059e+37
      %v3363 = vand.u32 %v3345, 2147483648
      %v3364 = vor.u32 1.1754944e-38, %v3363
      %v3365 = vsel %vm3362, %v3364, %v3360
      %v3366 = vmul.f32 %v3337, %v3365
      %v3367 = vrcp.pop %v3350
      %v3368 = vmul.f32 %v3350, %v3367
      %v3369 = vsub.f32 1.0, %v3368
      %v3370 = vmul.f32 %v3367, %v3369
      %v3371 = vadd.f32 %v3367, %v3370
      %vm3372 = vweird.f32 %v3350
      %vm3373 = vweird.f32 %v3367
      %vm3374 = vmor %vm3372, %vm3373
      %v3375 = vsel %vm3374, %v3367, %v3371
      %v3376 = vand.u32 2147483647, %v3350
      %vm3377 = vcmp.eq.f32.partialorder %v3376, 8.507059e+37
      %v3378 = vand.u32 %v3350, 2147483648
      %v3379 = vor.u32 1.1754944e-38, %v3378
      %v3380 = vsel %vm3377, %v3379, %v3375
      %v3381 = vmul.f32 %v3340, %v3380
      %3382 = vset.pattern.permute.xlu0 6
      %3383 = vperm.xlu0 %3382, %v2916
      %v3384 = vpop.permute.xlu0 %3383
      %3386 = vset.pattern.permute.xlu0 6
      %3387 = vperm.xlu0 %3386, %v2919
      %v3388 = vpop.permute.xlu0 %3387
      %v3390 = vperm.slane %v3019, 6
      %v3391 = vmul.f32 %v3384, %v3390
      %v3392 = vmul.f32 %v3388, %v3390
      %3393 = vset.pattern.permute.xlu0 7
      %3394 = vperm.xlu0 %3393, %v2916
      %v3395 = vpop.permute.xlu0 %3394
      %3397 = vset.pattern.permute.xlu0 7
      %3398 = vperm.xlu0 %3397, %v2919
      %v3399 = vpop.permute.xlu0 %3398
      %v3401 = vperm.slane %v3019, 7
      %v3402 = vmul.f32 %v3395, %v3401
      %v3403 = vmul.f32 %v3399, %v3401
      %v3404 = vadd.f32 %v3391, %v3402
      %v3405 = vadd.f32 %v3392, %v3403
      %v3406 = vmul.f32 %v3404, 0.70710677
      %v3407 = vmul.f32 %v3405, 0.70710677
      %v3408 = vsel %vm2512, %v3406, -inf
      %3409 = vmax.xlane.f32.xlu0 %v3408
      %v3410 = vpop.xlane.xlu0 %3409
      %v3411 = vsel %vm2512, %v3407, -inf
      %3412 = vmax.xlane.f32.xlu0 %v3411
      %v3413 = vpop.xlane.xlu0 %3412
      %v3414 = vsub.f32 %v3406, %v3410
      %v3415 = vsub.f32 %v3407, %v3413
      %v3416 = vmul.f32 %v3414, 1.442695
      %v3417 = vpow.pop %v3416
      %v3418 = vmul.f32 %v3415, 1.442695
      %v3419 = vpow.pop %v3418
      %v3420 = vrot.slane %v3031, 6
      %v3422 = vsel %vm604, %v3420, 1.0
      %v3424 = vsel %vm2512, %v3417, 0
      %v3427 = vsel %vm2512, %v3419, 0
      %v3430 = vsel %vm2512, %v3422, 0
      %3432 = vmatpush.xpose.msra.mxu0 0.0
      %3433 = vmatpush.xpose.msra.mxu0 0.0
      %3434 = vmatpush.xpose.msra.mxu0 0.0
      %3435 = vmatpush.xpose.msra.mxu0 0.0
      %3436 = vmatpush.xpose.msra.mxu0 0.0
      %3437 = vmatpush.xpose.msra.mxu0 0.0
      %3438 = vmatpush.xpose.msra.mxu0 0.0
      %3439 = vmatpush.xpose.msra.mxu0 0.0
      %3440 = vmatpush.xpose.msra.mxu0 0.0
      %3441 = vmatpush.xpose.msra.mxu0 0.0
      %3442 = vmatpush.xpose.msra.mxu0 0.0
      %3443 = vmatpush.xpose.msra.mxu0 0.0
      %3444 = vmatpush.xpose.msra.mxu0 0.0
      %3445 = vmatpush.xpose.msra.mxu0 0.0
      %3446 = vmatpush.xpose.msra.mxu0 0.0
      %3447 = vmatpush.xpose.msra.mxu0 %v3430
      %3448 = vmatmul.f32.gmra.mxu0 %v3424
      %v3449 = vpop.f32.mrf.mxu0
      %v3450 = vadd.f32 0.0, %v3449
      %3451 = vmatmul.f32.gmra.mxu0 %v3427
      %v3452 = vpop.f32.mrf.mxu0
      %v3453 = vadd.f32 0.0, %v3452
      %3454 = vdwg.mxu0
      %3456 = vset.pattern.permute.xlu0 2
      %3457 = vperm.xlu0 %3456, %v3450
      %v3458 = vpop.permute.xlu0 %3457
      %3461 = vset.pattern.permute.xlu0 2
      %3462 = vperm.xlu0 %3461, %v3453
      %v3463 = vpop.permute.xlu0 %3462
      %v3465 = vrcp.pop %v3458
      %v3466 = vmul.f32 %v3458, %v3465
      %v3467 = vsub.f32 1.0, %v3466
      %v3468 = vmul.f32 %v3465, %v3467
      %v3469 = vadd.f32 %v3465, %v3468
      %vm3470 = vweird.f32 %v3458
      %vm3471 = vweird.f32 %v3465
      %vm3472 = vmor %vm3470, %vm3471
      %v3473 = vsel %vm3472, %v3465, %v3469
      %v3474 = vand.u32 2147483647, %v3458
      %vm3475 = vcmp.eq.f32.partialorder %v3474, 8.507059e+37
      %v3476 = vand.u32 %v3458, 2147483648
      %v3477 = vor.u32 1.1754944e-38, %v3476
      %v3478 = vsel %vm3475, %v3477, %v3473
      %v3479 = vmul.f32 %v3450, %v3478
      %v3480 = vrcp.pop %v3463
      %v3481 = vmul.f32 %v3463, %v3480
      %v3482 = vsub.f32 1.0, %v3481
      %v3483 = vmul.f32 %v3480, %v3482
      %v3484 = vadd.f32 %v3480, %v3483
      %vm3485 = vweird.f32 %v3463
      %vm3486 = vweird.f32 %v3480
      %vm3487 = vmor %vm3485, %vm3486
      %v3488 = vsel %vm3487, %v3480, %v3484
      %v3489 = vand.u32 2147483647, %v3463
      %vm3490 = vcmp.eq.f32.partialorder %v3489, 8.507059e+37
      %v3491 = vand.u32 %v3463, 2147483648
      %v3492 = vor.u32 1.1754944e-38, %v3491
      %v3493 = vsel %vm3490, %v3492, %v3488
      %v3494 = vmul.f32 %v3453, %v3493
      %3495 = vset.pattern.permute.xlu0 8
      %3496 = vperm.xlu0 %3495, %v2916
      %v3497 = vpop.permute.xlu0 %3496
      %3499 = vset.pattern.permute.xlu0 8
      %3500 = vperm.xlu0 %3499, %v2919
      %v3501 = vpop.permute.xlu0 %3500
      %v3503 = vperm.slane %v3022, 0
      %v3504 = vmul.f32 %v3497, %v3503
      %v3505 = vmul.f32 %v3501, %v3503
      %3506 = vset.pattern.permute.xlu0 9
      %3507 = vperm.xlu0 %3506, %v2916
      %v3508 = vpop.permute.xlu0 %3507
      %3510 = vset.pattern.permute.xlu0 9
      %3511 = vperm.xlu0 %3510, %v2919
      %v3512 = vpop.permute.xlu0 %3511
      %v3514 = vperm.slane %v3022, 1
      %v3515 = vmul.f32 %v3508, %v3514
      %v3516 = vmul.f32 %v3512, %v3514
      %v3517 = vadd.f32 %v3504, %v3515
      %v3518 = vadd.f32 %v3505, %v3516
      %v3519 = vmul.f32 %v3517, 0.70710677
      %v3520 = vmul.f32 %v3518, 0.70710677
      %v3521 = vsel %vm2512, %v3519, -inf
      %3522 = vmax.xlane.f32.xlu0 %v3521
      %v3523 = vpop.xlane.xlu0 %3522
      %v3524 = vsel %vm2512, %v3520, -inf
      %3525 = vmax.xlane.f32.xlu0 %v3524
      %v3526 = vpop.xlane.xlu0 %3525
      %v3527 = vsub.f32 %v3519, %v3523
      %v3528 = vsub.f32 %v3520, %v3526
      %v3529 = vmul.f32 %v3527, 1.442695
      %v3530 = vpow.pop %v3529
      %v3531 = vmul.f32 %v3528, 1.442695
      %v3532 = vpow.pop %v3531
      %v3533 = vsel %vm604, %v3034, 1.0
      %v3535 = vsel %vm2512, %v3530, 0
      %v3538 = vsel %vm2512, %v3532, 0
      %v3541 = vsel %vm2512, %v3533, 0
      %3543 = vmatpush.xpose.msra.mxu0 0.0
      %3544 = vmatpush.xpose.msra.mxu0 0.0
      %3545 = vmatpush.xpose.msra.mxu0 0.0
      %3546 = vmatpush.xpose.msra.mxu0 0.0
      %3547 = vmatpush.xpose.msra.mxu0 0.0
      %3548 = vmatpush.xpose.msra.mxu0 0.0
      %3549 = vmatpush.xpose.msra.mxu0 0.0
      %3550 = vmatpush.xpose.msra.mxu0 0.0
      %3551 = vmatpush.xpose.msra.mxu0 0.0
      %3552 = vmatpush.xpose.msra.mxu0 0.0
      %3553 = vmatpush.xpose.msra.mxu0 0.0
      %3554 = vmatpush.xpose.msra.mxu0 0.0
      %3555 = vmatpush.xpose.msra.mxu0 0.0
      %3556 = vmatpush.xpose.msra.mxu0 0.0
      %3557 = vmatpush.xpose.msra.mxu0 0.0
      %3558 = vmatpush.xpose.msra.mxu0 %v3541
      %3559 = vmatmul.f32.gmra.mxu0 %v3535
      %v3560 = vpop.f32.mrf.mxu0
      %v3561 = vadd.f32 0.0, %v3560
      %3562 = vmatmul.f32.gmra.mxu0 %v3538
      %v3563 = vpop.f32.mrf.mxu0
      %v3564 = vadd.f32 0.0, %v3563
      %3565 = vdwg.mxu0
      %3567 = vset.pattern.permute.xlu0 2
      %3568 = vperm.xlu0 %3567, %v3561
      %v3569 = vpop.permute.xlu0 %3568
      %3572 = vset.pattern.permute.xlu0 2
      %3573 = vperm.xlu0 %3572, %v3564
      %v3574 = vpop.permute.xlu0 %3573
      %v3576 = vrcp.pop %v3569
      %v3577 = vmul.f32 %v3569, %v3576
      %v3578 = vsub.f32 1.0, %v3577
      %v3579 = vmul.f32 %v3576, %v3578
      %v3580 = vadd.f32 %v3576, %v3579
      %vm3581 = vweird.f32 %v3569
      %vm3582 = vweird.f32 %v3576
      %vm3583 = vmor %vm3581, %vm3582
      %v3584 = vsel %vm3583, %v3576, %v3580
      %v3585 = vand.u32 2147483647, %v3569
      %vm3586 = vcmp.eq.f32.partialorder %v3585, 8.507059e+37
      %v3587 = vand.u32 %v3569, 2147483648
      %v3588 = vor.u32 1.1754944e-38, %v3587
      %v3589 = vsel %vm3586, %v3588, %v3584
      %v3590 = vmul.f32 %v3561, %v3589
      %v3591 = vrcp.pop %v3574
      %v3592 = vmul.f32 %v3574, %v3591
      %v3593 = vsub.f32 1.0, %v3592
      %v3594 = vmul.f32 %v3591, %v3593
      %v3595 = vadd.f32 %v3591, %v3594
      %vm3596 = vweird.f32 %v3574
      %vm3597 = vweird.f32 %v3591
      %vm3598 = vmor %vm3596, %vm3597
      %v3599 = vsel %vm3598, %v3591, %v3595
      %v3600 = vand.u32 2147483647, %v3574
      %vm3601 = vcmp.eq.f32.partialorder %v3600, 8.507059e+37
      %v3602 = vand.u32 %v3574, 2147483648
      %v3603 = vor.u32 1.1754944e-38, %v3602
      %v3604 = vsel %vm3601, %v3603, %v3599
      %v3605 = vmul.f32 %v3564, %v3604
      %3606 = vset.pattern.permute.xlu0 10
      %3607 = vperm.xlu0 %3606, %v2916
      %v3608 = vpop.permute.xlu0 %3607
      %3610 = vset.pattern.permute.xlu0 10
      %3611 = vperm.xlu0 %3610, %v2919
      %v3612 = vpop.permute.xlu0 %3611
      %v3614 = vperm.slane %v3022, 2
      %v3615 = vmul.f32 %v3608, %v3614
      %v3616 = vmul.f32 %v3612, %v3614
      %3617 = vset.pattern.permute.xlu0 11
      %3618 = vperm.xlu0 %3617, %v2916
      %v3619 = vpop.permute.xlu0 %3618
      %3621 = vset.pattern.permute.xlu0 11
      %3622 = vperm.xlu0 %3621, %v2919
      %v3623 = vpop.permute.xlu0 %3622
      %v3625 = vperm.slane %v3022, 3
      %v3626 = vmul.f32 %v3619, %v3625
      %v3627 = vmul.f32 %v3623, %v3625
      %v3628 = vadd.f32 %v3615, %v3626
      %v3629 = vadd.f32 %v3616, %v3627
      %v3630 = vmul.f32 %v3628, 0.70710677
      %v3631 = vmul.f32 %v3629, 0.70710677
      %v3632 = vsel %vm2512, %v3630, -inf
      %3633 = vmax.xlane.f32.xlu0 %v3632
      %v3634 = vpop.xlane.xlu0 %3633
      %v3635 = vsel %vm2512, %v3631, -inf
      %3636 = vmax.xlane.f32.xlu0 %v3635
      %v3637 = vpop.xlane.xlu0 %3636
      %v3638 = vsub.f32 %v3630, %v3634
      %v3639 = vsub.f32 %v3631, %v3637
      %v3640 = vmul.f32 %v3638, 1.442695
      %v3641 = vpow.pop %v3640
      %v3642 = vmul.f32 %v3639, 1.442695
      %v3643 = vpow.pop %v3642
      %v3645 = vrot.slane %v3034, 2
      %v3647 = vsel %vm604, %v3645, 1.0
      %v3649 = vsel %vm2512, %v3641, 0
      %v3652 = vsel %vm2512, %v3643, 0
      %v3655 = vsel %vm2512, %v3647, 0
      %3657 = vmatpush.xpose.msra.mxu0 0.0
      %3658 = vmatpush.xpose.msra.mxu0 0.0
      %3659 = vmatpush.xpose.msra.mxu0 0.0
      %3660 = vmatpush.xpose.msra.mxu0 0.0
      %3661 = vmatpush.xpose.msra.mxu0 0.0
      %3662 = vmatpush.xpose.msra.mxu0 0.0
      %3663 = vmatpush.xpose.msra.mxu0 0.0
      %3664 = vmatpush.xpose.msra.mxu0 0.0
      %3665 = vmatpush.xpose.msra.mxu0 0.0
      %3666 = vmatpush.xpose.msra.mxu0 0.0
      %3667 = vmatpush.xpose.msra.mxu0 0.0
      %3668 = vmatpush.xpose.msra.mxu0 0.0
      %3669 = vmatpush.xpose.msra.mxu0 0.0
      %3670 = vmatpush.xpose.msra.mxu0 0.0
      %3671 = vmatpush.xpose.msra.mxu0 0.0
      %3672 = vmatpush.xpose.msra.mxu0 %v3655
      %3673 = vmatmul.f32.gmra.mxu0 %v3649
      %v3674 = vpop.f32.mrf.mxu0
      %v3675 = vadd.f32 0.0, %v3674
      %3676 = vmatmul.f32.gmra.mxu0 %v3652
      %v3677 = vpop.f32.mrf.mxu0
      %v3678 = vadd.f32 0.0, %v3677
      %3679 = vdwg.mxu0
      %3681 = vset.pattern.permute.xlu0 2
      %3682 = vperm.xlu0 %3681, %v3675
      %v3683 = vpop.permute.xlu0 %3682
      %3686 = vset.pattern.permute.xlu0 2
      %3687 = vperm.xlu0 %3686, %v3678
      %v3688 = vpop.permute.xlu0 %3687
      %v3690 = vrcp.pop %v3683
      %v3691 = vmul.f32 %v3683, %v3690
      %v3692 = vsub.f32 1.0, %v3691
      %v3693 = vmul.f32 %v3690, %v3692
      %v3694 = vadd.f32 %v3690, %v3693
      %vm3695 = vweird.f32 %v3683
      %vm3696 = vweird.f32 %v3690
      %vm3697 = vmor %vm3695, %vm3696
      %v3698 = vsel %vm3697, %v3690, %v3694
      %v3699 = vand.u32 2147483647, %v3683
      %vm3700 = vcmp.eq.f32.partialorder %v3699, 8.507059e+37
      %v3701 = vand.u32 %v3683, 2147483648
      %v3702 = vor.u32 1.1754944e-38, %v3701
      %v3703 = vsel %vm3700, %v3702, %v3698
      %v3704 = vmul.f32 %v3675, %v3703
      %v3705 = vrcp.pop %v3688
      %v3706 = vmul.f32 %v3688, %v3705
      %v3707 = vsub.f32 1.0, %v3706
      %v3708 = vmul.f32 %v3705, %v3707
      %v3709 = vadd.f32 %v3705, %v3708
      %vm3710 = vweird.f32 %v3688
      %vm3711 = vweird.f32 %v3705
      %vm3712 = vmor %vm3710, %vm3711
      %v3713 = vsel %vm3712, %v3705, %v3709
      %v3714 = vand.u32 2147483647, %v3688
      %vm3715 = vcmp.eq.f32.partialorder %v3714, 8.507059e+37
      %v3716 = vand.u32 %v3688, 2147483648
      %v3717 = vor.u32 1.1754944e-38, %v3716
      %v3718 = vsel %vm3715, %v3717, %v3713
      %v3719 = vmul.f32 %v3678, %v3718
      %3720 = vset.pattern.permute.xlu0 12
      %3721 = vperm.xlu0 %3720, %v2916
      %v3722 = vpop.permute.xlu0 %3721
      %3724 = vset.pattern.permute.xlu0 12
      %3725 = vperm.xlu0 %3724, %v2919
      %v3726 = vpop.permute.xlu0 %3725
      %v3728 = vperm.slane %v3022, 4
      %v3729 = vmul.f32 %v3722, %v3728
      %v3730 = vmul.f32 %v3726, %v3728
      %3731 = vset.pattern.permute.xlu0 13
      %3732 = vperm.xlu0 %3731, %v2916
      %v3733 = vpop.permute.xlu0 %3732
      %3735 = vset.pattern.permute.xlu0 13
      %3736 = vperm.xlu0 %3735, %v2919
      %v3737 = vpop.permute.xlu0 %3736
      %v3739 = vperm.slane %v3022, 5
      %v3740 = vmul.f32 %v3733, %v3739
      %v3741 = vmul.f32 %v3737, %v3739
      %v3742 = vadd.f32 %v3729, %v3740
      %v3743 = vadd.f32 %v3730, %v3741
      %v3744 = vmul.f32 %v3742, 0.70710677
      %v3745 = vmul.f32 %v3743, 0.70710677
      %v3746 = vsel %vm2512, %v3744, -inf
      %3747 = vmax.xlane.f32.xlu0 %v3746
      %v3748 = vpop.xlane.xlu0 %3747
      %v3749 = vsel %vm2512, %v3745, -inf
      %3750 = vmax.xlane.f32.xlu0 %v3749
      %v3751 = vpop.xlane.xlu0 %3750
      %v3752 = vsub.f32 %v3744, %v3748
      %v3753 = vsub.f32 %v3745, %v3751
      %v3754 = vmul.f32 %v3752, 1.442695
      %v3755 = vpow.pop %v3754
      %v3756 = vmul.f32 %v3753, 1.442695
      %v3757 = vpow.pop %v3756
      %v3758 = vrot.slane %v3034, 4
      %v3760 = vsel %vm604, %v3758, 1.0
      %v3762 = vsel %vm2512, %v3755, 0
      %v3765 = vsel %vm2512, %v3757, 0
      %v3768 = vsel %vm2512, %v3760, 0
      %3770 = vmatpush.xpose.msra.mxu0 0.0
      %3771 = vmatpush.xpose.msra.mxu0 0.0
      %3772 = vmatpush.xpose.msra.mxu0 0.0
      %3773 = vmatpush.xpose.msra.mxu0 0.0
      %3774 = vmatpush.xpose.msra.mxu0 0.0
      %3775 = vmatpush.xpose.msra.mxu0 0.0
      %3776 = vmatpush.xpose.msra.mxu0 0.0
      %3777 = vmatpush.xpose.msra.mxu0 0.0
      %3778 = vmatpush.xpose.msra.mxu0 0.0
      %3779 = vmatpush.xpose.msra.mxu0 0.0
      %3780 = vmatpush.xpose.msra.mxu0 0.0
      %3781 = vmatpush.xpose.msra.mxu0 0.0
      %3782 = vmatpush.xpose.msra.mxu0 0.0
      %3783 = vmatpush.xpose.msra.mxu0 0.0
      %3784 = vmatpush.xpose.msra.mxu0 0.0
      %3785 = vmatpush.xpose.msra.mxu0 %v3768
      %3786 = vmatmul.f32.gmra.mxu0 %v3762
      %v3787 = vpop.f32.mrf.mxu0
      %v3788 = vadd.f32 0.0, %v3787
      %3789 = vmatmul.f32.gmra.mxu0 %v3765
      %v3790 = vpop.f32.mrf.mxu0
      %v3791 = vadd.f32 0.0, %v3790
      %3792 = vdwg.mxu0
      %3794 = vset.pattern.permute.xlu0 2
      %3795 = vperm.xlu0 %3794, %v3788
      %v3796 = vpop.permute.xlu0 %3795
      %3799 = vset.pattern.permute.xlu0 2
      %3800 = vperm.xlu0 %3799, %v3791
      %v3801 = vpop.permute.xlu0 %3800
      %v3803 = vrcp.pop %v3796
      %v3804 = vmul.f32 %v3796, %v3803
      %v3805 = vsub.f32 1.0, %v3804
      %v3806 = vmul.f32 %v3803, %v3805
      %v3807 = vadd.f32 %v3803, %v3806
      %vm3808 = vweird.f32 %v3796
      %vm3809 = vweird.f32 %v3803
      %vm3810 = vmor %vm3808, %vm3809
      %v3811 = vsel %vm3810, %v3803, %v3807
      %v3812 = vand.u32 2147483647, %v3796
      %vm3813 = vcmp.eq.f32.partialorder %v3812, 8.507059e+37
      %v3814 = vand.u32 %v3796, 2147483648
      %v3815 = vor.u32 1.1754944e-38, %v3814
      %v3816 = vsel %vm3813, %v3815, %v3811
      %v3817 = vmul.f32 %v3788, %v3816
      %v3818 = vrcp.pop %v3801
      %v3819 = vmul.f32 %v3801, %v3818
      %v3820 = vsub.f32 1.0, %v3819
      %v3821 = vmul.f32 %v3818, %v3820
      %v3822 = vadd.f32 %v3818, %v3821
      %vm3823 = vweird.f32 %v3801
      %vm3824 = vweird.f32 %v3818
      %vm3825 = vmor %vm3823, %vm3824
      %v3826 = vsel %vm3825, %v3818, %v3822
      %v3827 = vand.u32 2147483647, %v3801
      %vm3828 = vcmp.eq.f32.partialorder %v3827, 8.507059e+37
      %v3829 = vand.u32 %v3801, 2147483648
      %v3830 = vor.u32 1.1754944e-38, %v3829
      %v3831 = vsel %vm3828, %v3830, %v3826
      %v3832 = vmul.f32 %v3791, %v3831
      %3833 = vset.pattern.permute.xlu0 14
      %3834 = vperm.xlu0 %3833, %v2916
      %v3835 = vpop.permute.xlu0 %3834
      %3837 = vset.pattern.permute.xlu0 14
      %3838 = vperm.xlu0 %3837, %v2919
      %v3839 = vpop.permute.xlu0 %3838
      %v3841 = vperm.slane %v3022, 6
      %v3842 = vmul.f32 %v3835, %v3841
      %v3843 = vmul.f32 %v3839, %v3841
      %3844 = vset.pattern.permute.xlu0 15
      %3845 = vperm.xlu0 %3844, %v2916
      %v3846 = vpop.permute.xlu0 %3845
      %3848 = vset.pattern.permute.xlu0 15
      %3849 = vperm.xlu0 %3848, %v2919
      %v3850 = vpop.permute.xlu0 %3849
      %v3852 = vperm.slane %v3022, 7
      %v3853 = vmul.f32 %v3846, %v3852
      %v3854 = vmul.f32 %v3850, %v3852
      %v3855 = vadd.f32 %v3842, %v3853
      %v3856 = vadd.f32 %v3843, %v3854
      %v3857 = vmul.f32 %v3855, 0.70710677
      %v3858 = vmul.f32 %v3856, 0.70710677
      %v3859 = vsel %vm2512, %v3857, -inf
      %3860 = vmax.xlane.f32.xlu0 %v3859
      %v3861 = vpop.xlane.xlu0 %3860
      %v3862 = vsel %vm2512, %v3858, -inf
      %3863 = vmax.xlane.f32.xlu0 %v3862
      %v3864 = vpop.xlane.xlu0 %3863
      %v3865 = vsub.f32 %v3857, %v3861
      %v3866 = vsub.f32 %v3858, %v3864
      %v3867 = vmul.f32 %v3865, 1.442695
      %v3868 = vpow.pop %v3867
      %v3869 = vmul.f32 %v3866, 1.442695
      %v3870 = vpow.pop %v3869
      %v3871 = vrot.slane %v3034, 6
      %v3873 = vsel %vm604, %v3871, 1.0
      %v3875 = vsel %vm2512, %v3868, 0
      %v3878 = vsel %vm2512, %v3870, 0
      %v3881 = vsel %vm2512, %v3873, 0
      %3883 = vmatpush.xpose.msra.mxu0 0.0
      %3884 = vmatpush.xpose.msra.mxu0 0.0
      %3885 = vmatpush.xpose.msra.mxu0 0.0
      %3886 = vmatpush.xpose.msra.mxu0 0.0
      %3887 = vmatpush.xpose.msra.mxu0 0.0
      %3888 = vmatpush.xpose.msra.mxu0 0.0
      %3889 = vmatpush.xpose.msra.mxu0 0.0
      %3890 = vmatpush.xpose.msra.mxu0 0.0
      %3891 = vmatpush.xpose.msra.mxu0 0.0
      %3892 = vmatpush.xpose.msra.mxu0 0.0
      %3893 = vmatpush.xpose.msra.mxu0 0.0
      %3894 = vmatpush.xpose.msra.mxu0 0.0
      %3895 = vmatpush.xpose.msra.mxu0 0.0
      %3896 = vmatpush.xpose.msra.mxu0 0.0
      %3897 = vmatpush.xpose.msra.mxu0 0.0
      %3898 = vmatpush.xpose.msra.mxu0 %v3881
      %3899 = vmatmul.f32.gmra.mxu0 %v3875
      %v3900 = vpop.f32.mrf.mxu0
      %v3901 = vadd.f32 0.0, %v3900
      %3902 = vmatmul.f32.gmra.mxu0 %v3878
      %v3903 = vpop.f32.mrf.mxu0
      %v3904 = vadd.f32 0.0, %v3903
      %3905 = vdwg.mxu0
      %3907 = vset.pattern.permute.xlu0 2
      %3908 = vperm.xlu0 %3907, %v3901
      %v3909 = vpop.permute.xlu0 %3908
      %3912 = vset.pattern.permute.xlu0 2
      %3913 = vperm.xlu0 %3912, %v3904
      %v3914 = vpop.permute.xlu0 %3913
      %v3916 = vrcp.pop %v3909
      %v3917 = vmul.f32 %v3909, %v3916
      %v3918 = vsub.f32 1.0, %v3917
      %v3919 = vmul.f32 %v3916, %v3918
      %v3920 = vadd.f32 %v3916, %v3919
      %vm3921 = vweird.f32 %v3909
      %vm3922 = vweird.f32 %v3916
      %vm3923 = vmor %vm3921, %vm3922
      %v3924 = vsel %vm3923, %v3916, %v3920
      %v3925 = vand.u32 2147483647, %v3909
      %vm3926 = vcmp.eq.f32.partialorder %v3925, 8.507059e+37
      %v3927 = vand.u32 %v3909, 2147483648
      %v3928 = vor.u32 1.1754944e-38, %v3927
      %v3929 = vsel %vm3926, %v3928, %v3924
      %v3930 = vmul.f32 %v3901, %v3929
      %v3931 = vrcp.pop %v3914
      %v3932 = vmul.f32 %v3914, %v3931
      %v3933 = vsub.f32 1.0, %v3932
      %v3934 = vmul.f32 %v3931, %v3933
      %v3935 = vadd.f32 %v3931, %v3934
      %vm3936 = vweird.f32 %v3914
      %vm3937 = vweird.f32 %v3931
      %vm3938 = vmor %vm3936, %vm3937
      %v3939 = vsel %vm3938, %v3931, %v3935
      %v3940 = vand.u32 2147483647, %v3914
      %vm3941 = vcmp.eq.f32.partialorder %v3940, 8.507059e+37
      %v3942 = vand.u32 %v3914, 2147483648
      %v3943 = vor.u32 1.1754944e-38, %v3942
      %v3944 = vsel %vm3941, %v3943, %v3939
      %v3945 = vmul.f32 %v3904, %v3944
      %3946 = vset.pattern.permute.xlu0 16
      %3947 = vperm.xlu0 %3946, %v2916
      %v3948 = vpop.permute.xlu0 %3947
      %3950 = vset.pattern.permute.xlu0 16
      %3951 = vperm.xlu0 %3950, %v2919
      %v3952 = vpop.permute.xlu0 %3951
      %v3954 = vperm.slane %v3025, 0
      %v3955 = vmul.f32 %v3948, %v3954
      %v3956 = vmul.f32 %v3952, %v3954
      %3957 = vset.pattern.permute.xlu0 17
      %3958 = vperm.xlu0 %3957, %v2916
      %v3959 = vpop.permute.xlu0 %3958
      %3961 = vset.pattern.permute.xlu0 17
      %3962 = vperm.xlu0 %3961, %v2919
      %v3963 = vpop.permute.xlu0 %3962
      %v3965 = vperm.slane %v3025, 1
      %v3966 = vmul.f32 %v3959, %v3965
      %v3967 = vmul.f32 %v3963, %v3965
      %v3968 = vadd.f32 %v3955, %v3966
      %v3969 = vadd.f32 %v3956, %v3967
      %v3970 = vmul.f32 %v3968, 0.70710677
      %v3971 = vmul.f32 %v3969, 0.70710677
      %v3972 = vsel %vm2512, %v3970, -inf
      %3973 = vmax.xlane.f32.xlu0 %v3972
      %v3974 = vpop.xlane.xlu0 %3973
      %v3975 = vsel %vm2512, %v3971, -inf
      %3976 = vmax.xlane.f32.xlu0 %v3975
      %v3977 = vpop.xlane.xlu0 %3976
      %v3978 = vsub.f32 %v3970, %v3974
      %v3979 = vsub.f32 %v3971, %v3977
      %v3980 = vmul.f32 %v3978, 1.442695
      %v3981 = vpow.pop %v3980
      %v3982 = vmul.f32 %v3979, 1.442695
      %v3983 = vpow.pop %v3982
      %v3984 = vsel %vm604, %v3037, 1.0
      %v3986 = vsel %vm2512, %v3981, 0
      %v3989 = vsel %vm2512, %v3983, 0
      %v3992 = vsel %vm2512, %v3984, 0
      %3994 = vmatpush.xpose.msra.mxu0 0.0
      %3995 = vmatpush.xpose.msra.mxu0 0.0
      %3996 = vmatpush.xpose.msra.mxu0 0.0
      %3997 = vmatpush.xpose.msra.mxu0 0.0
      %3998 = vmatpush.xpose.msra.mxu0 0.0
      %3999 = vmatpush.xpose.msra.mxu0 0.0
      %4000 = vmatpush.xpose.msra.mxu0 0.0
      %4001 = vmatpush.xpose.msra.mxu0 0.0
      %4002 = vmatpush.xpose.msra.mxu0 0.0
      %4003 = vmatpush.xpose.msra.mxu0 0.0
      %4004 = vmatpush.xpose.msra.mxu0 0.0
      %4005 = vmatpush.xpose.msra.mxu0 0.0
      %4006 = vmatpush.xpose.msra.mxu0 0.0
      %4007 = vmatpush.xpose.msra.mxu0 0.0
      %4008 = vmatpush.xpose.msra.mxu0 0.0
      %4009 = vmatpush.xpose.msra.mxu0 %v3992
      %4010 = vmatmul.f32.gmra.mxu0 %v3986
      %v4011 = vpop.f32.mrf.mxu0
      %v4012 = vadd.f32 0.0, %v4011
      %4013 = vmatmul.f32.gmra.mxu0 %v3989
      %v4014 = vpop.f32.mrf.mxu0
      %v4015 = vadd.f32 0.0, %v4014
      %4016 = vdwg.mxu0
      %4018 = vset.pattern.permute.xlu0 2
      %4019 = vperm.xlu0 %4018, %v4012
      %v4020 = vpop.permute.xlu0 %4019
      %4023 = vset.pattern.permute.xlu0 2
      %4024 = vperm.xlu0 %4023, %v4015
      %v4025 = vpop.permute.xlu0 %4024
      %v4027 = vrcp.pop %v4020
      %v4028 = vmul.f32 %v4020, %v4027
      %v4029 = vsub.f32 1.0, %v4028
      %v4030 = vmul.f32 %v4027, %v4029
      %v4031 = vadd.f32 %v4027, %v4030
      %vm4032 = vweird.f32 %v4020
      %vm4033 = vweird.f32 %v4027
      %vm4034 = vmor %vm4032, %vm4033
      %v4035 = vsel %vm4034, %v4027, %v4031
      %v4036 = vand.u32 2147483647, %v4020
      %vm4037 = vcmp.eq.f32.partialorder %v4036, 8.507059e+37
      %v4038 = vand.u32 %v4020, 2147483648
      %v4039 = vor.u32 1.1754944e-38, %v4038
      %v4040 = vsel %vm4037, %v4039, %v4035
      %v4041 = vmul.f32 %v4012, %v4040
      %v4042 = vrcp.pop %v4025
      %v4043 = vmul.f32 %v4025, %v4042
      %v4044 = vsub.f32 1.0, %v4043
      %v4045 = vmul.f32 %v4042, %v4044
      %v4046 = vadd.f32 %v4042, %v4045
      %vm4047 = vweird.f32 %v4025
      %vm4048 = vweird.f32 %v4042
      %vm4049 = vmor %vm4047, %vm4048
      %v4050 = vsel %vm4049, %v4042, %v4046
      %v4051 = vand.u32 2147483647, %v4025
      %vm4052 = vcmp.eq.f32.partialorder %v4051, 8.507059e+37
      %v4053 = vand.u32 %v4025, 2147483648
      %v4054 = vor.u32 1.1754944e-38, %v4053
      %v4055 = vsel %vm4052, %v4054, %v4050
      %v4056 = vmul.f32 %v4015, %v4055
      %4057 = vset.pattern.permute.xlu0 18
      %4058 = vperm.xlu0 %4057, %v2916
      %v4059 = vpop.permute.xlu0 %4058
      %4061 = vset.pattern.permute.xlu0 18
      %4062 = vperm.xlu0 %4061, %v2919
      %v4063 = vpop.permute.xlu0 %4062
      %v4065 = vperm.slane %v3025, 2
      %v4066 = vmul.f32 %v4059, %v4065
      %v4067 = vmul.f32 %v4063, %v4065
      %4068 = vset.pattern.permute.xlu0 19
      %4069 = vperm.xlu0 %4068, %v2916
      %v4070 = vpop.permute.xlu0 %4069
      %4072 = vset.pattern.permute.xlu0 19
      %4073 = vperm.xlu0 %4072, %v2919
      %v4074 = vpop.permute.xlu0 %4073
      %v4076 = vperm.slane %v3025, 3
      %v4077 = vmul.f32 %v4070, %v4076
      %v4078 = vmul.f32 %v4074, %v4076
      %v4079 = vadd.f32 %v4066, %v4077
      %v4080 = vadd.f32 %v4067, %v4078
      %v4081 = vmul.f32 %v4079, 0.70710677
      %v4082 = vmul.f32 %v4080, 0.70710677
      %v4083 = vsel %vm2512, %v4081, -inf
      %4084 = vmax.xlane.f32.xlu0 %v4083
      %v4085 = vpop.xlane.xlu0 %4084
      %v4086 = vsel %vm2512, %v4082, -inf
      %4087 = vmax.xlane.f32.xlu0 %v4086
      %v4088 = vpop.xlane.xlu0 %4087
      %v4089 = vsub.f32 %v4081, %v4085
      %v4090 = vsub.f32 %v4082, %v4088
      %v4091 = vmul.f32 %v4089, 1.442695
      %v4092 = vpow.pop %v4091
      %v4093 = vmul.f32 %v4090, 1.442695
      %v4094 = vpow.pop %v4093
      %v4096 = vrot.slane %v3037, 2
      %v4098 = vsel %vm604, %v4096, 1.0
      %v4100 = vsel %vm2512, %v4092, 0
      %v4103 = vsel %vm2512, %v4094, 0
      %v4106 = vsel %vm2512, %v4098, 0
      %4108 = vmatpush.xpose.msra.mxu0 0.0
      %4109 = vmatpush.xpose.msra.mxu0 0.0
      %4110 = vmatpush.xpose.msra.mxu0 0.0
      %4111 = vmatpush.xpose.msra.mxu0 0.0
      %4112 = vmatpush.xpose.msra.mxu0 0.0
      %4113 = vmatpush.xpose.msra.mxu0 0.0
      %4114 = vmatpush.xpose.msra.mxu0 0.0
      %4115 = vmatpush.xpose.msra.mxu0 0.0
      %4116 = vmatpush.xpose.msra.mxu0 0.0
      %4117 = vmatpush.xpose.msra.mxu0 0.0
      %4118 = vmatpush.xpose.msra.mxu0 0.0
      %4119 = vmatpush.xpose.msra.mxu0 0.0
      %4120 = vmatpush.xpose.msra.mxu0 0.0
      %4121 = vmatpush.xpose.msra.mxu0 0.0
      %4122 = vmatpush.xpose.msra.mxu0 0.0
      %4123 = vmatpush.xpose.msra.mxu0 %v4106
      %4124 = vmatmul.f32.gmra.mxu0 %v4100
      %v4125 = vpop.f32.mrf.mxu0
      %v4126 = vadd.f32 0.0, %v4125
      %4127 = vmatmul.f32.gmra.mxu0 %v4103
      %v4128 = vpop.f32.mrf.mxu0
      %v4129 = vadd.f32 0.0, %v4128
      %4130 = vdwg.mxu0
      %4132 = vset.pattern.permute.xlu0 2
      %4133 = vperm.xlu0 %4132, %v4126
      %v4134 = vpop.permute.xlu0 %4133
      %4137 = vset.pattern.permute.xlu0 2
      %4138 = vperm.xlu0 %4137, %v4129
      %v4139 = vpop.permute.xlu0 %4138
      %v4141 = vrcp.pop %v4134
      %v4142 = vmul.f32 %v4134, %v4141
      %v4143 = vsub.f32 1.0, %v4142
      %v4144 = vmul.f32 %v4141, %v4143
      %v4145 = vadd.f32 %v4141, %v4144
      %vm4146 = vweird.f32 %v4134
      %vm4147 = vweird.f32 %v4141
      %vm4148 = vmor %vm4146, %vm4147
      %v4149 = vsel %vm4148, %v4141, %v4145
      %v4150 = vand.u32 2147483647, %v4134
      %vm4151 = vcmp.eq.f32.partialorder %v4150, 8.507059e+37
      %v4152 = vand.u32 %v4134, 2147483648
      %v4153 = vor.u32 1.1754944e-38, %v4152
      %v4154 = vsel %vm4151, %v4153, %v4149
      %v4155 = vmul.f32 %v4126, %v4154
      %v4156 = vrcp.pop %v4139
      %v4157 = vmul.f32 %v4139, %v4156
      %v4158 = vsub.f32 1.0, %v4157
      %v4159 = vmul.f32 %v4156, %v4158
      %v4160 = vadd.f32 %v4156, %v4159
      %vm4161 = vweird.f32 %v4139
      %vm4162 = vweird.f32 %v4156
      %vm4163 = vmor %vm4161, %vm4162
      %v4164 = vsel %vm4163, %v4156, %v4160
      %v4165 = vand.u32 2147483647, %v4139
      %vm4166 = vcmp.eq.f32.partialorder %v4165, 8.507059e+37
      %v4167 = vand.u32 %v4139, 2147483648
      %v4168 = vor.u32 1.1754944e-38, %v4167
      %v4169 = vsel %vm4166, %v4168, %v4164
      %v4170 = vmul.f32 %v4129, %v4169
      %4171 = vset.pattern.permute.xlu0 20
      %4172 = vperm.xlu0 %4171, %v2916
      %v4173 = vpop.permute.xlu0 %4172
      %4175 = vset.pattern.permute.xlu0 20
      %4176 = vperm.xlu0 %4175, %v2919
      %v4177 = vpop.permute.xlu0 %4176
      %v4179 = vperm.slane %v3025, 4
      %v4180 = vmul.f32 %v4173, %v4179
      %v4181 = vmul.f32 %v4177, %v4179
      %4182 = vset.pattern.permute.xlu0 21
      %4183 = vperm.xlu0 %4182, %v2916
      %v4184 = vpop.permute.xlu0 %4183
      %4186 = vset.pattern.permute.xlu0 21
      %4187 = vperm.xlu0 %4186, %v2919
      %v4188 = vpop.permute.xlu0 %4187
      %v4190 = vperm.slane %v3025, 5
      %v4191 = vmul.f32 %v4184, %v4190
      %v4192 = vmul.f32 %v4188, %v4190
      %v4193 = vadd.f32 %v4180, %v4191
      %v4194 = vadd.f32 %v4181, %v4192
      %v4195 = vmul.f32 %v4193, 0.70710677
      %v4196 = vmul.f32 %v4194, 0.70710677
      %v4197 = vsel %vm2512, %v4195, -inf
      %4198 = vmax.xlane.f32.xlu0 %v4197
      %v4199 = vpop.xlane.xlu0 %4198
      %v4200 = vsel %vm2512, %v4196, -inf
      %4201 = vmax.xlane.f32.xlu0 %v4200
      %v4202 = vpop.xlane.xlu0 %4201
      %v4203 = vsub.f32 %v4195, %v4199
      %v4204 = vsub.f32 %v4196, %v4202
      %v4205 = vmul.f32 %v4203, 1.442695
      %v4206 = vpow.pop %v4205
      %v4207 = vmul.f32 %v4204, 1.442695
      %v4208 = vpow.pop %v4207
      %v4209 = vrot.slane %v3037, 4
      %v4211 = vsel %vm604, %v4209, 1.0
      %v4213 = vsel %vm2512, %v4206, 0
      %v4216 = vsel %vm2512, %v4208, 0
      %v4219 = vsel %vm2512, %v4211, 0
      %4221 = vmatpush.xpose.msra.mxu0 0.0
      %4222 = vmatpush.xpose.msra.mxu0 0.0
      %4223 = vmatpush.xpose.msra.mxu0 0.0
      %4224 = vmatpush.xpose.msra.mxu0 0.0
      %4225 = vmatpush.xpose.msra.mxu0 0.0
      %4226 = vmatpush.xpose.msra.mxu0 0.0
      %4227 = vmatpush.xpose.msra.mxu0 0.0
      %4228 = vmatpush.xpose.msra.mxu0 0.0
      %4229 = vmatpush.xpose.msra.mxu0 0.0
      %4230 = vmatpush.xpose.msra.mxu0 0.0
      %4231 = vmatpush.xpose.msra.mxu0 0.0
      %4232 = vmatpush.xpose.msra.mxu0 0.0
      %4233 = vmatpush.xpose.msra.mxu0 0.0
      %4234 = vmatpush.xpose.msra.mxu0 0.0
      %4235 = vmatpush.xpose.msra.mxu0 0.0
      %4236 = vmatpush.xpose.msra.mxu0 %v4219
      %4237 = vmatmul.f32.gmra.mxu0 %v4213
      %v4238 = vpop.f32.mrf.mxu0
      %v4239 = vadd.f32 0.0, %v4238
      %4240 = vmatmul.f32.gmra.mxu0 %v4216
      %v4241 = vpop.f32.mrf.mxu0
      %v4242 = vadd.f32 0.0, %v4241
      %4243 = vdwg.mxu0
      %4245 = vset.pattern.permute.xlu0 2
      %4246 = vperm.xlu0 %4245, %v4239
      %v4247 = vpop.permute.xlu0 %4246
      %4250 = vset.pattern.permute.xlu0 2
      %4251 = vperm.xlu0 %4250, %v4242
      %v4252 = vpop.permute.xlu0 %4251
      %v4254 = vrcp.pop %v4247
      %v4255 = vmul.f32 %v4247, %v4254
      %v4256 = vsub.f32 1.0, %v4255
      %v4257 = vmul.f32 %v4254, %v4256
      %v4258 = vadd.f32 %v4254, %v4257
      %vm4259 = vweird.f32 %v4247
      %vm4260 = vweird.f32 %v4254
      %vm4261 = vmor %vm4259, %vm4260
      %v4262 = vsel %vm4261, %v4254, %v4258
      %v4263 = vand.u32 2147483647, %v4247
      %vm4264 = vcmp.eq.f32.partialorder %v4263, 8.507059e+37
      %v4265 = vand.u32 %v4247, 2147483648
      %v4266 = vor.u32 1.1754944e-38, %v4265
      %v4267 = vsel %vm4264, %v4266, %v4262
      %v4268 = vmul.f32 %v4239, %v4267
      %v4269 = vrcp.pop %v4252
      %v4270 = vmul.f32 %v4252, %v4269
      %v4271 = vsub.f32 1.0, %v4270
      %v4272 = vmul.f32 %v4269, %v4271
      %v4273 = vadd.f32 %v4269, %v4272
      %vm4274 = vweird.f32 %v4252
      %vm4275 = vweird.f32 %v4269
      %vm4276 = vmor %vm4274, %vm4275
      %v4277 = vsel %vm4276, %v4269, %v4273
      %v4278 = vand.u32 2147483647, %v4252
      %vm4279 = vcmp.eq.f32.partialorder %v4278, 8.507059e+37
      %v4280 = vand.u32 %v4252, 2147483648
      %v4281 = vor.u32 1.1754944e-38, %v4280
      %v4282 = vsel %vm4279, %v4281, %v4277
      %v4283 = vmul.f32 %v4242, %v4282
      %4284 = vset.pattern.permute.xlu0 22
      %4285 = vperm.xlu0 %4284, %v2916
      %v4286 = vpop.permute.xlu0 %4285
      %4288 = vset.pattern.permute.xlu0 22
      %4289 = vperm.xlu0 %4288, %v2919
      %v4290 = vpop.permute.xlu0 %4289
      %v4292 = vperm.slane %v3025, 6
      %v4293 = vmul.f32 %v4286, %v4292
      %v4294 = vmul.f32 %v4290, %v4292
      %4295 = vset.pattern.permute.xlu0 23
      %4296 = vperm.xlu0 %4295, %v2916
      %v4297 = vpop.permute.xlu0 %4296
      %4299 = vset.pattern.permute.xlu0 23
      %4300 = vperm.xlu0 %4299, %v2919
      %v4301 = vpop.permute.xlu0 %4300
      %v4303 = vperm.slane %v3025, 7
      %v4304 = vmul.f32 %v4297, %v4303
      %v4305 = vmul.f32 %v4301, %v4303
      %v4306 = vadd.f32 %v4293, %v4304
      %v4307 = vadd.f32 %v4294, %v4305
      %v4308 = vmul.f32 %v4306, 0.70710677
      %v4309 = vmul.f32 %v4307, 0.70710677
      %v4310 = vsel %vm2512, %v4308, -inf
      %4311 = vmax.xlane.f32.xlu0 %v4310
      %v4312 = vpop.xlane.xlu0 %4311
      %v4313 = vsel %vm2512, %v4309, -inf
      %4314 = vmax.xlane.f32.xlu0 %v4313
      %v4315 = vpop.xlane.xlu0 %4314
      %v4316 = vsub.f32 %v4308, %v4312
      %v4317 = vsub.f32 %v4309, %v4315
      %v4318 = vmul.f32 %v4316, 1.442695
      %v4319 = vpow.pop %v4318
      %v4320 = vmul.f32 %v4317, 1.442695
      %v4321 = vpow.pop %v4320
      %v4322 = vrot.slane %v3037, 6
      %v4324 = vsel %vm604, %v4322, 1.0
      %v4326 = vsel %vm2512, %v4319, 0
      %v4329 = vsel %vm2512, %v4321, 0
      %v4332 = vsel %vm2512, %v4324, 0
      %4334 = vmatpush.xpose.msra.mxu0 0.0
      %4335 = vmatpush.xpose.msra.mxu0 0.0
      %4336 = vmatpush.xpose.msra.mxu0 0.0
      %4337 = vmatpush.xpose.msra.mxu0 0.0
      %4338 = vmatpush.xpose.msra.mxu0 0.0
      %4339 = vmatpush.xpose.msra.mxu0 0.0
      %4340 = vmatpush.xpose.msra.mxu0 0.0
      %4341 = vmatpush.xpose.msra.mxu0 0.0
      %4342 = vmatpush.xpose.msra.mxu0 0.0
      %4343 = vmatpush.xpose.msra.mxu0 0.0
      %4344 = vmatpush.xpose.msra.mxu0 0.0
      %4345 = vmatpush.xpose.msra.mxu0 0.0
      %4346 = vmatpush.xpose.msra.mxu0 0.0
      %4347 = vmatpush.xpose.msra.mxu0 0.0
      %4348 = vmatpush.xpose.msra.mxu0 0.0
      %4349 = vmatpush.xpose.msra.mxu0 %v4332
      %4350 = vmatmul.f32.gmra.mxu0 %v4326
      %v4351 = vpop.f32.mrf.mxu0
      %v4352 = vadd.f32 0.0, %v4351
      %4353 = vmatmul.f32.gmra.mxu0 %v4329
      %v4354 = vpop.f32.mrf.mxu0
      %v4355 = vadd.f32 0.0, %v4354
      %4356 = vdwg.mxu0
      %4358 = vset.pattern.permute.xlu0 2
      %4359 = vperm.xlu0 %4358, %v4352
      %v4360 = vpop.permute.xlu0 %4359
      %4363 = vset.pattern.permute.xlu0 2
      %4364 = vperm.xlu0 %4363, %v4355
      %v4365 = vpop.permute.xlu0 %4364
      %v4367 = vrcp.pop %v4360
      %v4368 = vmul.f32 %v4360, %v4367
      %v4369 = vsub.f32 1.0, %v4368
      %v4370 = vmul.f32 %v4367, %v4369
      %v4371 = vadd.f32 %v4367, %v4370
      %vm4372 = vweird.f32 %v4360
      %vm4373 = vweird.f32 %v4367
      %vm4374 = vmor %vm4372, %vm4373
      %v4375 = vsel %vm4374, %v4367, %v4371
      %v4376 = vand.u32 2147483647, %v4360
      %vm4377 = vcmp.eq.f32.partialorder %v4376, 8.507059e+37
      %v4378 = vand.u32 %v4360, 2147483648
      %v4379 = vor.u32 1.1754944e-38, %v4378
      %v4380 = vsel %vm4377, %v4379, %v4375
      %v4381 = vmul.f32 %v4352, %v4380
      %v4382 = vrcp.pop %v4365
      %v4383 = vmul.f32 %v4365, %v4382
      %v4384 = vsub.f32 1.0, %v4383
      %v4385 = vmul.f32 %v4382, %v4384
      %v4386 = vadd.f32 %v4382, %v4385
      %vm4387 = vweird.f32 %v4365
      %vm4388 = vweird.f32 %v4382
      %vm4389 = vmor %vm4387, %vm4388
      %v4390 = vsel %vm4389, %v4382, %v4386
      %v4391 = vand.u32 2147483647, %v4365
      %vm4392 = vcmp.eq.f32.partialorder %v4391, 8.507059e+37
      %v4393 = vand.u32 %v4365, 2147483648
      %v4394 = vor.u32 1.1754944e-38, %v4393
      %v4395 = vsel %vm4392, %v4394, %v4390
      %v4396 = vmul.f32 %v4355, %v4395
      %4397 = vset.pattern.permute.xlu0 24
      %4398 = vperm.xlu0 %4397, %v2916
      %v4399 = vpop.permute.xlu0 %4398
      %4401 = vset.pattern.permute.xlu0 24
      %4402 = vperm.xlu0 %4401, %v2919
      %v4403 = vpop.permute.xlu0 %4402
      %v4405 = vperm.slane %v3028, 0
      %v4406 = vmul.f32 %v4399, %v4405
      %v4407 = vmul.f32 %v4403, %v4405
      %4408 = vset.pattern.permute.xlu0 25
      %4409 = vperm.xlu0 %4408, %v2916
      %v4410 = vpop.permute.xlu0 %4409
      %4412 = vset.pattern.permute.xlu0 25
      %4413 = vperm.xlu0 %4412, %v2919
      %v4414 = vpop.permute.xlu0 %4413
      %v4416 = vperm.slane %v3028, 1
      %v4417 = vmul.f32 %v4410, %v4416
      %v4418 = vmul.f32 %v4414, %v4416
      %v4419 = vadd.f32 %v4406, %v4417
      %v4420 = vadd.f32 %v4407, %v4418
      %v4421 = vmul.f32 %v4419, 0.70710677
      %v4422 = vmul.f32 %v4420, 0.70710677
      %v4423 = vsel %vm2512, %v4421, -inf
      %4424 = vmax.xlane.f32.xlu0 %v4423
      %v4425 = vpop.xlane.xlu0 %4424
      %v4426 = vsel %vm2512, %v4422, -inf
      %4427 = vmax.xlane.f32.xlu0 %v4426
      %v4428 = vpop.xlane.xlu0 %4427
      %v4429 = vsub.f32 %v4421, %v4425
      %v4430 = vsub.f32 %v4422, %v4428
      %v4431 = vmul.f32 %v4429, 1.442695
      %v4432 = vpow.pop %v4431
      %v4433 = vmul.f32 %v4430, 1.442695
      %v4434 = vpow.pop %v4433
      %v4435 = vsel %vm604, %v3040, 1.0
      %v4437 = vsel %vm2512, %v4432, 0
      %v4440 = vsel %vm2512, %v4434, 0
      %v4443 = vsel %vm2512, %v4435, 0
      %4445 = vmatpush.xpose.msra.mxu0 0.0
      %4446 = vmatpush.xpose.msra.mxu0 0.0
      %4447 = vmatpush.xpose.msra.mxu0 0.0
      %4448 = vmatpush.xpose.msra.mxu0 0.0
      %4449 = vmatpush.xpose.msra.mxu0 0.0
      %4450 = vmatpush.xpose.msra.mxu0 0.0
      %4451 = vmatpush.xpose.msra.mxu0 0.0
      %4452 = vmatpush.xpose.msra.mxu0 0.0
      %4453 = vmatpush.xpose.msra.mxu0 0.0
      %4454 = vmatpush.xpose.msra.mxu0 0.0
      %4455 = vmatpush.xpose.msra.mxu0 0.0
      %4456 = vmatpush.xpose.msra.mxu0 0.0
      %4457 = vmatpush.xpose.msra.mxu0 0.0
      %4458 = vmatpush.xpose.msra.mxu0 0.0
      %4459 = vmatpush.xpose.msra.mxu0 0.0
      %4460 = vmatpush.xpose.msra.mxu0 %v4443
      %4461 = vmatmul.f32.gmra.mxu0 %v4437
      %v4462 = vpop.f32.mrf.mxu0
      %v4463 = vadd.f32 0.0, %v4462
      %4464 = vmatmul.f32.gmra.mxu0 %v4440
      %v4465 = vpop.f32.mrf.mxu0
      %v4466 = vadd.f32 0.0, %v4465
      %4467 = vdwg.mxu0
      %4469 = vset.pattern.permute.xlu0 2
      %4470 = vperm.xlu0 %4469, %v4463
      %v4471 = vpop.permute.xlu0 %4470
      %4474 = vset.pattern.permute.xlu0 2
      %4475 = vperm.xlu0 %4474, %v4466
      %v4476 = vpop.permute.xlu0 %4475
      %v4478 = vrcp.pop %v4471
      %v4479 = vmul.f32 %v4471, %v4478
      %v4480 = vsub.f32 1.0, %v4479
      %v4481 = vmul.f32 %v4478, %v4480
      %v4482 = vadd.f32 %v4478, %v4481
      %vm4483 = vweird.f32 %v4471
      %vm4484 = vweird.f32 %v4478
      %vm4485 = vmor %vm4483, %vm4484
      %v4486 = vsel %vm4485, %v4478, %v4482
      %v4487 = vand.u32 2147483647, %v4471
      %vm4488 = vcmp.eq.f32.partialorder %v4487, 8.507059e+37
      %v4489 = vand.u32 %v4471, 2147483648
      %v4490 = vor.u32 1.1754944e-38, %v4489
      %v4491 = vsel %vm4488, %v4490, %v4486
      %v4492 = vmul.f32 %v4463, %v4491
      %v4493 = vrcp.pop %v4476
      %v4494 = vmul.f32 %v4476, %v4493
      %v4495 = vsub.f32 1.0, %v4494
      %v4496 = vmul.f32 %v4493, %v4495
      %v4497 = vadd.f32 %v4493, %v4496
      %vm4498 = vweird.f32 %v4476
      %vm4499 = vweird.f32 %v4493
      %vm4500 = vmor %vm4498, %vm4499
      %v4501 = vsel %vm4500, %v4493, %v4497
      %v4502 = vand.u32 2147483647, %v4476
      %vm4503 = vcmp.eq.f32.partialorder %v4502, 8.507059e+37
      %v4504 = vand.u32 %v4476, 2147483648
      %v4505 = vor.u32 1.1754944e-38, %v4504
      %v4506 = vsel %vm4503, %v4505, %v4501
      %v4507 = vmul.f32 %v4466, %v4506
      %4508 = vset.pattern.permute.xlu0 26
      %4509 = vperm.xlu0 %4508, %v2916
      %v4510 = vpop.permute.xlu0 %4509
      %4512 = vset.pattern.permute.xlu0 26
      %4513 = vperm.xlu0 %4512, %v2919
      %v4514 = vpop.permute.xlu0 %4513
      %v4516 = vperm.slane %v3028, 2
      %v4517 = vmul.f32 %v4510, %v4516
      %v4518 = vmul.f32 %v4514, %v4516
      %4519 = vset.pattern.permute.xlu0 27
      %4520 = vperm.xlu0 %4519, %v2916
      %v4521 = vpop.permute.xlu0 %4520
      %4523 = vset.pattern.permute.xlu0 27
      %4524 = vperm.xlu0 %4523, %v2919
      %v4525 = vpop.permute.xlu0 %4524
      %v4527 = vperm.slane %v3028, 3
      %v4528 = vmul.f32 %v4521, %v4527
      %v4529 = vmul.f32 %v4525, %v4527
      %v4530 = vadd.f32 %v4517, %v4528
      %v4531 = vadd.f32 %v4518, %v4529
      %v4532 = vmul.f32 %v4530, 0.70710677
      %v4533 = vmul.f32 %v4531, 0.70710677
      %v4534 = vsel %vm2512, %v4532, -inf
      %4535 = vmax.xlane.f32.xlu0 %v4534
      %v4536 = vpop.xlane.xlu0 %4535
      %v4537 = vsel %vm2512, %v4533, -inf
      %4538 = vmax.xlane.f32.xlu0 %v4537
      %v4539 = vpop.xlane.xlu0 %4538
      %v4540 = vsub.f32 %v4532, %v4536
      %v4541 = vsub.f32 %v4533, %v4539
      %v4542 = vmul.f32 %v4540, 1.442695
      %v4543 = vpow.pop %v4542
      %v4544 = vmul.f32 %v4541, 1.442695
      %v4545 = vpow.pop %v4544
      %v4547 = vrot.slane %v3040, 2
      %v4549 = vsel %vm604, %v4547, 1.0
      %v4551 = vsel %vm2512, %v4543, 0
      %v4554 = vsel %vm2512, %v4545, 0
      %v4557 = vsel %vm2512, %v4549, 0
      %4559 = vmatpush.xpose.msra.mxu0 0.0
      %4560 = vmatpush.xpose.msra.mxu0 0.0
      %4561 = vmatpush.xpose.msra.mxu0 0.0
      %4562 = vmatpush.xpose.msra.mxu0 0.0
      %4563 = vmatpush.xpose.msra.mxu0 0.0
      %4564 = vmatpush.xpose.msra.mxu0 0.0
      %4565 = vmatpush.xpose.msra.mxu0 0.0
      %4566 = vmatpush.xpose.msra.mxu0 0.0
      %4567 = vmatpush.xpose.msra.mxu0 0.0
      %4568 = vmatpush.xpose.msra.mxu0 0.0
      %4569 = vmatpush.xpose.msra.mxu0 0.0
      %4570 = vmatpush.xpose.msra.mxu0 0.0
      %4571 = vmatpush.xpose.msra.mxu0 0.0
      %4572 = vmatpush.xpose.msra.mxu0 0.0
      %4573 = vmatpush.xpose.msra.mxu0 0.0
      %4574 = vmatpush.xpose.msra.mxu0 %v4557
      %4575 = vmatmul.f32.gmra.mxu0 %v4551
      %v4576 = vpop.f32.mrf.mxu0
      %v4577 = vadd.f32 0.0, %v4576
      %4578 = vmatmul.f32.gmra.mxu0 %v4554
      %v4579 = vpop.f32.mrf.mxu0
      %v4580 = vadd.f32 0.0, %v4579
      %4581 = vdwg.mxu0
      %4583 = vset.pattern.permute.xlu0 2
      %4584 = vperm.xlu0 %4583, %v4577
      %v4585 = vpop.permute.xlu0 %4584
      %4588 = vset.pattern.permute.xlu0 2
      %4589 = vperm.xlu0 %4588, %v4580
      %v4590 = vpop.permute.xlu0 %4589
      %v4592 = vrcp.pop %v4585
      %v4593 = vmul.f32 %v4585, %v4592
      %v4594 = vsub.f32 1.0, %v4593
      %v4595 = vmul.f32 %v4592, %v4594
      %v4596 = vadd.f32 %v4592, %v4595
      %vm4597 = vweird.f32 %v4585
      %vm4598 = vweird.f32 %v4592
      %vm4599 = vmor %vm4597, %vm4598
      %v4600 = vsel %vm4599, %v4592, %v4596
      %v4601 = vand.u32 2147483647, %v4585
      %vm4602 = vcmp.eq.f32.partialorder %v4601, 8.507059e+37
      %v4603 = vand.u32 %v4585, 2147483648
      %v4604 = vor.u32 1.1754944e-38, %v4603
      %v4605 = vsel %vm4602, %v4604, %v4600
      %v4606 = vmul.f32 %v4577, %v4605
      %v4607 = vrcp.pop %v4590
      %v4608 = vmul.f32 %v4590, %v4607
      %v4609 = vsub.f32 1.0, %v4608
      %v4610 = vmul.f32 %v4607, %v4609
      %v4611 = vadd.f32 %v4607, %v4610
      %vm4612 = vweird.f32 %v4590
      %vm4613 = vweird.f32 %v4607
      %vm4614 = vmor %vm4612, %vm4613
      %v4615 = vsel %vm4614, %v4607, %v4611
      %v4616 = vand.u32 2147483647, %v4590
      %vm4617 = vcmp.eq.f32.partialorder %v4616, 8.507059e+37
      %v4618 = vand.u32 %v4590, 2147483648
      %v4619 = vor.u32 1.1754944e-38, %v4618
      %v4620 = vsel %vm4617, %v4619, %v4615
      %v4621 = vmul.f32 %v4580, %v4620
      %4622 = vset.pattern.permute.xlu0 28
      %4623 = vperm.xlu0 %4622, %v2916
      %v4624 = vpop.permute.xlu0 %4623
      %4626 = vset.pattern.permute.xlu0 28
      %4627 = vperm.xlu0 %4626, %v2919
      %v4628 = vpop.permute.xlu0 %4627
      %v4630 = vperm.slane %v3028, 4
      %v4631 = vmul.f32 %v4624, %v4630
      %v4632 = vmul.f32 %v4628, %v4630
      %4633 = vset.pattern.permute.xlu0 29
      %4634 = vperm.xlu0 %4633, %v2916
      %v4635 = vpop.permute.xlu0 %4634
      %4637 = vset.pattern.permute.xlu0 29
      %4638 = vperm.xlu0 %4637, %v2919
      %v4639 = vpop.permute.xlu0 %4638
      %v4641 = vperm.slane %v3028, 5
      %v4642 = vmul.f32 %v4635, %v4641
      %v4643 = vmul.f32 %v4639, %v4641
      %v4644 = vadd.f32 %v4631, %v4642
      %v4645 = vadd.f32 %v4632, %v4643
      %v4646 = vmul.f32 %v4644, 0.70710677
      %v4647 = vmul.f32 %v4645, 0.70710677
      %v4648 = vsel %vm2512, %v4646, -inf
      %4649 = vmax.xlane.f32.xlu0 %v4648
      %v4650 = vpop.xlane.xlu0 %4649
      %v4651 = vsel %vm2512, %v4647, -inf
      %4652 = vmax.xlane.f32.xlu0 %v4651
      %v4653 = vpop.xlane.xlu0 %4652
      %v4654 = vsub.f32 %v4646, %v4650
      %v4655 = vsub.f32 %v4647, %v4653
      %v4656 = vmul.f32 %v4654, 1.442695
      %v4657 = vpow.pop %v4656
      %v4658 = vmul.f32 %v4655, 1.442695
      %v4659 = vpow.pop %v4658
      %v4660 = vrot.slane %v3040, 4
      %v4662 = vsel %vm604, %v4660, 1.0
      %v4664 = vsel %vm2512, %v4657, 0
      %v4667 = vsel %vm2512, %v4659, 0
      %v4670 = vsel %vm2512, %v4662, 0
      %4672 = vmatpush.xpose.msra.mxu0 0.0
      %4673 = vmatpush.xpose.msra.mxu0 0.0
      %4674 = vmatpush.xpose.msra.mxu0 0.0
      %4675 = vmatpush.xpose.msra.mxu0 0.0
      %4676 = vmatpush.xpose.msra.mxu0 0.0
      %4677 = vmatpush.xpose.msra.mxu0 0.0
      %4678 = vmatpush.xpose.msra.mxu0 0.0
      %4679 = vmatpush.xpose.msra.mxu0 0.0
      %4680 = vmatpush.xpose.msra.mxu0 0.0
      %4681 = vmatpush.xpose.msra.mxu0 0.0
      %4682 = vmatpush.xpose.msra.mxu0 0.0
      %4683 = vmatpush.xpose.msra.mxu0 0.0
      %4684 = vmatpush.xpose.msra.mxu0 0.0
      %4685 = vmatpush.xpose.msra.mxu0 0.0
      %4686 = vmatpush.xpose.msra.mxu0 0.0
      %4687 = vmatpush.xpose.msra.mxu0 %v4670
      %4688 = vmatmul.f32.gmra.mxu0 %v4664
      %v4689 = vpop.f32.mrf.mxu0
      %v4690 = vadd.f32 0.0, %v4689
      %4691 = vmatmul.f32.gmra.mxu0 %v4667
      %v4692 = vpop.f32.mrf.mxu0
      %v4693 = vadd.f32 0.0, %v4692
      %4694 = vdwg.mxu0
      %4696 = vset.pattern.permute.xlu0 2
      %4697 = vperm.xlu0 %4696, %v4690
      %v4698 = vpop.permute.xlu0 %4697
      %4701 = vset.pattern.permute.xlu0 2
      %4702 = vperm.xlu0 %4701, %v4693
      %v4703 = vpop.permute.xlu0 %4702
      %v4705 = vrcp.pop %v4698
      %v4706 = vmul.f32 %v4698, %v4705
      %v4707 = vsub.f32 1.0, %v4706
      %v4708 = vmul.f32 %v4705, %v4707
      %v4709 = vadd.f32 %v4705, %v4708
      %vm4710 = vweird.f32 %v4698
      %vm4711 = vweird.f32 %v4705
      %vm4712 = vmor %vm4710, %vm4711
      %v4713 = vsel %vm4712, %v4705, %v4709
      %v4714 = vand.u32 2147483647, %v4698
      %vm4715 = vcmp.eq.f32.partialorder %v4714, 8.507059e+37
      %v4716 = vand.u32 %v4698, 2147483648
      %v4717 = vor.u32 1.1754944e-38, %v4716
      %v4718 = vsel %vm4715, %v4717, %v4713
      %v4719 = vmul.f32 %v4690, %v4718
      %v4720 = vrcp.pop %v4703
      %v4721 = vmul.f32 %v4703, %v4720
      %v4722 = vsub.f32 1.0, %v4721
      %v4723 = vmul.f32 %v4720, %v4722
      %v4724 = vadd.f32 %v4720, %v4723
      %vm4725 = vweird.f32 %v4703
      %vm4726 = vweird.f32 %v4720
      %vm4727 = vmor %vm4725, %vm4726
      %v4728 = vsel %vm4727, %v4720, %v4724
      %v4729 = vand.u32 2147483647, %v4703
      %vm4730 = vcmp.eq.f32.partialorder %v4729, 8.507059e+37
      %v4731 = vand.u32 %v4703, 2147483648
      %v4732 = vor.u32 1.1754944e-38, %v4731
      %v4733 = vsel %vm4730, %v4732, %v4728
      %v4734 = vmul.f32 %v4693, %v4733
      %4735 = vset.pattern.permute.xlu0 30
      %4736 = vperm.xlu0 %4735, %v2916
      %v4737 = vpop.permute.xlu0 %4736
      %4739 = vset.pattern.permute.xlu0 30
      %4740 = vperm.xlu0 %4739, %v2919
      %v4741 = vpop.permute.xlu0 %4740
      %v4743 = vperm.slane %v3028, 6
      %v4744 = vmul.f32 %v4737, %v4743
      %v4745 = vmul.f32 %v4741, %v4743
      %4746 = vset.pattern.permute.xlu0 31
      %4747 = vperm.xlu0 %4746, %v2916
      %v4748 = vpop.permute.xlu0 %4747
      %4750 = vset.pattern.permute.xlu0 31
      %4751 = vperm.xlu0 %4750, %v2919
      %v4752 = vpop.permute.xlu0 %4751
      %v4754 = vperm.slane %v3028, 7
      %v4755 = vmul.f32 %v4748, %v4754
      %v4756 = vmul.f32 %v4752, %v4754
      %v4757 = vadd.f32 %v4744, %v4755
      %v4758 = vadd.f32 %v4745, %v4756
      %v4759 = vmul.f32 %v4757, 0.70710677
      %v4760 = vmul.f32 %v4758, 0.70710677
      %v4761 = vsel %vm2512, %v4759, -inf
      %4762 = vmax.xlane.f32.xlu0 %v4761
      %v4763 = vpop.xlane.xlu0 %4762
      %v4764 = vsel %vm2512, %v4760, -inf
      %4765 = vmax.xlane.f32.xlu0 %v4764
      %v4766 = vpop.xlane.xlu0 %4765
      %v4767 = vsub.f32 %v4759, %v4763
      %v4768 = vsub.f32 %v4760, %v4766
      %v4769 = vmul.f32 %v4767, 1.442695
      %v4770 = vpow.pop %v4769
      %v4771 = vmul.f32 %v4768, 1.442695
      %v4772 = vpow.pop %v4771
      %v4773 = vrot.slane %v3040, 6
      %v4775 = vsel %vm604, %v4773, 1.0
      %v4777 = vsel %vm2512, %v4770, 0
      %v4780 = vsel %vm2512, %v4772, 0
      %v4783 = vsel %vm2512, %v4775, 0
      %4785 = vmatpush.xpose.msra.mxu0 0.0
      %4786 = vmatpush.xpose.msra.mxu0 0.0
      %4787 = vmatpush.xpose.msra.mxu0 0.0
      %4788 = vmatpush.xpose.msra.mxu0 0.0
      %4789 = vmatpush.xpose.msra.mxu0 0.0
      %4790 = vmatpush.xpose.msra.mxu0 0.0
      %4791 = vmatpush.xpose.msra.mxu0 0.0
      %4792 = vmatpush.xpose.msra.mxu0 0.0
      %4793 = vmatpush.xpose.msra.mxu0 0.0
      %4794 = vmatpush.xpose.msra.mxu0 0.0
      %4795 = vmatpush.xpose.msra.mxu0 0.0
      %4796 = vmatpush.xpose.msra.mxu0 0.0
      %4797 = vmatpush.xpose.msra.mxu0 0.0
      %4798 = vmatpush.xpose.msra.mxu0 0.0
      %4799 = vmatpush.xpose.msra.mxu0 0.0
      %4800 = vmatpush.xpose.msra.mxu0 %v4783
      %4801 = vmatmul.f32.gmra.mxu0 %v4777
      %v4802 = vpop.f32.mrf.mxu0
      %v4803 = vadd.f32 0.0, %v4802
      %4804 = vmatmul.f32.gmra.mxu0 %v4780
      %v4805 = vpop.f32.mrf.mxu0
      %v4806 = vadd.f32 0.0, %v4805
      %4807 = vdwg.mxu0
      %4809 = vset.pattern.permute.xlu0 2
      %4810 = vperm.xlu0 %4809, %v4803
      %v4811 = vpop.permute.xlu0 %4810
      %4814 = vset.pattern.permute.xlu0 2
      %4815 = vperm.xlu0 %4814, %v4806
      %v4816 = vpop.permute.xlu0 %4815
      %v4818 = vrcp.pop %v4811
      %v4819 = vmul.f32 %v4811, %v4818
      %v4820 = vsub.f32 1.0, %v4819
      %v4821 = vmul.f32 %v4818, %v4820
      %v4822 = vadd.f32 %v4818, %v4821
      %vm4823 = vweird.f32 %v4811
      %vm4824 = vweird.f32 %v4818
      %vm4825 = vmor %vm4823, %vm4824
      %v4826 = vsel %vm4825, %v4818, %v4822
      %v4827 = vand.u32 2147483647, %v4811
      %vm4828 = vcmp.eq.f32.partialorder %v4827, 8.507059e+37
      %v4829 = vand.u32 %v4811, 2147483648
      %v4830 = vor.u32 1.1754944e-38, %v4829
      %v4831 = vsel %vm4828, %v4830, %v4826
      %v4832 = vmul.f32 %v4803, %v4831
      %v4833 = vrcp.pop %v4816
      %v4834 = vmul.f32 %v4816, %v4833
      %v4835 = vsub.f32 1.0, %v4834
      %v4836 = vmul.f32 %v4833, %v4835
      %v4837 = vadd.f32 %v4833, %v4836
      %vm4838 = vweird.f32 %v4816
      %vm4839 = vweird.f32 %v4833
      %vm4840 = vmor %vm4838, %vm4839
      %v4841 = vsel %vm4840, %v4833, %v4837
      %v4842 = vand.u32 2147483647, %v4816
      %vm4843 = vcmp.eq.f32.partialorder %v4842, 8.507059e+37
      %v4844 = vand.u32 %v4816, 2147483648
      %v4845 = vor.u32 1.1754944e-38, %v4844
      %v4846 = vsel %vm4843, %v4845, %v4841
      %v4847 = vmul.f32 %v4806, %v4846
      %4850 = vrot.lane.b32.xlu0 %v3253, 2
      %v4851 = vpop.permute.xlu0 %4850
      %4852 = vrot.lane.b32.xlu0 %v3268, 2
      %v4853 = vpop.permute.xlu0 %4852
      %4858 = vrot.lane.b32.xlu0 %v3366, 4
      %v4859 = vpop.permute.xlu0 %4858
      %4860 = vrot.lane.b32.xlu0 %v3381, 4
      %v4861 = vpop.permute.xlu0 %4860
      %4866 = vrot.lane.b32.xlu0 %v3479, 6
      %v4867 = vpop.permute.xlu0 %4866
      %4868 = vrot.lane.b32.xlu0 %v3494, 6
      %v4869 = vpop.permute.xlu0 %4868
      %4874 = vrot.lane.b32.xlu0 %v3590, 8
      %v4875 = vpop.permute.xlu0 %4874
      %4876 = vrot.lane.b32.xlu0 %v3605, 8
      %v4877 = vpop.permute.xlu0 %4876
      %4882 = vrot.lane.b32.xlu0 %v3704, 10
      %v4883 = vpop.permute.xlu0 %4882
      %4884 = vrot.lane.b32.xlu0 %v3719, 10
      %v4885 = vpop.permute.xlu0 %4884
      %4890 = vrot.lane.b32.xlu0 %v3817, 12
      %v4891 = vpop.permute.xlu0 %4890
      %4892 = vrot.lane.b32.xlu0 %v3832, 12
      %v4893 = vpop.permute.xlu0 %4892
      %4898 = vrot.lane.b32.xlu0 %v3930, 14
      %v4899 = vpop.permute.xlu0 %4898
      %4900 = vrot.lane.b32.xlu0 %v3945, 14
      %v4901 = vpop.permute.xlu0 %4900
      %4906 = vrot.lane.b32.xlu0 %v4041, 16
      %v4907 = vpop.permute.xlu0 %4906
      %4908 = vrot.lane.b32.xlu0 %v4056, 16
      %v4909 = vpop.permute.xlu0 %4908
      %4914 = vrot.lane.b32.xlu0 %v4155, 18
      %v4915 = vpop.permute.xlu0 %4914
      %4916 = vrot.lane.b32.xlu0 %v4170, 18
      %v4917 = vpop.permute.xlu0 %4916
      %4922 = vrot.lane.b32.xlu0 %v4268, 20
      %v4923 = vpop.permute.xlu0 %4922
      %4924 = vrot.lane.b32.xlu0 %v4283, 20
      %v4925 = vpop.permute.xlu0 %4924
      %4930 = vrot.lane.b32.xlu0 %v4381, 22
      %v4931 = vpop.permute.xlu0 %4930
      %4932 = vrot.lane.b32.xlu0 %v4396, 22
      %v4933 = vpop.permute.xlu0 %4932
      %4938 = vrot.lane.b32.xlu0 %v4492, 24
      %v4939 = vpop.permute.xlu0 %4938
      %4940 = vrot.lane.b32.xlu0 %v4507, 24
      %v4941 = vpop.permute.xlu0 %4940
      %4946 = vrot.lane.b32.xlu0 %v4606, 26
      %v4947 = vpop.permute.xlu0 %4946
      %4948 = vrot.lane.b32.xlu0 %v4621, 26
      %v4949 = vpop.permute.xlu0 %4948
      %4954 = vrot.lane.b32.xlu0 %v4719, 28
      %v4955 = vpop.permute.xlu0 %4954
      %4956 = vrot.lane.b32.xlu0 %v4734, 28
      %v4957 = vpop.permute.xlu0 %4956
      %4962 = vrot.lane.b32.xlu0 %v4832, 30
      %v4963 = vpop.permute.xlu0 %4962
      %4964 = vrot.lane.b32.xlu0 %v4847, 30
      %v4965 = vpop.permute.xlu0 %4964
      %v4968 = vsel %vm2491, %v3139, %v4851
      %v4969 = vsel %vm2491, %v3154, %v4853
      %v4970 = vsel %vm2494, %v4968, %v4859
      %v4971 = vsel %vm2494, %v4969, %v4861
      %v4972 = vsel %vm2497, %v4970, %v4867
      %v4973 = vsel %vm2497, %v4971, %v4869
      %v4974 = vsel %vm2500, %v4972, %v4875
      %v4975 = vsel %vm2500, %v4973, %v4877
      %v4976 = vsel %vm2503, %v4974, %v4883
      %v4977 = vsel %vm2503, %v4975, %v4885
      %v4978 = vsel %vm2506, %v4976, %v4891
      %v4979 = vsel %vm2506, %v4977, %v4893
      %v4980 = vsel %vm2509, %v4978, %v4899
      %v4981 = vsel %vm2509, %v4979, %v4901
      %v4982 = vsel %vm2512, %v4980, %v4907
      %v4983 = vsel %vm2512, %v4981, %v4909
      %v4984 = vsel %vm2515, %v4982, %v4915
      %v4985 = vsel %vm2515, %v4983, %v4917
      %v4986 = vsel %vm2518, %v4984, %v4923
      %v4987 = vsel %vm2518, %v4985, %v4925
      %v4988 = vsel %vm2521, %v4986, %v4931
      %v4989 = vsel %vm2521, %v4987, %v4933
      %v4990 = vsel %vm2524, %v4988, %v4939
      %v4991 = vsel %vm2524, %v4989, %v4941
      %v4992 = vsel %vm2527, %v4990, %v4947
      %v4993 = vsel %vm2527, %v4991, %v4949
      %v4994 = vsel %vm2530, %v4992, %v4955
      %v4995 = vsel %vm2530, %v4993, %v4957
      %v4996 = vsel %vm2533, %v4994, %v4963
      %v4997 = vsel %vm2533, %v4995, %v4965
      %v4998 = vld [vmem:[%s3 + $0x378] sm:$0xff]
      %v4999 = vld [vmem:[%s3 + $0x380] sm:$0xff]
      %v5000 = vld [vmem:[%s3 + $0x388] sm:$0xff]
      %v5001 = vld [vmem:[%s3 + $0x390] sm:$0xff]
      %v5002 = vld [vmem:[%s3 + $0x398] sm:$0x1]
      %v5003 = vperm.slane %v5002, 0
      %v5005 = vsel %vm317, %v4996, 0
      %v5008 = vsel %vm317, %v4997, 0
      %5010 = vmatpush.msra.mxu0 0.0
      %5011 = vmatpush.msra.mxu0 0.0
      %5012 = vmatpush.msra.mxu0 0.0
      %5013 = vmatpush.msra.mxu0 0.0
      %5014 = vmatpush.msra.mxu0 0.0
      %5015 = vmatpush.msra.mxu0 0.0
      %5016 = vmatpush.msra.mxu0 0.0
      %5017 = vmatpush.msra.mxu0 0.0
      %5018 = vmatpush.msra.mxu0 0.0
      %5019 = vmatpush.msra.mxu0 0.0
      %5020 = vmatpush.msra.mxu0 0.0
      %5021 = vmatpush.msra.mxu0 0.0
      %5022 = vmatpush.msra.mxu0 %v5001
      %5023 = vmatpush.msra.mxu0 %v5000
      %5024 = vmatpush.msra.mxu0 %v4999
      %5025 = vmatpush.msra.mxu0 %v4998
      %5026 = vmatmul.f32.gmra.mxu0 %v5005
      %v5027 = vpop.f32.mrf.mxu0
      %v5028 = vadd.f32 %v5003, %v5027
      %5029 = vmatmul.f32.gmra.mxu0 %v5008
      %v5030 = vpop.f32.mrf.mxu0
      %v5031 = vadd.f32 %v5003, %v5030
      %5032 = vdwg.mxu0
      %v5033 = vmul.f32 %v2740, %v5028
      %v5034 = vmul.f32 %v2743, %v5031
      %v5035 = vadd.f32 %v2652, %v5033
      %v5036 = vadd.f32 %v2653, %v5034
      %v5037 = vsel %vm317, %v5035, 0.0
      %5038 = vadd.xlane.f32.xlu0 %v5037
      %v5039 = vpop.xlane.xlu0 %5038
      %v5040 = vsel %vm317, %v5036, 0.0
      %5041 = vadd.xlane.f32.xlu0 %v5040
      %v5042 = vpop.xlane.xlu0 %5041
      %v5043 = vmul.f32 %v5039, %v2841
      %v5044 = vmul.f32 %v5042, %v2841
      %v5045 = vsub.f32 %v5035, %v5043
      %v5046 = vsub.f32 %v5036, %v5044
      %v5047 = vmul.f32 %v5045, %v5045
      %v5048 = vmul.f32 %v5046, %v5046
      %v5049 = vsel %vm317, %v5047, 0.0
      %5050 = vadd.xlane.f32.xlu0 %v5049
      %v5051 = vpop.xlane.xlu0 %5050
      %v5052 = vsel %vm317, %v5048, 0.0
      %5053 = vadd.xlane.f32.xlu0 %v5052
      %v5054 = vpop.xlane.xlu0 %5053
      %v5055 = vmul.f32 %v5051, %v2841
      %v5056 = vmul.f32 %v5054, %v2841
      %v5057 = vadd.f32 %v5055, 1e-06
      %v5058 = vadd.f32 %v5056, 1e-06
      %v5059 = vrsqrt.pop %v5057
      %v5060 = vmul.f32 %v5059, %v5057
      %v5061 = vmul.f32 %v5060, %v5059
      %v5062 = vmul.f32 0.5, %v5061
      %v5063 = vsub.f32 1.5, %v5062
      %v5064 = vmul.f32 %v5059, %v5063
      %vm5065 = vweird.f32 %v5057
      %vm5066 = vweird.f32 %v5059
      %vm5067 = vmor %vm5065, %vm5066
      %v5068 = vsel %vm5067, %v5059, %v5064
      %v5069 = vrsqrt.pop %v5058
      %v5070 = vmul.f32 %v5069, %v5058
      %v5071 = vmul.f32 %v5070, %v5069
      %v5072 = vmul.f32 0.5, %v5071
      %v5073 = vsub.f32 1.5, %v5072
      %v5074 = vmul.f32 %v5069, %v5073
      %vm5075 = vweird.f32 %v5058
      %vm5076 = vweird.f32 %v5069
      %vm5077 = vmor %vm5075, %vm5076
      %v5078 = vsel %vm5077, %v5069, %v5074
      %v5079 = vmul.f32 %v5045, %v5068
      %v5080 = vmul.f32 %v5046, %v5078
      %v5081 = vadd.f32 %v2796, 1.0
      %v5082 = vadd.f32 %v2799, 1.0
      %v5083 = vmul.f32 %v5079, %v5081
      %v5084 = vmul.f32 %v5080, %v5082
      %v5085 = vadd.f32 %v5083, %v2768
      %v5086 = vadd.f32 %v5084, %v2771
      %v5087 = vld [vmem:[%s3 + $0x3a0] sm:$0xff]
      %v5088 = vld [vmem:[%s3 + $0x3a8] sm:$0xff]
      %v5089 = vld [vmem:[%s3 + $0x3b0] sm:$0xff]
      %v5090 = vld [vmem:[%s3 + $0x3b8] sm:$0xff]
      %v5091 = vld [vmem:[%s3 + $0x3c0] sm:$0x1]
      %v5092 = vperm.slane %v5091, 0
      %v5094 = vsel %vm317, %v5085, 0
      %v5097 = vsel %vm317, %v5086, 0
      %5099 = vmatpush.msra.mxu0 0.0
      %5100 = vmatpush.msra.mxu0 0.0
      %5101 = vmatpush.msra.mxu0 0.0
      %5102 = vmatpush.msra.mxu0 0.0
      %5103 = vmatpush.msra.mxu0 0.0
      %5104 = vmatpush.msra.mxu0 0.0
      %5105 = vmatpush.msra.mxu0 0.0
      %5106 = vmatpush.msra.mxu0 0.0
      %5107 = vmatpush.msra.mxu0 0.0
      %5108 = vmatpush.msra.mxu0 0.0
      %5109 = vmatpush.msra.mxu0 0.0
      %5110 = vmatpush.msra.mxu0 0.0
      %5111 = vmatpush.msra.mxu0 %v5090
      %5112 = vmatpush.msra.mxu0 %v5089
      %5113 = vmatpush.msra.mxu0 %v5088
      %5114 = vmatpush.msra.mxu0 %v5087
      %5115 = vmatmul.f32.gmra.mxu0 %v5094
      %v5116 = vpop.f32.mrf.mxu0
      %v5117 = vadd.f32 %v5092, %v5116
      %5118 = vmatmul.f32.gmra.mxu0 %v5097
      %v5119 = vpop.f32.mrf.mxu0
      %v5120 = vadd.f32 %v5092, %v5119
      %5121 = vdwg.mxu0
      %v5122 = vmul.f32 %v5117, 0.5
      %v5123 = vmul.f32 %v5120, 0.5
      %v5124 = vmul.f32 %v5117, 0.044715
      %v5125 = vmul.f32 %v5120, 0.044715
      %v5126 = vmul.f32 %v5124, %v5117
      %v5127 = vmul.f32 %v5125, %v5120
      %v5128 = vmul.f32 %v5126, %v5117
      %v5129 = vmul.f32 %v5127, %v5120
      %v5130 = vadd.f32 %v5117, %v5128
      %v5131 = vadd.f32 %v5120, %v5129
      %v5132 = vmul.f32 %v5130, 0.7978846
      %v5133 = vmul.f32 %v5131, 0.7978846
      %v5134 = vtanh.pop %v5132
      %v5135 = vtanh.pop %v5133
      %v5136 = vadd.f32 %v5134, 1.0
      %v5137 = vadd.f32 %v5135, 1.0
      %v5138 = vmul.f32 %v5122, %v5136
      %v5139 = vmul.f32 %v5123, %v5137
      %v5140 = vld [vmem:[%s3 + $0x3c8] sm:$0xff]
      %v5141 = vld [vmem:[%s3 + $0x3d0] sm:$0xff]
      %v5142 = vld [vmem:[%s3 + $0x3d8] sm:$0xff]
      %v5143 = vld [vmem:[%s3 + $0x3e0] sm:$0xff]
      %v5144 = vld [vmem:[%s3 + $0x3e8] sm:$0xff]
      %v5145 = vld [vmem:[%s3 + $0x3f0] sm:$0xff]
      %v5146 = vld [vmem:[%s3 + $0x3f8] sm:$0xff]
      %v5147 = vld [vmem:[%s3 + $0x400] sm:$0xff]
      %v5148 = vld [vmem:[%s3 + $0x408] sm:$0xff]
      %v5149 = vld [vmem:[%s3 + $0x410] sm:$0xff]
      %v5150 = vld [vmem:[%s3 + $0x418] sm:$0xff]
      %v5151 = vld [vmem:[%s3 + $0x420] sm:$0xff]
      %v5152 = vld [vmem:[%s3 + $0x428] sm:$0xff]
      %v5153 = vld [vmem:[%s3 + $0x430] sm:$0xff]
      %v5154 = vld [vmem:[%s3 + $0x438] sm:$0xff]
      %v5155 = vld [vmem:[%s3 + $0x440] sm:$0xff]
      %v5156 = vld [vmem:[%s3 + $0x448] sm:$0x1]
      %v5157 = vperm.slane %v5156, 0
      %5158 = vmatpush.msra.mxu0 %v5155
      %5159 = vmatpush.msra.mxu0 %v5154
      %5160 = vmatpush.msra.mxu0 %v5153
      %5161 = vmatpush.msra.mxu0 %v5152
      %5162 = vmatpush.msra.mxu0 %v5151
      %5163 = vmatpush.msra.mxu0 %v5150
      %5164 = vmatpush.msra.mxu0 %v5149
      %5165 = vmatpush.msra.mxu0 %v5148
      %5166 = vmatpush.msra.mxu0 %v5147
      %5167 = vmatpush.msra.mxu0 %v5146
      %5168 = vmatpush.msra.mxu0 %v5145
      %5169 = vmatpush.msra.mxu0 %v5144
      %5170 = vmatpush.msra.mxu0 %v5143
      %5171 = vmatpush.msra.mxu0 %v5142
      %5172 = vmatpush.msra.mxu0 %v5141
      %5173 = vmatpush.msra.mxu0 %v5140
      %5174 = vmatmul.f32.gmra.mxu0 %v5138
      %v5175 = vpop.f32.mrf.mxu0
      %v5176 = vadd.f32 %v5157, %v5175
      %5177 = vmatmul.f32.gmra.mxu0 %v5139
      %v5178 = vpop.f32.mrf.mxu0
      %v5179 = vadd.f32 %v5157, %v5178
      %5180 = vdwg.mxu0
      %v5181 = vmul.f32 %v2824, %v5176
      %v5182 = vmul.f32 %v2827, %v5179
      %v5183 = vadd.f32 %v5035, %v5181
      %v5184 = vadd.f32 %v5036, %v5182
      %v5185 = vld [vmem:[%s3 + $0x510] sm:$0x3f]
      %v5186 = vld [vmem:[%s3 + $0x450] sm:$0xff]
      %v5187 = vld [vmem:[%s3 + $0x458] sm:$0xff]
      %v5188 = vld [vmem:[%s3 + $0x460] sm:$0xff]
      %v5189 = vld [vmem:[%s3 + $0x468] sm:$0xff]
      %v5190 = vperm.slane %v5185, 0
      %5191 = vmatpush.msra.mxu0 0.0
      %5192 = vmatpush.msra.mxu0 0.0
      %5193 = vmatpush.msra.mxu0 0.0
      %5194 = vmatpush.msra.mxu0 0.0
      %5195 = vmatpush.msra.mxu0 0.0
      %5196 = vmatpush.msra.mxu0 0.0
      %5197 = vmatpush.msra.mxu0 0.0
      %5198 = vmatpush.msra.mxu0 0.0
      %5199 = vmatpush.msra.mxu0 0.0
      %5200 = vmatpush.msra.mxu0 0.0
      %5201 = vmatpush.msra.mxu0 0.0
      %5202 = vmatpush.msra.mxu0 0.0
      %5203 = vmatpush.msra.mxu0 %v5189
      %5204 = vmatpush.msra.mxu0 %v5188
      %5205 = vmatpush.msra.mxu0 %v5187
      %5206 = vmatpush.msra.mxu0 %v5186
      %5207 = vmatmul.f32.gmra.mxu0 %v2661
      %v5208 = vpop.f32.mrf.mxu0
      %v5209 = vadd.f32 %v5190, %v5208
      %5210 = vmatmul.f32.gmra.mxu0 %v2664
      %v5211 = vpop.f32.mrf.mxu0
      %v5212 = vadd.f32 %v5190, %v5211
      %5213 = vdwg.mxu0
      %v5214 = vld [vmem:[%s3 + $0x470] sm:$0xff]
      %v5215 = vld [vmem:[%s3 + $0x478] sm:$0xff]
      %v5216 = vld [vmem:[%s3 + $0x480] sm:$0xff]
      %v5217 = vld [vmem:[%s3 + $0x488] sm:$0xff]
      %v5218 = vperm.slane %v5185, 1
      %5219 = vmatpush.msra.mxu0 0.0
      %5220 = vmatpush.msra.mxu0 0.0
      %5221 = vmatpush.msra.mxu0 0.0
      %5222 = vmatpush.msra.mxu0 0.0
      %5223 = vmatpush.msra.mxu0 0.0
      %5224 = vmatpush.msra.mxu0 0.0
      %5225 = vmatpush.msra.mxu0 0.0
      %5226 = vmatpush.msra.mxu0 0.0
      %5227 = vmatpush.msra.mxu0 0.0
      %5228 = vmatpush.msra.mxu0 0.0
      %5229 = vmatpush.msra.mxu0 0.0
      %5230 = vmatpush.msra.mxu0 0.0
      %5231 = vmatpush.msra.mxu0 %v5217
      %5232 = vmatpush.msra.mxu0 %v5216
      %5233 = vmatpush.msra.mxu0 %v5215
      %5234 = vmatpush.msra.mxu0 %v5214
      %5235 = vmatmul.f32.gmra.mxu0 %v2661
      %v5236 = vpop.f32.mrf.mxu0
      %v5237 = vadd.f32 %v5218, %v5236
      %5238 = vmatmul.f32.gmra.mxu0 %v2664
      %v5239 = vpop.f32.mrf.mxu0
      %v5240 = vadd.f32 %v5218, %v5239
      %5241 = vdwg.mxu0
      %v5242 = vld [vmem:[%s3 + $0x490] sm:$0xff]
      %v5243 = vld [vmem:[%s3 + $0x498] sm:$0xff]
      %v5244 = vld [vmem:[%s3 + $0x4a0] sm:$0xff]
      %v5245 = vld [vmem:[%s3 + $0x4a8] sm:$0xff]
      %v5246 = vperm.slane %v5185, 2
      %5247 = vmatpush.msra.mxu0 0.0
      %5248 = vmatpush.msra.mxu0 0.0
      %5249 = vmatpush.msra.mxu0 0.0
      %5250 = vmatpush.msra.mxu0 0.0
      %5251 = vmatpush.msra.mxu0 0.0
      %5252 = vmatpush.msra.mxu0 0.0
      %5253 = vmatpush.msra.mxu0 0.0
      %5254 = vmatpush.msra.mxu0 0.0
      %5255 = vmatpush.msra.mxu0 0.0
      %5256 = vmatpush.msra.mxu0 0.0
      %5257 = vmatpush.msra.mxu0 0.0
      %5258 = vmatpush.msra.mxu0 0.0
      %5259 = vmatpush.msra.mxu0 %v5245
      %5260 = vmatpush.msra.mxu0 %v5244
      %5261 = vmatpush.msra.mxu0 %v5243
      %5262 = vmatpush.msra.mxu0 %v5242
      %5263 = vmatmul.f32.gmra.mxu0 %v2661
      %v5264 = vpop.f32.mrf.mxu0
      %v5265 = vadd.f32 %v5246, %v5264
      %5266 = vmatmul.f32.gmra.mxu0 %v2664
      %v5267 = vpop.f32.mrf.mxu0
      %v5268 = vadd.f32 %v5246, %v5267
      %5269 = vdwg.mxu0
      %v5270 = vld [vmem:[%s3 + $0x4b0] sm:$0xff]
      %v5271 = vld [vmem:[%s3 + $0x4b8] sm:$0xff]
      %v5272 = vld [vmem:[%s3 + $0x4c0] sm:$0xff]
      %v5273 = vld [vmem:[%s3 + $0x4c8] sm:$0xff]
      %v5274 = vperm.slane %v5185, 3
      %5275 = vmatpush.msra.mxu0 0.0
      %5276 = vmatpush.msra.mxu0 0.0
      %5277 = vmatpush.msra.mxu0 0.0
      %5278 = vmatpush.msra.mxu0 0.0
      %5279 = vmatpush.msra.mxu0 0.0
      %5280 = vmatpush.msra.mxu0 0.0
      %5281 = vmatpush.msra.mxu0 0.0
      %5282 = vmatpush.msra.mxu0 0.0
      %5283 = vmatpush.msra.mxu0 0.0
      %5284 = vmatpush.msra.mxu0 0.0
      %5285 = vmatpush.msra.mxu0 0.0
      %5286 = vmatpush.msra.mxu0 0.0
      %5287 = vmatpush.msra.mxu0 %v5273
      %5288 = vmatpush.msra.mxu0 %v5272
      %5289 = vmatpush.msra.mxu0 %v5271
      %5290 = vmatpush.msra.mxu0 %v5270
      %5291 = vmatmul.f32.gmra.mxu0 %v2661
      %v5292 = vpop.f32.mrf.mxu0
      %v5293 = vadd.f32 %v5274, %v5292
      %5294 = vmatmul.f32.gmra.mxu0 %v2664
      %v5295 = vpop.f32.mrf.mxu0
      %v5296 = vadd.f32 %v5274, %v5295
      %5297 = vdwg.mxu0
      %v5298 = vld [vmem:[%s3 + $0x4d0] sm:$0xff]
      %v5299 = vld [vmem:[%s3 + $0x4d8] sm:$0xff]
      %v5300 = vld [vmem:[%s3 + $0x4e0] sm:$0xff]
      %v5301 = vld [vmem:[%s3 + $0x4e8] sm:$0xff]
      %v5302 = vperm.slane %v5185, 4
      %5303 = vmatpush.msra.mxu0 0.0
      %5304 = vmatpush.msra.mxu0 0.0
      %5305 = vmatpush.msra.mxu0 0.0
      %5306 = vmatpush.msra.mxu0 0.0
      %5307 = vmatpush.msra.mxu0 0.0
      %5308 = vmatpush.msra.mxu0 0.0
      %5309 = vmatpush.msra.mxu0 0.0
      %5310 = vmatpush.msra.mxu0 0.0
      %5311 = vmatpush.msra.mxu0 0.0
      %5312 = vmatpush.msra.mxu0 0.0
      %5313 = vmatpush.msra.mxu0 0.0
      %5314 = vmatpush.msra.mxu0 0.0
      %5315 = vmatpush.msra.mxu0 %v5301
      %5316 = vmatpush.msra.mxu0 %v5300
      %5317 = vmatpush.msra.mxu0 %v5299
      %5318 = vmatpush.msra.mxu0 %v5298
      %5319 = vmatmul.f32.gmra.mxu0 %v2661
      %v5320 = vpop.f32.mrf.mxu0
      %v5321 = vadd.f32 %v5302, %v5320
      %5322 = vmatmul.f32.gmra.mxu0 %v2664
      %v5323 = vpop.f32.mrf.mxu0
      %v5324 = vadd.f32 %v5302, %v5323
      %5325 = vdwg.mxu0
      %v5326 = vld [vmem:[%s3 + $0x4f0] sm:$0xff]
      %v5327 = vld [vmem:[%s3 + $0x4f8] sm:$0xff]
      %v5328 = vld [vmem:[%s3 + $0x500] sm:$0xff]
      %v5329 = vld [vmem:[%s3 + $0x508] sm:$0xff]
      %v5330 = vperm.slane %v5185, 5
      %5331 = vmatpush.msra.mxu0 0.0
      %5332 = vmatpush.msra.mxu0 0.0
      %5333 = vmatpush.msra.mxu0 0.0
      %5334 = vmatpush.msra.mxu0 0.0
      %5335 = vmatpush.msra.mxu0 0.0
      %5336 = vmatpush.msra.mxu0 0.0
      %5337 = vmatpush.msra.mxu0 0.0
      %5338 = vmatpush.msra.mxu0 0.0
      %5339 = vmatpush.msra.mxu0 0.0
      %5340 = vmatpush.msra.mxu0 0.0
      %5341 = vmatpush.msra.mxu0 0.0
      %5342 = vmatpush.msra.mxu0 0.0
      %5343 = vmatpush.msra.mxu0 %v5329
      %5344 = vmatpush.msra.mxu0 %v5328
      %5345 = vmatpush.msra.mxu0 %v5327
      %5346 = vmatpush.msra.mxu0 %v5326
      %5347 = vmatmul.f32.gmra.mxu0 %v2661
      %v5348 = vpop.f32.mrf.mxu0
      %v5349 = vadd.f32 %v5330, %v5348
      %5350 = vmatmul.f32.gmra.mxu0 %v2664
      %v5351 = vpop.f32.mrf.mxu0
      %v5352 = vadd.f32 %v5330, %v5351
      %5353 = vdwg.mxu0
      %v5354 = vsel %vm317, %v5183, 0.0
      %5355 = vadd.xlane.f32.xlu0 %v5354
      %v5356 = vpop.xlane.xlu0 %5355
      %v5357 = vsel %vm317, %v5184, 0.0
      %5358 = vadd.xlane.f32.xlu0 %v5357
      %v5359 = vpop.xlane.xlu0 %5358
      %v5360 = vmul.f32 %v5356, %v2841
      %v5361 = vmul.f32 %v5359, %v2841
      %v5362 = vsub.f32 %v5183, %v5360
      %v5363 = vsub.f32 %v5184, %v5361
      %v5364 = vmul.f32 %v5362, %v5362
      %v5365 = vmul.f32 %v5363, %v5363
      %v5366 = vsel %vm317, %v5364, 0.0
      %5367 = vadd.xlane.f32.xlu0 %v5366
      %v5368 = vpop.xlane.xlu0 %5367
      %v5369 = vsel %vm317, %v5365, 0.0
      %5370 = vadd.xlane.f32.xlu0 %v5369
      %v5371 = vpop.xlane.xlu0 %5370
      %v5372 = vmul.f32 %v5368, %v2841
      %v5373 = vmul.f32 %v5371, %v2841
      %v5374 = vadd.f32 %v5372, 1e-06
      %v5375 = vadd.f32 %v5373, 1e-06
      %v5376 = vrsqrt.pop %v5374
      %v5377 = vmul.f32 %v5376, %v5374
      %v5378 = vmul.f32 %v5377, %v5376
      %v5379 = vmul.f32 0.5, %v5378
      %v5380 = vsub.f32 1.5, %v5379
      %v5381 = vmul.f32 %v5376, %v5380
      %vm5382 = vweird.f32 %v5374
      %vm5383 = vweird.f32 %v5376
      %vm5384 = vmor %vm5382, %vm5383
      %v5385 = vsel %vm5384, %v5376, %v5381
      %v5386 = vrsqrt.pop %v5375
      %v5387 = vmul.f32 %v5386, %v5375
      %v5388 = vmul.f32 %v5387, %v5386
      %v5389 = vmul.f32 0.5, %v5388
      %v5390 = vsub.f32 1.5, %v5389
      %v5391 = vmul.f32 %v5386, %v5390
      %vm5392 = vweird.f32 %v5375
      %vm5393 = vweird.f32 %v5386
      %vm5394 = vmor %vm5392, %vm5393
      %v5395 = vsel %vm5394, %v5386, %v5391
      %v5396 = vmul.f32 %v5362, %v5385
      %v5397 = vmul.f32 %v5363, %v5395
      %v5398 = vadd.f32 %v5237, 1.0
      %v5399 = vadd.f32 %v5240, 1.0
      %v5400 = vmul.f32 %v5396, %v5398
      %v5401 = vmul.f32 %v5397, %v5399
      %v5402 = vadd.f32 %v5400, %v5209
      %v5403 = vadd.f32 %v5401, %v5212
      %v5404 = vld [vmem:[%s3 + $0x518] sm:$0xff]
      %v5405 = vld [vmem:[%s3 + $0x520] sm:$0xff]
      %v5406 = vld [vmem:[%s3 + $0x528] sm:$0xff]
      %v5407 = vld [vmem:[%s3 + $0x530] sm:$0xff]
      %v5408 = vld [vmem:[%s3 + $0x538] sm:$0x1]
      %v5409 = vperm.slane %v5408, 0
      %v5411 = vsel %vm317, %v5402, 0
      %v5414 = vsel %vm317, %v5403, 0
      %5416 = vmatpush.msra.mxu0 0.0
      %5417 = vmatpush.msra.mxu0 0.0
      %5418 = vmatpush.msra.mxu0 0.0
      %5419 = vmatpush.msra.mxu0 0.0
      %5420 = vmatpush.msra.mxu0 0.0
      %5421 = vmatpush.msra.mxu0 0.0
      %5422 = vmatpush.msra.mxu0 0.0
      %5423 = vmatpush.msra.mxu0 0.0
      %5424 = vmatpush.msra.mxu0 0.0
      %5425 = vmatpush.msra.mxu0 0.0
      %5426 = vmatpush.msra.mxu0 0.0
      %5427 = vmatpush.msra.mxu0 0.0
      %5428 = vmatpush.msra.mxu0 %v5407
      %5429 = vmatpush.msra.mxu0 %v5406
      %5430 = vmatpush.msra.mxu0 %v5405
      %5431 = vmatpush.msra.mxu0 %v5404
      %5432 = vmatmul.f32.gmra.mxu0 %v5411
      %v5433 = vpop.f32.mrf.mxu0
      %v5434 = vadd.f32 %v5409, %v5433
      %5435 = vmatmul.f32.gmra.mxu0 %v5414
      %v5436 = vpop.f32.mrf.mxu0
      %v5437 = vadd.f32 %v5409, %v5436
      %5438 = vdwg.mxu0
      %v5439 = vld [vmem:[%s3 + $0x540] sm:$0xff]
      %v5440 = vld [vmem:[%s3 + $0x548] sm:$0xff]
      %v5441 = vld [vmem:[%s3 + $0x550] sm:$0xff]
      %v5442 = vld [vmem:[%s3 + $0x558] sm:$0xff]
      %v5443 = vld [vmem:[%s3 + $0x560] sm:$0xff]
      %v5444 = vld [vmem:[%s3 + $0x568] sm:$0xff]
      %v5445 = vld [vmem:[%s3 + $0x570] sm:$0xff]
      %v5446 = vld [vmem:[%s3 + $0x578] sm:$0xff]
      %v5447 = vld [vmem:[%s3 + $0x580] sm:$0xff]
      %v5448 = vld [vmem:[%s3 + $0x588] sm:$0xff]
      %v5449 = vld [vmem:[%s3 + $0x590] sm:$0xff]
      %v5450 = vld [vmem:[%s3 + $0x598] sm:$0xff]
      %v5451 = vld [vmem:[%s3 + $0x5a0] sm:$0xff]
      %v5452 = vld [vmem:[%s3 + $0x5a8] sm:$0xff]
      %v5453 = vld [vmem:[%s3 + $0x5b0] sm:$0xff]
      %v5454 = vld [vmem:[%s3 + $0x5b8] sm:$0xff]
      %5456 = vset.pattern.permute.xlu0 0
      %5457 = vperm.xlu0 %5456, %v5447
      %v5458 = vpop.permute.xlu0 %5457
      %5461 = vset.pattern.permute.xlu0 0
      %5462 = vperm.xlu0 %5461, %v5448
      %v5463 = vpop.permute.xlu0 %5462
      %5466 = vset.pattern.permute.xlu0 0
      %5467 = vperm.xlu0 %5466, %v5449
      %v5468 = vpop.permute.xlu0 %5467
      %5471 = vset.pattern.permute.xlu0 0
      %5472 = vperm.xlu0 %5471, %v5450
      %v5473 = vpop.permute.xlu0 %5472
      %5476 = vset.pattern.permute.xlu0 0
      %5477 = vperm.xlu0 %5476, %v5451
      %v5478 = vpop.permute.xlu0 %5477
      %5481 = vset.pattern.permute.xlu0 0
      %5482 = vperm.xlu0 %5481, %v5452
      %v5483 = vpop.permute.xlu0 %5482
      %5486 = vset.pattern.permute.xlu0 0
      %5487 = vperm.xlu0 %5486, %v5453
      %v5488 = vpop.permute.xlu0 %5487
      %5491 = vset.pattern.permute.xlu0 0
      %5492 = vperm.xlu0 %5491, %v5454
      %v5493 = vpop.permute.xlu0 %5492
      %v5496 = vsel %vm317, %v5439, 0
      %v5499 = vsel %vm317, %v5440, 0
      %v5502 = vsel %vm317, %v5441, 0
      %v5505 = vsel %vm317, %v5442, 0
      %v5508 = vsel %vm317, %v5443, 0
      %v5511 = vsel %vm317, %v5444, 0
      %v5514 = vsel %vm317, %v5445, 0
      %v5517 = vsel %vm317, %v5446, 0
      %5519 = vmatpush.xpose.msra.mxu0 0.0
      %5520 = vmatpush.xpose.msra.mxu0 0.0
      %5521 = vmatpush.xpose.msra.mxu0 0.0
      %5522 = vmatpush.xpose.msra.mxu0 0.0
      %5523 = vmatpush.xpose.msra.mxu0 0.0
      %5524 = vmatpush.xpose.msra.mxu0 0.0
      %5525 = vmatpush.xpose.msra.mxu0 0.0
      %5526 = vmatpush.xpose.msra.mxu0 0.0
      %5527 = vmatpush.xpose.msra.mxu0 0.0
      %5528 = vmatpush.xpose.msra.mxu0 0.0
      %5529 = vmatpush.xpose.msra.mxu0 0.0
      %5530 = vmatpush.xpose.msra.mxu0 0.0
      %5531 = vmatpush.xpose.msra.mxu0 0.0
      %5532 = vmatpush.xpose.msra.mxu0 0.0
      %5533 = vmatpush.xpose.msra.mxu0 %v5414
      %5534 = vmatpush.xpose.msra.mxu0 %v5411
      %5535 = vmatmul.f32.gmra.mxu0 %v5496
      %v5536 = vpop.f32.mrf.mxu0
      %v5537 = vadd.f32 %v5458, %v5536
      %5538 = vmatmul.f32.gmra.mxu0 %v5499
      %v5539 = vpop.f32.mrf.mxu0
      %v5540 = vadd.f32 %v5463, %v5539
      %5541 = vmatmul.f32.gmra.mxu0 %v5502
      %v5542 = vpop.f32.mrf.mxu0
      %v5543 = vadd.f32 %v5468, %v5542
      %5544 = vmatmul.f32.gmra.mxu0 %v5505
      %v5545 = vpop.f32.mrf.mxu0
      %v5546 = vadd.f32 %v5473, %v5545
      %5547 = vmatmul.f32.gmra.mxu0 %v5508
      %v5548 = vpop.f32.mrf.mxu0
      %v5549 = vadd.f32 %v5478, %v5548
      %5550 = vmatmul.f32.gmra.mxu0 %v5511
      %v5551 = vpop.f32.mrf.mxu0
      %v5552 = vadd.f32 %v5483, %v5551
      %5553 = vmatmul.f32.gmra.mxu0 %v5514
      %v5554 = vpop.f32.mrf.mxu0
      %v5555 = vadd.f32 %v5488, %v5554
      %5556 = vmatmul.f32.gmra.mxu0 %v5517
      %v5557 = vpop.f32.mrf.mxu0
      %v5558 = vadd.f32 %v5493, %v5557
      %5559 = vdwg.mxu0
      %5561 = vset.pattern.permute.xlu0 0
      %5562 = vperm.xlu0 %5561, %v5434
      %v5563 = vpop.permute.xlu0 %5562
      %5566 = vset.pattern.permute.xlu0 0
      %5567 = vperm.xlu0 %5566, %v5437
      %v5568 = vpop.permute.xlu0 %5567
      %v5570 = vperm.slane %v5537, 0
      %v5571 = vmul.f32 %v5563, %v5570
      %v5572 = vmul.f32 %v5568, %v5570
      %5573 = vset.pattern.permute.xlu0 1
      %5574 = vperm.xlu0 %5573, %v5434
      %v5575 = vpop.permute.xlu0 %5574
      %5577 = vset.pattern.permute.xlu0 1
      %5578 = vperm.xlu0 %5577, %v5437
      %v5579 = vpop.permute.xlu0 %5578
      %v5581 = vperm.slane %v5537, 1
      %v5582 = vmul.f32 %v5575, %v5581
      %v5583 = vmul.f32 %v5579, %v5581
      %v5584 = vadd.f32 %v5571, %v5582
      %v5585 = vadd.f32 %v5572, %v5583
      %v5586 = vmul.f32 %v5584, 0.70710677
      %v5587 = vmul.f32 %v5585, 0.70710677
      %v5588 = vsel %vm2512, %v5586, -inf
      %5589 = vmax.xlane.f32.xlu0 %v5588
      %v5590 = vpop.xlane.xlu0 %5589
      %v5591 = vsel %vm2512, %v5587, -inf
      %5592 = vmax.xlane.f32.xlu0 %v5591
      %v5593 = vpop.xlane.xlu0 %5592
      %v5594 = vsub.f32 %v5586, %v5590
      %v5595 = vsub.f32 %v5587, %v5593
      %v5596 = vmul.f32 %v5594, 1.442695
      %v5597 = vpow.pop %v5596
      %v5598 = vmul.f32 %v5595, 1.442695
      %v5599 = vpow.pop %v5598
      %v5600 = vsel %vm604, %v5549, 1.0
      %v5602 = vsel %vm2512, %v5597, 0
      %v5605 = vsel %vm2512, %v5599, 0
      %v5608 = vsel %vm2512, %v5600, 0
      %5610 = vmatpush.xpose.msra.mxu0 0.0
      %5611 = vmatpush.xpose.msra.mxu0 0.0
      %5612 = vmatpush.xpose.msra.mxu0 0.0
      %5613 = vmatpush.xpose.msra.mxu0 0.0
      %5614 = vmatpush.xpose.msra.mxu0 0.0
      %5615 = vmatpush.xpose.msra.mxu0 0.0
      %5616 = vmatpush.xpose.msra.mxu0 0.0
      %5617 = vmatpush.xpose.msra.mxu0 0.0
      %5618 = vmatpush.xpose.msra.mxu0 0.0
      %5619 = vmatpush.xpose.msra.mxu0 0.0
      %5620 = vmatpush.xpose.msra.mxu0 0.0
      %5621 = vmatpush.xpose.msra.mxu0 0.0
      %5622 = vmatpush.xpose.msra.mxu0 0.0
      %5623 = vmatpush.xpose.msra.mxu0 0.0
      %5624 = vmatpush.xpose.msra.mxu0 0.0
      %5625 = vmatpush.xpose.msra.mxu0 %v5608
      %5626 = vmatmul.f32.gmra.mxu0 %v5602
      %v5627 = vpop.f32.mrf.mxu0
      %v5628 = vadd.f32 0.0, %v5627
      %5629 = vmatmul.f32.gmra.mxu0 %v5605
      %v5630 = vpop.f32.mrf.mxu0
      %v5631 = vadd.f32 0.0, %v5630
      %5632 = vdwg.mxu0
      %5634 = vset.pattern.permute.xlu0 2
      %5635 = vperm.xlu0 %5634, %v5628
      %v5636 = vpop.permute.xlu0 %5635
      %5639 = vset.pattern.permute.xlu0 2
      %5640 = vperm.xlu0 %5639, %v5631
      %v5641 = vpop.permute.xlu0 %5640
      %v5643 = vrcp.pop %v5636
      %v5644 = vmul.f32 %v5636, %v5643
      %v5645 = vsub.f32 1.0, %v5644
      %v5646 = vmul.f32 %v5643, %v5645
      %v5647 = vadd.f32 %v5643, %v5646
      %vm5648 = vweird.f32 %v5636
      %vm5649 = vweird.f32 %v5643
      %vm5650 = vmor %vm5648, %vm5649
      %v5651 = vsel %vm5650, %v5643, %v5647
      %v5652 = vand.u32 2147483647, %v5636
      %vm5653 = vcmp.eq.f32.partialorder %v5652, 8.507059e+37
      %v5654 = vand.u32 %v5636, 2147483648
      %v5655 = vor.u32 1.1754944e-38, %v5654
      %v5656 = vsel %vm5653, %v5655, %v5651
      %v5657 = vmul.f32 %v5628, %v5656
      %v5658 = vrcp.pop %v5641
      %v5659 = vmul.f32 %v5641, %v5658
      %v5660 = vsub.f32 1.0, %v5659
      %v5661 = vmul.f32 %v5658, %v5660
      %v5662 = vadd.f32 %v5658, %v5661
      %vm5663 = vweird.f32 %v5641
      %vm5664 = vweird.f32 %v5658
      %vm5665 = vmor %vm5663, %vm5664
      %v5666 = vsel %vm5665, %v5658, %v5662
      %v5667 = vand.u32 2147483647, %v5641
      %vm5668 = vcmp.eq.f32.partialorder %v5667, 8.507059e+37
      %v5669 = vand.u32 %v5641, 2147483648
      %v5670 = vor.u32 1.1754944e-38, %v5669
      %v5671 = vsel %vm5668, %v5670, %v5666
      %v5672 = vmul.f32 %v5631, %v5671
      %5673 = vset.pattern.permute.xlu0 2
      %5674 = vperm.xlu0 %5673, %v5434
      %v5675 = vpop.permute.xlu0 %5674
      %5677 = vset.pattern.permute.xlu0 2
      %5678 = vperm.xlu0 %5677, %v5437
      %v5679 = vpop.permute.xlu0 %5678
      %v5681 = vperm.slane %v5537, 2
      %v5682 = vmul.f32 %v5675, %v5681
      %v5683 = vmul.f32 %v5679, %v5681
      %5684 = vset.pattern.permute.xlu0 3
      %5685 = vperm.xlu0 %5684, %v5434
      %v5686 = vpop.permute.xlu0 %5685
      %5688 = vset.pattern.permute.xlu0 3
      %5689 = vperm.xlu0 %5688, %v5437
      %v5690 = vpop.permute.xlu0 %5689
      %v5692 = vperm.slane %v5537, 3
      %v5693 = vmul.f32 %v5686, %v5692
      %v5694 = vmul.f32 %v5690, %v5692
      %v5695 = vadd.f32 %v5682, %v5693
      %v5696 = vadd.f32 %v5683, %v5694
      %v5697 = vmul.f32 %v5695, 0.70710677
      %v5698 = vmul.f32 %v5696, 0.70710677
      %v5699 = vsel %vm2512, %v5697, -inf
      %5700 = vmax.xlane.f32.xlu0 %v5699
      %v5701 = vpop.xlane.xlu0 %5700
      %v5702 = vsel %vm2512, %v5698, -inf
      %5703 = vmax.xlane.f32.xlu0 %v5702
      %v5704 = vpop.xlane.xlu0 %5703
      %v5705 = vsub.f32 %v5697, %v5701
      %v5706 = vsub.f32 %v5698, %v5704
      %v5707 = vmul.f32 %v5705, 1.442695
      %v5708 = vpow.pop %v5707
      %v5709 = vmul.f32 %v5706, 1.442695
      %v5710 = vpow.pop %v5709
      %v5712 = vrot.slane %v5549, 2
      %v5714 = vsel %vm604, %v5712, 1.0
      %v5716 = vsel %vm2512, %v5708, 0
      %v5719 = vsel %vm2512, %v5710, 0
      %v5722 = vsel %vm2512, %v5714, 0
      %5724 = vmatpush.xpose.msra.mxu0 0.0
      %5725 = vmatpush.xpose.msra.mxu0 0.0
      %5726 = vmatpush.xpose.msra.mxu0 0.0
      %5727 = vmatpush.xpose.msra.mxu0 0.0
      %5728 = vmatpush.xpose.msra.mxu0 0.0
      %5729 = vmatpush.xpose.msra.mxu0 0.0
      %5730 = vmatpush.xpose.msra.mxu0 0.0
      %5731 = vmatpush.xpose.msra.mxu0 0.0
      %5732 = vmatpush.xpose.msra.mxu0 0.0
      %5733 = vmatpush.xpose.msra.mxu0 0.0
      %5734 = vmatpush.xpose.msra.mxu0 0.0
      %5735 = vmatpush.xpose.msra.mxu0 0.0
      %5736 = vmatpush.xpose.msra.mxu0 0.0
      %5737 = vmatpush.xpose.msra.mxu0 0.0
      %5738 = vmatpush.xpose.msra.mxu0 0.0
      %5739 = vmatpush.xpose.msra.mxu0 %v5722
      %5740 = vmatmul.f32.gmra.mxu0 %v5716
      %v5741 = vpop.f32.mrf.mxu0
      %v5742 = vadd.f32 0.0, %v5741
      %5743 = vmatmul.f32.gmra.mxu0 %v5719
      %v5744 = vpop.f32.mrf.mxu0
      %v5745 = vadd.f32 0.0, %v5744
      %5746 = vdwg.mxu0
      %5748 = vset.pattern.permute.xlu0 2
      %5749 = vperm.xlu0 %5748, %v5742
      %v5750 = vpop.permute.xlu0 %5749
      %5753 = vset.pattern.permute.xlu0 2
      %5754 = vperm.xlu0 %5753, %v5745
      %v5755 = vpop.permute.xlu0 %5754
      %v5757 = vrcp.pop %v5750
      %v5758 = vmul.f32 %v5750, %v5757
      %v5759 = vsub.f32 1.0, %v5758
      %v5760 = vmul.f32 %v5757, %v5759
      %v5761 = vadd.f32 %v5757, %v5760
      %vm5762 = vweird.f32 %v5750
      %vm5763 = vweird.f32 %v5757
      %vm5764 = vmor %vm5762, %vm5763
      %v5765 = vsel %vm5764, %v5757, %v5761
      %v5766 = vand.u32 2147483647, %v5750
      %vm5767 = vcmp.eq.f32.partialorder %v5766, 8.507059e+37
      %v5768 = vand.u32 %v5750, 2147483648
      %v5769 = vor.u32 1.1754944e-38, %v5768
      %v5770 = vsel %vm5767, %v5769, %v5765
      %v5771 = vmul.f32 %v5742, %v5770
      %v5772 = vrcp.pop %v5755
      %v5773 = vmul.f32 %v5755, %v5772
      %v5774 = vsub.f32 1.0, %v5773
      %v5775 = vmul.f32 %v5772, %v5774
      %v5776 = vadd.f32 %v5772, %v5775
      %vm5777 = vweird.f32 %v5755
      %vm5778 = vweird.f32 %v5772
      %vm5779 = vmor %vm5777, %vm5778
      %v5780 = vsel %vm5779, %v5772, %v5776
      %v5781 = vand.u32 2147483647, %v5755
      %vm5782 = vcmp.eq.f32.partialorder %v5781, 8.507059e+37
      %v5783 = vand.u32 %v5755, 2147483648
      %v5784 = vor.u32 1.1754944e-38, %v5783
      %v5785 = vsel %vm5782, %v5784, %v5780
      %v5786 = vmul.f32 %v5745, %v5785
      %5787 = vset.pattern.permute.xlu0 4
      %5788 = vperm.xlu0 %5787, %v5434
      %v5789 = vpop.permute.xlu0 %5788
      %5791 = vset.pattern.permute.xlu0 4
      %5792 = vperm.xlu0 %5791, %v5437
      %v5793 = vpop.permute.xlu0 %5792
      %v5795 = vperm.slane %v5537, 4
      %v5796 = vmul.f32 %v5789, %v5795
      %v5797 = vmul.f32 %v5793, %v5795
      %5798 = vset.pattern.permute.xlu0 5
      %5799 = vperm.xlu0 %5798, %v5434
      %v5800 = vpop.permute.xlu0 %5799
      %5802 = vset.pattern.permute.xlu0 5
      %5803 = vperm.xlu0 %5802, %v5437
      %v5804 = vpop.permute.xlu0 %5803
      %v5806 = vperm.slane %v5537, 5
      %v5807 = vmul.f32 %v5800, %v5806
      %v5808 = vmul.f32 %v5804, %v5806
      %v5809 = vadd.f32 %v5796, %v5807
      %v5810 = vadd.f32 %v5797, %v5808
      %v5811 = vmul.f32 %v5809, 0.70710677
      %v5812 = vmul.f32 %v5810, 0.70710677
      %v5813 = vsel %vm2512, %v5811, -inf
      %5814 = vmax.xlane.f32.xlu0 %v5813
      %v5815 = vpop.xlane.xlu0 %5814
      %v5816 = vsel %vm2512, %v5812, -inf
      %5817 = vmax.xlane.f32.xlu0 %v5816
      %v5818 = vpop.xlane.xlu0 %5817
      %v5819 = vsub.f32 %v5811, %v5815
      %v5820 = vsub.f32 %v5812, %v5818
      %v5821 = vmul.f32 %v5819, 1.442695
      %v5822 = vpow.pop %v5821
      %v5823 = vmul.f32 %v5820, 1.442695
      %v5824 = vpow.pop %v5823
      %v5825 = vrot.slane %v5549, 4
      %v5827 = vsel %vm604, %v5825, 1.0
      %v5829 = vsel %vm2512, %v5822, 0
      %v5832 = vsel %vm2512, %v5824, 0
      %v5835 = vsel %vm2512, %v5827, 0
      %5837 = vmatpush.xpose.msra.mxu0 0.0
      %5838 = vmatpush.xpose.msra.mxu0 0.0
      %5839 = vmatpush.xpose.msra.mxu0 0.0
      %5840 = vmatpush.xpose.msra.mxu0 0.0
      %5841 = vmatpush.xpose.msra.mxu0 0.0
      %5842 = vmatpush.xpose.msra.mxu0 0.0
      %5843 = vmatpush.xpose.msra.mxu0 0.0
      %5844 = vmatpush.xpose.msra.mxu0 0.0
      %5845 = vmatpush.xpose.msra.mxu0 0.0
      %5846 = vmatpush.xpose.msra.mxu0 0.0
      %5847 = vmatpush.xpose.msra.mxu0 0.0
      %5848 = vmatpush.xpose.msra.mxu0 0.0
      %5849 = vmatpush.xpose.msra.mxu0 0.0
      %5850 = vmatpush.xpose.msra.mxu0 0.0
      %5851 = vmatpush.xpose.msra.mxu0 0.0
      %5852 = vmatpush.xpose.msra.mxu0 %v5835
      %5853 = vmatmul.f32.gmra.mxu0 %v5829
      %v5854 = vpop.f32.mrf.mxu0
      %v5855 = vadd.f32 0.0, %v5854
      %5856 = vmatmul.f32.gmra.mxu0 %v5832
      %v5857 = vpop.f32.mrf.mxu0
      %v5858 = vadd.f32 0.0, %v5857
      %5859 = vdwg.mxu0
      %5861 = vset.pattern.permute.xlu0 2
      %5862 = vperm.xlu0 %5861, %v5855
      %v5863 = vpop.permute.xlu0 %5862
      %5866 = vset.pattern.permute.xlu0 2
      %5867 = vperm.xlu0 %5866, %v5858
      %v5868 = vpop.permute.xlu0 %5867
      %v5870 = vrcp.pop %v5863
      %v5871 = vmul.f32 %v5863, %v5870
      %v5872 = vsub.f32 1.0, %v5871
      %v5873 = vmul.f32 %v5870, %v5872
      %v5874 = vadd.f32 %v5870, %v5873
      %vm5875 = vweird.f32 %v5863
      %vm5876 = vweird.f32 %v5870
      %vm5877 = vmor %vm5875, %vm5876
      %v5878 = vsel %vm5877, %v5870, %v5874
      %v5879 = vand.u32 2147483647, %v5863
      %vm5880 = vcmp.eq.f32.partialorder %v5879, 8.507059e+37
      %v5881 = vand.u32 %v5863, 2147483648
      %v5882 = vor.u32 1.1754944e-38, %v5881
      %v5883 = vsel %vm5880, %v5882, %v5878
      %v5884 = vmul.f32 %v5855, %v5883
      %v5885 = vrcp.pop %v5868
      %v5886 = vmul.f32 %v5868, %v5885
      %v5887 = vsub.f32 1.0, %v5886
      %v5888 = vmul.f32 %v5885, %v5887
      %v5889 = vadd.f32 %v5885, %v5888
      %vm5890 = vweird.f32 %v5868
      %vm5891 = vweird.f32 %v5885
      %vm5892 = vmor %vm5890, %vm5891
      %v5893 = vsel %vm5892, %v5885, %v5889
      %v5894 = vand.u32 2147483647, %v5868
      %vm5895 = vcmp.eq.f32.partialorder %v5894, 8.507059e+37
      %v5896 = vand.u32 %v5868, 2147483648
      %v5897 = vor.u32 1.1754944e-38, %v5896
      %v5898 = vsel %vm5895, %v5897, %v5893
      %v5899 = vmul.f32 %v5858, %v5898
      %5900 = vset.pattern.permute.xlu0 6
      %5901 = vperm.xlu0 %5900, %v5434
      %v5902 = vpop.permute.xlu0 %5901
      %5904 = vset.pattern.permute.xlu0 6
      %5905 = vperm.xlu0 %5904, %v5437
      %v5906 = vpop.permute.xlu0 %5905
      %v5908 = vperm.slane %v5537, 6
      %v5909 = vmul.f32 %v5902, %v5908
      %v5910 = vmul.f32 %v5906, %v5908
      %5911 = vset.pattern.permute.xlu0 7
      %5912 = vperm.xlu0 %5911, %v5434
      %v5913 = vpop.permute.xlu0 %5912
      %5915 = vset.pattern.permute.xlu0 7
      %5916 = vperm.xlu0 %5915, %v5437
      %v5917 = vpop.permute.xlu0 %5916
      %v5919 = vperm.slane %v5537, 7
      %v5920 = vmul.f32 %v5913, %v5919
      %v5921 = vmul.f32 %v5917, %v5919
      %v5922 = vadd.f32 %v5909, %v5920
      %v5923 = vadd.f32 %v5910, %v5921
      %v5924 = vmul.f32 %v5922, 0.70710677
      %v5925 = vmul.f32 %v5923, 0.70710677
      %v5926 = vsel %vm2512, %v5924, -inf
      %5927 = vmax.xlane.f32.xlu0 %v5926
      %v5928 = vpop.xlane.xlu0 %5927
      %v5929 = vsel %vm2512, %v5925, -inf
      %5930 = vmax.xlane.f32.xlu0 %v5929
      %v5931 = vpop.xlane.xlu0 %5930
      %v5932 = vsub.f32 %v5924, %v5928
      %v5933 = vsub.f32 %v5925, %v5931
      %v5934 = vmul.f32 %v5932, 1.442695
      %v5935 = vpow.pop %v5934
      %v5936 = vmul.f32 %v5933, 1.442695
      %v5937 = vpow.pop %v5936
      %v5938 = vrot.slane %v5549, 6
      %v5940 = vsel %vm604, %v5938, 1.0
      %v5942 = vsel %vm2512, %v5935, 0
      %v5945 = vsel %vm2512, %v5937, 0
      %v5948 = vsel %vm2512, %v5940, 0
      %5950 = vmatpush.xpose.msra.mxu0 0.0
      %5951 = vmatpush.xpose.msra.mxu0 0.0
      %5952 = vmatpush.xpose.msra.mxu0 0.0
      %5953 = vmatpush.xpose.msra.mxu0 0.0
      %5954 = vmatpush.xpose.msra.mxu0 0.0
      %5955 = vmatpush.xpose.msra.mxu0 0.0
      %5956 = vmatpush.xpose.msra.mxu0 0.0
      %5957 = vmatpush.xpose.msra.mxu0 0.0
      %5958 = vmatpush.xpose.msra.mxu0 0.0
      %5959 = vmatpush.xpose.msra.mxu0 0.0
      %5960 = vmatpush.xpose.msra.mxu0 0.0
      %5961 = vmatpush.xpose.msra.mxu0 0.0
      %5962 = vmatpush.xpose.msra.mxu0 0.0
      %5963 = vmatpush.xpose.msra.mxu0 0.0
      %5964 = vmatpush.xpose.msra.mxu0 0.0
      %5965 = vmatpush.xpose.msra.mxu0 %v5948
      %5966 = vmatmul.f32.gmra.mxu0 %v5942
      %v5967 = vpop.f32.mrf.mxu0
      %v5968 = vadd.f32 0.0, %v5967
      %5969 = vmatmul.f32.gmra.mxu0 %v5945
      %v5970 = vpop.f32.mrf.mxu0
      %v5971 = vadd.f32 0.0, %v5970
      %5972 = vdwg.mxu0
      %5974 = vset.pattern.permute.xlu0 2
      %5975 = vperm.xlu0 %5974, %v5968
      %v5976 = vpop.permute.xlu0 %5975
      %5979 = vset.pattern.permute.xlu0 2
      %5980 = vperm.xlu0 %5979, %v5971
      %v5981 = vpop.permute.xlu0 %5980
      %v5983 = vrcp.pop %v5976
      %v5984 = vmul.f32 %v5976, %v5983
      %v5985 = vsub.f32 1.0, %v5984
      %v5986 = vmul.f32 %v5983, %v5985
      %v5987 = vadd.f32 %v5983, %v5986
      %vm5988 = vweird.f32 %v5976
      %vm5989 = vweird.f32 %v5983
      %vm5990 = vmor %vm5988, %vm5989
      %v5991 = vsel %vm5990, %v5983, %v5987
      %v5992 = vand.u32 2147483647, %v5976
      %vm5993 = vcmp.eq.f32.partialorder %v5992, 8.507059e+37
      %v5994 = vand.u32 %v5976, 2147483648
      %v5995 = vor.u32 1.1754944e-38, %v5994
      %v5996 = vsel %vm5993, %v5995, %v5991
      %v5997 = vmul.f32 %v5968, %v5996
      %v5998 = vrcp.pop %v5981
      %v5999 = vmul.f32 %v5981, %v5998
      %v6000 = vsub.f32 1.0, %v5999
      %v6001 = vmul.f32 %v5998, %v6000
      %v6002 = vadd.f32 %v5998, %v6001
      %vm6003 = vweird.f32 %v5981
      %vm6004 = vweird.f32 %v5998
      %vm6005 = vmor %vm6003, %vm6004
      %v6006 = vsel %vm6005, %v5998, %v6002
      %v6007 = vand.u32 2147483647, %v5981
      %vm6008 = vcmp.eq.f32.partialorder %v6007, 8.507059e+37
      %v6009 = vand.u32 %v5981, 2147483648
      %v6010 = vor.u32 1.1754944e-38, %v6009
      %v6011 = vsel %vm6008, %v6010, %v6006
      %v6012 = vmul.f32 %v5971, %v6011
      %6013 = vset.pattern.permute.xlu0 8
      %6014 = vperm.xlu0 %6013, %v5434
      %v6015 = vpop.permute.xlu0 %6014
      %6017 = vset.pattern.permute.xlu0 8
      %6018 = vperm.xlu0 %6017, %v5437
      %v6019 = vpop.permute.xlu0 %6018
      %v6021 = vperm.slane %v5540, 0
      %v6022 = vmul.f32 %v6015, %v6021
      %v6023 = vmul.f32 %v6019, %v6021
      %6024 = vset.pattern.permute.xlu0 9
      %6025 = vperm.xlu0 %6024, %v5434
      %v6026 = vpop.permute.xlu0 %6025
      %6028 = vset.pattern.permute.xlu0 9
      %6029 = vperm.xlu0 %6028, %v5437
      %v6030 = vpop.permute.xlu0 %6029
      %v6032 = vperm.slane %v5540, 1
      %v6033 = vmul.f32 %v6026, %v6032
      %v6034 = vmul.f32 %v6030, %v6032
      %v6035 = vadd.f32 %v6022, %v6033
      %v6036 = vadd.f32 %v6023, %v6034
      %v6037 = vmul.f32 %v6035, 0.70710677
      %v6038 = vmul.f32 %v6036, 0.70710677
      %v6039 = vsel %vm2512, %v6037, -inf
      %6040 = vmax.xlane.f32.xlu0 %v6039
      %v6041 = vpop.xlane.xlu0 %6040
      %v6042 = vsel %vm2512, %v6038, -inf
      %6043 = vmax.xlane.f32.xlu0 %v6042
      %v6044 = vpop.xlane.xlu0 %6043
      %v6045 = vsub.f32 %v6037, %v6041
      %v6046 = vsub.f32 %v6038, %v6044
      %v6047 = vmul.f32 %v6045, 1.442695
      %v6048 = vpow.pop %v6047
      %v6049 = vmul.f32 %v6046, 1.442695
      %v6050 = vpow.pop %v6049
      %v6051 = vsel %vm604, %v5552, 1.0
      %v6053 = vsel %vm2512, %v6048, 0
      %v6056 = vsel %vm2512, %v6050, 0
      %v6059 = vsel %vm2512, %v6051, 0
      %6061 = vmatpush.xpose.msra.mxu0 0.0
      %6062 = vmatpush.xpose.msra.mxu0 0.0
      %6063 = vmatpush.xpose.msra.mxu0 0.0
      %6064 = vmatpush.xpose.msra.mxu0 0.0
      %6065 = vmatpush.xpose.msra.mxu0 0.0
      %6066 = vmatpush.xpose.msra.mxu0 0.0
      %6067 = vmatpush.xpose.msra.mxu0 0.0
      %6068 = vmatpush.xpose.msra.mxu0 0.0
      %6069 = vmatpush.xpose.msra.mxu0 0.0
      %6070 = vmatpush.xpose.msra.mxu0 0.0
      %6071 = vmatpush.xpose.msra.mxu0 0.0
      %6072 = vmatpush.xpose.msra.mxu0 0.0
      %6073 = vmatpush.xpose.msra.mxu0 0.0
      %6074 = vmatpush.xpose.msra.mxu0 0.0
      %6075 = vmatpush.xpose.msra.mxu0 0.0
      %6076 = vmatpush.xpose.msra.mxu0 %v6059
      %6077 = vmatmul.f32.gmra.mxu0 %v6053
      %v6078 = vpop.f32.mrf.mxu0
      %v6079 = vadd.f32 0.0, %v6078
      %6080 = vmatmul.f32.gmra.mxu0 %v6056
      %v6081 = vpop.f32.mrf.mxu0
      %v6082 = vadd.f32 0.0, %v6081
      %6083 = vdwg.mxu0
      %6085 = vset.pattern.permute.xlu0 2
      %6086 = vperm.xlu0 %6085, %v6079
      %v6087 = vpop.permute.xlu0 %6086
      %6090 = vset.pattern.permute.xlu0 2
      %6091 = vperm.xlu0 %6090, %v6082
      %v6092 = vpop.permute.xlu0 %6091
      %v6094 = vrcp.pop %v6087
      %v6095 = vmul.f32 %v6087, %v6094
      %v6096 = vsub.f32 1.0, %v6095
      %v6097 = vmul.f32 %v6094, %v6096
      %v6098 = vadd.f32 %v6094, %v6097
      %vm6099 = vweird.f32 %v6087
      %vm6100 = vweird.f32 %v6094
      %vm6101 = vmor %vm6099, %vm6100
      %v6102 = vsel %vm6101, %v6094, %v6098
      %v6103 = vand.u32 2147483647, %v6087
      %vm6104 = vcmp.eq.f32.partialorder %v6103, 8.507059e+37
      %v6105 = vand.u32 %v6087, 2147483648
      %v6106 = vor.u32 1.1754944e-38, %v6105
      %v6107 = vsel %vm6104, %v6106, %v6102
      %v6108 = vmul.f32 %v6079, %v6107
      %v6109 = vrcp.pop %v6092
      %v6110 = vmul.f32 %v6092, %v6109
      %v6111 = vsub.f32 1.0, %v6110
      %v6112 = vmul.f32 %v6109, %v6111
      %v6113 = vadd.f32 %v6109, %v6112
      %vm6114 = vweird.f32 %v6092
      %vm6115 = vweird.f32 %v6109
      %vm6116 = vmor %vm6114, %vm6115
      %v6117 = vsel %vm6116, %v6109, %v6113
      %v6118 = vand.u32 2147483647, %v6092
      %vm6119 = vcmp.eq.f32.partialorder %v6118, 8.507059e+37
      %v6120 = vand.u32 %v6092, 2147483648
      %v6121 = vor.u32 1.1754944e-38, %v6120
      %v6122 = vsel %vm6119, %v6121, %v6117
      %v6123 = vmul.f32 %v6082, %v6122
      %6124 = vset.pattern.permute.xlu0 10
      %6125 = vperm.xlu0 %6124, %v5434
      %v6126 = vpop.permute.xlu0 %6125
      %6128 = vset.pattern.permute.xlu0 10
      %6129 = vperm.xlu0 %6128, %v5437
      %v6130 = vpop.permute.xlu0 %6129
      %v6132 = vperm.slane %v5540, 2
      %v6133 = vmul.f32 %v6126, %v6132
      %v6134 = vmul.f32 %v6130, %v6132
      %6135 = vset.pattern.permute.xlu0 11
      %6136 = vperm.xlu0 %6135, %v5434
      %v6137 = vpop.permute.xlu0 %6136
      %6139 = vset.pattern.permute.xlu0 11
      %6140 = vperm.xlu0 %6139, %v5437
      %v6141 = vpop.permute.xlu0 %6140
      %v6143 = vperm.slane %v5540, 3
      %v6144 = vmul.f32 %v6137, %v6143
      %v6145 = vmul.f32 %v6141, %v6143
      %v6146 = vadd.f32 %v6133, %v6144
      %v6147 = vadd.f32 %v6134, %v6145
      %v6148 = vmul.f32 %v6146, 0.70710677
      %v6149 = vmul.f32 %v6147, 0.70710677
      %v6150 = vsel %vm2512, %v6148, -inf
      %6151 = vmax.xlane.f32.xlu0 %v6150
      %v6152 = vpop.xlane.xlu0 %6151
      %v6153 = vsel %vm2512, %v6149, -inf
      %6154 = vmax.xlane.f32.xlu0 %v6153
      %v6155 = vpop.xlane.xlu0 %6154
      %v6156 = vsub.f32 %v6148, %v6152
      %v6157 = vsub.f32 %v6149, %v6155
      %v6158 = vmul.f32 %v6156, 1.442695
      %v6159 = vpow.pop %v6158
      %v6160 = vmul.f32 %v6157, 1.442695
      %v6161 = vpow.pop %v6160
      %v6163 = vrot.slane %v5552, 2
      %v6165 = vsel %vm604, %v6163, 1.0
      %v6167 = vsel %vm2512, %v6159, 0
      %v6170 = vsel %vm2512, %v6161, 0
      %v6173 = vsel %vm2512, %v6165, 0
      %6175 = vmatpush.xpose.msra.mxu0 0.0
      %6176 = vmatpush.xpose.msra.mxu0 0.0
      %6177 = vmatpush.xpose.msra.mxu0 0.0
      %6178 = vmatpush.xpose.msra.mxu0 0.0
      %6179 = vmatpush.xpose.msra.mxu0 0.0
      %6180 = vmatpush.xpose.msra.mxu0 0.0
      %6181 = vmatpush.xpose.msra.mxu0 0.0
      %6182 = vmatpush.xpose.msra.mxu0 0.0
      %6183 = vmatpush.xpose.msra.mxu0 0.0
      %6184 = vmatpush.xpose.msra.mxu0 0.0
      %6185 = vmatpush.xpose.msra.mxu0 0.0
      %6186 = vmatpush.xpose.msra.mxu0 0.0
      %6187 = vmatpush.xpose.msra.mxu0 0.0
      %6188 = vmatpush.xpose.msra.mxu0 0.0
      %6189 = vmatpush.xpose.msra.mxu0 0.0
      %6190 = vmatpush.xpose.msra.mxu0 %v6173
      %6191 = vmatmul.f32.gmra.mxu0 %v6167
      %v6192 = vpop.f32.mrf.mxu0
      %v6193 = vadd.f32 0.0, %v6192
      %6194 = vmatmul.f32.gmra.mxu0 %v6170
      %v6195 = vpop.f32.mrf.mxu0
      %v6196 = vadd.f32 0.0, %v6195
      %6197 = vdwg.mxu0
      %6199 = vset.pattern.permute.xlu0 2
      %6200 = vperm.xlu0 %6199, %v6193
      %v6201 = vpop.permute.xlu0 %6200
      %6204 = vset.pattern.permute.xlu0 2
      %6205 = vperm.xlu0 %6204, %v6196
      %v6206 = vpop.permute.xlu0 %6205
      %v6208 = vrcp.pop %v6201
      %v6209 = vmul.f32 %v6201, %v6208
      %v6210 = vsub.f32 1.0, %v6209
      %v6211 = vmul.f32 %v6208, %v6210
      %v6212 = vadd.f32 %v6208, %v6211
      %vm6213 = vweird.f32 %v6201
      %vm6214 = vweird.f32 %v6208
      %vm6215 = vmor %vm6213, %vm6214
      %v6216 = vsel %vm6215, %v6208, %v6212
      %v6217 = vand.u32 2147483647, %v6201
      %vm6218 = vcmp.eq.f32.partialorder %v6217, 8.507059e+37
      %v6219 = vand.u32 %v6201, 2147483648
      %v6220 = vor.u32 1.1754944e-38, %v6219
      %v6221 = vsel %vm6218, %v6220, %v6216
      %v6222 = vmul.f32 %v6193, %v6221
      %v6223 = vrcp.pop %v6206
      %v6224 = vmul.f32 %v6206, %v6223
      %v6225 = vsub.f32 1.0, %v6224
      %v6226 = vmul.f32 %v6223, %v6225
      %v6227 = vadd.f32 %v6223, %v6226
      %vm6228 = vweird.f32 %v6206
      %vm6229 = vweird.f32 %v6223
      %vm6230 = vmor %vm6228, %vm6229
      %v6231 = vsel %vm6230, %v6223, %v6227
      %v6232 = vand.u32 2147483647, %v6206
      %vm6233 = vcmp.eq.f32.partialorder %v6232, 8.507059e+37
      %v6234 = vand.u32 %v6206, 2147483648
      %v6235 = vor.u32 1.1754944e-38, %v6234
      %v6236 = vsel %vm6233, %v6235, %v6231
      %v6237 = vmul.f32 %v6196, %v6236
      %6238 = vset.pattern.permute.xlu0 12
      %6239 = vperm.xlu0 %6238, %v5434
      %v6240 = vpop.permute.xlu0 %6239
      %6242 = vset.pattern.permute.xlu0 12
      %6243 = vperm.xlu0 %6242, %v5437
      %v6244 = vpop.permute.xlu0 %6243
      %v6246 = vperm.slane %v5540, 4
      %v6247 = vmul.f32 %v6240, %v6246
      %v6248 = vmul.f32 %v6244, %v6246
      %6249 = vset.pattern.permute.xlu0 13
      %6250 = vperm.xlu0 %6249, %v5434
      %v6251 = vpop.permute.xlu0 %6250
      %6253 = vset.pattern.permute.xlu0 13
      %6254 = vperm.xlu0 %6253, %v5437
      %v6255 = vpop.permute.xlu0 %6254
      %v6257 = vperm.slane %v5540, 5
      %v6258 = vmul.f32 %v6251, %v6257
      %v6259 = vmul.f32 %v6255, %v6257
      %v6260 = vadd.f32 %v6247, %v6258
      %v6261 = vadd.f32 %v6248, %v6259
      %v6262 = vmul.f32 %v6260, 0.70710677
      %v6263 = vmul.f32 %v6261, 0.70710677
      %v6264 = vsel %vm2512, %v6262, -inf
      %6265 = vmax.xlane.f32.xlu0 %v6264
      %v6266 = vpop.xlane.xlu0 %6265
      %v6267 = vsel %vm2512, %v6263, -inf
      %6268 = vmax.xlane.f32.xlu0 %v6267
      %v6269 = vpop.xlane.xlu0 %6268
      %v6270 = vsub.f32 %v6262, %v6266
      %v6271 = vsub.f32 %v6263, %v6269
      %v6272 = vmul.f32 %v6270, 1.442695
      %v6273 = vpow.pop %v6272
      %v6274 = vmul.f32 %v6271, 1.442695
      %v6275 = vpow.pop %v6274
      %v6276 = vrot.slane %v5552, 4
      %v6278 = vsel %vm604, %v6276, 1.0
      %v6280 = vsel %vm2512, %v6273, 0
      %v6283 = vsel %vm2512, %v6275, 0
      %v6286 = vsel %vm2512, %v6278, 0
      %6288 = vmatpush.xpose.msra.mxu0 0.0
      %6289 = vmatpush.xpose.msra.mxu0 0.0
      %6290 = vmatpush.xpose.msra.mxu0 0.0
      %6291 = vmatpush.xpose.msra.mxu0 0.0
      %6292 = vmatpush.xpose.msra.mxu0 0.0
      %6293 = vmatpush.xpose.msra.mxu0 0.0
      %6294 = vmatpush.xpose.msra.mxu0 0.0
      %6295 = vmatpush.xpose.msra.mxu0 0.0
      %6296 = vmatpush.xpose.msra.mxu0 0.0
      %6297 = vmatpush.xpose.msra.mxu0 0.0
      %6298 = vmatpush.xpose.msra.mxu0 0.0
      %6299 = vmatpush.xpose.msra.mxu0 0.0
      %6300 = vmatpush.xpose.msra.mxu0 0.0
      %6301 = vmatpush.xpose.msra.mxu0 0.0
      %6302 = vmatpush.xpose.msra.mxu0 0.0
      %6303 = vmatpush.xpose.msra.mxu0 %v6286
      %6304 = vmatmul.f32.gmra.mxu0 %v6280
      %v6305 = vpop.f32.mrf.mxu0
      %v6306 = vadd.f32 0.0, %v6305
      %6307 = vmatmul.f32.gmra.mxu0 %v6283
      %v6308 = vpop.f32.mrf.mxu0
      %v6309 = vadd.f32 0.0, %v6308
      %6310 = vdwg.mxu0
      %6312 = vset.pattern.permute.xlu0 2
      %6313 = vperm.xlu0 %6312, %v6306
      %v6314 = vpop.permute.xlu0 %6313
      %6317 = vset.pattern.permute.xlu0 2
      %6318 = vperm.xlu0 %6317, %v6309
      %v6319 = vpop.permute.xlu0 %6318
      %v6321 = vrcp.pop %v6314
      %v6322 = vmul.f32 %v6314, %v6321
      %v6323 = vsub.f32 1.0, %v6322
      %v6324 = vmul.f32 %v6321, %v6323
      %v6325 = vadd.f32 %v6321, %v6324
      %vm6326 = vweird.f32 %v6314
      %vm6327 = vweird.f32 %v6321
      %vm6328 = vmor %vm6326, %vm6327
      %v6329 = vsel %vm6328, %v6321, %v6325
      %v6330 = vand.u32 2147483647, %v6314
      %vm6331 = vcmp.eq.f32.partialorder %v6330, 8.507059e+37
      %v6332 = vand.u32 %v6314, 2147483648
      %v6333 = vor.u32 1.1754944e-38, %v6332
      %v6334 = vsel %vm6331, %v6333, %v6329
      %v6335 = vmul.f32 %v6306, %v6334
      %v6336 = vrcp.pop %v6319
      %v6337 = vmul.f32 %v6319, %v6336
      %v6338 = vsub.f32 1.0, %v6337
      %v6339 = vmul.f32 %v6336, %v6338
      %v6340 = vadd.f32 %v6336, %v6339
      %vm6341 = vweird.f32 %v6319
      %vm6342 = vweird.f32 %v6336
      %vm6343 = vmor %vm6341, %vm6342
      %v6344 = vsel %vm6343, %v6336, %v6340
      %v6345 = vand.u32 2147483647, %v6319
      %vm6346 = vcmp.eq.f32.partialorder %v6345, 8.507059e+37
      %v6347 = vand.u32 %v6319, 2147483648
      %v6348 = vor.u32 1.1754944e-38, %v6347
      %v6349 = vsel %vm6346, %v6348, %v6344
      %v6350 = vmul.f32 %v6309, %v6349
      %6351 = vset.pattern.permute.xlu0 14
      %6352 = vperm.xlu0 %6351, %v5434
      %v6353 = vpop.permute.xlu0 %6352
      %6355 = vset.pattern.permute.xlu0 14
      %6356 = vperm.xlu0 %6355, %v5437
      %v6357 = vpop.permute.xlu0 %6356
      %v6359 = vperm.slane %v5540, 6
      %v6360 = vmul.f32 %v6353, %v6359
      %v6361 = vmul.f32 %v6357, %v6359
      %6362 = vset.pattern.permute.xlu0 15
      %6363 = vperm.xlu0 %6362, %v5434
      %v6364 = vpop.permute.xlu0 %6363
      %6366 = vset.pattern.permute.xlu0 15
      %6367 = vperm.xlu0 %6366, %v5437
      %v6368 = vpop.permute.xlu0 %6367
      %v6370 = vperm.slane %v5540, 7
      %v6371 = vmul.f32 %v6364, %v6370
      %v6372 = vmul.f32 %v6368, %v6370
      %v6373 = vadd.f32 %v6360, %v6371
      %v6374 = vadd.f32 %v6361, %v6372
      %v6375 = vmul.f32 %v6373, 0.70710677
      %v6376 = vmul.f32 %v6374, 0.70710677
      %v6377 = vsel %vm2512, %v6375, -inf
      %6378 = vmax.xlane.f32.xlu0 %v6377
      %v6379 = vpop.xlane.xlu0 %6378
      %v6380 = vsel %vm2512, %v6376, -inf
      %6381 = vmax.xlane.f32.xlu0 %v6380
      %v6382 = vpop.xlane.xlu0 %6381
      %v6383 = vsub.f32 %v6375, %v6379
      %v6384 = vsub.f32 %v6376, %v6382
      %v6385 = vmul.f32 %v6383, 1.442695
      %v6386 = vpow.pop %v6385
      %v6387 = vmul.f32 %v6384, 1.442695
      %v6388 = vpow.pop %v6387
      %v6389 = vrot.slane %v5552, 6
      %v6391 = vsel %vm604, %v6389, 1.0
      %v6393 = vsel %vm2512, %v6386, 0
      %v6396 = vsel %vm2512, %v6388, 0
      %v6399 = vsel %vm2512, %v6391, 0
      %6401 = vmatpush.xpose.msra.mxu0 0.0
      %6402 = vmatpush.xpose.msra.mxu0 0.0
      %6403 = vmatpush.xpose.msra.mxu0 0.0
      %6404 = vmatpush.xpose.msra.mxu0 0.0
      %6405 = vmatpush.xpose.msra.mxu0 0.0
      %6406 = vmatpush.xpose.msra.mxu0 0.0
      %6407 = vmatpush.xpose.msra.mxu0 0.0
      %6408 = vmatpush.xpose.msra.mxu0 0.0
      %6409 = vmatpush.xpose.msra.mxu0 0.0
      %6410 = vmatpush.xpose.msra.mxu0 0.0
      %6411 = vmatpush.xpose.msra.mxu0 0.0
      %6412 = vmatpush.xpose.msra.mxu0 0.0
      %6413 = vmatpush.xpose.msra.mxu0 0.0
      %6414 = vmatpush.xpose.msra.mxu0 0.0
      %6415 = vmatpush.xpose.msra.mxu0 0.0
      %6416 = vmatpush.xpose.msra.mxu0 %v6399
      %6417 = vmatmul.f32.gmra.mxu0 %v6393
      %v6418 = vpop.f32.mrf.mxu0
      %v6419 = vadd.f32 0.0, %v6418
      %6420 = vmatmul.f32.gmra.mxu0 %v6396
      %v6421 = vpop.f32.mrf.mxu0
      %v6422 = vadd.f32 0.0, %v6421
      %6423 = vdwg.mxu0
      %6425 = vset.pattern.permute.xlu0 2
      %6426 = vperm.xlu0 %6425, %v6419
      %v6427 = vpop.permute.xlu0 %6426
      %6430 = vset.pattern.permute.xlu0 2
      %6431 = vperm.xlu0 %6430, %v6422
      %v6432 = vpop.permute.xlu0 %6431
      %v6434 = vrcp.pop %v6427
      %v6435 = vmul.f32 %v6427, %v6434
      %v6436 = vsub.f32 1.0, %v6435
      %v6437 = vmul.f32 %v6434, %v6436
      %v6438 = vadd.f32 %v6434, %v6437
      %vm6439 = vweird.f32 %v6427
      %vm6440 = vweird.f32 %v6434
      %vm6441 = vmor %vm6439, %vm6440
      %v6442 = vsel %vm6441, %v6434, %v6438
      %v6443 = vand.u32 2147483647, %v6427
      %vm6444 = vcmp.eq.f32.partialorder %v6443, 8.507059e+37
      %v6445 = vand.u32 %v6427, 2147483648
      %v6446 = vor.u32 1.1754944e-38, %v6445
      %v6447 = vsel %vm6444, %v6446, %v6442
      %v6448 = vmul.f32 %v6419, %v6447
      %v6449 = vrcp.pop %v6432
      %v6450 = vmul.f32 %v6432, %v6449
      %v6451 = vsub.f32 1.0, %v6450
      %v6452 = vmul.f32 %v6449, %v6451
      %v6453 = vadd.f32 %v6449, %v6452
      %vm6454 = vweird.f32 %v6432
      %vm6455 = vweird.f32 %v6449
      %vm6456 = vmor %vm6454, %vm6455
      %v6457 = vsel %vm6456, %v6449, %v6453
      %v6458 = vand.u32 2147483647, %v6432
      %vm6459 = vcmp.eq.f32.partialorder %v6458, 8.507059e+37
      %v6460 = vand.u32 %v6432, 2147483648
      %v6461 = vor.u32 1.1754944e-38, %v6460
      %v6462 = vsel %vm6459, %v6461, %v6457
      %v6463 = vmul.f32 %v6422, %v6462
      %6464 = vset.pattern.permute.xlu0 16
      %6465 = vperm.xlu0 %6464, %v5434
      %v6466 = vpop.permute.xlu0 %6465
      %6468 = vset.pattern.permute.xlu0 16
      %6469 = vperm.xlu0 %6468, %v5437
      %v6470 = vpop.permute.xlu0 %6469
      %v6472 = vperm.slane %v5543, 0
      %v6473 = vmul.f32 %v6466, %v6472
      %v6474 = vmul.f32 %v6470, %v6472
      %6475 = vset.pattern.permute.xlu0 17
      %6476 = vperm.xlu0 %6475, %v5434
      %v6477 = vpop.permute.xlu0 %6476
      %6479 = vset.pattern.permute.xlu0 17
      %6480 = vperm.xlu0 %6479, %v5437
      %v6481 = vpop.permute.xlu0 %6480
      %v6483 = vperm.slane %v5543, 1
      %v6484 = vmul.f32 %v6477, %v6483
      %v6485 = vmul.f32 %v6481, %v6483
      %v6486 = vadd.f32 %v6473, %v6484
      %v6487 = vadd.f32 %v6474, %v6485
      %v6488 = vmul.f32 %v6486, 0.70710677
      %v6489 = vmul.f32 %v6487, 0.70710677
      %v6490 = vsel %vm2512, %v6488, -inf
      %6491 = vmax.xlane.f32.xlu0 %v6490
      %v6492 = vpop.xlane.xlu0 %6491
      %v6493 = vsel %vm2512, %v6489, -inf
      %6494 = vmax.xlane.f32.xlu0 %v6493
      %v6495 = vpop.xlane.xlu0 %6494
      %v6496 = vsub.f32 %v6488, %v6492
      %v6497 = vsub.f32 %v6489, %v6495
      %v6498 = vmul.f32 %v6496, 1.442695
      %v6499 = vpow.pop %v6498
      %v6500 = vmul.f32 %v6497, 1.442695
      %v6501 = vpow.pop %v6500
      %v6502 = vsel %vm604, %v5555, 1.0
      %v6504 = vsel %vm2512, %v6499, 0
      %v6507 = vsel %vm2512, %v6501, 0
      %v6510 = vsel %vm2512, %v6502, 0
      %6512 = vmatpush.xpose.msra.mxu0 0.0
      %6513 = vmatpush.xpose.msra.mxu0 0.0
      %6514 = vmatpush.xpose.msra.mxu0 0.0
      %6515 = vmatpush.xpose.msra.mxu0 0.0
      %6516 = vmatpush.xpose.msra.mxu0 0.0
      %6517 = vmatpush.xpose.msra.mxu0 0.0
      %6518 = vmatpush.xpose.msra.mxu0 0.0
      %6519 = vmatpush.xpose.msra.mxu0 0.0
      %6520 = vmatpush.xpose.msra.mxu0 0.0
      %6521 = vmatpush.xpose.msra.mxu0 0.0
      %6522 = vmatpush.xpose.msra.mxu0 0.0
      %6523 = vmatpush.xpose.msra.mxu0 0.0
      %6524 = vmatpush.xpose.msra.mxu0 0.0
      %6525 = vmatpush.xpose.msra.mxu0 0.0
      %6526 = vmatpush.xpose.msra.mxu0 0.0
      %6527 = vmatpush.xpose.msra.mxu0 %v6510
      %6528 = vmatmul.f32.gmra.mxu0 %v6504
      %v6529 = vpop.f32.mrf.mxu0
      %v6530 = vadd.f32 0.0, %v6529
      %6531 = vmatmul.f32.gmra.mxu0 %v6507
      %v6532 = vpop.f32.mrf.mxu0
      %v6533 = vadd.f32 0.0, %v6532
      %6534 = vdwg.mxu0
      %6536 = vset.pattern.permute.xlu0 2
      %6537 = vperm.xlu0 %6536, %v6530
      %v6538 = vpop.permute.xlu0 %6537
      %6541 = vset.pattern.permute.xlu0 2
      %6542 = vperm.xlu0 %6541, %v6533
      %v6543 = vpop.permute.xlu0 %6542
      %v6545 = vrcp.pop %v6538
      %v6546 = vmul.f32 %v6538, %v6545
      %v6547 = vsub.f32 1.0, %v6546
      %v6548 = vmul.f32 %v6545, %v6547
      %v6549 = vadd.f32 %v6545, %v6548
      %vm6550 = vweird.f32 %v6538
      %vm6551 = vweird.f32 %v6545
      %vm6552 = vmor %vm6550, %vm6551
      %v6553 = vsel %vm6552, %v6545, %v6549
      %v6554 = vand.u32 2147483647, %v6538
      %vm6555 = vcmp.eq.f32.partialorder %v6554, 8.507059e+37
      %v6556 = vand.u32 %v6538, 2147483648
      %v6557 = vor.u32 1.1754944e-38, %v6556
      %v6558 = vsel %vm6555, %v6557, %v6553
      %v6559 = vmul.f32 %v6530, %v6558
      %v6560 = vrcp.pop %v6543
      %v6561 = vmul.f32 %v6543, %v6560
      %v6562 = vsub.f32 1.0, %v6561
      %v6563 = vmul.f32 %v6560, %v6562
      %v6564 = vadd.f32 %v6560, %v6563
      %vm6565 = vweird.f32 %v6543
      %vm6566 = vweird.f32 %v6560
      %vm6567 = vmor %vm6565, %vm6566
      %v6568 = vsel %vm6567, %v6560, %v6564
      %v6569 = vand.u32 2147483647, %v6543
      %vm6570 = vcmp.eq.f32.partialorder %v6569, 8.507059e+37
      %v6571 = vand.u32 %v6543, 2147483648
      %v6572 = vor.u32 1.1754944e-38, %v6571
      %v6573 = vsel %vm6570, %v6572, %v6568
      %v6574 = vmul.f32 %v6533, %v6573
      %6575 = vset.pattern.permute.xlu0 18
      %6576 = vperm.xlu0 %6575, %v5434
      %v6577 = vpop.permute.xlu0 %6576
      %6579 = vset.pattern.permute.xlu0 18
      %6580 = vperm.xlu0 %6579, %v5437
      %v6581 = vpop.permute.xlu0 %6580
      %v6583 = vperm.slane %v5543, 2
      %v6584 = vmul.f32 %v6577, %v6583
      %v6585 = vmul.f32 %v6581, %v6583
      %6586 = vset.pattern.permute.xlu0 19
      %6587 = vperm.xlu0 %6586, %v5434
      %v6588 = vpop.permute.xlu0 %6587
      %6590 = vset.pattern.permute.xlu0 19
      %6591 = vperm.xlu0 %6590, %v5437
      %v6592 = vpop.permute.xlu0 %6591
      %v6594 = vperm.slane %v5543, 3
      %v6595 = vmul.f32 %v6588, %v6594
      %v6596 = vmul.f32 %v6592, %v6594
      %v6597 = vadd.f32 %v6584, %v6595
      %v6598 = vadd.f32 %v6585, %v6596
      %v6599 = vmul.f32 %v6597, 0.70710677
      %v6600 = vmul.f32 %v6598, 0.70710677
      %v6601 = vsel %vm2512, %v6599, -inf
      %6602 = vmax.xlane.f32.xlu0 %v6601
      %v6603 = vpop.xlane.xlu0 %6602
      %v6604 = vsel %vm2512, %v6600, -inf
      %6605 = vmax.xlane.f32.xlu0 %v6604
      %v6606 = vpop.xlane.xlu0 %6605
      %v6607 = vsub.f32 %v6599, %v6603
      %v6608 = vsub.f32 %v6600, %v6606
      %v6609 = vmul.f32 %v6607, 1.442695
      %v6610 = vpow.pop %v6609
      %v6611 = vmul.f32 %v6608, 1.442695
      %v6612 = vpow.pop %v6611
      %v6614 = vrot.slane %v5555, 2
      %v6616 = vsel %vm604, %v6614, 1.0
      %v6618 = vsel %vm2512, %v6610, 0
      %v6621 = vsel %vm2512, %v6612, 0
      %v6624 = vsel %vm2512, %v6616, 0
      %6626 = vmatpush.xpose.msra.mxu0 0.0
      %6627 = vmatpush.xpose.msra.mxu0 0.0
      %6628 = vmatpush.xpose.msra.mxu0 0.0
      %6629 = vmatpush.xpose.msra.mxu0 0.0
      %6630 = vmatpush.xpose.msra.mxu0 0.0
      %6631 = vmatpush.xpose.msra.mxu0 0.0
      %6632 = vmatpush.xpose.msra.mxu0 0.0
      %6633 = vmatpush.xpose.msra.mxu0 0.0
      %6634 = vmatpush.xpose.msra.mxu0 0.0
      %6635 = vmatpush.xpose.msra.mxu0 0.0
      %6636 = vmatpush.xpose.msra.mxu0 0.0
      %6637 = vmatpush.xpose.msra.mxu0 0.0
      %6638 = vmatpush.xpose.msra.mxu0 0.0
      %6639 = vmatpush.xpose.msra.mxu0 0.0
      %6640 = vmatpush.xpose.msra.mxu0 0.0
      %6641 = vmatpush.xpose.msra.mxu0 %v6624
      %6642 = vmatmul.f32.gmra.mxu0 %v6618
      %v6643 = vpop.f32.mrf.mxu0
      %v6644 = vadd.f32 0.0, %v6643
      %6645 = vmatmul.f32.gmra.mxu0 %v6621
      %v6646 = vpop.f32.mrf.mxu0
      %v6647 = vadd.f32 0.0, %v6646
      %6648 = vdwg.mxu0
      %6650 = vset.pattern.permute.xlu0 2
      %6651 = vperm.xlu0 %6650, %v6644
      %v6652 = vpop.permute.xlu0 %6651
      %6655 = vset.pattern.permute.xlu0 2
      %6656 = vperm.xlu0 %6655, %v6647
      %v6657 = vpop.permute.xlu0 %6656
      %v6659 = vrcp.pop %v6652
      %v6660 = vmul.f32 %v6652, %v6659
      %v6661 = vsub.f32 1.0, %v6660
      %v6662 = vmul.f32 %v6659, %v6661
      %v6663 = vadd.f32 %v6659, %v6662
      %vm6664 = vweird.f32 %v6652
      %vm6665 = vweird.f32 %v6659
      %vm6666 = vmor %vm6664, %vm6665
      %v6667 = vsel %vm6666, %v6659, %v6663
      %v6668 = vand.u32 2147483647, %v6652
      %vm6669 = vcmp.eq.f32.partialorder %v6668, 8.507059e+37
      %v6670 = vand.u32 %v6652, 2147483648
      %v6671 = vor.u32 1.1754944e-38, %v6670
      %v6672 = vsel %vm6669, %v6671, %v6667
      %v6673 = vmul.f32 %v6644, %v6672
      %v6674 = vrcp.pop %v6657
      %v6675 = vmul.f32 %v6657, %v6674
      %v6676 = vsub.f32 1.0, %v6675
      %v6677 = vmul.f32 %v6674, %v6676
      %v6678 = vadd.f32 %v6674, %v6677
      %vm6679 = vweird.f32 %v6657
      %vm6680 = vweird.f32 %v6674
      %vm6681 = vmor %vm6679, %vm6680
      %v6682 = vsel %vm6681, %v6674, %v6678
      %v6683 = vand.u32 2147483647, %v6657
      %vm6684 = vcmp.eq.f32.partialorder %v6683, 8.507059e+37
      %v6685 = vand.u32 %v6657, 2147483648
      %v6686 = vor.u32 1.1754944e-38, %v6685
      %v6687 = vsel %vm6684, %v6686, %v6682
      %v6688 = vmul.f32 %v6647, %v6687
      %6689 = vset.pattern.permute.xlu0 20
      %6690 = vperm.xlu0 %6689, %v5434
      %v6691 = vpop.permute.xlu0 %6690
      %6693 = vset.pattern.permute.xlu0 20
      %6694 = vperm.xlu0 %6693, %v5437
      %v6695 = vpop.permute.xlu0 %6694
      %v6697 = vperm.slane %v5543, 4
      %v6698 = vmul.f32 %v6691, %v6697
      %v6699 = vmul.f32 %v6695, %v6697
      %6700 = vset.pattern.permute.xlu0 21
      %6701 = vperm.xlu0 %6700, %v5434
      %v6702 = vpop.permute.xlu0 %6701
      %6704 = vset.pattern.permute.xlu0 21
      %6705 = vperm.xlu0 %6704, %v5437
      %v6706 = vpop.permute.xlu0 %6705
      %v6708 = vperm.slane %v5543, 5
      %v6709 = vmul.f32 %v6702, %v6708
      %v6710 = vmul.f32 %v6706, %v6708
      %v6711 = vadd.f32 %v6698, %v6709
      %v6712 = vadd.f32 %v6699, %v6710
      %v6713 = vmul.f32 %v6711, 0.70710677
      %v6714 = vmul.f32 %v6712, 0.70710677
      %v6715 = vsel %vm2512, %v6713, -inf
      %6716 = vmax.xlane.f32.xlu0 %v6715
      %v6717 = vpop.xlane.xlu0 %6716
      %v6718 = vsel %vm2512, %v6714, -inf
      %6719 = vmax.xlane.f32.xlu0 %v6718
      %v6720 = vpop.xlane.xlu0 %6719
      %v6721 = vsub.f32 %v6713, %v6717
      %v6722 = vsub.f32 %v6714, %v6720
      %v6723 = vmul.f32 %v6721, 1.442695
      %v6724 = vpow.pop %v6723
      %v6725 = vmul.f32 %v6722, 1.442695
      %v6726 = vpow.pop %v6725
      %v6727 = vrot.slane %v5555, 4
      %v6729 = vsel %vm604, %v6727, 1.0
      %v6731 = vsel %vm2512, %v6724, 0
      %v6734 = vsel %vm2512, %v6726, 0
      %v6737 = vsel %vm2512, %v6729, 0
      %6739 = vmatpush.xpose.msra.mxu0 0.0
      %6740 = vmatpush.xpose.msra.mxu0 0.0
      %6741 = vmatpush.xpose.msra.mxu0 0.0
      %6742 = vmatpush.xpose.msra.mxu0 0.0
      %6743 = vmatpush.xpose.msra.mxu0 0.0
      %6744 = vmatpush.xpose.msra.mxu0 0.0
      %6745 = vmatpush.xpose.msra.mxu0 0.0
      %6746 = vmatpush.xpose.msra.mxu0 0.0
      %6747 = vmatpush.xpose.msra.mxu0 0.0
      %6748 = vmatpush.xpose.msra.mxu0 0.0
      %6749 = vmatpush.xpose.msra.mxu0 0.0
      %6750 = vmatpush.xpose.msra.mxu0 0.0
      %6751 = vmatpush.xpose.msra.mxu0 0.0
      %6752 = vmatpush.xpose.msra.mxu0 0.0
      %6753 = vmatpush.xpose.msra.mxu0 0.0
      %6754 = vmatpush.xpose.msra.mxu0 %v6737
      %6755 = vmatmul.f32.gmra.mxu0 %v6731
      %v6756 = vpop.f32.mrf.mxu0
      %v6757 = vadd.f32 0.0, %v6756
      %6758 = vmatmul.f32.gmra.mxu0 %v6734
      %v6759 = vpop.f32.mrf.mxu0
      %v6760 = vadd.f32 0.0, %v6759
      %6761 = vdwg.mxu0
      %6763 = vset.pattern.permute.xlu0 2
      %6764 = vperm.xlu0 %6763, %v6757
      %v6765 = vpop.permute.xlu0 %6764
      %6768 = vset.pattern.permute.xlu0 2
      %6769 = vperm.xlu0 %6768, %v6760
      %v6770 = vpop.permute.xlu0 %6769
      %v6772 = vrcp.pop %v6765
      %v6773 = vmul.f32 %v6765, %v6772
      %v6774 = vsub.f32 1.0, %v6773
      %v6775 = vmul.f32 %v6772, %v6774
      %v6776 = vadd.f32 %v6772, %v6775
      %vm6777 = vweird.f32 %v6765
      %vm6778 = vweird.f32 %v6772
      %vm6779 = vmor %vm6777, %vm6778
      %v6780 = vsel %vm6779, %v6772, %v6776
      %v6781 = vand.u32 2147483647, %v6765
      %vm6782 = vcmp.eq.f32.partialorder %v6781, 8.507059e+37
      %v6783 = vand.u32 %v6765, 2147483648
      %v6784 = vor.u32 1.1754944e-38, %v6783
      %v6785 = vsel %vm6782, %v6784, %v6780
      %v6786 = vmul.f32 %v6757, %v6785
      %v6787 = vrcp.pop %v6770
      %v6788 = vmul.f32 %v6770, %v6787
      %v6789 = vsub.f32 1.0, %v6788
      %v6790 = vmul.f32 %v6787, %v6789
      %v6791 = vadd.f32 %v6787, %v6790
      %vm6792 = vweird.f32 %v6770
      %vm6793 = vweird.f32 %v6787
      %vm6794 = vmor %vm6792, %vm6793
      %v6795 = vsel %vm6794, %v6787, %v6791
      %v6796 = vand.u32 2147483647, %v6770
      %vm6797 = vcmp.eq.f32.partialorder %v6796, 8.507059e+37
      %v6798 = vand.u32 %v6770, 2147483648
      %v6799 = vor.u32 1.1754944e-38, %v6798
      %v6800 = vsel %vm6797, %v6799, %v6795
      %v6801 = vmul.f32 %v6760, %v6800
      %6802 = vset.pattern.permute.xlu0 22
      %6803 = vperm.xlu0 %6802, %v5434
      %v6804 = vpop.permute.xlu0 %6803
      %6806 = vset.pattern.permute.xlu0 22
      %6807 = vperm.xlu0 %6806, %v5437
      %v6808 = vpop.permute.xlu0 %6807
      %v6810 = vperm.slane %v5543, 6
      %v6811 = vmul.f32 %v6804, %v6810
      %v6812 = vmul.f32 %v6808, %v6810
      %6813 = vset.pattern.permute.xlu0 23
      %6814 = vperm.xlu0 %6813, %v5434
      %v6815 = vpop.permute.xlu0 %6814
      %6817 = vset.pattern.permute.xlu0 23
      %6818 = vperm.xlu0 %6817, %v5437
      %v6819 = vpop.permute.xlu0 %6818
      %v6821 = vperm.slane %v5543, 7
      %v6822 = vmul.f32 %v6815, %v6821
      %v6823 = vmul.f32 %v6819, %v6821
      %v6824 = vadd.f32 %v6811, %v6822
      %v6825 = vadd.f32 %v6812, %v6823
      %v6826 = vmul.f32 %v6824, 0.70710677
      %v6827 = vmul.f32 %v6825, 0.70710677
      %v6828 = vsel %vm2512, %v6826, -inf
      %6829 = vmax.xlane.f32.xlu0 %v6828
      %v6830 = vpop.xlane.xlu0 %6829
      %v6831 = vsel %vm2512, %v6827, -inf
      %6832 = vmax.xlane.f32.xlu0 %v6831
      %v6833 = vpop.xlane.xlu0 %6832
      %v6834 = vsub.f32 %v6826, %v6830
      %v6835 = vsub.f32 %v6827, %v6833
      %v6836 = vmul.f32 %v6834, 1.442695
      %v6837 = vpow.pop %v6836
      %v6838 = vmul.f32 %v6835, 1.442695
      %v6839 = vpow.pop %v6838
      %v6840 = vrot.slane %v5555, 6
      %v6842 = vsel %vm604, %v6840, 1.0
      %v6844 = vsel %vm2512, %v6837, 0
      %v6847 = vsel %vm2512, %v6839, 0
      %v6850 = vsel %vm2512, %v6842, 0
      %6852 = vmatpush.xpose.msra.mxu0 0.0
      %6853 = vmatpush.xpose.msra.mxu0 0.0
      %6854 = vmatpush.xpose.msra.mxu0 0.0
      %6855 = vmatpush.xpose.msra.mxu0 0.0
      %6856 = vmatpush.xpose.msra.mxu0 0.0
      %6857 = vmatpush.xpose.msra.mxu0 0.0
      %6858 = vmatpush.xpose.msra.mxu0 0.0
      %6859 = vmatpush.xpose.msra.mxu0 0.0
      %6860 = vmatpush.xpose.msra.mxu0 0.0
      %6861 = vmatpush.xpose.msra.mxu0 0.0
      %6862 = vmatpush.xpose.msra.mxu0 0.0
      %6863 = vmatpush.xpose.msra.mxu0 0.0
      %6864 = vmatpush.xpose.msra.mxu0 0.0
      %6865 = vmatpush.xpose.msra.mxu0 0.0
      %6866 = vmatpush.xpose.msra.mxu0 0.0
      %6867 = vmatpush.xpose.msra.mxu0 %v6850
      %6868 = vmatmul.f32.gmra.mxu0 %v6844
      %v6869 = vpop.f32.mrf.mxu0
      %v6870 = vadd.f32 0.0, %v6869
      %6871 = vmatmul.f32.gmra.mxu0 %v6847
      %v6872 = vpop.f32.mrf.mxu0
      %v6873 = vadd.f32 0.0, %v6872
      %6874 = vdwg.mxu0
      %6876 = vset.pattern.permute.xlu0 2
      %6877 = vperm.xlu0 %6876, %v6870
      %v6878 = vpop.permute.xlu0 %6877
      %6881 = vset.pattern.permute.xlu0 2
      %6882 = vperm.xlu0 %6881, %v6873
      %v6883 = vpop.permute.xlu0 %6882
      %v6885 = vrcp.pop %v6878
      %v6886 = vmul.f32 %v6878, %v6885
      %v6887 = vsub.f32 1.0, %v6886
      %v6888 = vmul.f32 %v6885, %v6887
      %v6889 = vadd.f32 %v6885, %v6888
      %vm6890 = vweird.f32 %v6878
      %vm6891 = vweird.f32 %v6885
      %vm6892 = vmor %vm6890, %vm6891
      %v6893 = vsel %vm6892, %v6885, %v6889
      %v6894 = vand.u32 2147483647, %v6878
      %vm6895 = vcmp.eq.f32.partialorder %v6894, 8.507059e+37
      %v6896 = vand.u32 %v6878, 2147483648
      %v6897 = vor.u32 1.1754944e-38, %v6896
      %v6898 = vsel %vm6895, %v6897, %v6893
      %v6899 = vmul.f32 %v6870, %v6898
      %v6900 = vrcp.pop %v6883
      %v6901 = vmul.f32 %v6883, %v6900
      %v6902 = vsub.f32 1.0, %v6901
      %v6903 = vmul.f32 %v6900, %v6902
      %v6904 = vadd.f32 %v6900, %v6903
      %vm6905 = vweird.f32 %v6883
      %vm6906 = vweird.f32 %v6900
      %vm6907 = vmor %vm6905, %vm6906
      %v6908 = vsel %vm6907, %v6900, %v6904
      %v6909 = vand.u32 2147483647, %v6883
      %vm6910 = vcmp.eq.f32.partialorder %v6909, 8.507059e+37
      %v6911 = vand.u32 %v6883, 2147483648
      %v6912 = vor.u32 1.1754944e-38, %v6911
      %v6913 = vsel %vm6910, %v6912, %v6908
      %v6914 = vmul.f32 %v6873, %v6913
      %6915 = vset.pattern.permute.xlu0 24
      %6916 = vperm.xlu0 %6915, %v5434
      %v6917 = vpop.permute.xlu0 %6916
      %6919 = vset.pattern.permute.xlu0 24
      %6920 = vperm.xlu0 %6919, %v5437
      %v6921 = vpop.permute.xlu0 %6920
      %v6923 = vperm.slane %v5546, 0
      %v6924 = vmul.f32 %v6917, %v6923
      %v6925 = vmul.f32 %v6921, %v6923
      %6926 = vset.pattern.permute.xlu0 25
      %6927 = vperm.xlu0 %6926, %v5434
      %v6928 = vpop.permute.xlu0 %6927
      %6930 = vset.pattern.permute.xlu0 25
      %6931 = vperm.xlu0 %6930, %v5437
      %v6932 = vpop.permute.xlu0 %6931
      %v6934 = vperm.slane %v5546, 1
      %v6935 = vmul.f32 %v6928, %v6934
      %v6936 = vmul.f32 %v6932, %v6934
      %v6937 = vadd.f32 %v6924, %v6935
      %v6938 = vadd.f32 %v6925, %v6936
      %v6939 = vmul.f32 %v6937, 0.70710677
      %v6940 = vmul.f32 %v6938, 0.70710677
      %v6941 = vsel %vm2512, %v6939, -inf
      %6942 = vmax.xlane.f32.xlu0 %v6941
      %v6943 = vpop.xlane.xlu0 %6942
      %v6944 = vsel %vm2512, %v6940, -inf
      %6945 = vmax.xlane.f32.xlu0 %v6944
      %v6946 = vpop.xlane.xlu0 %6945
      %v6947 = vsub.f32 %v6939, %v6943
      %v6948 = vsub.f32 %v6940, %v6946
      %v6949 = vmul.f32 %v6947, 1.442695
      %v6950 = vpow.pop %v6949
      %v6951 = vmul.f32 %v6948, 1.442695
      %v6952 = vpow.pop %v6951
      %v6953 = vsel %vm604, %v5558, 1.0
      %v6955 = vsel %vm2512, %v6950, 0
      %v6958 = vsel %vm2512, %v6952, 0
      %v6961 = vsel %vm2512, %v6953, 0
      %6963 = vmatpush.xpose.msra.mxu0 0.0
      %6964 = vmatpush.xpose.msra.mxu0 0.0
      %6965 = vmatpush.xpose.msra.mxu0 0.0
      %6966 = vmatpush.xpose.msra.mxu0 0.0
      %6967 = vmatpush.xpose.msra.mxu0 0.0
      %6968 = vmatpush.xpose.msra.mxu0 0.0
      %6969 = vmatpush.xpose.msra.mxu0 0.0
      %6970 = vmatpush.xpose.msra.mxu0 0.0
      %6971 = vmatpush.xpose.msra.mxu0 0.0
      %6972 = vmatpush.xpose.msra.mxu0 0.0
      %6973 = vmatpush.xpose.msra.mxu0 0.0
      %6974 = vmatpush.xpose.msra.mxu0 0.0
      %6975 = vmatpush.xpose.msra.mxu0 0.0
      %6976 = vmatpush.xpose.msra.mxu0 0.0
      %6977 = vmatpush.xpose.msra.mxu0 0.0
      %6978 = vmatpush.xpose.msra.mxu0 %v6961
      %6979 = vmatmul.f32.gmra.mxu0 %v6955
      %v6980 = vpop.f32.mrf.mxu0
      %v6981 = vadd.f32 0.0, %v6980
      %6982 = vmatmul.f32.gmra.mxu0 %v6958
      %v6983 = vpop.f32.mrf.mxu0
      %v6984 = vadd.f32 0.0, %v6983
      %6985 = vdwg.mxu0
      %6987 = vset.pattern.permute.xlu0 2
      %6988 = vperm.xlu0 %6987, %v6981
      %v6989 = vpop.permute.xlu0 %6988
      %6992 = vset.pattern.permute.xlu0 2
      %6993 = vperm.xlu0 %6992, %v6984
      %v6994 = vpop.permute.xlu0 %6993
      %v6996 = vrcp.pop %v6989
      %v6997 = vmul.f32 %v6989, %v6996
      %v6998 = vsub.f32 1.0, %v6997
      %v6999 = vmul.f32 %v6996, %v6998
      %v7000 = vadd.f32 %v6996, %v6999
      %vm7001 = vweird.f32 %v6989
      %vm7002 = vweird.f32 %v6996
      %vm7003 = vmor %vm7001, %vm7002
      %v7004 = vsel %vm7003, %v6996, %v7000
      %v7005 = vand.u32 2147483647, %v6989
      %vm7006 = vcmp.eq.f32.partialorder %v7005, 8.507059e+37
      %v7007 = vand.u32 %v6989, 2147483648
      %v7008 = vor.u32 1.1754944e-38, %v7007
      %v7009 = vsel %vm7006, %v7008, %v7004
      %v7010 = vmul.f32 %v6981, %v7009
      %v7011 = vrcp.pop %v6994
      %v7012 = vmul.f32 %v6994, %v7011
      %v7013 = vsub.f32 1.0, %v7012
      %v7014 = vmul.f32 %v7011, %v7013
      %v7015 = vadd.f32 %v7011, %v7014
      %vm7016 = vweird.f32 %v6994
      %vm7017 = vweird.f32 %v7011
      %vm7018 = vmor %vm7016, %vm7017
      %v7019 = vsel %vm7018, %v7011, %v7015
      %v7020 = vand.u32 2147483647, %v6994
      %vm7021 = vcmp.eq.f32.partialorder %v7020, 8.507059e+37
      %v7022 = vand.u32 %v6994, 2147483648
      %v7023 = vor.u32 1.1754944e-38, %v7022
      %v7024 = vsel %vm7021, %v7023, %v7019
      %v7025 = vmul.f32 %v6984, %v7024
      %7026 = vset.pattern.permute.xlu0 26
      %7027 = vperm.xlu0 %7026, %v5434
      %v7028 = vpop.permute.xlu0 %7027
      %7030 = vset.pattern.permute.xlu0 26
      %7031 = vperm.xlu0 %7030, %v5437
      %v7032 = vpop.permute.xlu0 %7031
      %v7034 = vperm.slane %v5546, 2
      %v7035 = vmul.f32 %v7028, %v7034
      %v7036 = vmul.f32 %v7032, %v7034
      %7037 = vset.pattern.permute.xlu0 27
      %7038 = vperm.xlu0 %7037, %v5434
      %v7039 = vpop.permute.xlu0 %7038
      %7041 = vset.pattern.permute.xlu0 27
      %7042 = vperm.xlu0 %7041, %v5437
      %v7043 = vpop.permute.xlu0 %7042
      %v7045 = vperm.slane %v5546, 3
      %v7046 = vmul.f32 %v7039, %v7045
      %v7047 = vmul.f32 %v7043, %v7045
      %v7048 = vadd.f32 %v7035, %v7046
      %v7049 = vadd.f32 %v7036, %v7047
      %v7050 = vmul.f32 %v7048, 0.70710677
      %v7051 = vmul.f32 %v7049, 0.70710677
      %v7052 = vsel %vm2512, %v7050, -inf
      %7053 = vmax.xlane.f32.xlu0 %v7052
      %v7054 = vpop.xlane.xlu0 %7053
      %v7055 = vsel %vm2512, %v7051, -inf
      %7056 = vmax.xlane.f32.xlu0 %v7055
      %v7057 = vpop.xlane.xlu0 %7056
      %v7058 = vsub.f32 %v7050, %v7054
      %v7059 = vsub.f32 %v7051, %v7057
      %v7060 = vmul.f32 %v7058, 1.442695
      %v7061 = vpow.pop %v7060
      %v7062 = vmul.f32 %v7059, 1.442695
      %v7063 = vpow.pop %v7062
      %v7065 = vrot.slane %v5558, 2
      %v7067 = vsel %vm604, %v7065, 1.0
      %v7069 = vsel %vm2512, %v7061, 0
      %v7072 = vsel %vm2512, %v7063, 0
      %v7075 = vsel %vm2512, %v7067, 0
      %7077 = vmatpush.xpose.msra.mxu0 0.0
      %7078 = vmatpush.xpose.msra.mxu0 0.0
      %7079 = vmatpush.xpose.msra.mxu0 0.0
      %7080 = vmatpush.xpose.msra.mxu0 0.0
      %7081 = vmatpush.xpose.msra.mxu0 0.0
      %7082 = vmatpush.xpose.msra.mxu0 0.0
      %7083 = vmatpush.xpose.msra.mxu0 0.0
      %7084 = vmatpush.xpose.msra.mxu0 0.0
      %7085 = vmatpush.xpose.msra.mxu0 0.0
      %7086 = vmatpush.xpose.msra.mxu0 0.0
      %7087 = vmatpush.xpose.msra.mxu0 0.0
      %7088 = vmatpush.xpose.msra.mxu0 0.0
      %7089 = vmatpush.xpose.msra.mxu0 0.0
      %7090 = vmatpush.xpose.msra.mxu0 0.0
      %7091 = vmatpush.xpose.msra.mxu0 0.0
      %7092 = vmatpush.xpose.msra.mxu0 %v7075
      %7093 = vmatmul.f32.gmra.mxu0 %v7069
      %v7094 = vpop.f32.mrf.mxu0
      %v7095 = vadd.f32 0.0, %v7094
      %7096 = vmatmul.f32.gmra.mxu0 %v7072
      %v7097 = vpop.f32.mrf.mxu0
      %v7098 = vadd.f32 0.0, %v7097
      %7099 = vdwg.mxu0
      %7101 = vset.pattern.permute.xlu0 2
      %7102 = vperm.xlu0 %7101, %v7095
      %v7103 = vpop.permute.xlu0 %7102
      %7106 = vset.pattern.permute.xlu0 2
      %7107 = vperm.xlu0 %7106, %v7098
      %v7108 = vpop.permute.xlu0 %7107
      %v7110 = vrcp.pop %v7103
      %v7111 = vmul.f32 %v7103, %v7110
      %v7112 = vsub.f32 1.0, %v7111
      %v7113 = vmul.f32 %v7110, %v7112
      %v7114 = vadd.f32 %v7110, %v7113
      %vm7115 = vweird.f32 %v7103
      %vm7116 = vweird.f32 %v7110
      %vm7117 = vmor %vm7115, %vm7116
      %v7118 = vsel %vm7117, %v7110, %v7114
      %v7119 = vand.u32 2147483647, %v7103
      %vm7120 = vcmp.eq.f32.partialorder %v7119, 8.507059e+37
      %v7121 = vand.u32 %v7103, 2147483648
      %v7122 = vor.u32 1.1754944e-38, %v7121
      %v7123 = vsel %vm7120, %v7122, %v7118
      %v7124 = vmul.f32 %v7095, %v7123
      %v7125 = vrcp.pop %v7108
      %v7126 = vmul.f32 %v7108, %v7125
      %v7127 = vsub.f32 1.0, %v7126
      %v7128 = vmul.f32 %v7125, %v7127
      %v7129 = vadd.f32 %v7125, %v7128
      %vm7130 = vweird.f32 %v7108
      %vm7131 = vweird.f32 %v7125
      %vm7132 = vmor %vm7130, %vm7131
      %v7133 = vsel %vm7132, %v7125, %v7129
      %v7134 = vand.u32 2147483647, %v7108
      %vm7135 = vcmp.eq.f32.partialorder %v7134, 8.507059e+37
      %v7136 = vand.u32 %v7108, 2147483648
      %v7137 = vor.u32 1.1754944e-38, %v7136
      %v7138 = vsel %vm7135, %v7137, %v7133
      %v7139 = vmul.f32 %v7098, %v7138
      %7140 = vset.pattern.permute.xlu0 28
      %7141 = vperm.xlu0 %7140, %v5434
      %v7142 = vpop.permute.xlu0 %7141
      %7144 = vset.pattern.permute.xlu0 28
      %7145 = vperm.xlu0 %7144, %v5437
      %v7146 = vpop.permute.xlu0 %7145
      %v7148 = vperm.slane %v5546, 4
      %v7149 = vmul.f32 %v7142, %v7148
      %v7150 = vmul.f32 %v7146, %v7148
      %7151 = vset.pattern.permute.xlu0 29
      %7152 = vperm.xlu0 %7151, %v5434
      %v7153 = vpop.permute.xlu0 %7152
      %7155 = vset.pattern.permute.xlu0 29
      %7156 = vperm.xlu0 %7155, %v5437
      %v7157 = vpop.permute.xlu0 %7156
      %v7159 = vperm.slane %v5546, 5
      %v7160 = vmul.f32 %v7153, %v7159
      %v7161 = vmul.f32 %v7157, %v7159
      %v7162 = vadd.f32 %v7149, %v7160
      %v7163 = vadd.f32 %v7150, %v7161
      %v7164 = vmul.f32 %v7162, 0.70710677
      %v7165 = vmul.f32 %v7163, 0.70710677
      %v7166 = vsel %vm2512, %v7164, -inf
      %7167 = vmax.xlane.f32.xlu0 %v7166
      %v7168 = vpop.xlane.xlu0 %7167
      %v7169 = vsel %vm2512, %v7165, -inf
      %7170 = vmax.xlane.f32.xlu0 %v7169
      %v7171 = vpop.xlane.xlu0 %7170
      %v7172 = vsub.f32 %v7164, %v7168
      %v7173 = vsub.f32 %v7165, %v7171
      %v7174 = vmul.f32 %v7172, 1.442695
      %v7175 = vpow.pop %v7174
      %v7176 = vmul.f32 %v7173, 1.442695
      %v7177 = vpow.pop %v7176
      %v7178 = vrot.slane %v5558, 4
      %v7180 = vsel %vm604, %v7178, 1.0
      %v7182 = vsel %vm2512, %v7175, 0
      %v7185 = vsel %vm2512, %v7177, 0
      %v7188 = vsel %vm2512, %v7180, 0
      %7190 = vmatpush.xpose.msra.mxu0 0.0
      %7191 = vmatpush.xpose.msra.mxu0 0.0
      %7192 = vmatpush.xpose.msra.mxu0 0.0
      %7193 = vmatpush.xpose.msra.mxu0 0.0
      %7194 = vmatpush.xpose.msra.mxu0 0.0
      %7195 = vmatpush.xpose.msra.mxu0 0.0
      %7196 = vmatpush.xpose.msra.mxu0 0.0
      %7197 = vmatpush.xpose.msra.mxu0 0.0
      %7198 = vmatpush.xpose.msra.mxu0 0.0
      %7199 = vmatpush.xpose.msra.mxu0 0.0
      %7200 = vmatpush.xpose.msra.mxu0 0.0
      %7201 = vmatpush.xpose.msra.mxu0 0.0
      %7202 = vmatpush.xpose.msra.mxu0 0.0
      %7203 = vmatpush.xpose.msra.mxu0 0.0
      %7204 = vmatpush.xpose.msra.mxu0 0.0
      %7205 = vmatpush.xpose.msra.mxu0 %v7188
      %7206 = vmatmul.f32.gmra.mxu0 %v7182
      %v7207 = vpop.f32.mrf.mxu0
      %v7208 = vadd.f32 0.0, %v7207
      %7209 = vmatmul.f32.gmra.mxu0 %v7185
      %v7210 = vpop.f32.mrf.mxu0
      %v7211 = vadd.f32 0.0, %v7210
      %7212 = vdwg.mxu0
      %7214 = vset.pattern.permute.xlu0 2
      %7215 = vperm.xlu0 %7214, %v7208
      %v7216 = vpop.permute.xlu0 %7215
      %7219 = vset.pattern.permute.xlu0 2
      %7220 = vperm.xlu0 %7219, %v7211
      %v7221 = vpop.permute.xlu0 %7220
      %v7223 = vrcp.pop %v7216
      %v7224 = vmul.f32 %v7216, %v7223
      %v7225 = vsub.f32 1.0, %v7224
      %v7226 = vmul.f32 %v7223, %v7225
      %v7227 = vadd.f32 %v7223, %v7226
      %vm7228 = vweird.f32 %v7216
      %vm7229 = vweird.f32 %v7223
      %vm7230 = vmor %vm7228, %vm7229
      %v7231 = vsel %vm7230, %v7223, %v7227
      %v7232 = vand.u32 2147483647, %v7216
      %vm7233 = vcmp.eq.f32.partialorder %v7232, 8.507059e+37
      %v7234 = vand.u32 %v7216, 2147483648
      %v7235 = vor.u32 1.1754944e-38, %v7234
      %v7236 = vsel %vm7233, %v7235, %v7231
      %v7237 = vmul.f32 %v7208, %v7236
      %v7238 = vrcp.pop %v7221
      %v7239 = vmul.f32 %v7221, %v7238
      %v7240 = vsub.f32 1.0, %v7239
      %v7241 = vmul.f32 %v7238, %v7240
      %v7242 = vadd.f32 %v7238, %v7241
      %vm7243 = vweird.f32 %v7221
      %vm7244 = vweird.f32 %v7238
      %vm7245 = vmor %vm7243, %vm7244
      %v7246 = vsel %vm7245, %v7238, %v7242
      %v7247 = vand.u32 2147483647, %v7221
      %vm7248 = vcmp.eq.f32.partialorder %v7247, 8.507059e+37
      %v7249 = vand.u32 %v7221, 2147483648
      %v7250 = vor.u32 1.1754944e-38, %v7249
      %v7251 = vsel %vm7248, %v7250, %v7246
      %v7252 = vmul.f32 %v7211, %v7251
      %7253 = vset.pattern.permute.xlu0 30
      %7254 = vperm.xlu0 %7253, %v5434
      %v7255 = vpop.permute.xlu0 %7254
      %7257 = vset.pattern.permute.xlu0 30
      %7258 = vperm.xlu0 %7257, %v5437
      %v7259 = vpop.permute.xlu0 %7258
      %v7261 = vperm.slane %v5546, 6
      %v7262 = vmul.f32 %v7255, %v7261
      %v7263 = vmul.f32 %v7259, %v7261
      %7264 = vset.pattern.permute.xlu0 31
      %7265 = vperm.xlu0 %7264, %v5434
      %v7266 = vpop.permute.xlu0 %7265
      %7268 = vset.pattern.permute.xlu0 31
      %7269 = vperm.xlu0 %7268, %v5437
      %v7270 = vpop.permute.xlu0 %7269
      %v7272 = vperm.slane %v5546, 7
      %v7273 = vmul.f32 %v7266, %v7272
      %v7274 = vmul.f32 %v7270, %v7272
      %v7275 = vadd.f32 %v7262, %v7273
      %v7276 = vadd.f32 %v7263, %v7274
      %v7277 = vmul.f32 %v7275, 0.70710677
      %v7278 = vmul.f32 %v7276, 0.70710677
      %v7279 = vsel %vm2512, %v7277, -inf
      %7280 = vmax.xlane.f32.xlu0 %v7279
      %v7281 = vpop.xlane.xlu0 %7280
      %v7282 = vsel %vm2512, %v7278, -inf
      %7283 = vmax.xlane.f32.xlu0 %v7282
      %v7284 = vpop.xlane.xlu0 %7283
      %v7285 = vsub.f32 %v7277, %v7281
      %v7286 = vsub.f32 %v7278, %v7284
      %v7287 = vmul.f32 %v7285, 1.442695
      %v7288 = vpow.pop %v7287
      %v7289 = vmul.f32 %v7286, 1.442695
      %v7290 = vpow.pop %v7289
      %v7291 = vrot.slane %v5558, 6
      %v7293 = vsel %vm604, %v7291, 1.0
      %v7295 = vsel %vm2512, %v7288, 0
      %v7298 = vsel %vm2512, %v7290, 0
      %v7301 = vsel %vm2512, %v7293, 0
      %7303 = vmatpush.xpose.msra.mxu0 0.0
      %7304 = vmatpush.xpose.msra.mxu0 0.0
      %7305 = vmatpush.xpose.msra.mxu0 0.0
      %7306 = vmatpush.xpose.msra.mxu0 0.0
      %7307 = vmatpush.xpose.msra.mxu0 0.0
      %7308 = vmatpush.xpose.msra.mxu0 0.0
      %7309 = vmatpush.xpose.msra.mxu0 0.0
      %7310 = vmatpush.xpose.msra.mxu0 0.0
      %7311 = vmatpush.xpose.msra.mxu0 0.0
      %7312 = vmatpush.xpose.msra.mxu0 0.0
      %7313 = vmatpush.xpose.msra.mxu0 0.0
      %7314 = vmatpush.xpose.msra.mxu0 0.0
      %7315 = vmatpush.xpose.msra.mxu0 0.0
      %7316 = vmatpush.xpose.msra.mxu0 0.0
      %7317 = vmatpush.xpose.msra.mxu0 0.0
      %7318 = vmatpush.xpose.msra.mxu0 %v7301
      %7319 = vmatmul.f32.gmra.mxu0 %v7295
      %v7320 = vpop.f32.mrf.mxu0
      %v7321 = vadd.f32 0.0, %v7320
      %7322 = vmatmul.f32.gmra.mxu0 %v7298
      %v7323 = vpop.f32.mrf.mxu0
      %v7324 = vadd.f32 0.0, %v7323
      %7325 = vdwg.mxu0
      %7327 = vset.pattern.permute.xlu0 2
      %7328 = vperm.xlu0 %7327, %v7321
      %v7329 = vpop.permute.xlu0 %7328
      %7332 = vset.pattern.permute.xlu0 2
      %7333 = vperm.xlu0 %7332, %v7324
      %v7334 = vpop.permute.xlu0 %7333
      %v7336 = vrcp.pop %v7329
      %v7337 = vmul.f32 %v7329, %v7336
      %v7338 = vsub.f32 1.0, %v7337
      %v7339 = vmul.f32 %v7336, %v7338
      %v7340 = vadd.f32 %v7336, %v7339
      %vm7341 = vweird.f32 %v7329
      %vm7342 = vweird.f32 %v7336
      %vm7343 = vmor %vm7341, %vm7342
      %v7344 = vsel %vm7343, %v7336, %v7340
      %v7345 = vand.u32 2147483647, %v7329
      %vm7346 = vcmp.eq.f32.partialorder %v7345, 8.507059e+37
      %v7347 = vand.u32 %v7329, 2147483648
      %v7348 = vor.u32 1.1754944e-38, %v7347
      %v7349 = vsel %vm7346, %v7348, %v7344
      %v7350 = vmul.f32 %v7321, %v7349
      %v7351 = vrcp.pop %v7334
      %v7352 = vmul.f32 %v7334, %v7351
      %v7353 = vsub.f32 1.0, %v7352
      %v7354 = vmul.f32 %v7351, %v7353
      %v7355 = vadd.f32 %v7351, %v7354
      %vm7356 = vweird.f32 %v7334
      %vm7357 = vweird.f32 %v7351
      %vm7358 = vmor %vm7356, %vm7357
      %v7359 = vsel %vm7358, %v7351, %v7355
      %v7360 = vand.u32 2147483647, %v7334
      %vm7361 = vcmp.eq.f32.partialorder %v7360, 8.507059e+37
      %v7362 = vand.u32 %v7334, 2147483648
      %v7363 = vor.u32 1.1754944e-38, %v7362
      %v7364 = vsel %vm7361, %v7363, %v7359
      %v7365 = vmul.f32 %v7324, %v7364
      %7368 = vrot.lane.b32.xlu0 %v5771, 2
      %v7369 = vpop.permute.xlu0 %7368
      %7370 = vrot.lane.b32.xlu0 %v5786, 2
      %v7371 = vpop.permute.xlu0 %7370
      %7376 = vrot.lane.b32.xlu0 %v5884, 4
      %v7377 = vpop.permute.xlu0 %7376
      %7378 = vrot.lane.b32.xlu0 %v5899, 4
      %v7379 = vpop.permute.xlu0 %7378
      %7384 = vrot.lane.b32.xlu0 %v5997, 6
      %v7385 = vpop.permute.xlu0 %7384
      %7386 = vrot.lane.b32.xlu0 %v6012, 6
      %v7387 = vpop.permute.xlu0 %7386
      %7392 = vrot.lane.b32.xlu0 %v6108, 8
      %v7393 = vpop.permute.xlu0 %7392
      %7394 = vrot.lane.b32.xlu0 %v6123, 8
      %v7395 = vpop.permute.xlu0 %7394
      %7400 = vrot.lane.b32.xlu0 %v6222, 10
      %v7401 = vpop.permute.xlu0 %7400
      %7402 = vrot.lane.b32.xlu0 %v6237, 10
      %v7403 = vpop.permute.xlu0 %7402
      %7408 = vrot.lane.b32.xlu0 %v6335, 12
      %v7409 = vpop.permute.xlu0 %7408
      %7410 = vrot.lane.b32.xlu0 %v6350, 12
      %v7411 = vpop.permute.xlu0 %7410
      %7416 = vrot.lane.b32.xlu0 %v6448, 14
      %v7417 = vpop.permute.xlu0 %7416
      %7418 = vrot.lane.b32.xlu0 %v6463, 14
      %v7419 = vpop.permute.xlu0 %7418
      %7424 = vrot.lane.b32.xlu0 %v6559, 16
      %v7425 = vpop.permute.xlu0 %7424
      %7426 = vrot.lane.b32.xlu0 %v6574, 16
      %v7427 = vpop.permute.xlu0 %7426
      %7432 = vrot.lane.b32.xlu0 %v6673, 18
      %v7433 = vpop.permute.xlu0 %7432
      %7434 = vrot.lane.b32.xlu0 %v6688, 18
      %v7435 = vpop.permute.xlu0 %7434
      %7440 = vrot.lane.b32.xlu0 %v6786, 20
      %v7441 = vpop.permute.xlu0 %7440
      %7442 = vrot.lane.b32.xlu0 %v6801, 20
      %v7443 = vpop.permute.xlu0 %7442
      %7448 = vrot.lane.b32.xlu0 %v6899, 22
      %v7449 = vpop.permute.xlu0 %7448
      %7450 = vrot.lane.b32.xlu0 %v6914, 22
      %v7451 = vpop.permute.xlu0 %7450
      %7456 = vrot.lane.b32.xlu0 %v7010, 24
      %v7457 = vpop.permute.xlu0 %7456
      %7458 = vrot.lane.b32.xlu0 %v7025, 24
      %v7459 = vpop.permute.xlu0 %7458
      %7464 = vrot.lane.b32.xlu0 %v7124, 26
      %v7465 = vpop.permute.xlu0 %7464
      %7466 = vrot.lane.b32.xlu0 %v7139, 26
      %v7467 = vpop.permute.xlu0 %7466
      %7472 = vrot.lane.b32.xlu0 %v7237, 28
      %v7473 = vpop.permute.xlu0 %7472
      %7474 = vrot.lane.b32.xlu0 %v7252, 28
      %v7475 = vpop.permute.xlu0 %7474
      %7480 = vrot.lane.b32.xlu0 %v7350, 30
      %v7481 = vpop.permute.xlu0 %7480
      %7482 = vrot.lane.b32.xlu0 %v7365, 30
      %v7483 = vpop.permute.xlu0 %7482
      %v7486 = vsel %vm2491, %v5657, %v7369
      %v7487 = vsel %vm2491, %v5672, %v7371
      %v7488 = vsel %vm2494, %v7486, %v7377
      %v7489 = vsel %vm2494, %v7487, %v7379
      %v7490 = vsel %vm2497, %v7488, %v7385
      %v7491 = vsel %vm2497, %v7489, %v7387
      %v7492 = vsel %vm2500, %v7490, %v7393
      %v7493 = vsel %vm2500, %v7491, %v7395
      %v7494 = vsel %vm2503, %v7492, %v7401
      %v7495 = vsel %vm2503, %v7493, %v7403
      %v7496 = vsel %vm2506, %v7494, %v7409
      %v7497 = vsel %vm2506, %v7495, %v7411
      %v7498 = vsel %vm2509, %v7496, %v7417
      %v7499 = vsel %vm2509, %v7497, %v7419
      %v7500 = vsel %vm2512, %v7498, %v7425
      %v7501 = vsel %vm2512, %v7499, %v7427
      %v7502 = vsel %vm2515, %v7500, %v7433
      %v7503 = vsel %vm2515, %v7501, %v7435
      %v7504 = vsel %vm2518, %v7502, %v7441
      %v7505 = vsel %vm2518, %v7503, %v7443
      %v7506 = vsel %vm2521, %v7504, %v7449
      %v7507 = vsel %vm2521, %v7505, %v7451
      %v7508 = vsel %vm2524, %v7506, %v7457
      %v7509 = vsel %vm2524, %v7507, %v7459
      %v7510 = vsel %vm2527, %v7508, %v7465
      %v7511 = vsel %vm2527, %v7509, %v7467
      %v7512 = vsel %vm2530, %v7510, %v7473
      %v7513 = vsel %vm2530, %v7511, %v7475
      %v7514 = vsel %vm2533, %v7512, %v7481
      %v7515 = vsel %vm2533, %v7513, %v7483
      %v7516 = vld [vmem:[%s3 + $0x5c0] sm:$0xff]
      %v7517 = vld [vmem:[%s3 + $0x5c8] sm:$0xff]
      %v7518 = vld [vmem:[%s3 + $0x5d0] sm:$0xff]
      %v7519 = vld [vmem:[%s3 + $0x5d8] sm:$0xff]
      %v7520 = vld [vmem:[%s3 + $0x5e0] sm:$0x1]
      %v7521 = vperm.slane %v7520, 0
      %v7523 = vsel %vm317, %v7514, 0
      %v7526 = vsel %vm317, %v7515, 0
      %7528 = vmatpush.msra.mxu0 0.0
      %7529 = vmatpush.msra.mxu0 0.0
      %7530 = vmatpush.msra.mxu0 0.0
      %7531 = vmatpush.msra.mxu0 0.0
      %7532 = vmatpush.msra.mxu0 0.0
      %7533 = vmatpush.msra.mxu0 0.0
      %7534 = vmatpush.msra.mxu0 0.0
      %7535 = vmatpush.msra.mxu0 0.0
      %7536 = vmatpush.msra.mxu0 0.0
      %7537 = vmatpush.msra.mxu0 0.0
      %7538 = vmatpush.msra.mxu0 0.0
      %7539 = vmatpush.msra.mxu0 0.0
      %7540 = vmatpush.msra.mxu0 %v7519
      %7541 = vmatpush.msra.mxu0 %v7518
      %7542 = vmatpush.msra.mxu0 %v7517
      %7543 = vmatpush.msra.mxu0 %v7516
      %7544 = vmatmul.f32.gmra.mxu0 %v7523
      %v7545 = vpop.f32.mrf.mxu0
      %v7546 = vadd.f32 %v7521, %v7545
      %7547 = vmatmul.f32.gmra.mxu0 %v7526
      %v7548 = vpop.f32.mrf.mxu0
      %v7549 = vadd.f32 %v7521, %v7548
      %7550 = vdwg.mxu0
      %v7551 = vmul.f32 %v5265, %v7546
      %v7552 = vmul.f32 %v5268, %v7549
      %v7553 = vadd.f32 %v5183, %v7551
      %v7554 = vadd.f32 %v5184, %v7552
      %v7555 = vsel %vm317, %v7553, 0.0
      %7556 = vadd.xlane.f32.xlu0 %v7555
      %v7557 = vpop.xlane.xlu0 %7556
      %v7558 = vsel %vm317, %v7554, 0.0
      %7559 = vadd.xlane.f32.xlu0 %v7558
      %v7560 = vpop.xlane.xlu0 %7559
      %v7561 = vmul.f32 %v7557, %v2841
      %v7562 = vmul.f32 %v7560, %v2841
      %v7563 = vsub.f32 %v7553, %v7561
      %v7564 = vsub.f32 %v7554, %v7562
      %v7565 = vmul.f32 %v7563, %v7563
      %v7566 = vmul.f32 %v7564, %v7564
      %v7567 = vsel %vm317, %v7565, 0.0
      %7568 = vadd.xlane.f32.xlu0 %v7567
      %v7569 = vpop.xlane.xlu0 %7568
      %v7570 = vsel %vm317, %v7566, 0.0
      %7571 = vadd.xlane.f32.xlu0 %v7570
      %v7572 = vpop.xlane.xlu0 %7571
      %v7573 = vmul.f32 %v7569, %v2841
      %v7574 = vmul.f32 %v7572, %v2841
      %v7575 = vadd.f32 %v7573, 1e-06
      %v7576 = vadd.f32 %v7574, 1e-06
      %v7577 = vrsqrt.pop %v7575
      %v7578 = vmul.f32 %v7577, %v7575
      %v7579 = vmul.f32 %v7578, %v7577
      %v7580 = vmul.f32 0.5, %v7579
      %v7581 = vsub.f32 1.5, %v7580
      %v7582 = vmul.f32 %v7577, %v7581
      %vm7583 = vweird.f32 %v7575
      %vm7584 = vweird.f32 %v7577
      %vm7585 = vmor %vm7583, %vm7584
      %v7586 = vsel %vm7585, %v7577, %v7582
      %v7587 = vrsqrt.pop %v7576
      %v7588 = vmul.f32 %v7587, %v7576
      %v7589 = vmul.f32 %v7588, %v7587
      %v7590 = vmul.f32 0.5, %v7589
      %v7591 = vsub.f32 1.5, %v7590
      %v7592 = vmul.f32 %v7587, %v7591
      %vm7593 = vweird.f32 %v7576
      %vm7594 = vweird.f32 %v7587
      %vm7595 = vmor %vm7593, %vm7594
      %v7596 = vsel %vm7595, %v7587, %v7592
      %v7597 = vmul.f32 %v7563, %v7586
      %v7598 = vmul.f32 %v7564, %v7596
      %v7599 = vadd.f32 %v5321, 1.0
      %v7600 = vadd.f32 %v5324, 1.0
      %v7601 = vmul.f32 %v7597, %v7599
      %v7602 = vmul.f32 %v7598, %v7600
      %v7603 = vadd.f32 %v7601, %v5293
      %v7604 = vadd.f32 %v7602, %v5296
      %v7605 = vld [vmem:[%s3 + $0x5e8] sm:$0xff]
      %v7606 = vld [vmem:[%s3 + $0x5f0] sm:$0xff]
      %v7607 = vld [vmem:[%s3 + $0x5f8] sm:$0xff]
      %v7608 = vld [vmem:[%s3 + $0x600] sm:$0xff]
      %v7609 = vld [vmem:[%s3 + $0x608] sm:$0x1]
      %v7610 = vperm.slane %v7609, 0
      %v7612 = vsel %vm317, %v7603, 0
      %v7615 = vsel %vm317, %v7604, 0
      %7617 = vmatpush.msra.mxu0 0.0
      %7618 = vmatpush.msra.mxu0 0.0
      %7619 = vmatpush.msra.mxu0 0.0
      %7620 = vmatpush.msra.mxu0 0.0
      %7621 = vmatpush.msra.mxu0 0.0
      %7622 = vmatpush.msra.mxu0 0.0
      %7623 = vmatpush.msra.mxu0 0.0
      %7624 = vmatpush.msra.mxu0 0.0
      %7625 = vmatpush.msra.mxu0 0.0
      %7626 = vmatpush.msra.mxu0 0.0
      %7627 = vmatpush.msra.mxu0 0.0
      %7628 = vmatpush.msra.mxu0 0.0
      %7629 = vmatpush.msra.mxu0 %v7608
      %7630 = vmatpush.msra.mxu0 %v7607
      %7631 = vmatpush.msra.mxu0 %v7606
      %7632 = vmatpush.msra.mxu0 %v7605
      %7633 = vmatmul.f32.gmra.mxu0 %v7612
      %v7634 = vpop.f32.mrf.mxu0
      %v7635 = vadd.f32 %v7610, %v7634
      %7636 = vmatmul.f32.gmra.mxu0 %v7615
      %v7637 = vpop.f32.mrf.mxu0
      %v7638 = vadd.f32 %v7610, %v7637
      %7639 = vdwg.mxu0
      %v7640 = vmul.f32 %v7635, 0.5
      %v7641 = vmul.f32 %v7638, 0.5
      %v7642 = vmul.f32 %v7635, 0.044715
      %v7643 = vmul.f32 %v7638, 0.044715
      %v7644 = vmul.f32 %v7642, %v7635
      %v7645 = vmul.f32 %v7643, %v7638
      %v7646 = vmul.f32 %v7644, %v7635
      %v7647 = vmul.f32 %v7645, %v7638
      %v7648 = vadd.f32 %v7635, %v7646
      %v7649 = vadd.f32 %v7638, %v7647
      %v7650 = vmul.f32 %v7648, 0.7978846
      %v7651 = vmul.f32 %v7649, 0.7978846
      %v7652 = vtanh.pop %v7650
      %v7653 = vtanh.pop %v7651
      %v7654 = vadd.f32 %v7652, 1.0
      %v7655 = vadd.f32 %v7653, 1.0
      %v7656 = vmul.f32 %v7640, %v7654
      %v7657 = vmul.f32 %v7641, %v7655
      %v7658 = vld [vmem:[%s3 + $0x610] sm:$0xff]
      %v7659 = vld [vmem:[%s3 + $0x618] sm:$0xff]
      %v7660 = vld [vmem:[%s3 + $0x620] sm:$0xff]
      %v7661 = vld [vmem:[%s3 + $0x628] sm:$0xff]
      %v7662 = vld [vmem:[%s3 + $0x630] sm:$0xff]
      %v7663 = vld [vmem:[%s3 + $0x638] sm:$0xff]
      %v7664 = vld [vmem:[%s3 + $0x640] sm:$0xff]
      %v7665 = vld [vmem:[%s3 + $0x648] sm:$0xff]
      %v7666 = vld [vmem:[%s3 + $0x650] sm:$0xff]
      %v7667 = vld [vmem:[%s3 + $0x658] sm:$0xff]
      %v7668 = vld [vmem:[%s3 + $0x660] sm:$0xff]
      %v7669 = vld [vmem:[%s3 + $0x668] sm:$0xff]
      %v7670 = vld [vmem:[%s3 + $0x670] sm:$0xff]
      %v7671 = vld [vmem:[%s3 + $0x678] sm:$0xff]
      %v7672 = vld [vmem:[%s3 + $0x680] sm:$0xff]
      %v7673 = vld [vmem:[%s3 + $0x688] sm:$0xff]
      %v7674 = vld [vmem:[%s3 + $0x690] sm:$0x1]
      %v7675 = vperm.slane %v7674, 0
      %7676 = vmatpush.msra.mxu0 %v7673
      %7677 = vmatpush.msra.mxu0 %v7672
      %7678 = vmatpush.msra.mxu0 %v7671
      %7679 = vmatpush.msra.mxu0 %v7670
      %7680 = vmatpush.msra.mxu0 %v7669
      %7681 = vmatpush.msra.mxu0 %v7668
      %7682 = vmatpush.msra.mxu0 %v7667
      %7683 = vmatpush.msra.mxu0 %v7666
      %7684 = vmatpush.msra.mxu0 %v7665
      %7685 = vmatpush.msra.mxu0 %v7664
      %7686 = vmatpush.msra.mxu0 %v7663
      %7687 = vmatpush.msra.mxu0 %v7662
      %7688 = vmatpush.msra.mxu0 %v7661
      %7689 = vmatpush.msra.mxu0 %v7660
      %7690 = vmatpush.msra.mxu0 %v7659
      %7691 = vmatpush.msra.mxu0 %v7658
      %7692 = vmatmul.f32.gmra.mxu0 %v7656
      %v7693 = vpop.f32.mrf.mxu0
      %v7694 = vadd.f32 %v7675, %v7693
      %7695 = vmatmul.f32.gmra.mxu0 %v7657
      %v7696 = vpop.f32.mrf.mxu0
      %v7697 = vadd.f32 %v7675, %v7696
      %7698 = vdwg.mxu0
      %v7699 = vmul.f32 %v5349, %v7694
      %v7700 = vmul.f32 %v5352, %v7697
      %v7701 = vadd.f32 %v7553, %v7699
      %v7702 = vadd.f32 %v7554, %v7700
      %v7703 = vld [vmem:[%s3 + $0x6d8] sm:$0x3]
      %v7704 = vld [vmem:[%s3 + $0x698] sm:$0xff]
      %v7705 = vld [vmem:[%s3 + $0x6a0] sm:$0xff]
      %v7706 = vld [vmem:[%s3 + $0x6a8] sm:$0xff]
      %v7707 = vld [vmem:[%s3 + $0x6b0] sm:$0xff]
      %v7708 = vperm.slane %v7703, 0
      %7709 = vmatpush.msra.mxu0 0.0
      %7710 = vmatpush.msra.mxu0 0.0
      %7711 = vmatpush.msra.mxu0 0.0
      %7712 = vmatpush.msra.mxu0 0.0
      %7713 = vmatpush.msra.mxu0 0.0
      %7714 = vmatpush.msra.mxu0 0.0
      %7715 = vmatpush.msra.mxu0 0.0
      %7716 = vmatpush.msra.mxu0 0.0
      %7717 = vmatpush.msra.mxu0 0.0
      %7718 = vmatpush.msra.mxu0 0.0
      %7719 = vmatpush.msra.mxu0 0.0
      %7720 = vmatpush.msra.mxu0 0.0
      %7721 = vmatpush.msra.mxu0 %v7707
      %7722 = vmatpush.msra.mxu0 %v7706
      %7723 = vmatpush.msra.mxu0 %v7705
      %7724 = vmatpush.msra.mxu0 %v7704
      %7725 = vmatmul.f32.gmra.mxu0 %v2661
      %v7726 = vpop.f32.mrf.mxu0
      %v7727 = vadd.f32 %v7708, %v7726
      %7728 = vmatmul.f32.gmra.mxu0 %v2664
      %v7729 = vpop.f32.mrf.mxu0
      %v7730 = vadd.f32 %v7708, %v7729
      %7731 = vdwg.mxu0
      %v7732 = vld [vmem:[%s3 + $0x6b8] sm:$0xff]
      %v7733 = vld [vmem:[%s3 + $0x6c0] sm:$0xff]
      %v7734 = vld [vmem:[%s3 + $0x6c8] sm:$0xff]
      %v7735 = vld [vmem:[%s3 + $0x6d0] sm:$0xff]
      %v7736 = vperm.slane %v7703, 1
      %7737 = vmatpush.msra.mxu0 0.0
      %7738 = vmatpush.msra.mxu0 0.0
      %7739 = vmatpush.msra.mxu0 0.0
      %7740 = vmatpush.msra.mxu0 0.0
      %7741 = vmatpush.msra.mxu0 0.0
      %7742 = vmatpush.msra.mxu0 0.0
      %7743 = vmatpush.msra.mxu0 0.0
      %7744 = vmatpush.msra.mxu0 0.0
      %7745 = vmatpush.msra.mxu0 0.0
      %7746 = vmatpush.msra.mxu0 0.0
      %7747 = vmatpush.msra.mxu0 0.0
      %7748 = vmatpush.msra.mxu0 0.0
      %7749 = vmatpush.msra.mxu0 %v7735
      %7750 = vmatpush.msra.mxu0 %v7734
      %7751 = vmatpush.msra.mxu0 %v7733
      %7752 = vmatpush.msra.mxu0 %v7732
      %7753 = vmatmul.f32.gmra.mxu0 %v2661
      %v7754 = vpop.f32.mrf.mxu0
      %v7755 = vadd.f32 %v7736, %v7754
      %7756 = vmatmul.f32.gmra.mxu0 %v2664
      %v7757 = vpop.f32.mrf.mxu0
      %v7758 = vadd.f32 %v7736, %v7757
      %7759 = vdwg.mxu0
      %v7760 = vsel %vm317, %v7701, 0.0
      %7761 = vadd.xlane.f32.xlu0 %v7760
      %v7762 = vpop.xlane.xlu0 %7761
      %v7763 = vsel %vm317, %v7702, 0.0
      %7764 = vadd.xlane.f32.xlu0 %v7763
      %v7765 = vpop.xlane.xlu0 %7764
      %v7766 = vmul.f32 %v7762, %v2841
      %v7767 = vmul.f32 %v7765, %v2841
      %v7768 = vsub.f32 %v7701, %v7766
      %v7769 = vsub.f32 %v7702, %v7767
      %v7770 = vmul.f32 %v7768, %v7768
      %v7771 = vmul.f32 %v7769, %v7769
      %v7772 = vsel %vm317, %v7770, 0.0
      %7773 = vadd.xlane.f32.xlu0 %v7772
      %v7774 = vpop.xlane.xlu0 %7773
      %v7775 = vsel %vm317, %v7771, 0.0
      %7776 = vadd.xlane.f32.xlu0 %v7775
      %v7777 = vpop.xlane.xlu0 %7776
      %v7778 = vmul.f32 %v7774, %v2841
      %v7779 = vmul.f32 %v7777, %v2841
      %v7780 = vadd.f32 %v7778, 1e-06
      %v7781 = vadd.f32 %v7779, 1e-06
      %v7782 = vrsqrt.pop %v7780
      %v7783 = vmul.f32 %v7782, %v7780
      %v7784 = vmul.f32 %v7783, %v7782
      %v7785 = vmul.f32 0.5, %v7784
      %v7786 = vsub.f32 1.5, %v7785
      %v7787 = vmul.f32 %v7782, %v7786
      %vm7788 = vweird.f32 %v7780
      %vm7789 = vweird.f32 %v7782
      %vm7790 = vmor %vm7788, %vm7789
      %v7791 = vsel %vm7790, %v7782, %v7787
      %v7792 = vrsqrt.pop %v7781
      %v7793 = vmul.f32 %v7792, %v7781
      %v7794 = vmul.f32 %v7793, %v7792
      %v7795 = vmul.f32 0.5, %v7794
      %v7796 = vsub.f32 1.5, %v7795
      %v7797 = vmul.f32 %v7792, %v7796
      %vm7798 = vweird.f32 %v7781
      %vm7799 = vweird.f32 %v7792
      %vm7800 = vmor %vm7798, %vm7799
      %v7801 = vsel %vm7800, %v7792, %v7797
      %v7802 = vmul.f32 %v7768, %v7791
      %v7803 = vmul.f32 %v7769, %v7801
      %v7804 = vadd.f32 %v7755, 1.0
      %v7805 = vadd.f32 %v7758, 1.0
      %v7806 = vmul.f32 %v7802, %v7804
      %v7807 = vmul.f32 %v7803, %v7805
      %v7808 = vadd.f32 %v7806, %v7727
      %v7809 = vadd.f32 %v7807, %v7730
      %v7810 = vld [vmem:[%s3 + $0x6e0] sm:$0xf]
      %v7811 = vld [vmem:[%s3 + $0x6e8] sm:$0xf]
      %7813 = vset.pattern.permute.xlu0 0
      %7814 = vperm.xlu0 %7813, %v7811
      %v7815 = vpop.permute.xlu0 %7814
      %v7818 = vsel %vm317, %v7810, 0
      %v7821 = vsel %vm317, %v7808, 0
      %v7824 = vsel %vm317, %v7809, 0
      %7826 = vmatpush.xpose.msra.mxu0 0.0
      %7827 = vmatpush.xpose.msra.mxu0 0.0
      %7828 = vmatpush.xpose.msra.mxu0 0.0
      %7829 = vmatpush.xpose.msra.mxu0 0.0
      %7830 = vmatpush.xpose.msra.mxu0 0.0
      %7831 = vmatpush.xpose.msra.mxu0 0.0
      %7832 = vmatpush.xpose.msra.mxu0 0.0
      %7833 = vmatpush.xpose.msra.mxu0 0.0
      %7834 = vmatpush.xpose.msra.mxu0 0.0
      %7835 = vmatpush.xpose.msra.mxu0 0.0
      %7836 = vmatpush.xpose.msra.mxu0 0.0
      %7837 = vmatpush.xpose.msra.mxu0 0.0
      %7838 = vmatpush.xpose.msra.mxu0 0.0
      %7839 = vmatpush.xpose.msra.mxu0 0.0
      %7840 = vmatpush.xpose.msra.mxu0 %v7824
      %7841 = vmatpush.xpose.msra.mxu0 %v7821
      %7842 = vmatmul.f32.gmra.mxu0 %v7818
      %v7843 = vpop.f32.mrf.mxu0
      %v7844 = vadd.f32 %v7815, %v7843
      %7845 = vdwg.mxu0
      %vm7846 = vcmask 125952
      %7847 = vst.msk [vmem:[%s212] sm:$0xf] %vm7846, %v7844
      %p7848 = scmp.lt.s32.totalorder %s15, 1
      %s7849 = scalar_select %p7848, %s15, 1
      %s7850 = smul.addr %s7849, 4
      %s7851 = scalar_lea.vmem %s4, %s7850
      // Predicated region
      $region37: #{ross3d_denoiser_forward.21} parent=35 // pred_check
        %p7852 = pneg %p127
      $region38: #{ross3d_denoiser_forward.21} parent=35 // pred_check_branch
        %7854 = sbr.rel (%p7852) target = $region40
      $region39: #{ross3d_denoiser_forward.21} parent=35 // pred_region
        _
      $region40: #{ross3d_denoiser_forward.21} parent=35 // pred_fallthru
        _
    $region36: #{ross3d_denoiser_forward.21} parent=5 // pred_fallthru
      _
    %p7855 = scmp.le.s32.totalorder 2, %s10
    // Predicated region
    $region41: #{ross3d_denoiser_forward.21} parent=5 // pred_check
      %p7856 = pneg %p7855
    $region42: #{ross3d_denoiser_forward.21} parent=5 // pred_check_branch
      %7858 = sbr.rel (%p7856) target = $region44
    $region43: #{ross3d_denoiser_forward.21} parent=5 // pred_region
      %s7859 = ssub.s32 %s10, 2
      // Predicated region
      $region45: #{ross3d_denoiser_forward.21} parent=43 // pred_check
        %p7860 = pneg %p133
      $region46: #{ross3d_denoiser_forward.21} parent=43 // pred_check_branch
        %7862 = sbr.rel (%p7860) target = $region48
      $region47: #{ross3d_denoiser_forward.21} parent=43 // pred_region
        %p7863 = scmp.lt.s32.totalorder %s16, 1
        %s7864 = scalar_select %p7863, %s16, 1
        %s7865 = smul.addr %s7864, 4
        %s7866 = scalar_lea.vmem %s4, %s7865
      $region48: #{ross3d_denoiser_forward.21} parent=43 // pred_fallthru
        _
    $region44: #{ross3d_denoiser_forward.21} parent=5 // pred_fallthru
      _
  $region6: #{ross3d_denoiser_forward.21} parent=0 // loop_footer
    %s14 = sadd.s32 1, %s10
  $region7: #{ross3d_denoiser_forward.21} parent=0 // loop_footer_branch
    %9 = sbr.rel target = $region3
  $region8: #{ross3d_denoiser_forward.21} parent=0 // loop_exit
    _

</llo_original>
